<compile_context>
chip_gen: v5e
topology: v5e:2x2
jax: 0.10.0
libtpu: 0.0.40
codegen_flags: <defaults>
</compile_context>

<pallas_src>
import functools

import jax
import jax.numpy as jnp
from jax.experimental import pallas as pl
from jax.experimental.pallas import tpu as pltpu


# ----------------------------------------------------------------------------
# Static network configuration
# ----------------------------------------------------------------------------
_NUM_CONV = 8
_POOL = (False, True, False, True, False, True, False, True)
_NUM_LSTM_LAYERS = 2
_H = 20             # LSTM hidden size
_HP = 32            # per-gate / hidden lane padding (aligned 32-lane blocks)
_NG = 4             # gates [i, f, g, o]
_GW = _NG * _HP     # 128 packed gate lanes
_D0 = 2 * _H        # LSTM input size (= conv feature size = 40)


def _conv_channels(nchns):
    return ((nchns, 5), (5, 5), (5, 10), (10, 10),
            (10, 20), (20, 20), (20, 40), (40, 40))


# Row offsets inside the packed LSTM / fc weight slab (rows, 128).
_OFF_WIH0 = 0                       # 2 x (40, 128): layer-0 input proj (fwd, bwd)
_OFF_WIH1 = _OFF_WIH0 + 2 * _D0     # 4 x (32, 128): layer-1 input proj, split halves
_OFF_WHH = _OFF_WIH1 + 4 * _HP      # 4 x (32, 128): recurrent weights
_OFF_FCW = _OFF_WHH + 4 * _HP       # 2 x (32, 128): fc1 split halves (cols 0:2 real)
_LSTM_ROWS = _OFF_FCW + 2 * _HP     # 400

# Row offsets inside the packed per-channel vector slab (rows, 128).
_OFF_LBIAS = 3 * _NUM_CONV          # 4 rows of packed LSTM biases
_OFF_FCB = _OFF_LBIAS + 4           # fc1 bias row
_VEC_ROWS = _OFF_FCB + 1            # 29


# ----------------------------------------------------------------------------
# Fused whole-network kernel (one grid program per sequence)
# ----------------------------------------------------------------------------

def fused_kernel(x_ref, convw_ref, vec_ref, lstm_ref, o_ref,
                 s0f, s0b, s1f, s1b, *, bb, T, channels):
    f32 = jnp.float32
    N = bb * T
    h = x_ref[...]                                       # (N, L, Cin0), channels-last

    # --------- conv stack: 3 accumulating tap matmuls + bias + LeakyReLU + BN (+pool)
    w_off = 0
    for l, ((cin, cout), pool) in enumerate(zip(channels, _POOL)):
        Lc = h.shape[1]
        w0 = convw_ref[w_off            : w_off + cin,     :cout]   # tap x[l-1]
        w1 = convw_ref[w_off + cin      : w_off + 2 * cin, :cout]   # tap x[l]
        w2 = convw_ref[w_off + 2 * cin  : w_off + 3 * cin, :cout]   # tap x[l+1]
        w_off += 3 * cin
        bias  = vec_ref[3 * l     : 3 * l + 1, :cout]
        scale = vec_ref[3 * l + 1 : 3 * l + 2, :cout]
        shift = vec_ref[3 * l + 2 : 3 * l + 3, :cout]

        zero = jnp.zeros((N, 1, cin), f32)
        x_prev = jnp.concatenate([zero, h[:, :Lc - 1, :]], axis=1)   # x[l-1], zero pad
        x_next = jnp.concatenate([h[:, 1:, :], zero], axis=1)        # x[l+1], zero pad
        y = (jnp.dot(x_prev.reshape(N * Lc, cin), w0, preferred_element_type=f32)
             + jnp.dot(h.reshape(N * Lc, cin), w1, preferred_element_type=f32)
             + jnp.dot(x_next.reshape(N * Lc, cin), w2, preferred_element_type=f32))
        y = y + bias
        y = jnp.maximum(y, 0.01 * y)                     # LeakyReLU(0.01)
        y = y * scale + shift                            # eval-mode BN affine
        y = y.reshape(N, Lc, cout)
        if pool:                                         # max_pool1d(2) (trunc odd tail)
            Lp = (Lc // 2) * 2
            y = jnp.max(y[:, :Lp, :].reshape(N, Lp // 2, 2, cout), axis=2)
        h = y
        # drop1 / drop2: identity at inference.

    feat = jnp.mean(h, axis=1)                           # (N, 40) temporal mean

    # --------- bidirectional LSTM (interleaved fwd/bwd chains, padded gate lanes)
    def whh(idx):
        base = _OFF_WHH + idx * _HP
        return lstm_ref[base: base + _HP, :]             # (32, 128)

    def bidir_layer(xg_f, xg_b, whh_f, whh_b, out_f, out_b):
        hh_f = jnp.zeros((bb, _HP), f32); cc_f = jnp.zeros((bb, _HP), f32)
        hh_b = jnp.zeros((bb, _HP), f32); cc_b = jnp.zeros((bb, _HP), f32)
        for s in range(T):                               # fully unrolled (T small)
            t_f, t_b = s, T - 1 - s
            g_f = xg_f[:, t_f, :] + jnp.dot(hh_f, whh_f, preferred_element_type=f32)
            g_b = xg_b[:, t_b, :] + jnp.dot(hh_b, whh_b, preferred_element_type=f32)
            sig_f = jax.nn.sigmoid(g_f); tnh_f = jnp.tanh(g_f)   # 2 EUP pushes / dir
            sig_b = jax.nn.sigmoid(g_b); tnh_b = jnp.tanh(g_b)
            # gates [i | f | g | o] at 32-lane-aligned offsets 0/32/64/96
            cc_f = sig_f[:, _HP:2 * _HP] * cc_f + sig_f[:, :_HP] * tnh_f[:, 2 * _HP:3 * _HP]
            cc_b = sig_b[:, _HP:2 * _HP] * cc_b + sig_b[:, :_HP] * tnh_b[:, 2 * _HP:3 * _HP]
            hh_f = sig_f[:, 3 * _HP:] * jnp.tanh(cc_f)
            hh_b = sig_b[:, 3 * _HP:] * jnp.tanh(cc_b)
            out_f[:, t_f, :] = hh_f                      # per-step store into VMEM scratch
            out_b[:, t_b, :] = hh_b

    # layer 0: hoisted input projection (one matmul per direction over all timesteps)
    wih0_f = lstm_ref[_OFF_WIH0        : _OFF_WIH0 + _D0, :]
    wih0_b = lstm_ref[_OFF_WIH0 + _D0  : _OFF_WIH0 + 2 * _D0, :]
    b0_f = vec_ref[_OFF_LBIAS     : _OFF_LBIAS + 1, :]
    b0_b = vec_ref[_OFF_LBIAS + 1 : _OFF_LBIAS + 2, :]
    xg0_f = (jnp.dot(feat, wih0_f, preferred_element_type=f32) + b0_f).reshape(bb, T, _GW)
    xg0_b = (jnp.dot(feat, wih0_b, preferred_element_type=f32) + b0_b).reshape(bb, T, _GW)
    bidir_layer(xg0_f, xg0_b, whh(0), whh(1), s0f, s0b)

    # layer 1: two summed matmuls (fwd-half + bwd-half) — no lane concat
    sf = s0f[...].reshape(N, _HP)
    sb = s0b[...].reshape(N, _HP)

    def proj1(d):
        base = _OFF_WIH1 + 2 * d * _HP
        w_fh = lstm_ref[base        : base + _HP, :]
        w_bh = lstm_ref[base + _HP  : base + 2 * _HP, :]
        b1 = vec_ref[_OFF_LBIAS + 2 + d : _OFF_LBIAS + 3 + d, :]
        return (jnp.dot(sf, w_fh, preferred_element_type=f32)
                + jnp.dot(sb, w_bh, preferred_element_type=f32)
                + b1).reshape(bb, T, _GW)

    bidir_layer(proj1(0), proj1(1), whh(2), whh(3), s1f, s1b)

    # fc1 (lane-dense 128-wide output; real logits in columns 0:2)
    fcw_f = lstm_ref[_OFF_FCW        : _OFF_FCW + _HP, :]
    fcw_b = lstm_ref[_OFF_FCW + _HP  : _OFF_FCW + 2 * _HP, :]
    fcb = vec_ref[_OFF_FCB: _OFF_FCB + 1, :]
    yf = s1f[...].reshape(N, _HP)
    yb = s1b[...].reshape(N, _HP)
    out = (jnp.dot(yf, fcw_f, preferred_element_type=f32)
           + jnp.dot(yb, fcw_b, preferred_element_type=f32) + fcb)
    o_ref[...] = out.astype(o_ref.dtype)                 # (N, 128) unmasked store


# ----------------------------------------------------------------------------
# Host-side weight packing (PyTorch-shaped params -> lane-dense VMEM slabs)
# ----------------------------------------------------------------------------

def _pad_gates_cols(m):
    """(rows, 4H) with gates [i|f|g|o] each H wide -> (rows, 128), gate g at lanes g*32."""
    m = jnp.asarray(m, jnp.float32)
    out = jnp.zeros((m.shape[0], _GW), jnp.float32)
    for g in range(_NG):
        out = out.at[:, g * _HP: g * _HP + _H].set(m[:, g * _H:(g + 1) * _H])
    return out


def _pack_conv_slab(convs, channels):
    rows = sum(3 * cin for cin, _ in channels)
    slab = jnp.zeros((rows, 128), jnp.float32)
    off = 0
    for (cin, cout), (w, *_rest) in zip(channels, convs):
        for k in range(3):                                # tap k multiplies x[l-1+k]
            slab = slab.at[off + k * cin: off + (k + 1) * cin, :cout].set(w[:, :, k].T)
        off += 3 * cin
    return slab


def _pack_vec_slab(convs, lstm, fc, channels):
    v = jnp.zeros((_VEC_ROWS, 128), jnp.float32)
    for l, ((_cin, cout), (w, b, gamma, beta, mean, var)) in enumerate(zip(channels, convs)):
        scale = gamma / jnp.sqrt(var + 1e-5)
        shift = beta - mean * scale
        v = v.at[3 * l, :cout].set(b)
        v = v.at[3 * l + 1, :cout].set(scale)
        v = v.at[3 * l + 2, :cout].set(shift)
    for layer in range(_NUM_LSTM_LAYERS):
        for d in range(2):
            _w_ih, _w_hh, b_ih, b_hh = lstm[layer][d]
            row = _OFF_LBIAS + 2 * layer + d
            v = v.at[row, :].set(_pad_gates_cols((b_ih + b_hh)[None, :])[0])
    _fc_w, fc_b = fc
    v = v.at[_OFF_FCB, :2].set(fc_b)
    return v


def _pack_lstm_slab(lstm, fc):
    s = jnp.zeros((_LSTM_ROWS, 128), jnp.float32)
    # layer-0 input projections: w_ih (4H, 40) -> (40, 128)
    for d in range(2):
        w_ih = lstm[0][d][0]
        s = s.at[_OFF_WIH0 + d * _D0: _OFF_WIH0 + (d + 1) * _D0, :].set(
            _pad_gates_cols(w_ih.T))
    # layer-1 input projections split into fwd-input / bwd-input halves (rows padded to 32)
    for d in range(2):
        w_ih = lstm[1][d][0]                              # (4H, 2H)
        m = _pad_gates_cols(w_ih.T)                       # (40, 128): rows 0:20 fwd, 20:40 bwd
        base = _OFF_WIH1 + 2 * d * _HP
        s = s.at[base: base + _H, :].set(m[:_H])
        s = s.at[base + _HP: base + _HP + _H, :].set(m[_H:])
    # recurrent weights: w_hh (4H, H) -> (20, 128), rows padded to 32
    for layer in range(_NUM_LSTM_LAYERS):
        for d in range(2):
            w_hh = lstm[layer][d][1]
            base = _OFF_WHH + (2 * layer + d) * _HP
            s = s.at[base: base + _H, :].set(_pad_gates_cols(w_hh.T))
    # fc1: (2, 40) -> split fwd/bwd halves, cols 0:2 real (rest zero -> lane-dense output)
    fc_w, _fc_b = fc
    wt = fc_w.T                                           # (40, 2)
    s = s.at[_OFF_FCW: _OFF_FCW + _H, :2].set(wt[:_H])
    s = s.at[_OFF_FCW + _HP: _OFF_FCW + _HP + _H, :2].set(wt[_H:])
    return s


# ----------------------------------------------------------------------------
# Wrapper
# ----------------------------------------------------------------------------

def cnn_blstm_forward(x, params):
    convs, lstm, fc = params
    b, T, C, L = x.shape
    channels = _conv_channels(C)

    conv_slab = _pack_conv_slab(convs, channels)
    vec_slab = _pack_vec_slab(convs, lstm, fc, channels)
    lstm_slab = _pack_lstm_slab(lstm, fc)

    # (b, T, C, L) -> (b*T, L, C): channels-last for the conv matmuls.
    x_nlc = jnp.transpose(x.reshape(b * T, C, L), (0, 2, 1)).astype(jnp.float32)

    bb = 1                                   # sequences per grid program (v7x: 2 TCs)
    grid = (b // bb,)
    kernel = functools.partial(fused_kernel, bb=bb, T=T, channels=channels)

    out = pl.pallas_call(
        kernel,
        grid=grid,
        in_specs=[
            pl.BlockSpec((bb * T, L, C), lambda i: (i, 0, 0)),     # per-sequence block
            pl.BlockSpec(conv_slab.shape, lambda i: (0, 0)),       # resident weight slabs
            pl.BlockSpec(vec_slab.shape, lambda i: (0, 0)),
            pl.BlockSpec(lstm_slab.shape, lambda i: (0, 0)),
        ],
        out_specs=pl.BlockSpec((bb * T, _GW), lambda i: (i, 0)),
        out_shape=jax.ShapeDtypeStruct((b * T, _GW), jnp.float32),
        scratch_shapes=[
            pltpu.VMEM((bb, T, _HP), jnp.float32),   # layer-0 forward hidden states
            pltpu.VMEM((bb, T, _HP), jnp.float32),   # layer-0 backward
            pltpu.VMEM((bb, T, _HP), jnp.float32),   # layer-1 forward
            pltpu.VMEM((bb, T, _HP), jnp.float32),   # layer-1 backward
        ],
        compiler_params=pltpu.CompilerParams(
            dimension_semantics=("parallel",),
            vmem_limit_bytes=32 * 1024 * 1024,
        ),
    )(x_nlc, conv_slab, vec_slab, lstm_slab)

    return out[:, :2].reshape(b, T, 2), None, None


# ----------------------------------------------------------------------------
# Parameters (deterministic, synthetic, PyTorch-shaped)
# ----------------------------------------------------------------------------

def init_params(key, nchns):
    keys = iter(jax.random.split(key, 80))

    def nrm(shape, s):
        return jax.random.normal(next(keys), shape, jnp.float32) * s

    convs = []
    for cin, cout in _conv_channels(nchns):
        w = nrm((cout, cin, 3), 0.2)            # PyTorch Conv1d weight layout
        b = nrm((cout,), 0.1)
        gamma = 1.0 + nrm((cout,), 0.1)
        beta = nrm((cout,), 0.1)
        mean = nrm((cout,), 0.1)
        var = 1.0 + jnp.abs(nrm((cout,), 0.1))
        convs.append((w, b, gamma, beta, mean, var))

    lstm = []
    for layer in range(_NUM_LSTM_LAYERS):
        d_in = _D0 if layer == 0 else 2 * _H
        dirs = []
        for _d in range(2):
            w_ih = nrm((4 * _H, d_in), 0.15)    # gate order [i | f | g | o]
            w_hh = nrm((4 * _H, _H), 0.15)
            b_ih = nrm((4 * _H,), 0.1)
            b_hh = nrm((4 * _H,), 0.1)
            dirs.append((w_ih, w_hh, b_ih, b_hh))
        lstm.append(dirs)

    fc_w = nrm((2, 2 * _H), 0.2)
    fc_b = nrm((2,), 0.1)
    return convs, lstm, (fc_w, fc_b)


# ----------------------------------------------------------------------------
# Pure-JAX reference (mirrors the PyTorch module in eval mode)
# ----------------------------------------------------------------------------

def reference_forward(x, params):
    convs, lstm, (fc_w, fc_b) = params
    b, T, C, L = x.shape
    h = jnp.transpose(x.reshape(b * T, C, L), (0, 2, 1)).astype(jnp.float32)
    for (_cin, cout), (w, bias, gamma, beta, mean, var), pool in zip(
            _conv_channels(C), convs, _POOL):
        N, Lc, cin = h.shape
        zero = jnp.zeros((N, 1, cin), jnp.float32)
        xp = jnp.concatenate([zero, h[:, :Lc - 1, :]], axis=1)
        xn = jnp.concatenate([h[:, 1:, :], zero], axis=1)
        y = xp @ w[:, :, 0].T + h @ w[:, :, 1].T + xn @ w[:, :, 2].T + bias
        y = jnp.where(y > 0, y, 0.01 * y)
        scale = gamma / jnp.sqrt(var + 1e-5)
        y = y * scale + (beta - mean * scale)
        if pool:
            Lp = (Lc // 2) * 2
            y = jnp.max(y[:, :Lp, :].reshape(N, Lp // 2, 2, cout), axis=2)
        h = y
    seq = jnp.mean(h, axis=1).reshape(b, T, _D0)
    for layer in range(_NUM_LSTM_LAYERS):
        outs = []
        for d in range(2):
            w_ih, w_hh, b_ih, b_hh = lstm[layer][d]
            xg = seq @ w_ih.T + (b_ih + b_hh)
            hh = jnp.zeros((b, _H), jnp.float32)
            cc = jnp.zeros((b, _H), jnp.float32)
            ys = [None] * T
            order = range(T) if d == 0 else range(T - 1, -1, -1)
            for t in order:
                g = xg[:, t, :] + hh @ w_hh.T
                i = jax.nn.sigmoid(g[:, :_H])
                f = jax.nn.sigmoid(g[:, _H:2 * _H])
                gg = jnp.tanh(g[:, 2 * _H:3 * _H])
                o = jax.nn.sigmoid(g[:, 3 * _H:])
                cc = f * cc + i * gg
                hh = o * jnp.tanh(cc)
                ys[t] = hh
            outs.append(jnp.stack(ys, axis=1))
        seq = jnp.concatenate(outs, axis=-1)
    rout = seq.reshape(b * T, 2 * _H) @ fc_w.T + fc_b
    return rout.reshape(b, T, 2)


# ----------------------------------------------------------------------------
# Main
# ----------------------------------------------------------------------------

if __name__ == "__main__":
    key = jax.random.PRNGKey(0)
    k_x, k_p = jax.random.split(key)

    b, T, C, L = 2, 8, 4, 16            # small shapes; L//16 == 1 after 4 pools
    x = jax.random.normal(k_x, (b, T, C, L), jnp.float32)
    params = init_params(k_p, nchns=C)

    fwd = jax.jit(lambda xx: cnn_blstm_forward(xx, params))
    rout, hc, a = fwd(x)
    jax.block_until_ready(rout)

    assert rout.shape == (b, T, 2), rout.shape
    assert hc is None and a is None

    ref = reference_forward(x, params)
    err = float(jnp.max(jnp.abs(rout - ref)))
    assert err < 1e-1, f"kernel/reference mismatch: max abs err = {err}"
    print("KERNEL_OK")
</pallas_src>

<mosaic_0001>
module attributes {stable_mosaic.version = 11 : i64} {
  func.func @fused_kernel(%arg0: i32, %arg1: memref<8x16x4xf32, #tpu.memory_space<vmem>>, %arg2: memref<342x128xf32, #tpu.memory_space<vmem>>, %arg3: memref<29x128xf32, #tpu.memory_space<vmem>>, %arg4: memref<400x128xf32, #tpu.memory_space<vmem>>, %arg5: memref<8x128xf32, #tpu.memory_space<vmem>>, %arg6: memref<1x8x32xf32, #tpu.memory_space<vmem>>, %arg7: memref<1x8x32xf32, #tpu.memory_space<vmem>>, %arg8: memref<1x8x32xf32, #tpu.memory_space<vmem>>, %arg9: memref<1x8x32xf32, #tpu.memory_space<vmem>>) attributes {dimension_semantics = [#tpu.dimension_semantics<parallel>], iteration_bounds = array<i64: 2>, scalar_prefetch = 0 : i64, scratch_operands = 4 : i64, tpu.core_type = #tpu.core_type<tc>, window_params = [{transform_indices = @transform_0, window_bounds = array<i64: 8, 16, 4>}, {pipeline_mode = #tpu.pipeline_mode<synchronous>, transform_indices = @transform_1, window_bounds = array<i64: 342, 128>}, {pipeline_mode = #tpu.pipeline_mode<synchronous>, transform_indices = @transform_2, window_bounds = array<i64: 29, 128>}, {pipeline_mode = #tpu.pipeline_mode<synchronous>, transform_indices = @transform_3, window_bounds = array<i64: 400, 128>}, {transform_indices = @transform_4, window_bounds = array<i64: 8, 128>}]} {
    %c0 = arith.constant 0 : index
    %c0_0 = arith.constant 0 : index
    %c0_1 = arith.constant 0 : index
    %0 = vector.load %arg1[%c0, %c0_0, %c0_1] : memref<8x16x4xf32, #tpu.memory_space<vmem>>, vector<8x16x4xf32>
    %c0_2 = arith.constant 0 : index
    %c0_3 = arith.constant 0 : index
    %1 = vector.load %arg2[%c0_2, %c0_3] : memref<342x128xf32, #tpu.memory_space<vmem>>, vector<4x5xf32>
    %c4 = arith.constant 4 : index
    %c0_4 = arith.constant 0 : index
    %2 = vector.load %arg2[%c4, %c0_4] : memref<342x128xf32, #tpu.memory_space<vmem>>, vector<4x5xf32>
    %c8 = arith.constant 8 : index
    %c0_5 = arith.constant 0 : index
    %3 = vector.load %arg2[%c8, %c0_5] : memref<342x128xf32, #tpu.memory_space<vmem>>, vector<4x5xf32>
    %c0_6 = arith.constant 0 : index
    %c0_7 = arith.constant 0 : index
    %4 = vector.load %arg3[%c0_6, %c0_7] : memref<29x128xf32, #tpu.memory_space<vmem>>, vector<1x5xf32>
    %c1 = arith.constant 1 : index
    %c0_8 = arith.constant 0 : index
    %5 = vector.load %arg3[%c1, %c0_8] : memref<29x128xf32, #tpu.memory_space<vmem>>, vector<1x5xf32>
    %c2 = arith.constant 2 : index
    %c0_9 = arith.constant 0 : index
    %6 = vector.load %arg3[%c2, %c0_9] : memref<29x128xf32, #tpu.memory_space<vmem>>, vector<1x5xf32>
    %cst = arith.constant 0.000000e+00 : f32
    %7 = vector.broadcast %cst : f32 to vector<8x1x4xf32>
    %8 = vector.extract_strided_slice %0 {offsets = [0, 0, 0], sizes = [8, 15, 4], strides = [1, 1, 1]} : vector<8x16x4xf32> to vector<8x15x4xf32>
    %9 = tpu.concatenate %7, %8 in 1 : vector<8x1x4xf32>, vector<8x15x4xf32> -> vector<8x16x4xf32>
    %10 = vector.extract_strided_slice %0 {offsets = [0, 1, 0], sizes = [8, 15, 4], strides = [1, 1, 1]} : vector<8x16x4xf32> to vector<8x15x4xf32>
    %11 = tpu.concatenate %10, %7 in 1 : vector<8x15x4xf32>, vector<8x1x4xf32> -> vector<8x16x4xf32>
    %12 = vector.shape_cast %9 : vector<8x16x4xf32> to vector<128x4xf32>
    %cst_10 = arith.constant dense<0.000000e+00> : vector<128x5xf32>
    %13 = tpu.matmul %12, %1, %cst_10 {dimension_numbers = #tpu.dot_dimension_numbers<[1], [0], [0], [1], [0, 0, 1, 1], [], []>} : vector<128x4xf32>, vector<4x5xf32>, vector<128x5xf32> -> vector<128x5xf32>
    %14 = vector.shape_cast %0 : vector<8x16x4xf32> to vector<128x4xf32>
    %cst_11 = arith.constant dense<0.000000e+00> : vector<128x5xf32>
    %15 = tpu.matmul %14, %2, %cst_11 {dimension_numbers = #tpu.dot_dimension_numbers<[1], [0], [0], [1], [0, 0, 1, 1], [], []>} : vector<128x4xf32>, vector<4x5xf32>, vector<128x5xf32> -> vector<128x5xf32>
    %16 = arith.addf %13, %15 : vector<128x5xf32>
    %17 = vector.shape_cast %11 : vector<8x16x4xf32> to vector<128x4xf32>
    %cst_12 = arith.constant dense<0.000000e+00> : vector<128x5xf32>
    %18 = tpu.matmul %17, %3, %cst_12 {dimension_numbers = #tpu.dot_dimension_numbers<[1], [0], [0], [1], [0, 0, 1, 1], [], []>} : vector<128x4xf32>, vector<4x5xf32>, vector<128x5xf32> -> vector<128x5xf32>
    %19 = arith.addf %16, %18 : vector<128x5xf32>
    %20 = vector.broadcast %4 : vector<1x5xf32> to vector<128x5xf32>
    %21 = arith.addf %19, %20 : vector<128x5xf32>
    %cst_13 = arith.constant 0.00999999977 : f32
    %22 = vector.broadcast %cst_13 : f32 to vector<128x5xf32>
    %23 = arith.mulf %22, %21 : vector<128x5xf32>
    %24 = arith.maximumf %21, %23 : vector<128x5xf32>
    %25 = vector.broadcast %5 : vector<1x5xf32> to vector<128x5xf32>
    %26 = arith.mulf %24, %25 : vector<128x5xf32>
    %27 = vector.broadcast %6 : vector<1x5xf32> to vector<128x5xf32>
    %28 = arith.addf %26, %27 : vector<128x5xf32>
    %29 = vector.shape_cast %28 : vector<128x5xf32> to vector<8x16x5xf32>
    %c12 = arith.constant 12 : index
    %c0_14 = arith.constant 0 : index
    %30 = vector.load %arg2[%c12, %c0_14] : memref<342x128xf32, #tpu.memory_space<vmem>>, vector<5x5xf32>
    %c17 = arith.constant 17 : index
    %c0_15 = arith.constant 0 : index
    %31 = vector.load %arg2[%c17, %c0_15] : memref<342x128xf32, #tpu.memory_space<vmem>>, vector<5x5xf32>
    %c22 = arith.constant 22 : index
    %c0_16 = arith.constant 0 : index
    %32 = vector.load %arg2[%c22, %c0_16] : memref<342x128xf32, #tpu.memory_space<vmem>>, vector<5x5xf32>
    %c3 = arith.constant 3 : index
    %c0_17 = arith.constant 0 : index
    %33 = vector.load %arg3[%c3, %c0_17] : memref<29x128xf32, #tpu.memory_space<vmem>>, vector<1x5xf32>
    %c4_18 = arith.constant 4 : index
    %c0_19 = arith.constant 0 : index
    %34 = vector.load %arg3[%c4_18, %c0_19] : memref<29x128xf32, #tpu.memory_space<vmem>>, vector<1x5xf32>
    %c5 = arith.constant 5 : index
    %c0_20 = arith.constant 0 : index
    %35 = vector.load %arg3[%c5, %c0_20] : memref<29x128xf32, #tpu.memory_space<vmem>>, vector<1x5xf32>
    %cst_21 = arith.constant 0.000000e+00 : f32
    %36 = vector.broadcast %cst_21 : f32 to vector<8x1x5xf32>
    %37 = vector.extract_strided_slice %29 {offsets = [0, 0, 0], sizes = [8, 15, 5], strides = [1, 1, 1]} : vector<8x16x5xf32> to vector<8x15x5xf32>
    %38 = tpu.concatenate %36, %37 in 1 : vector<8x1x5xf32>, vector<8x15x5xf32> -> vector<8x16x5xf32>
    %39 = vector.extract_strided_slice %29 {offsets = [0, 1, 0], sizes = [8, 15, 5], strides = [1, 1, 1]} : vector<8x16x5xf32> to vector<8x15x5xf32>
    %40 = tpu.concatenate %39, %36 in 1 : vector<8x15x5xf32>, vector<8x1x5xf32> -> vector<8x16x5xf32>
    %41 = vector.shape_cast %38 : vector<8x16x5xf32> to vector<128x5xf32>
    %cst_22 = arith.constant dense<0.000000e+00> : vector<128x5xf32>
    %42 = tpu.matmul %41, %30, %cst_22 {dimension_numbers = #tpu.dot_dimension_numbers<[1], [0], [0], [1], [0, 0, 1, 1], [], []>} : vector<128x5xf32>, vector<5x5xf32>, vector<128x5xf32> -> vector<128x5xf32>
    %43 = vector.shape_cast %29 : vector<8x16x5xf32> to vector<128x5xf32>
    %cst_23 = arith.constant dense<0.000000e+00> : vector<128x5xf32>
    %44 = tpu.matmul %43, %31, %cst_23 {dimension_numbers = #tpu.dot_dimension_numbers<[1], [0], [0], [1], [0, 0, 1, 1], [], []>} : vector<128x5xf32>, vector<5x5xf32>, vector<128x5xf32> -> vector<128x5xf32>
    %45 = arith.addf %42, %44 : vector<128x5xf32>
    %46 = vector.shape_cast %40 : vector<8x16x5xf32> to vector<128x5xf32>
    %cst_24 = arith.constant dense<0.000000e+00> : vector<128x5xf32>
    %47 = tpu.matmul %46, %32, %cst_24 {dimension_numbers = #tpu.dot_dimension_numbers<[1], [0], [0], [1], [0, 0, 1, 1], [], []>} : vector<128x5xf32>, vector<5x5xf32>, vector<128x5xf32> -> vector<128x5xf32>
    %48 = arith.addf %45, %47 : vector<128x5xf32>
    %49 = vector.broadcast %33 : vector<1x5xf32> to vector<128x5xf32>
    %50 = arith.addf %48, %49 : vector<128x5xf32>
    %cst_25 = arith.constant 0.00999999977 : f32
    %51 = vector.broadcast %cst_25 : f32 to vector<128x5xf32>
    %52 = arith.mulf %51, %50 : vector<128x5xf32>
    %53 = arith.maximumf %50, %52 : vector<128x5xf32>
    %54 = vector.broadcast %34 : vector<1x5xf32> to vector<128x5xf32>
    %55 = arith.mulf %53, %54 : vector<128x5xf32>
    %56 = vector.broadcast %35 : vector<1x5xf32> to vector<128x5xf32>
    %57 = arith.addf %55, %56 : vector<128x5xf32>
    %58 = vector.shape_cast %57 : vector<128x5xf32> to vector<8x16x5xf32>
    %59 = vector.shape_cast %58 : vector<8x16x5xf32> to vector<8x8x2x5xf32>
    %cst_26 = arith.constant dense<0xFF800000> : vector<8x8x5xf32>
    %60 = vector.multi_reduction <maximumf>, %59, %cst_26 [2] : vector<8x8x2x5xf32> to vector<8x8x5xf32>
    %c27 = arith.constant 27 : index
    %c0_27 = arith.constant 0 : index
    %61 = vector.load %arg2[%c27, %c0_27] : memref<342x128xf32, #tpu.memory_space<vmem>>, vector<5x10xf32>
    %c32 = arith.constant 32 : index
    %c0_28 = arith.constant 0 : index
    %62 = vector.load %arg2[%c32, %c0_28] : memref<342x128xf32, #tpu.memory_space<vmem>>, vector<5x10xf32>
    %c37 = arith.constant 37 : index
    %c0_29 = arith.constant 0 : index
    %63 = vector.load %arg2[%c37, %c0_29] : memref<342x128xf32, #tpu.memory_space<vmem>>, vector<5x10xf32>
    %c6 = arith.constant 6 : index
    %c0_30 = arith.constant 0 : index
    %64 = vector.load %arg3[%c6, %c0_30] : memref<29x128xf32, #tpu.memory_space<vmem>>, vector<1x10xf32>
    %c7 = arith.constant 7 : index
    %c0_31 = arith.constant 0 : index
    %65 = vector.load %arg3[%c7, %c0_31] : memref<29x128xf32, #tpu.memory_space<vmem>>, vector<1x10xf32>
    %c8_32 = arith.constant 8 : index
    %c0_33 = arith.constant 0 : index
    %66 = vector.load %arg3[%c8_32, %c0_33] : memref<29x128xf32, #tpu.memory_space<vmem>>, vector<1x10xf32>
    %cst_34 = arith.constant 0.000000e+00 : f32
    %67 = vector.broadcast %cst_34 : f32 to vector<8x1x5xf32>
    %68 = vector.extract_strided_slice %60 {offsets = [0, 0, 0], sizes = [8, 7, 5], strides = [1, 1, 1]} : vector<8x8x5xf32> to vector<8x7x5xf32>
    %69 = tpu.concatenate %67, %68 in 1 : vector<8x1x5xf32>, vector<8x7x5xf32> -> vector<8x8x5xf32>
    %70 = vector.extract_strided_slice %60 {offsets = [0, 1, 0], sizes = [8, 7, 5], strides = [1, 1, 1]} : vector<8x8x5xf32> to vector<8x7x5xf32>
    %71 = tpu.concatenate %70, %67 in 1 : vector<8x7x5xf32>, vector<8x1x5xf32> -> vector<8x8x5xf32>
    %72 = vector.shape_cast %69 : vector<8x8x5xf32> to vector<64x5xf32>
    %cst_35 = arith.constant dense<0.000000e+00> : vector<64x10xf32>
    %73 = tpu.matmul %72, %61, %cst_35 {dimension_numbers = #tpu.dot_dimension_numbers<[1], [0], [0], [1], [0, 0, 1, 1], [], []>} : vector<64x5xf32>, vector<5x10xf32>, vector<64x10xf32> -> vector<64x10xf32>
    %74 = vector.shape_cast %60 : vector<8x8x5xf32> to vector<64x5xf32>
    %cst_36 = arith.constant dense<0.000000e+00> : vector<64x10xf32>
    %75 = tpu.matmul %74, %62, %cst_36 {dimension_numbers = #tpu.dot_dimension_numbers<[1], [0], [0], [1], [0, 0, 1, 1], [], []>} : vector<64x5xf32>, vector<5x10xf32>, vector<64x10xf32> -> vector<64x10xf32>
    %76 = arith.addf %73, %75 : vector<64x10xf32>
    %77 = vector.shape_cast %71 : vector<8x8x5xf32> to vector<64x5xf32>
    %cst_37 = arith.constant dense<0.000000e+00> : vector<64x10xf32>
    %78 = tpu.matmul %77, %63, %cst_37 {dimension_numbers = #tpu.dot_dimension_numbers<[1], [0], [0], [1], [0, 0, 1, 1], [], []>} : vector<64x5xf32>, vector<5x10xf32>, vector<64x10xf32> -> vector<64x10xf32>
    %79 = arith.addf %76, %78 : vector<64x10xf32>
    %80 = vector.broadcast %64 : vector<1x10xf32> to vector<64x10xf32>
    %81 = arith.addf %79, %80 : vector<64x10xf32>
    %cst_38 = arith.constant 0.00999999977 : f32
    %82 = vector.broadcast %cst_38 : f32 to vector<64x10xf32>
    %83 = arith.mulf %82, %81 : vector<64x10xf32>
    %84 = arith.maximumf %81, %83 : vector<64x10xf32>
    %85 = vector.broadcast %65 : vector<1x10xf32> to vector<64x10xf32>
    %86 = arith.mulf %84, %85 : vector<64x10xf32>
    %87 = vector.broadcast %66 : vector<1x10xf32> to vector<64x10xf32>
    %88 = arith.addf %86, %87 : vector<64x10xf32>
    %89 = vector.shape_cast %88 : vector<64x10xf32> to vector<8x8x10xf32>
    %c42 = arith.constant 42 : index
    %c0_39 = arith.constant 0 : index
    %90 = vector.load %arg2[%c42, %c0_39] : memref<342x128xf32, #tpu.memory_space<vmem>>, vector<10x10xf32>
    %c52 = arith.constant 52 : index
    %c0_40 = arith.constant 0 : index
    %91 = vector.load %arg2[%c52, %c0_40] : memref<342x128xf32, #tpu.memory_space<vmem>>, vector<10x10xf32>
    %c62 = arith.constant 62 : index
    %c0_41 = arith.constant 0 : index
    %92 = vector.load %arg2[%c62, %c0_41] : memref<342x128xf32, #tpu.memory_space<vmem>>, vector<10x10xf32>
    %c9 = arith.constant 9 : index
    %c0_42 = arith.constant 0 : index
    %93 = vector.load %arg3[%c9, %c0_42] : memref<29x128xf32, #tpu.memory_space<vmem>>, vector<1x10xf32>
    %c10 = arith.constant 10 : index
    %c0_43 = arith.constant 0 : index
    %94 = vector.load %arg3[%c10, %c0_43] : memref<29x128xf32, #tpu.memory_space<vmem>>, vector<1x10xf32>
    %c11 = arith.constant 11 : index
    %c0_44 = arith.constant 0 : index
    %95 = vector.load %arg3[%c11, %c0_44] : memref<29x128xf32, #tpu.memory_space<vmem>>, vector<1x10xf32>
    %cst_45 = arith.constant 0.000000e+00 : f32
    %96 = vector.broadcast %cst_45 : f32 to vector<8x1x10xf32>
    %97 = vector.extract_strided_slice %89 {offsets = [0, 0, 0], sizes = [8, 7, 10], strides = [1, 1, 1]} : vector<8x8x10xf32> to vector<8x7x10xf32>
    %98 = tpu.concatenate %96, %97 in 1 : vector<8x1x10xf32>, vector<8x7x10xf32> -> vector<8x8x10xf32>
    %99 = vector.extract_strided_slice %89 {offsets = [0, 1, 0], sizes = [8, 7, 10], strides = [1, 1, 1]} : vector<8x8x10xf32> to vector<8x7x10xf32>
    %100 = tpu.concatenate %99, %96 in 1 : vector<8x7x10xf32>, vector<8x1x10xf32> -> vector<8x8x10xf32>
    %101 = vector.shape_cast %98 : vector<8x8x10xf32> to vector<64x10xf32>
    %cst_46 = arith.constant dense<0.000000e+00> : vector<64x10xf32>
    %102 = tpu.matmul %101, %90, %cst_46 {dimension_numbers = #tpu.dot_dimension_numbers<[1], [0], [0], [1], [0, 0, 1, 1], [], []>} : vector<64x10xf32>, vector<10x10xf32>, vector<64x10xf32> -> vector<64x10xf32>
    %103 = vector.shape_cast %89 : vector<8x8x10xf32> to vector<64x10xf32>
    %cst_47 = arith.constant dense<0.000000e+00> : vector<64x10xf32>
    %104 = tpu.matmul %103, %91, %cst_47 {dimension_numbers = #tpu.dot_dimension_numbers<[1], [0], [0], [1], [0, 0, 1, 1], [], []>} : vector<64x10xf32>, vector<10x10xf32>, vector<64x10xf32> -> vector<64x10xf32>
    %105 = arith.addf %102, %104 : vector<64x10xf32>
    %106 = vector.shape_cast %100 : vector<8x8x10xf32> to vector<64x10xf32>
    %cst_48 = arith.constant dense<0.000000e+00> : vector<64x10xf32>
    %107 = tpu.matmul %106, %92, %cst_48 {dimension_numbers = #tpu.dot_dimension_numbers<[1], [0], [0], [1], [0, 0, 1, 1], [], []>} : vector<64x10xf32>, vector<10x10xf32>, vector<64x10xf32> -> vector<64x10xf32>
    %108 = arith.addf %105, %107 : vector<64x10xf32>
    %109 = vector.broadcast %93 : vector<1x10xf32> to vector<64x10xf32>
    %110 = arith.addf %108, %109 : vector<64x10xf32>
    %cst_49 = arith.constant 0.00999999977 : f32
    %111 = vector.broadcast %cst_49 : f32 to vector<64x10xf32>
    %112 = arith.mulf %111, %110 : vector<64x10xf32>
    %113 = arith.maximumf %110, %112 : vector<64x10xf32>
    %114 = vector.broadcast %94 : vector<1x10xf32> to vector<64x10xf32>
    %115 = arith.mulf %113, %114 : vector<64x10xf32>
    %116 = vector.broadcast %95 : vector<1x10xf32> to vector<64x10xf32>
    %117 = arith.addf %115, %116 : vector<64x10xf32>
    %118 = vector.shape_cast %117 : vector<64x10xf32> to vector<8x8x10xf32>
    %119 = vector.shape_cast %118 : vector<8x8x10xf32> to vector<8x4x2x10xf32>
    %cst_50 = arith.constant dense<0xFF800000> : vector<8x4x10xf32>
    %120 = vector.multi_reduction <maximumf>, %119, %cst_50 [2] : vector<8x4x2x10xf32> to vector<8x4x10xf32>
    %c72 = arith.constant 72 : index
    %c0_51 = arith.constant 0 : index
    %121 = vector.load %arg2[%c72, %c0_51] : memref<342x128xf32, #tpu.memory_space<vmem>>, vector<10x20xf32>
    %c82 = arith.constant 82 : index
    %c0_52 = arith.constant 0 : index
    %122 = vector.load %arg2[%c82, %c0_52] : memref<342x128xf32, #tpu.memory_space<vmem>>, vector<10x20xf32>
    %c92 = arith.constant 92 : index
    %c0_53 = arith.constant 0 : index
    %123 = vector.load %arg2[%c92, %c0_53] : memref<342x128xf32, #tpu.memory_space<vmem>>, vector<10x20xf32>
    %c12_54 = arith.constant 12 : index
    %c0_55 = arith.constant 0 : index
    %124 = vector.load %arg3[%c12_54, %c0_55] : memref<29x128xf32, #tpu.memory_space<vmem>>, vector<1x20xf32>
    %c13 = arith.constant 13 : index
    %c0_56 = arith.constant 0 : index
    %125 = vector.load %arg3[%c13, %c0_56] : memref<29x128xf32, #tpu.memory_space<vmem>>, vector<1x20xf32>
    %c14 = arith.constant 14 : index
    %c0_57 = arith.constant 0 : index
    %126 = vector.load %arg3[%c14, %c0_57] : memref<29x128xf32, #tpu.memory_space<vmem>>, vector<1x20xf32>
    %cst_58 = arith.constant 0.000000e+00 : f32
    %127 = vector.broadcast %cst_58 : f32 to vector<8x1x10xf32>
    %128 = vector.extract_strided_slice %120 {offsets = [0, 0, 0], sizes = [8, 3, 10], strides = [1, 1, 1]} : vector<8x4x10xf32> to vector<8x3x10xf32>
    %129 = tpu.concatenate %127, %128 in 1 : vector<8x1x10xf32>, vector<8x3x10xf32> -> vector<8x4x10xf32>
    %130 = vector.extract_strided_slice %120 {offsets = [0, 1, 0], sizes = [8, 3, 10], strides = [1, 1, 1]} : vector<8x4x10xf32> to vector<8x3x10xf32>
    %131 = tpu.concatenate %130, %127 in 1 : vector<8x3x10xf32>, vector<8x1x10xf32> -> vector<8x4x10xf32>
    %132 = vector.shape_cast %129 : vector<8x4x10xf32> to vector<32x10xf32>
    %cst_59 = arith.constant dense<0.000000e+00> : vector<32x20xf32>
    %133 = tpu.matmul %132, %121, %cst_59 {dimension_numbers = #tpu.dot_dimension_numbers<[1], [0], [0], [1], [0, 0, 1, 1], [], []>} : vector<32x10xf32>, vector<10x20xf32>, vector<32x20xf32> -> vector<32x20xf32>
    %134 = vector.shape_cast %120 : vector<8x4x10xf32> to vector<32x10xf32>
    %cst_60 = arith.constant dense<0.000000e+00> : vector<32x20xf32>
    %135 = tpu.matmul %134, %122, %cst_60 {dimension_numbers = #tpu.dot_dimension_numbers<[1], [0], [0], [1], [0, 0, 1, 1], [], []>} : vector<32x10xf32>, vector<10x20xf32>, vector<32x20xf32> -> vector<32x20xf32>
    %136 = arith.addf %133, %135 : vector<32x20xf32>
    %137 = vector.shape_cast %131 : vector<8x4x10xf32> to vector<32x10xf32>
    %cst_61 = arith.constant dense<0.000000e+00> : vector<32x20xf32>
    %138 = tpu.matmul %137, %123, %cst_61 {dimension_numbers = #tpu.dot_dimension_numbers<[1], [0], [0], [1], [0, 0, 1, 1], [], []>} : vector<32x10xf32>, vector<10x20xf32>, vector<32x20xf32> -> vector<32x20xf32>
    %139 = arith.addf %136, %138 : vector<32x20xf32>
    %140 = vector.broadcast %124 : vector<1x20xf32> to vector<32x20xf32>
    %141 = arith.addf %139, %140 : vector<32x20xf32>
    %cst_62 = arith.constant 0.00999999977 : f32
    %142 = vector.broadcast %cst_62 : f32 to vector<32x20xf32>
    %143 = arith.mulf %142, %141 : vector<32x20xf32>
    %144 = arith.maximumf %141, %143 : vector<32x20xf32>
    %145 = vector.broadcast %125 : vector<1x20xf32> to vector<32x20xf32>
    %146 = arith.mulf %144, %145 : vector<32x20xf32>
    %147 = vector.broadcast %126 : vector<1x20xf32> to vector<32x20xf32>
    %148 = arith.addf %146, %147 : vector<32x20xf32>
    %149 = vector.shape_cast %148 : vector<32x20xf32> to vector<8x4x20xf32>
    %c102 = arith.constant 102 : index
    %c0_63 = arith.constant 0 : index
    %150 = vector.load %arg2[%c102, %c0_63] : memref<342x128xf32, #tpu.memory_space<vmem>>, vector<20x20xf32>
    %c122 = arith.constant 122 : index
    %c0_64 = arith.constant 0 : index
    %151 = vector.load %arg2[%c122, %c0_64] : memref<342x128xf32, #tpu.memory_space<vmem>>, vector<20x20xf32>
    %c142 = arith.constant 142 : index
    %c0_65 = arith.constant 0 : index
    %152 = vector.load %arg2[%c142, %c0_65] : memref<342x128xf32, #tpu.memory_space<vmem>>, vector<20x20xf32>
    %c15 = arith.constant 15 : index
    %c0_66 = arith.constant 0 : index
    %153 = vector.load %arg3[%c15, %c0_66] : memref<29x128xf32, #tpu.memory_space<vmem>>, vector<1x20xf32>
    %c16 = arith.constant 16 : index
    %c0_67 = arith.constant 0 : index
    %154 = vector.load %arg3[%c16, %c0_67] : memref<29x128xf32, #tpu.memory_space<vmem>>, vector<1x20xf32>
    %c17_68 = arith.constant 17 : index
    %c0_69 = arith.constant 0 : index
    %155 = vector.load %arg3[%c17_68, %c0_69] : memref<29x128xf32, #tpu.memory_space<vmem>>, vector<1x20xf32>
    %cst_70 = arith.constant 0.000000e+00 : f32
    %156 = vector.broadcast %cst_70 : f32 to vector<8x1x20xf32>
    %157 = vector.extract_strided_slice %149 {offsets = [0, 0, 0], sizes = [8, 3, 20], strides = [1, 1, 1]} : vector<8x4x20xf32> to vector<8x3x20xf32>
    %158 = tpu.concatenate %156, %157 in 1 : vector<8x1x20xf32>, vector<8x3x20xf32> -> vector<8x4x20xf32>
    %159 = vector.extract_strided_slice %149 {offsets = [0, 1, 0], sizes = [8, 3, 20], strides = [1, 1, 1]} : vector<8x4x20xf32> to vector<8x3x20xf32>
    %160 = tpu.concatenate %159, %156 in 1 : vector<8x3x20xf32>, vector<8x1x20xf32> -> vector<8x4x20xf32>
    %161 = vector.shape_cast %158 : vector<8x4x20xf32> to vector<32x20xf32>
    %cst_71 = arith.constant dense<0.000000e+00> : vector<32x20xf32>
    %162 = tpu.matmul %161, %150, %cst_71 {dimension_numbers = #tpu.dot_dimension_numbers<[1], [0], [0], [1], [0, 0, 1, 1], [], []>} : vector<32x20xf32>, vector<20x20xf32>, vector<32x20xf32> -> vector<32x20xf32>
    %163 = vector.shape_cast %149 : vector<8x4x20xf32> to vector<32x20xf32>
    %cst_72 = arith.constant dense<0.000000e+00> : vector<32x20xf32>
    %164 = tpu.matmul %163, %151, %cst_72 {dimension_numbers = #tpu.dot_dimension_numbers<[1], [0], [0], [1], [0, 0, 1, 1], [], []>} : vector<32x20xf32>, vector<20x20xf32>, vector<32x20xf32> -> vector<32x20xf32>
    %165 = arith.addf %162, %164 : vector<32x20xf32>
    %166 = vector.shape_cast %160 : vector<8x4x20xf32> to vector<32x20xf32>
    %cst_73 = arith.constant dense<0.000000e+00> : vector<32x20xf32>
    %167 = tpu.matmul %166, %152, %cst_73 {dimension_numbers = #tpu.dot_dimension_numbers<[1], [0], [0], [1], [0, 0, 1, 1], [], []>} : vector<32x20xf32>, vector<20x20xf32>, vector<32x20xf32> -> vector<32x20xf32>
    %168 = arith.addf %165, %167 : vector<32x20xf32>
    %169 = vector.broadcast %153 : vector<1x20xf32> to vector<32x20xf32>
    %170 = arith.addf %168, %169 : vector<32x20xf32>
    %cst_74 = arith.constant 0.00999999977 : f32
    %171 = vector.broadcast %cst_74 : f32 to vector<32x20xf32>
    %172 = arith.mulf %171, %170 : vector<32x20xf32>
    %173 = arith.maximumf %170, %172 : vector<32x20xf32>
    %174 = vector.broadcast %154 : vector<1x20xf32> to vector<32x20xf32>
    %175 = arith.mulf %173, %174 : vector<32x20xf32>
    %176 = vector.broadcast %155 : vector<1x20xf32> to vector<32x20xf32>
    %177 = arith.addf %175, %176 : vector<32x20xf32>
    %178 = vector.shape_cast %177 : vector<32x20xf32> to vector<8x4x20xf32>
    %179 = vector.shape_cast %178 : vector<8x4x20xf32> to vector<8x2x2x20xf32>
    %cst_75 = arith.constant dense<0xFF800000> : vector<8x2x20xf32>
    %180 = vector.multi_reduction <maximumf>, %179, %cst_75 [2] : vector<8x2x2x20xf32> to vector<8x2x20xf32>
    %c162 = arith.constant 162 : index
    %c0_76 = arith.constant 0 : index
    %181 = vector.load %arg2[%c162, %c0_76] : memref<342x128xf32, #tpu.memory_space<vmem>>, vector<20x40xf32>
    %c182 = arith.constant 182 : index
    %c0_77 = arith.constant 0 : index
    %182 = vector.load %arg2[%c182, %c0_77] : memref<342x128xf32, #tpu.memory_space<vmem>>, vector<20x40xf32>
    %c202 = arith.constant 202 : index
    %c0_78 = arith.constant 0 : index
    %183 = vector.load %arg2[%c202, %c0_78] : memref<342x128xf32, #tpu.memory_space<vmem>>, vector<20x40xf32>
    %c18 = arith.constant 18 : index
    %c0_79 = arith.constant 0 : index
    %184 = vector.load %arg3[%c18, %c0_79] : memref<29x128xf32, #tpu.memory_space<vmem>>, vector<1x40xf32>
    %c19 = arith.constant 19 : index
    %c0_80 = arith.constant 0 : index
    %185 = vector.load %arg3[%c19, %c0_80] : memref<29x128xf32, #tpu.memory_space<vmem>>, vector<1x40xf32>
    %c20 = arith.constant 20 : index
    %c0_81 = arith.constant 0 : index
    %186 = vector.load %arg3[%c20, %c0_81] : memref<29x128xf32, #tpu.memory_space<vmem>>, vector<1x40xf32>
    %cst_82 = arith.constant 0.000000e+00 : f32
    %187 = vector.broadcast %cst_82 : f32 to vector<8x1x20xf32>
    %188 = vector.extract_strided_slice %180 {offsets = [0, 0, 0], sizes = [8, 1, 20], strides = [1, 1, 1]} : vector<8x2x20xf32> to vector<8x1x20xf32>
    %189 = tpu.concatenate %187, %188 in 1 : vector<8x1x20xf32>, vector<8x1x20xf32> -> vector<8x2x20xf32>
    %190 = vector.extract_strided_slice %180 {offsets = [0, 1, 0], sizes = [8, 1, 20], strides = [1, 1, 1]} : vector<8x2x20xf32> to vector<8x1x20xf32>
    %191 = tpu.concatenate %190, %187 in 1 : vector<8x1x20xf32>, vector<8x1x20xf32> -> vector<8x2x20xf32>
    %192 = vector.shape_cast %189 : vector<8x2x20xf32> to vector<16x20xf32>
    %cst_83 = arith.constant dense<0.000000e+00> : vector<16x40xf32>
    %193 = tpu.matmul %192, %181, %cst_83 {dimension_numbers = #tpu.dot_dimension_numbers<[1], [0], [0], [1], [0, 0, 1, 1], [], []>} : vector<16x20xf32>, vector<20x40xf32>, vector<16x40xf32> -> vector<16x40xf32>
    %194 = vector.shape_cast %180 : vector<8x2x20xf32> to vector<16x20xf32>
    %cst_84 = arith.constant dense<0.000000e+00> : vector<16x40xf32>
    %195 = tpu.matmul %194, %182, %cst_84 {dimension_numbers = #tpu.dot_dimension_numbers<[1], [0], [0], [1], [0, 0, 1, 1], [], []>} : vector<16x20xf32>, vector<20x40xf32>, vector<16x40xf32> -> vector<16x40xf32>
    %196 = arith.addf %193, %195 : vector<16x40xf32>
    %197 = vector.shape_cast %191 : vector<8x2x20xf32> to vector<16x20xf32>
    %cst_85 = arith.constant dense<0.000000e+00> : vector<16x40xf32>
    %198 = tpu.matmul %197, %183, %cst_85 {dimension_numbers = #tpu.dot_dimension_numbers<[1], [0], [0], [1], [0, 0, 1, 1], [], []>} : vector<16x20xf32>, vector<20x40xf32>, vector<16x40xf32> -> vector<16x40xf32>
    %199 = arith.addf %196, %198 : vector<16x40xf32>
    %200 = vector.broadcast %184 : vector<1x40xf32> to vector<16x40xf32>
    %201 = arith.addf %199, %200 : vector<16x40xf32>
    %cst_86 = arith.constant 0.00999999977 : f32
    %202 = vector.broadcast %cst_86 : f32 to vector<16x40xf32>
    %203 = arith.mulf %202, %201 : vector<16x40xf32>
    %204 = arith.maximumf %201, %203 : vector<16x40xf32>
    %205 = vector.broadcast %185 : vector<1x40xf32> to vector<16x40xf32>
    %206 = arith.mulf %204, %205 : vector<16x40xf32>
    %207 = vector.broadcast %186 : vector<1x40xf32> to vector<16x40xf32>
    %208 = arith.addf %206, %207 : vector<16x40xf32>
    %209 = vector.shape_cast %208 : vector<16x40xf32> to vector<8x2x40xf32>
    %c222 = arith.constant 222 : index
    %c0_87 = arith.constant 0 : index
    %210 = vector.load %arg2[%c222, %c0_87] : memref<342x128xf32, #tpu.memory_space<vmem>>, vector<40x40xf32>
    %c262 = arith.constant 262 : index
    %c0_88 = arith.constant 0 : index
    %211 = vector.load %arg2[%c262, %c0_88] : memref<342x128xf32, #tpu.memory_space<vmem>>, vector<40x40xf32>
    %c302 = arith.constant 302 : index
    %c0_89 = arith.constant 0 : index
    %212 = vector.load %arg2[%c302, %c0_89] : memref<342x128xf32, #tpu.memory_space<vmem>>, vector<40x40xf32>
    %c21 = arith.constant 21 : index
    %c0_90 = arith.constant 0 : index
    %213 = vector.load %arg3[%c21, %c0_90] : memref<29x128xf32, #tpu.memory_space<vmem>>, vector<1x40xf32>
    %c22_91 = arith.constant 22 : index
    %c0_92 = arith.constant 0 : index
    %214 = vector.load %arg3[%c22_91, %c0_92] : memref<29x128xf32, #tpu.memory_space<vmem>>, vector<1x40xf32>
    %c23 = arith.constant 23 : index
    %c0_93 = arith.constant 0 : index
    %215 = vector.load %arg3[%c23, %c0_93] : memref<29x128xf32, #tpu.memory_space<vmem>>, vector<1x40xf32>
    %cst_94 = arith.constant 0.000000e+00 : f32
    %216 = vector.broadcast %cst_94 : f32 to vector<8x1x40xf32>
    %217 = vector.extract_strided_slice %209 {offsets = [0, 0, 0], sizes = [8, 1, 40], strides = [1, 1, 1]} : vector<8x2x40xf32> to vector<8x1x40xf32>
    %218 = tpu.concatenate %216, %217 in 1 : vector<8x1x40xf32>, vector<8x1x40xf32> -> vector<8x2x40xf32>
    %219 = vector.extract_strided_slice %209 {offsets = [0, 1, 0], sizes = [8, 1, 40], strides = [1, 1, 1]} : vector<8x2x40xf32> to vector<8x1x40xf32>
    %220 = tpu.concatenate %219, %216 in 1 : vector<8x1x40xf32>, vector<8x1x40xf32> -> vector<8x2x40xf32>
    %221 = vector.shape_cast %218 : vector<8x2x40xf32> to vector<16x40xf32>
    %cst_95 = arith.constant dense<0.000000e+00> : vector<16x40xf32>
    %222 = tpu.matmul %221, %210, %cst_95 {dimension_numbers = #tpu.dot_dimension_numbers<[1], [0], [0], [1], [0, 0, 1, 1], [], []>} : vector<16x40xf32>, vector<40x40xf32>, vector<16x40xf32> -> vector<16x40xf32>
    %223 = vector.shape_cast %209 : vector<8x2x40xf32> to vector<16x40xf32>
    %cst_96 = arith.constant dense<0.000000e+00> : vector<16x40xf32>
    %224 = tpu.matmul %223, %211, %cst_96 {dimension_numbers = #tpu.dot_dimension_numbers<[1], [0], [0], [1], [0, 0, 1, 1], [], []>} : vector<16x40xf32>, vector<40x40xf32>, vector<16x40xf32> -> vector<16x40xf32>
    %225 = arith.addf %222, %224 : vector<16x40xf32>
    %226 = vector.shape_cast %220 : vector<8x2x40xf32> to vector<16x40xf32>
    %cst_97 = arith.constant dense<0.000000e+00> : vector<16x40xf32>
    %227 = tpu.matmul %226, %212, %cst_97 {dimension_numbers = #tpu.dot_dimension_numbers<[1], [0], [0], [1], [0, 0, 1, 1], [], []>} : vector<16x40xf32>, vector<40x40xf32>, vector<16x40xf32> -> vector<16x40xf32>
    %228 = arith.addf %225, %227 : vector<16x40xf32>
    %229 = vector.broadcast %213 : vector<1x40xf32> to vector<16x40xf32>
    %230 = arith.addf %228, %229 : vector<16x40xf32>
    %cst_98 = arith.constant 0.00999999977 : f32
    %231 = vector.broadcast %cst_98 : f32 to vector<16x40xf32>
    %232 = arith.mulf %231, %230 : vector<16x40xf32>
    %233 = arith.maximumf %230, %232 : vector<16x40xf32>
    %234 = vector.broadcast %214 : vector<1x40xf32> to vector<16x40xf32>
    %235 = arith.mulf %233, %234 : vector<16x40xf32>
    %236 = vector.broadcast %215 : vector<1x40xf32> to vector<16x40xf32>
    %237 = arith.addf %235, %236 : vector<16x40xf32>
    %238 = vector.shape_cast %237 : vector<16x40xf32> to vector<8x2x40xf32>
    %239 = vector.shape_cast %238 : vector<8x2x40xf32> to vector<8x1x2x40xf32>
    %cst_99 = arith.constant dense<0xFF800000> : vector<8x1x40xf32>
    %240 = vector.multi_reduction <maximumf>, %239, %cst_99 [2] : vector<8x1x2x40xf32> to vector<8x1x40xf32>
    %cst_100 = arith.constant dense<0.000000e+00> : vector<8x40xf32>
    %241 = vector.multi_reduction <add>, %240, %cst_100 [1] : vector<8x1x40xf32> to vector<8x40xf32>
    %cst_101 = arith.constant 1.000000e+00 : f32
    %242 = vector.broadcast %cst_101 : f32 to vector<8x40xf32>
    %243 = arith.divf %241, %242 : vector<8x40xf32>
    %c0_102 = arith.constant 0 : index
    %c0_103 = arith.constant 0 : index
    %244 = vector.load %arg4[%c0_102, %c0_103] : memref<400x128xf32, #tpu.memory_space<vmem>>, vector<40x128xf32>
    %c40 = arith.constant 40 : index
    %c0_104 = arith.constant 0 : index
    %245 = vector.load %arg4[%c40, %c0_104] : memref<400x128xf32, #tpu.memory_space<vmem>>, vector<40x128xf32>
    %c24 = arith.constant 24 : index
    %c0_105 = arith.constant 0 : index
    %246 = vector.load %arg3[%c24, %c0_105] : memref<29x128xf32, #tpu.memory_space<vmem>>, vector<1x128xf32>
    %c25 = arith.constant 25 : index
    %c0_106 = arith.constant 0 : index
    %247 = vector.load %arg3[%c25, %c0_106] : memref<29x128xf32, #tpu.memory_space<vmem>>, vector<1x128xf32>
    %cst_107 = arith.constant dense<0.000000e+00> : vector<8x128xf32>
    %248 = tpu.matmul %243, %244, %cst_107 {dimension_numbers = #tpu.dot_dimension_numbers<[1], [0], [0], [1], [0, 0, 1, 1], [], []>} : vector<8x40xf32>, vector<40x128xf32>, vector<8x128xf32> -> vector<8x128xf32>
    %249 = vector.broadcast %246 : vector<1x128xf32> to vector<8x128xf32>
    %250 = arith.addf %248, %249 : vector<8x128xf32>
    %251 = vector.shape_cast %250 : vector<8x128xf32> to vector<1x8x128xf32>
    %cst_108 = arith.constant dense<0.000000e+00> : vector<8x128xf32>
    %252 = tpu.matmul %243, %245, %cst_108 {dimension_numbers = #tpu.dot_dimension_numbers<[1], [0], [0], [1], [0, 0, 1, 1], [], []>} : vector<8x40xf32>, vector<40x128xf32>, vector<8x128xf32> -> vector<8x128xf32>
    %253 = vector.broadcast %247 : vector<1x128xf32> to vector<8x128xf32>
    %254 = arith.addf %252, %253 : vector<8x128xf32>
    %255 = vector.shape_cast %254 : vector<8x128xf32> to vector<1x8x128xf32>
    %c208 = arith.constant 208 : index
    %c0_109 = arith.constant 0 : index
    %256 = vector.load %arg4[%c208, %c0_109] : memref<400x128xf32, #tpu.memory_space<vmem>>, vector<32x128xf32>
    %c240 = arith.constant 240 : index
    %c0_110 = arith.constant 0 : index
    %257 = vector.load %arg4[%c240, %c0_110] : memref<400x128xf32, #tpu.memory_space<vmem>>, vector<32x128xf32>
    %cst_111 = arith.constant 0.000000e+00 : f32
    %258 = vector.broadcast %cst_111 : f32 to vector<1x32xf32>
    %cst_112 = arith.constant 0.000000e+00 : f32
    %259 = vector.broadcast %cst_112 : f32 to vector<1x32xf32>
    %cst_113 = arith.constant 0.000000e+00 : f32
    %260 = vector.broadcast %cst_113 : f32 to vector<1x32xf32>
    %cst_114 = arith.constant 0.000000e+00 : f32
    %261 = vector.broadcast %cst_114 : f32 to vector<1x32xf32>
    %262 = vector.extract_strided_slice %251 {offsets = [0, 0, 0], sizes = [1, 1, 128], strides = [1, 1, 1]} : vector<1x8x128xf32> to vector<1x1x128xf32>
    %263 = vector.shape_cast %262 : vector<1x1x128xf32> to vector<1x128xf32>
    %cst_115 = arith.constant dense<0.000000e+00> : vector<1x128xf32>
    %264 = tpu.matmul %258, %256, %cst_115 {dimension_numbers = #tpu.dot_dimension_numbers<[1], [0], [0], [1], [0, 0, 1, 1], [], []>} : vector<1x32xf32>, vector<32x128xf32>, vector<1x128xf32> -> vector<1x128xf32>
    %265 = arith.addf %263, %264 : vector<1x128xf32>
    %266 = vector.extract_strided_slice %255 {offsets = [0, 7, 0], sizes = [1, 1, 128], strides = [1, 1, 1]} : vector<1x8x128xf32> to vector<1x1x128xf32>
    %267 = vector.shape_cast %266 : vector<1x1x128xf32> to vector<1x128xf32>
    %cst_116 = arith.constant dense<0.000000e+00> : vector<1x128xf32>
    %268 = tpu.matmul %260, %257, %cst_116 {dimension_numbers = #tpu.dot_dimension_numbers<[1], [0], [0], [1], [0, 0, 1, 1], [], []>} : vector<1x32xf32>, vector<32x128xf32>, vector<1x128xf32> -> vector<1x128xf32>
    %269 = arith.addf %267, %268 : vector<1x128xf32>
    %270 = arith.negf %265 : vector<1x128xf32>
    %271 = math.exp %270 : vector<1x128xf32>
    %cst_117 = arith.constant 1.000000e+00 : f32
    %272 = vector.broadcast %cst_117 : f32 to vector<1x128xf32>
    %273 = arith.addf %272, %271 : vector<1x128xf32>
    %274 = arith.divf %272, %273 : vector<1x128xf32>
    %275 = math.tanh %265 : vector<1x128xf32>
    %276 = arith.negf %269 : vector<1x128xf32>
    %277 = math.exp %276 : vector<1x128xf32>
    %cst_118 = arith.constant 1.000000e+00 : f32
    %278 = vector.broadcast %cst_118 : f32 to vector<1x128xf32>
    %279 = arith.addf %278, %277 : vector<1x128xf32>
    %280 = arith.divf %278, %279 : vector<1x128xf32>
    %281 = math.tanh %269 : vector<1x128xf32>
    %282 = vector.extract_strided_slice %274 {offsets = [0, 32], sizes = [1, 32], strides = [1, 1]} : vector<1x128xf32> to vector<1x32xf32>
    %283 = arith.mulf %282, %259 : vector<1x32xf32>
    %284 = vector.extract_strided_slice %274 {offsets = [0, 0], sizes = [1, 32], strides = [1, 1]} : vector<1x128xf32> to vector<1x32xf32>
    %285 = vector.extract_strided_slice %275 {offsets = [0, 64], sizes = [1, 32], strides = [1, 1]} : vector<1x128xf32> to vector<1x32xf32>
    %286 = arith.mulf %284, %285 : vector<1x32xf32>
    %287 = arith.addf %283, %286 : vector<1x32xf32>
    %288 = vector.extract_strided_slice %280 {offsets = [0, 32], sizes = [1, 32], strides = [1, 1]} : vector<1x128xf32> to vector<1x32xf32>
    %289 = arith.mulf %288, %261 : vector<1x32xf32>
    %290 = vector.extract_strided_slice %280 {offsets = [0, 0], sizes = [1, 32], strides = [1, 1]} : vector<1x128xf32> to vector<1x32xf32>
    %291 = vector.extract_strided_slice %281 {offsets = [0, 64], sizes = [1, 32], strides = [1, 1]} : vector<1x128xf32> to vector<1x32xf32>
    %292 = arith.mulf %290, %291 : vector<1x32xf32>
    %293 = arith.addf %289, %292 : vector<1x32xf32>
    %294 = vector.extract_strided_slice %274 {offsets = [0, 96], sizes = [1, 32], strides = [1, 1]} : vector<1x128xf32> to vector<1x32xf32>
    %295 = math.tanh %287 : vector<1x32xf32>
    %296 = arith.mulf %294, %295 : vector<1x32xf32>
    %297 = vector.extract_strided_slice %280 {offsets = [0, 96], sizes = [1, 32], strides = [1, 1]} : vector<1x128xf32> to vector<1x32xf32>
    %298 = math.tanh %293 : vector<1x32xf32>
    %299 = arith.mulf %297, %298 : vector<1x32xf32>
    %c0_119 = arith.constant 0 : index
    %c0_120 = arith.constant 0 : index
    %c0_121 = arith.constant 0 : index
    %300 = vector.load %arg6[%c0_119, %c0_120, %c0_121] : memref<1x8x32xf32, #tpu.memory_space<vmem>>, vector<1x1x32xf32>
    %301 = vector.shape_cast %300 : vector<1x1x32xf32> to vector<1x32xf32>
    %302 = vector.shape_cast %296 : vector<1x32xf32> to vector<1x1x32xf32>
    tpu.vector_store %arg6[%c0_119, %c0_120, %c0_121], %302 {strides = array<i32>} : memref<1x8x32xf32, #tpu.memory_space<vmem>>, vector<1x1x32xf32>,
    %c0_122 = arith.constant 0 : index
    %c7_123 = arith.constant 7 : index
    %c0_124 = arith.constant 0 : index
    %303 = vector.load %arg7[%c0_122, %c7_123, %c0_124] : memref<1x8x32xf32, #tpu.memory_space<vmem>>, vector<1x1x32xf32>
    %304 = vector.shape_cast %303 : vector<1x1x32xf32> to vector<1x32xf32>
    %305 = vector.shape_cast %299 : vector<1x32xf32> to vector<1x1x32xf32>
    tpu.vector_store %arg7[%c0_122, %c7_123, %c0_124], %305 {strides = array<i32>} : memref<1x8x32xf32, #tpu.memory_space<vmem>>, vector<1x1x32xf32>,
    %306 = vector.extract_strided_slice %251 {offsets = [0, 1, 0], sizes = [1, 1, 128], strides = [1, 1, 1]} : vector<1x8x128xf32> to vector<1x1x128xf32>
    %307 = vector.shape_cast %306 : vector<1x1x128xf32> to vector<1x128xf32>
    %cst_125 = arith.constant dense<0.000000e+00> : vector<1x128xf32>
    %308 = tpu.matmul %296, %256, %cst_125 {dimension_numbers = #tpu.dot_dimension_numbers<[1], [0], [0], [1], [0, 0, 1, 1], [], []>} : vector<1x32xf32>, vector<32x128xf32>, vector<1x128xf32> -> vector<1x128xf32>
    %309 = arith.addf %307, %308 : vector<1x128xf32>
    %310 = vector.extract_strided_slice %255 {offsets = [0, 6, 0], sizes = [1, 1, 128], strides = [1, 1, 1]} : vector<1x8x128xf32> to vector<1x1x128xf32>
    %311 = vector.shape_cast %310 : vector<1x1x128xf32> to vector<1x128xf32>
    %cst_126 = arith.constant dense<0.000000e+00> : vector<1x128xf32>
    %312 = tpu.matmul %299, %257, %cst_126 {dimension_numbers = #tpu.dot_dimension_numbers<[1], [0], [0], [1], [0, 0, 1, 1], [], []>} : vector<1x32xf32>, vector<32x128xf32>, vector<1x128xf32> -> vector<1x128xf32>
    %313 = arith.addf %311, %312 : vector<1x128xf32>
    %314 = arith.negf %309 : vector<1x128xf32>
    %315 = math.exp %314 : vector<1x128xf32>
    %cst_127 = arith.constant 1.000000e+00 : f32
    %316 = vector.broadcast %cst_127 : f32 to vector<1x128xf32>
    %317 = arith.addf %316, %315 : vector<1x128xf32>
    %318 = arith.divf %316, %317 : vector<1x128xf32>
    %319 = math.tanh %309 : vector<1x128xf32>
    %320 = arith.negf %313 : vector<1x128xf32>
    %321 = math.exp %320 : vector<1x128xf32>
    %cst_128 = arith.constant 1.000000e+00 : f32
    %322 = vector.broadcast %cst_128 : f32 to vector<1x128xf32>
    %323 = arith.addf %322, %321 : vector<1x128xf32>
    %324 = arith.divf %322, %323 : vector<1x128xf32>
    %325 = math.tanh %313 : vector<1x128xf32>
    %326 = vector.extract_strided_slice %318 {offsets = [0, 32], sizes = [1, 32], strides = [1, 1]} : vector<1x128xf32> to vector<1x32xf32>
    %327 = arith.mulf %326, %287 : vector<1x32xf32>
    %328 = vector.extract_strided_slice %318 {offsets = [0, 0], sizes = [1, 32], strides = [1, 1]} : vector<1x128xf32> to vector<1x32xf32>
    %329 = vector.extract_strided_slice %319 {offsets = [0, 64], sizes = [1, 32], strides = [1, 1]} : vector<1x128xf32> to vector<1x32xf32>
    %330 = arith.mulf %328, %329 : vector<1x32xf32>
    %331 = arith.addf %327, %330 : vector<1x32xf32>
    %332 = vector.extract_strided_slice %324 {offsets = [0, 32], sizes = [1, 32], strides = [1, 1]} : vector<1x128xf32> to vector<1x32xf32>
    %333 = arith.mulf %332, %293 : vector<1x32xf32>
    %334 = vector.extract_strided_slice %324 {offsets = [0, 0], sizes = [1, 32], strides = [1, 1]} : vector<1x128xf32> to vector<1x32xf32>
    %335 = vector.extract_strided_slice %325 {offsets = [0, 64], sizes = [1, 32], strides = [1, 1]} : vector<1x128xf32> to vector<1x32xf32>
    %336 = arith.mulf %334, %335 : vector<1x32xf32>
    %337 = arith.addf %333, %336 : vector<1x32xf32>
    %338 = vector.extract_strided_slice %318 {offsets = [0, 96], sizes = [1, 32], strides = [1, 1]} : vector<1x128xf32> to vector<1x32xf32>
    %339 = math.tanh %331 : vector<1x32xf32>
    %340 = arith.mulf %338, %339 : vector<1x32xf32>
    %341 = vector.extract_strided_slice %324 {offsets = [0, 96], sizes = [1, 32], strides = [1, 1]} : vector<1x128xf32> to vector<1x32xf32>
    %342 = math.tanh %337 : vector<1x32xf32>
    %343 = arith.mulf %341, %342 : vector<1x32xf32>
    %c0_129 = arith.constant 0 : index
    %c1_130 = arith.constant 1 : index
    %c0_131 = arith.constant 0 : index
    %344 = vector.load %arg6[%c0_129, %c1_130, %c0_131] : memref<1x8x32xf32, #tpu.memory_space<vmem>>, vector<1x1x32xf32>
    %345 = vector.shape_cast %344 : vector<1x1x32xf32> to vector<1x32xf32>
    %346 = vector.shape_cast %340 : vector<1x32xf32> to vector<1x1x32xf32>
    tpu.vector_store %arg6[%c0_129, %c1_130, %c0_131], %346 {strides = array<i32>} : memref<1x8x32xf32, #tpu.memory_space<vmem>>, vector<1x1x32xf32>,
    %c0_132 = arith.constant 0 : index
    %c6_133 = arith.constant 6 : index
    %c0_134 = arith.constant 0 : index
    %347 = vector.load %arg7[%c0_132, %c6_133, %c0_134] : memref<1x8x32xf32, #tpu.memory_space<vmem>>, vector<1x1x32xf32>
    %348 = vector.shape_cast %347 : vector<1x1x32xf32> to vector<1x32xf32>
    %349 = vector.shape_cast %343 : vector<1x32xf32> to vector<1x1x32xf32>
    tpu.vector_store %arg7[%c0_132, %c6_133, %c0_134], %349 {strides = array<i32>} : memref<1x8x32xf32, #tpu.memory_space<vmem>>, vector<1x1x32xf32>,
    %350 = vector.extract_strided_slice %251 {offsets = [0, 2, 0], sizes = [1, 1, 128], strides = [1, 1, 1]} : vector<1x8x128xf32> to vector<1x1x128xf32>
    %351 = vector.shape_cast %350 : vector<1x1x128xf32> to vector<1x128xf32>
    %cst_135 = arith.constant dense<0.000000e+00> : vector<1x128xf32>
    %352 = tpu.matmul %340, %256, %cst_135 {dimension_numbers = #tpu.dot_dimension_numbers<[1], [0], [0], [1], [0, 0, 1, 1], [], []>} : vector<1x32xf32>, vector<32x128xf32>, vector<1x128xf32> -> vector<1x128xf32>
    %353 = arith.addf %351, %352 : vector<1x128xf32>
    %354 = vector.extract_strided_slice %255 {offsets = [0, 5, 0], sizes = [1, 1, 128], strides = [1, 1, 1]} : vector<1x8x128xf32> to vector<1x1x128xf32>
    %355 = vector.shape_cast %354 : vector<1x1x128xf32> to vector<1x128xf32>
    %cst_136 = arith.constant dense<0.000000e+00> : vector<1x128xf32>
    %356 = tpu.matmul %343, %257, %cst_136 {dimension_numbers = #tpu.dot_dimension_numbers<[1], [0], [0], [1], [0, 0, 1, 1], [], []>} : vector<1x32xf32>, vector<32x128xf32>, vector<1x128xf32> -> vector<1x128xf32>
    %357 = arith.addf %355, %356 : vector<1x128xf32>
    %358 = arith.negf %353 : vector<1x128xf32>
    %359 = math.exp %358 : vector<1x128xf32>
    %cst_137 = arith.constant 1.000000e+00 : f32
    %360 = vector.broadcast %cst_137 : f32 to vector<1x128xf32>
    %361 = arith.addf %360, %359 : vector<1x128xf32>
    %362 = arith.divf %360, %361 : vector<1x128xf32>
    %363 = math.tanh %353 : vector<1x128xf32>
    %364 = arith.negf %357 : vector<1x128xf32>
    %365 = math.exp %364 : vector<1x128xf32>
    %cst_138 = arith.constant 1.000000e+00 : f32
    %366 = vector.broadcast %cst_138 : f32 to vector<1x128xf32>
    %367 = arith.addf %366, %365 : vector<1x128xf32>
    %368 = arith.divf %366, %367 : vector<1x128xf32>
    %369 = math.tanh %357 : vector<1x128xf32>
    %370 = vector.extract_strided_slice %362 {offsets = [0, 32], sizes = [1, 32], strides = [1, 1]} : vector<1x128xf32> to vector<1x32xf32>
    %371 = arith.mulf %370, %331 : vector<1x32xf32>
    %372 = vector.extract_strided_slice %362 {offsets = [0, 0], sizes = [1, 32], strides = [1, 1]} : vector<1x128xf32> to vector<1x32xf32>
    %373 = vector.extract_strided_slice %363 {offsets = [0, 64], sizes = [1, 32], strides = [1, 1]} : vector<1x128xf32> to vector<1x32xf32>
    %374 = arith.mulf %372, %373 : vector<1x32xf32>
    %375 = arith.addf %371, %374 : vector<1x32xf32>
    %376 = vector.extract_strided_slice %368 {offsets = [0, 32], sizes = [1, 32], strides = [1, 1]} : vector<1x128xf32> to vector<1x32xf32>
    %377 = arith.mulf %376, %337 : vector<1x32xf32>
    %378 = vector.extract_strided_slice %368 {offsets = [0, 0], sizes = [1, 32], strides = [1, 1]} : vector<1x128xf32> to vector<1x32xf32>
    %379 = vector.extract_strided_slice %369 {offsets = [0, 64], sizes = [1, 32], strides = [1, 1]} : vector<1x128xf32> to vector<1x32xf32>
    %380 = arith.mulf %378, %379 : vector<1x32xf32>
    %381 = arith.addf %377, %380 : vector<1x32xf32>
    %382 = vector.extract_strided_slice %362 {offsets = [0, 96], sizes = [1, 32], strides = [1, 1]} : vector<1x128xf32> to vector<1x32xf32>
    %383 = math.tanh %375 : vector<1x32xf32>
    %384 = arith.mulf %382, %383 : vector<1x32xf32>
    %385 = vector.extract_strided_slice %368 {offsets = [0, 96], sizes = [1, 32], strides = [1, 1]} : vector<1x128xf32> to vector<1x32xf32>
    %386 = math.tanh %381 : vector<1x32xf32>
    %387 = arith.mulf %385, %386 : vector<1x32xf32>
    %c0_139 = arith.constant 0 : index
    %c2_140 = arith.constant 2 : index
    %c0_141 = arith.constant 0 : index
    %388 = vector.load %arg6[%c0_139, %c2_140, %c0_141] : memref<1x8x32xf32, #tpu.memory_space<vmem>>, vector<1x1x32xf32>
    %389 = vector.shape_cast %388 : vector<1x1x32xf32> to vector<1x32xf32>
    %390 = vector.shape_cast %384 : vector<1x32xf32> to vector<1x1x32xf32>
    tpu.vector_store %arg6[%c0_139, %c2_140, %c0_141], %390 {strides = array<i32>} : memref<1x8x32xf32, #tpu.memory_space<vmem>>, vector<1x1x32xf32>,
    %c0_142 = arith.constant 0 : index
    %c5_143 = arith.constant 5 : index
    %c0_144 = arith.constant 0 : index
    %391 = vector.load %arg7[%c0_142, %c5_143, %c0_144] : memref<1x8x32xf32, #tpu.memory_space<vmem>>, vector<1x1x32xf32>
    %392 = vector.shape_cast %391 : vector<1x1x32xf32> to vector<1x32xf32>
    %393 = vector.shape_cast %387 : vector<1x32xf32> to vector<1x1x32xf32>
    tpu.vector_store %arg7[%c0_142, %c5_143, %c0_144], %393 {strides = array<i32>} : memref<1x8x32xf32, #tpu.memory_space<vmem>>, vector<1x1x32xf32>,
    %394 = vector.extract_strided_slice %251 {offsets = [0, 3, 0], sizes = [1, 1, 128], strides = [1, 1, 1]} : vector<1x8x128xf32> to vector<1x1x128xf32>
    %395 = vector.shape_cast %394 : vector<1x1x128xf32> to vector<1x128xf32>
    %cst_145 = arith.constant dense<0.000000e+00> : vector<1x128xf32>
    %396 = tpu.matmul %384, %256, %cst_145 {dimension_numbers = #tpu.dot_dimension_numbers<[1], [0], [0], [1], [0, 0, 1, 1], [], []>} : vector<1x32xf32>, vector<32x128xf32>, vector<1x128xf32> -> vector<1x128xf32>
    %397 = arith.addf %395, %396 : vector<1x128xf32>
    %398 = vector.extract_strided_slice %255 {offsets = [0, 4, 0], sizes = [1, 1, 128], strides = [1, 1, 1]} : vector<1x8x128xf32> to vector<1x1x128xf32>
    %399 = vector.shape_cast %398 : vector<1x1x128xf32> to vector<1x128xf32>
    %cst_146 = arith.constant dense<0.000000e+00> : vector<1x128xf32>
    %400 = tpu.matmul %387, %257, %cst_146 {dimension_numbers = #tpu.dot_dimension_numbers<[1], [0], [0], [1], [0, 0, 1, 1], [], []>} : vector<1x32xf32>, vector<32x128xf32>, vector<1x128xf32> -> vector<1x128xf32>
    %401 = arith.addf %399, %400 : vector<1x128xf32>
    %402 = arith.negf %397 : vector<1x128xf32>
    %403 = math.exp %402 : vector<1x128xf32>
    %cst_147 = arith.constant 1.000000e+00 : f32
    %404 = vector.broadcast %cst_147 : f32 to vector<1x128xf32>
    %405 = arith.addf %404, %403 : vector<1x128xf32>
    %406 = arith.divf %404, %405 : vector<1x128xf32>
    %407 = math.tanh %397 : vector<1x128xf32>
    %408 = arith.negf %401 : vector<1x128xf32>
    %409 = math.exp %408 : vector<1x128xf32>
    %cst_148 = arith.constant 1.000000e+00 : f32
    %410 = vector.broadcast %cst_148 : f32 to vector<1x128xf32>
    %411 = arith.addf %410, %409 : vector<1x128xf32>
    %412 = arith.divf %410, %411 : vector<1x128xf32>
    %413 = math.tanh %401 : vector<1x128xf32>
    %414 = vector.extract_strided_slice %406 {offsets = [0, 32], sizes = [1, 32], strides = [1, 1]} : vector<1x128xf32> to vector<1x32xf32>
    %415 = arith.mulf %414, %375 : vector<1x32xf32>
    %416 = vector.extract_strided_slice %406 {offsets = [0, 0], sizes = [1, 32], strides = [1, 1]} : vector<1x128xf32> to vector<1x32xf32>
    %417 = vector.extract_strided_slice %407 {offsets = [0, 64], sizes = [1, 32], strides = [1, 1]} : vector<1x128xf32> to vector<1x32xf32>
    %418 = arith.mulf %416, %417 : vector<1x32xf32>
    %419 = arith.addf %415, %418 : vector<1x32xf32>
    %420 = vector.extract_strided_slice %412 {offsets = [0, 32], sizes = [1, 32], strides = [1, 1]} : vector<1x128xf32> to vector<1x32xf32>
    %421 = arith.mulf %420, %381 : vector<1x32xf32>
    %422 = vector.extract_strided_slice %412 {offsets = [0, 0], sizes = [1, 32], strides = [1, 1]} : vector<1x128xf32> to vector<1x32xf32>
    %423 = vector.extract_strided_slice %413 {offsets = [0, 64], sizes = [1, 32], strides = [1, 1]} : vector<1x128xf32> to vector<1x32xf32>
    %424 = arith.mulf %422, %423 : vector<1x32xf32>
    %425 = arith.addf %421, %424 : vector<1x32xf32>
    %426 = vector.extract_strided_slice %406 {offsets = [0, 96], sizes = [1, 32], strides = [1, 1]} : vector<1x128xf32> to vector<1x32xf32>
    %427 = math.tanh %419 : vector<1x32xf32>
    %428 = arith.mulf %426, %427 : vector<1x32xf32>
    %429 = vector.extract_strided_slice %412 {offsets = [0, 96], sizes = [1, 32], strides = [1, 1]} : vector<1x128xf32> to vector<1x32xf32>
    %430 = math.tanh %425 : vector<1x32xf32>
    %431 = arith.mulf %429, %430 : vector<1x32xf32>
    %c0_149 = arith.constant 0 : index
    %c3_150 = arith.constant 3 : index
    %c0_151 = arith.constant 0 : index
    %432 = vector.load %arg6[%c0_149, %c3_150, %c0_151] : memref<1x8x32xf32, #tpu.memory_space<vmem>>, vector<1x1x32xf32>
    %433 = vector.shape_cast %432 : vector<1x1x32xf32> to vector<1x32xf32>
    %434 = vector.shape_cast %428 : vector<1x32xf32> to vector<1x1x32xf32>
    tpu.vector_store %arg6[%c0_149, %c3_150, %c0_151], %434 {strides = array<i32>} : memref<1x8x32xf32, #tpu.memory_space<vmem>>, vector<1x1x32xf32>,
    %c0_152 = arith.constant 0 : index
    %c4_153 = arith.constant 4 : index
    %c0_154 = arith.constant 0 : index
    %435 = vector.load %arg7[%c0_152, %c4_153, %c0_154] : memref<1x8x32xf32, #tpu.memory_space<vmem>>, vector<1x1x32xf32>
    %436 = vector.shape_cast %435 : vector<1x1x32xf32> to vector<1x32xf32>
    %437 = vector.shape_cast %431 : vector<1x32xf32> to vector<1x1x32xf32>
    tpu.vector_store %arg7[%c0_152, %c4_153, %c0_154], %437 {strides = array<i32>} : memref<1x8x32xf32, #tpu.memory_space<vmem>>, vector<1x1x32xf32>,
    %438 = vector.extract_strided_slice %251 {offsets = [0, 4, 0], sizes = [1, 1, 128], strides = [1, 1, 1]} : vector<1x8x128xf32> to vector<1x1x128xf32>
    %439 = vector.shape_cast %438 : vector<1x1x128xf32> to vector<1x128xf32>
    %cst_155 = arith.constant dense<0.000000e+00> : vector<1x128xf32>
    %440 = tpu.matmul %428, %256, %cst_155 {dimension_numbers = #tpu.dot_dimension_numbers<[1], [0], [0], [1], [0, 0, 1, 1], [], []>} : vector<1x32xf32>, vector<32x128xf32>, vector<1x128xf32> -> vector<1x128xf32>
    %441 = arith.addf %439, %440 : vector<1x128xf32>
    %442 = vector.extract_strided_slice %255 {offsets = [0, 3, 0], sizes = [1, 1, 128], strides = [1, 1, 1]} : vector<1x8x128xf32> to vector<1x1x128xf32>
    %443 = vector.shape_cast %442 : vector<1x1x128xf32> to vector<1x128xf32>
    %cst_156 = arith.constant dense<0.000000e+00> : vector<1x128xf32>
    %444 = tpu.matmul %431, %257, %cst_156 {dimension_numbers = #tpu.dot_dimension_numbers<[1], [0], [0], [1], [0, 0, 1, 1], [], []>} : vector<1x32xf32>, vector<32x128xf32>, vector<1x128xf32> -> vector<1x128xf32>
    %445 = arith.addf %443, %444 : vector<1x128xf32>
    %446 = arith.negf %441 : vector<1x128xf32>
    %447 = math.exp %446 : vector<1x128xf32>
    %cst_157 = arith.constant 1.000000e+00 : f32
    %448 = vector.broadcast %cst_157 : f32 to vector<1x128xf32>
    %449 = arith.addf %448, %447 : vector<1x128xf32>
    %450 = arith.divf %448, %449 : vector<1x128xf32>
    %451 = math.tanh %441 : vector<1x128xf32>
    %452 = arith.negf %445 : vector<1x128xf32>
    %453 = math.exp %452 : vector<1x128xf32>
    %cst_158 = arith.constant 1.000000e+00 : f32
    %454 = vector.broadcast %cst_158 : f32 to vector<1x128xf32>
    %455 = arith.addf %454, %453 : vector<1x128xf32>
    %456 = arith.divf %454, %455 : vector<1x128xf32>
    %457 = math.tanh %445 : vector<1x128xf32>
    %458 = vector.extract_strided_slice %450 {offsets = [0, 32], sizes = [1, 32], strides = [1, 1]} : vector<1x128xf32> to vector<1x32xf32>
    %459 = arith.mulf %458, %419 : vector<1x32xf32>
    %460 = vector.extract_strided_slice %450 {offsets = [0, 0], sizes = [1, 32], strides = [1, 1]} : vector<1x128xf32> to vector<1x32xf32>
    %461 = vector.extract_strided_slice %451 {offsets = [0, 64], sizes = [1, 32], strides = [1, 1]} : vector<1x128xf32> to vector<1x32xf32>
    %462 = arith.mulf %460, %461 : vector<1x32xf32>
    %463 = arith.addf %459, %462 : vector<1x32xf32>
    %464 = vector.extract_strided_slice %456 {offsets = [0, 32], sizes = [1, 32], strides = [1, 1]} : vector<1x128xf32> to vector<1x32xf32>
    %465 = arith.mulf %464, %425 : vector<1x32xf32>
    %466 = vector.extract_strided_slice %456 {offsets = [0, 0], sizes = [1, 32], strides = [1, 1]} : vector<1x128xf32> to vector<1x32xf32>
    %467 = vector.extract_strided_slice %457 {offsets = [0, 64], sizes = [1, 32], strides = [1, 1]} : vector<1x128xf32> to vector<1x32xf32>
    %468 = arith.mulf %466, %467 : vector<1x32xf32>
    %469 = arith.addf %465, %468 : vector<1x32xf32>
    %470 = vector.extract_strided_slice %450 {offsets = [0, 96], sizes = [1, 32], strides = [1, 1]} : vector<1x128xf32> to vector<1x32xf32>
    %471 = math.tanh %463 : vector<1x32xf32>
    %472 = arith.mulf %470, %471 : vector<1x32xf32>
    %473 = vector.extract_strided_slice %456 {offsets = [0, 96], sizes = [1, 32], strides = [1, 1]} : vector<1x128xf32> to vector<1x32xf32>
    %474 = math.tanh %469 : vector<1x32xf32>
    %475 = arith.mulf %473, %474 : vector<1x32xf32>
    %c0_159 = arith.constant 0 : index
    %c4_160 = arith.constant 4 : index
    %c0_161 = arith.constant 0 : index
    %476 = vector.load %arg6[%c0_159, %c4_160, %c0_161] : memref<1x8x32xf32, #tpu.memory_space<vmem>>, vector<1x1x32xf32>
    %477 = vector.shape_cast %476 : vector<1x1x32xf32> to vector<1x32xf32>
    %478 = vector.shape_cast %472 : vector<1x32xf32> to vector<1x1x32xf32>
    tpu.vector_store %arg6[%c0_159, %c4_160, %c0_161], %478 {strides = array<i32>} : memref<1x8x32xf32, #tpu.memory_space<vmem>>, vector<1x1x32xf32>,
    %c0_162 = arith.constant 0 : index
    %c3_163 = arith.constant 3 : index
    %c0_164 = arith.constant 0 : index
    %479 = vector.load %arg7[%c0_162, %c3_163, %c0_164] : memref<1x8x32xf32, #tpu.memory_space<vmem>>, vector<1x1x32xf32>
    %480 = vector.shape_cast %479 : vector<1x1x32xf32> to vector<1x32xf32>
    %481 = vector.shape_cast %475 : vector<1x32xf32> to vector<1x1x32xf32>
    tpu.vector_store %arg7[%c0_162, %c3_163, %c0_164], %481 {strides = array<i32>} : memref<1x8x32xf32, #tpu.memory_space<vmem>>, vector<1x1x32xf32>,
    %482 = vector.extract_strided_slice %251 {offsets = [0, 5, 0], sizes = [1, 1, 128], strides = [1, 1, 1]} : vector<1x8x128xf32> to vector<1x1x128xf32>
    %483 = vector.shape_cast %482 : vector<1x1x128xf32> to vector<1x128xf32>
    %cst_165 = arith.constant dense<0.000000e+00> : vector<1x128xf32>
    %484 = tpu.matmul %472, %256, %cst_165 {dimension_numbers = #tpu.dot_dimension_numbers<[1], [0], [0], [1], [0, 0, 1, 1], [], []>} : vector<1x32xf32>, vector<32x128xf32>, vector<1x128xf32> -> vector<1x128xf32>
    %485 = arith.addf %483, %484 : vector<1x128xf32>
    %486 = vector.extract_strided_slice %255 {offsets = [0, 2, 0], sizes = [1, 1, 128], strides = [1, 1, 1]} : vector<1x8x128xf32> to vector<1x1x128xf32>
    %487 = vector.shape_cast %486 : vector<1x1x128xf32> to vector<1x128xf32>
    %cst_166 = arith.constant dense<0.000000e+00> : vector<1x128xf32>
    %488 = tpu.matmul %475, %257, %cst_166 {dimension_numbers = #tpu.dot_dimension_numbers<[1], [0], [0], [1], [0, 0, 1, 1], [], []>} : vector<1x32xf32>, vector<32x128xf32>, vector<1x128xf32> -> vector<1x128xf32>
    %489 = arith.addf %487, %488 : vector<1x128xf32>
    %490 = arith.negf %485 : vector<1x128xf32>
    %491 = math.exp %490 : vector<1x128xf32>
    %cst_167 = arith.constant 1.000000e+00 : f32
    %492 = vector.broadcast %cst_167 : f32 to vector<1x128xf32>
    %493 = arith.addf %492, %491 : vector<1x128xf32>
    %494 = arith.divf %492, %493 : vector<1x128xf32>
    %495 = math.tanh %485 : vector<1x128xf32>
    %496 = arith.negf %489 : vector<1x128xf32>
    %497 = math.exp %496 : vector<1x128xf32>
    %cst_168 = arith.constant 1.000000e+00 : f32
    %498 = vector.broadcast %cst_168 : f32 to vector<1x128xf32>
    %499 = arith.addf %498, %497 : vector<1x128xf32>
    %500 = arith.divf %498, %499 : vector<1x128xf32>
    %501 = math.tanh %489 : vector<1x128xf32>
    %502 = vector.extract_strided_slice %494 {offsets = [0, 32], sizes = [1, 32], strides = [1, 1]} : vector<1x128xf32> to vector<1x32xf32>
    %503 = arith.mulf %502, %463 : vector<1x32xf32>
    %504 = vector.extract_strided_slice %494 {offsets = [0, 0], sizes = [1, 32], strides = [1, 1]} : vector<1x128xf32> to vector<1x32xf32>
    %505 = vector.extract_strided_slice %495 {offsets = [0, 64], sizes = [1, 32], strides = [1, 1]} : vector<1x128xf32> to vector<1x32xf32>
    %506 = arith.mulf %504, %505 : vector<1x32xf32>
    %507 = arith.addf %503, %506 : vector<1x32xf32>
    %508 = vector.extract_strided_slice %500 {offsets = [0, 32], sizes = [1, 32], strides = [1, 1]} : vector<1x128xf32> to vector<1x32xf32>
    %509 = arith.mulf %508, %469 : vector<1x32xf32>
    %510 = vector.extract_strided_slice %500 {offsets = [0, 0], sizes = [1, 32], strides = [1, 1]} : vector<1x128xf32> to vector<1x32xf32>
    %511 = vector.extract_strided_slice %501 {offsets = [0, 64], sizes = [1, 32], strides = [1, 1]} : vector<1x128xf32> to vector<1x32xf32>
    %512 = arith.mulf %510, %511 : vector<1x32xf32>
    %513 = arith.addf %509, %512 : vector<1x32xf32>
    %514 = vector.extract_strided_slice %494 {offsets = [0, 96], sizes = [1, 32], strides = [1, 1]} : vector<1x128xf32> to vector<1x32xf32>
    %515 = math.tanh %507 : vector<1x32xf32>
    %516 = arith.mulf %514, %515 : vector<1x32xf32>
    %517 = vector.extract_strided_slice %500 {offsets = [0, 96], sizes = [1, 32], strides = [1, 1]} : vector<1x128xf32> to vector<1x32xf32>
    %518 = math.tanh %513 : vector<1x32xf32>
    %519 = arith.mulf %517, %518 : vector<1x32xf32>
    %c0_169 = arith.constant 0 : index
    %c5_170 = arith.constant 5 : index
    %c0_171 = arith.constant 0 : index
    %520 = vector.load %arg6[%c0_169, %c5_170, %c0_171] : memref<1x8x32xf32, #tpu.memory_space<vmem>>, vector<1x1x32xf32>
    %521 = vector.shape_cast %520 : vector<1x1x32xf32> to vector<1x32xf32>
    %522 = vector.shape_cast %516 : vector<1x32xf32> to vector<1x1x32xf32>
    tpu.vector_store %arg6[%c0_169, %c5_170, %c0_171], %522 {strides = array<i32>} : memref<1x8x32xf32, #tpu.memory_space<vmem>>, vector<1x1x32xf32>,
    %c0_172 = arith.constant 0 : index
    %c2_173 = arith.constant 2 : index
    %c0_174 = arith.constant 0 : index
    %523 = vector.load %arg7[%c0_172, %c2_173, %c0_174] : memref<1x8x32xf32, #tpu.memory_space<vmem>>, vector<1x1x32xf32>
    %524 = vector.shape_cast %523 : vector<1x1x32xf32> to vector<1x32xf32>
    %525 = vector.shape_cast %519 : vector<1x32xf32> to vector<1x1x32xf32>
    tpu.vector_store %arg7[%c0_172, %c2_173, %c0_174], %525 {strides = array<i32>} : memref<1x8x32xf32, #tpu.memory_space<vmem>>, vector<1x1x32xf32>,
    %526 = vector.extract_strided_slice %251 {offsets = [0, 6, 0], sizes = [1, 1, 128], strides = [1, 1, 1]} : vector<1x8x128xf32> to vector<1x1x128xf32>
    %527 = vector.shape_cast %526 : vector<1x1x128xf32> to vector<1x128xf32>
    %cst_175 = arith.constant dense<0.000000e+00> : vector<1x128xf32>
    %528 = tpu.matmul %516, %256, %cst_175 {dimension_numbers = #tpu.dot_dimension_numbers<[1], [0], [0], [1], [0, 0, 1, 1], [], []>} : vector<1x32xf32>, vector<32x128xf32>, vector<1x128xf32> -> vector<1x128xf32>
    %529 = arith.addf %527, %528 : vector<1x128xf32>
    %530 = vector.extract_strided_slice %255 {offsets = [0, 1, 0], sizes = [1, 1, 128], strides = [1, 1, 1]} : vector<1x8x128xf32> to vector<1x1x128xf32>
    %531 = vector.shape_cast %530 : vector<1x1x128xf32> to vector<1x128xf32>
    %cst_176 = arith.constant dense<0.000000e+00> : vector<1x128xf32>
    %532 = tpu.matmul %519, %257, %cst_176 {dimension_numbers = #tpu.dot_dimension_numbers<[1], [0], [0], [1], [0, 0, 1, 1], [], []>} : vector<1x32xf32>, vector<32x128xf32>, vector<1x128xf32> -> vector<1x128xf32>
    %533 = arith.addf %531, %532 : vector<1x128xf32>
    %534 = arith.negf %529 : vector<1x128xf32>
    %535 = math.exp %534 : vector<1x128xf32>
    %cst_177 = arith.constant 1.000000e+00 : f32
    %536 = vector.broadcast %cst_177 : f32 to vector<1x128xf32>
    %537 = arith.addf %536, %535 : vector<1x128xf32>
    %538 = arith.divf %536, %537 : vector<1x128xf32>
    %539 = math.tanh %529 : vector<1x128xf32>
    %540 = arith.negf %533 : vector<1x128xf32>
    %541 = math.exp %540 : vector<1x128xf32>
    %cst_178 = arith.constant 1.000000e+00 : f32
    %542 = vector.broadcast %cst_178 : f32 to vector<1x128xf32>
    %543 = arith.addf %542, %541 : vector<1x128xf32>
    %544 = arith.divf %542, %543 : vector<1x128xf32>
    %545 = math.tanh %533 : vector<1x128xf32>
    %546 = vector.extract_strided_slice %538 {offsets = [0, 32], sizes = [1, 32], strides = [1, 1]} : vector<1x128xf32> to vector<1x32xf32>
    %547 = arith.mulf %546, %507 : vector<1x32xf32>
    %548 = vector.extract_strided_slice %538 {offsets = [0, 0], sizes = [1, 32], strides = [1, 1]} : vector<1x128xf32> to vector<1x32xf32>
    %549 = vector.extract_strided_slice %539 {offsets = [0, 64], sizes = [1, 32], strides = [1, 1]} : vector<1x128xf32> to vector<1x32xf32>
    %550 = arith.mulf %548, %549 : vector<1x32xf32>
    %551 = arith.addf %547, %550 : vector<1x32xf32>
    %552 = vector.extract_strided_slice %544 {offsets = [0, 32], sizes = [1, 32], strides = [1, 1]} : vector<1x128xf32> to vector<1x32xf32>
    %553 = arith.mulf %552, %513 : vector<1x32xf32>
    %554 = vector.extract_strided_slice %544 {offsets = [0, 0], sizes = [1, 32], strides = [1, 1]} : vector<1x128xf32> to vector<1x32xf32>
    %555 = vector.extract_strided_slice %545 {offsets = [0, 64], sizes = [1, 32], strides = [1, 1]} : vector<1x128xf32> to vector<1x32xf32>
    %556 = arith.mulf %554, %555 : vector<1x32xf32>
    %557 = arith.addf %553, %556 : vector<1x32xf32>
    %558 = vector.extract_strided_slice %538 {offsets = [0, 96], sizes = [1, 32], strides = [1, 1]} : vector<1x128xf32> to vector<1x32xf32>
    %559 = math.tanh %551 : vector<1x32xf32>
    %560 = arith.mulf %558, %559 : vector<1x32xf32>
    %561 = vector.extract_strided_slice %544 {offsets = [0, 96], sizes = [1, 32], strides = [1, 1]} : vector<1x128xf32> to vector<1x32xf32>
    %562 = math.tanh %557 : vector<1x32xf32>
    %563 = arith.mulf %561, %562 : vector<1x32xf32>
    %c0_179 = arith.constant 0 : index
    %c6_180 = arith.constant 6 : index
    %c0_181 = arith.constant 0 : index
    %564 = vector.load %arg6[%c0_179, %c6_180, %c0_181] : memref<1x8x32xf32, #tpu.memory_space<vmem>>, vector<1x1x32xf32>
    %565 = vector.shape_cast %564 : vector<1x1x32xf32> to vector<1x32xf32>
    %566 = vector.shape_cast %560 : vector<1x32xf32> to vector<1x1x32xf32>
    tpu.vector_store %arg6[%c0_179, %c6_180, %c0_181], %566 {strides = array<i32>} : memref<1x8x32xf32, #tpu.memory_space<vmem>>, vector<1x1x32xf32>,
    %c0_182 = arith.constant 0 : index
    %c1_183 = arith.constant 1 : index
    %c0_184 = arith.constant 0 : index
    %567 = vector.load %arg7[%c0_182, %c1_183, %c0_184] : memref<1x8x32xf32, #tpu.memory_space<vmem>>, vector<1x1x32xf32>
    %568 = vector.shape_cast %567 : vector<1x1x32xf32> to vector<1x32xf32>
    %569 = vector.shape_cast %563 : vector<1x32xf32> to vector<1x1x32xf32>
    tpu.vector_store %arg7[%c0_182, %c1_183, %c0_184], %569 {strides = array<i32>} : memref<1x8x32xf32, #tpu.memory_space<vmem>>, vector<1x1x32xf32>,
    %570 = vector.extract_strided_slice %251 {offsets = [0, 7, 0], sizes = [1, 1, 128], strides = [1, 1, 1]} : vector<1x8x128xf32> to vector<1x1x128xf32>
    %571 = vector.shape_cast %570 : vector<1x1x128xf32> to vector<1x128xf32>
    %cst_185 = arith.constant dense<0.000000e+00> : vector<1x128xf32>
    %572 = tpu.matmul %560, %256, %cst_185 {dimension_numbers = #tpu.dot_dimension_numbers<[1], [0], [0], [1], [0, 0, 1, 1], [], []>} : vector<1x32xf32>, vector<32x128xf32>, vector<1x128xf32> -> vector<1x128xf32>
    %573 = arith.addf %571, %572 : vector<1x128xf32>
    %574 = vector.extract_strided_slice %255 {offsets = [0, 0, 0], sizes = [1, 1, 128], strides = [1, 1, 1]} : vector<1x8x128xf32> to vector<1x1x128xf32>
    %575 = vector.shape_cast %574 : vector<1x1x128xf32> to vector<1x128xf32>
    %cst_186 = arith.constant dense<0.000000e+00> : vector<1x128xf32>
    %576 = tpu.matmul %563, %257, %cst_186 {dimension_numbers = #tpu.dot_dimension_numbers<[1], [0], [0], [1], [0, 0, 1, 1], [], []>} : vector<1x32xf32>, vector<32x128xf32>, vector<1x128xf32> -> vector<1x128xf32>
    %577 = arith.addf %575, %576 : vector<1x128xf32>
    %578 = arith.negf %573 : vector<1x128xf32>
    %579 = math.exp %578 : vector<1x128xf32>
    %cst_187 = arith.constant 1.000000e+00 : f32
    %580 = vector.broadcast %cst_187 : f32 to vector<1x128xf32>
    %581 = arith.addf %580, %579 : vector<1x128xf32>
    %582 = arith.divf %580, %581 : vector<1x128xf32>
    %583 = math.tanh %573 : vector<1x128xf32>
    %584 = arith.negf %577 : vector<1x128xf32>
    %585 = math.exp %584 : vector<1x128xf32>
    %cst_188 = arith.constant 1.000000e+00 : f32
    %586 = vector.broadcast %cst_188 : f32 to vector<1x128xf32>
    %587 = arith.addf %586, %585 : vector<1x128xf32>
    %588 = arith.divf %586, %587 : vector<1x128xf32>
    %589 = math.tanh %577 : vector<1x128xf32>
    %590 = vector.extract_strided_slice %582 {offsets = [0, 32], sizes = [1, 32], strides = [1, 1]} : vector<1x128xf32> to vector<1x32xf32>
    %591 = arith.mulf %590, %551 : vector<1x32xf32>
    %592 = vector.extract_strided_slice %582 {offsets = [0, 0], sizes = [1, 32], strides = [1, 1]} : vector<1x128xf32> to vector<1x32xf32>
    %593 = vector.extract_strided_slice %583 {offsets = [0, 64], sizes = [1, 32], strides = [1, 1]} : vector<1x128xf32> to vector<1x32xf32>
    %594 = arith.mulf %592, %593 : vector<1x32xf32>
    %595 = arith.addf %591, %594 : vector<1x32xf32>
    %596 = vector.extract_strided_slice %588 {offsets = [0, 32], sizes = [1, 32], strides = [1, 1]} : vector<1x128xf32> to vector<1x32xf32>
    %597 = arith.mulf %596, %557 : vector<1x32xf32>
    %598 = vector.extract_strided_slice %588 {offsets = [0, 0], sizes = [1, 32], strides = [1, 1]} : vector<1x128xf32> to vector<1x32xf32>
    %599 = vector.extract_strided_slice %589 {offsets = [0, 64], sizes = [1, 32], strides = [1, 1]} : vector<1x128xf32> to vector<1x32xf32>
    %600 = arith.mulf %598, %599 : vector<1x32xf32>
    %601 = arith.addf %597, %600 : vector<1x32xf32>
    %602 = vector.extract_strided_slice %582 {offsets = [0, 96], sizes = [1, 32], strides = [1, 1]} : vector<1x128xf32> to vector<1x32xf32>
    %603 = math.tanh %595 : vector<1x32xf32>
    %604 = arith.mulf %602, %603 : vector<1x32xf32>
    %605 = vector.extract_strided_slice %588 {offsets = [0, 96], sizes = [1, 32], strides = [1, 1]} : vector<1x128xf32> to vector<1x32xf32>
    %606 = math.tanh %601 : vector<1x32xf32>
    %607 = arith.mulf %605, %606 : vector<1x32xf32>
    %c0_189 = arith.constant 0 : index
    %c7_190 = arith.constant 7 : index
    %c0_191 = arith.constant 0 : index
    %608 = vector.load %arg6[%c0_189, %c7_190, %c0_191] : memref<1x8x32xf32, #tpu.memory_space<vmem>>, vector<1x1x32xf32>
    %609 = vector.shape_cast %608 : vector<1x1x32xf32> to vector<1x32xf32>
    %610 = vector.shape_cast %604 : vector<1x32xf32> to vector<1x1x32xf32>
    tpu.vector_store %arg6[%c0_189, %c7_190, %c0_191], %610 {strides = array<i32>} : memref<1x8x32xf32, #tpu.memory_space<vmem>>, vector<1x1x32xf32>,
    %c0_192 = arith.constant 0 : index
    %c0_193 = arith.constant 0 : index
    %c0_194 = arith.constant 0 : index
    %611 = vector.load %arg7[%c0_192, %c0_193, %c0_194] : memref<1x8x32xf32, #tpu.memory_space<vmem>>, vector<1x1x32xf32>
    %612 = vector.shape_cast %611 : vector<1x1x32xf32> to vector<1x32xf32>
    %613 = vector.shape_cast %607 : vector<1x32xf32> to vector<1x1x32xf32>
    tpu.vector_store %arg7[%c0_192, %c0_193, %c0_194], %613 {strides = array<i32>} : memref<1x8x32xf32, #tpu.memory_space<vmem>>, vector<1x1x32xf32>,
    %c0_195 = arith.constant 0 : index
    %c0_196 = arith.constant 0 : index
    %c0_197 = arith.constant 0 : index
    %614 = vector.load %arg6[%c0_195, %c0_196, %c0_197] : memref<1x8x32xf32, #tpu.memory_space<vmem>>, vector<1x8x32xf32>
    %615 = vector.shape_cast %614 : vector<1x8x32xf32> to vector<8x32xf32>
    %c0_198 = arith.constant 0 : index
    %c0_199 = arith.constant 0 : index
    %c0_200 = arith.constant 0 : index
    %616 = vector.load %arg7[%c0_198, %c0_199, %c0_200] : memref<1x8x32xf32, #tpu.memory_space<vmem>>, vector<1x8x32xf32>
    %617 = vector.shape_cast %616 : vector<1x8x32xf32> to vector<8x32xf32>
    %c80 = arith.constant 80 : index
    %c0_201 = arith.constant 0 : index
    %618 = vector.load %arg4[%c80, %c0_201] : memref<400x128xf32, #tpu.memory_space<vmem>>, vector<32x128xf32>
    %c112 = arith.constant 112 : index
    %c0_202 = arith.constant 0 : index
    %619 = vector.load %arg4[%c112, %c0_202] : memref<400x128xf32, #tpu.memory_space<vmem>>, vector<32x128xf32>
    %c26 = arith.constant 26 : index
    %c0_203 = arith.constant 0 : index
    %620 = vector.load %arg3[%c26, %c0_203] : memref<29x128xf32, #tpu.memory_space<vmem>>, vector<1x128xf32>
    %cst_204 = arith.constant dense<0.000000e+00> : vector<8x128xf32>
    %621 = tpu.matmul %615, %618, %cst_204 {dimension_numbers = #tpu.dot_dimension_numbers<[1], [0], [0], [1], [0, 0, 1, 1], [], []>} : vector<8x32xf32>, vector<32x128xf32>, vector<8x128xf32> -> vector<8x128xf32>
    %cst_205 = arith.constant dense<0.000000e+00> : vector<8x128xf32>
    %622 = tpu.matmul %617, %619, %cst_205 {dimension_numbers = #tpu.dot_dimension_numbers<[1], [0], [0], [1], [0, 0, 1, 1], [], []>} : vector<8x32xf32>, vector<32x128xf32>, vector<8x128xf32> -> vector<8x128xf32>
    %623 = arith.addf %621, %622 : vector<8x128xf32>
    %624 = vector.broadcast %620 : vector<1x128xf32> to vector<8x128xf32>
    %625 = arith.addf %623, %624 : vector<8x128xf32>
    %626 = vector.shape_cast %625 : vector<8x128xf32> to vector<1x8x128xf32>
    %c144 = arith.constant 144 : index
    %c0_206 = arith.constant 0 : index
    %627 = vector.load %arg4[%c144, %c0_206] : memref<400x128xf32, #tpu.memory_space<vmem>>, vector<32x128xf32>
    %c176 = arith.constant 176 : index
    %c0_207 = arith.constant 0 : index
    %628 = vector.load %arg4[%c176, %c0_207] : memref<400x128xf32, #tpu.memory_space<vmem>>, vector<32x128xf32>
    %c27_208 = arith.constant 27 : index
    %c0_209 = arith.constant 0 : index
    %629 = vector.load %arg3[%c27_208, %c0_209] : memref<29x128xf32, #tpu.memory_space<vmem>>, vector<1x128xf32>
    %cst_210 = arith.constant dense<0.000000e+00> : vector<8x128xf32>
    %630 = tpu.matmul %615, %627, %cst_210 {dimension_numbers = #tpu.dot_dimension_numbers<[1], [0], [0], [1], [0, 0, 1, 1], [], []>} : vector<8x32xf32>, vector<32x128xf32>, vector<8x128xf32> -> vector<8x128xf32>
    %cst_211 = arith.constant dense<0.000000e+00> : vector<8x128xf32>
    %631 = tpu.matmul %617, %628, %cst_211 {dimension_numbers = #tpu.dot_dimension_numbers<[1], [0], [0], [1], [0, 0, 1, 1], [], []>} : vector<8x32xf32>, vector<32x128xf32>, vector<8x128xf32> -> vector<8x128xf32>
    %632 = arith.addf %630, %631 : vector<8x128xf32>
    %633 = vector.broadcast %629 : vector<1x128xf32> to vector<8x128xf32>
    %634 = arith.addf %632, %633 : vector<8x128xf32>
    %635 = vector.shape_cast %634 : vector<8x128xf32> to vector<1x8x128xf32>
    %c272 = arith.constant 272 : index
    %c0_212 = arith.constant 0 : index
    %636 = vector.load %arg4[%c272, %c0_212] : memref<400x128xf32, #tpu.memory_space<vmem>>, vector<32x128xf32>
    %c304 = arith.constant 304 : index
    %c0_213 = arith.constant 0 : index
    %637 = vector.load %arg4[%c304, %c0_213] : memref<400x128xf32, #tpu.memory_space<vmem>>, vector<32x128xf32>
    %cst_214 = arith.constant 0.000000e+00 : f32
    %638 = vector.broadcast %cst_214 : f32 to vector<1x32xf32>
    %cst_215 = arith.constant 0.000000e+00 : f32
    %639 = vector.broadcast %cst_215 : f32 to vector<1x32xf32>
    %cst_216 = arith.constant 0.000000e+00 : f32
    %640 = vector.broadcast %cst_216 : f32 to vector<1x32xf32>
    %cst_217 = arith.constant 0.000000e+00 : f32
    %641 = vector.broadcast %cst_217 : f32 to vector<1x32xf32>
    %642 = vector.extract_strided_slice %626 {offsets = [0, 0, 0], sizes = [1, 1, 128], strides = [1, 1, 1]} : vector<1x8x128xf32> to vector<1x1x128xf32>
    %643 = vector.shape_cast %642 : vector<1x1x128xf32> to vector<1x128xf32>
    %cst_218 = arith.constant dense<0.000000e+00> : vector<1x128xf32>
    %644 = tpu.matmul %638, %636, %cst_218 {dimension_numbers = #tpu.dot_dimension_numbers<[1], [0], [0], [1], [0, 0, 1, 1], [], []>} : vector<1x32xf32>, vector<32x128xf32>, vector<1x128xf32> -> vector<1x128xf32>
    %645 = arith.addf %643, %644 : vector<1x128xf32>
    %646 = vector.extract_strided_slice %635 {offsets = [0, 7, 0], sizes = [1, 1, 128], strides = [1, 1, 1]} : vector<1x8x128xf32> to vector<1x1x128xf32>
    %647 = vector.shape_cast %646 : vector<1x1x128xf32> to vector<1x128xf32>
    %cst_219 = arith.constant dense<0.000000e+00> : vector<1x128xf32>
    %648 = tpu.matmul %640, %637, %cst_219 {dimension_numbers = #tpu.dot_dimension_numbers<[1], [0], [0], [1], [0, 0, 1, 1], [], []>} : vector<1x32xf32>, vector<32x128xf32>, vector<1x128xf32> -> vector<1x128xf32>
    %649 = arith.addf %647, %648 : vector<1x128xf32>
    %650 = arith.negf %645 : vector<1x128xf32>
    %651 = math.exp %650 : vector<1x128xf32>
    %cst_220 = arith.constant 1.000000e+00 : f32
    %652 = vector.broadcast %cst_220 : f32 to vector<1x128xf32>
    %653 = arith.addf %652, %651 : vector<1x128xf32>
    %654 = arith.divf %652, %653 : vector<1x128xf32>
    %655 = math.tanh %645 : vector<1x128xf32>
    %656 = arith.negf %649 : vector<1x128xf32>
    %657 = math.exp %656 : vector<1x128xf32>
    %cst_221 = arith.constant 1.000000e+00 : f32
    %658 = vector.broadcast %cst_221 : f32 to vector<1x128xf32>
    %659 = arith.addf %658, %657 : vector<1x128xf32>
    %660 = arith.divf %658, %659 : vector<1x128xf32>
    %661 = math.tanh %649 : vector<1x128xf32>
    %662 = vector.extract_strided_slice %654 {offsets = [0, 32], sizes = [1, 32], strides = [1, 1]} : vector<1x128xf32> to vector<1x32xf32>
    %663 = arith.mulf %662, %639 : vector<1x32xf32>
    %664 = vector.extract_strided_slice %654 {offsets = [0, 0], sizes = [1, 32], strides = [1, 1]} : vector<1x128xf32> to vector<1x32xf32>
    %665 = vector.extract_strided_slice %655 {offsets = [0, 64], sizes = [1, 32], strides = [1, 1]} : vector<1x128xf32> to vector<1x32xf32>
    %666 = arith.mulf %664, %665 : vector<1x32xf32>
    %667 = arith.addf %663, %666 : vector<1x32xf32>
    %668 = vector.extract_strided_slice %660 {offsets = [0, 32], sizes = [1, 32], strides = [1, 1]} : vector<1x128xf32> to vector<1x32xf32>
    %669 = arith.mulf %668, %641 : vector<1x32xf32>
    %670 = vector.extract_strided_slice %660 {offsets = [0, 0], sizes = [1, 32], strides = [1, 1]} : vector<1x128xf32> to vector<1x32xf32>
    %671 = vector.extract_strided_slice %661 {offsets = [0, 64], sizes = [1, 32], strides = [1, 1]} : vector<1x128xf32> to vector<1x32xf32>
    %672 = arith.mulf %670, %671 : vector<1x32xf32>
    %673 = arith.addf %669, %672 : vector<1x32xf32>
    %674 = vector.extract_strided_slice %654 {offsets = [0, 96], sizes = [1, 32], strides = [1, 1]} : vector<1x128xf32> to vector<1x32xf32>
    %675 = math.tanh %667 : vector<1x32xf32>
    %676 = arith.mulf %674, %675 : vector<1x32xf32>
    %677 = vector.extract_strided_slice %660 {offsets = [0, 96], sizes = [1, 32], strides = [1, 1]} : vector<1x128xf32> to vector<1x32xf32>
    %678 = math.tanh %673 : vector<1x32xf32>
    %679 = arith.mulf %677, %678 : vector<1x32xf32>
    %c0_222 = arith.constant 0 : index
    %c0_223 = arith.constant 0 : index
    %c0_224 = arith.constant 0 : index
    %680 = vector.load %arg8[%c0_222, %c0_223, %c0_224] : memref<1x8x32xf32, #tpu.memory_space<vmem>>, vector<1x1x32xf32>
    %681 = vector.shape_cast %680 : vector<1x1x32xf32> to vector<1x32xf32>
    %682 = vector.shape_cast %676 : vector<1x32xf32> to vector<1x1x32xf32>
    tpu.vector_store %arg8[%c0_222, %c0_223, %c0_224], %682 {strides = array<i32>} : memref<1x8x32xf32, #tpu.memory_space<vmem>>, vector<1x1x32xf32>,
    %c0_225 = arith.constant 0 : index
    %c7_226 = arith.constant 7 : index
    %c0_227 = arith.constant 0 : index
    %683 = vector.load %arg9[%c0_225, %c7_226, %c0_227] : memref<1x8x32xf32, #tpu.memory_space<vmem>>, vector<1x1x32xf32>
    %684 = vector.shape_cast %683 : vector<1x1x32xf32> to vector<1x32xf32>
    %685 = vector.shape_cast %679 : vector<1x32xf32> to vector<1x1x32xf32>
    tpu.vector_store %arg9[%c0_225, %c7_226, %c0_227], %685 {strides = array<i32>} : memref<1x8x32xf32, #tpu.memory_space<vmem>>, vector<1x1x32xf32>,
    %686 = vector.extract_strided_slice %626 {offsets = [0, 1, 0], sizes = [1, 1, 128], strides = [1, 1, 1]} : vector<1x8x128xf32> to vector<1x1x128xf32>
    %687 = vector.shape_cast %686 : vector<1x1x128xf32> to vector<1x128xf32>
    %cst_228 = arith.constant dense<0.000000e+00> : vector<1x128xf32>
    %688 = tpu.matmul %676, %636, %cst_228 {dimension_numbers = #tpu.dot_dimension_numbers<[1], [0], [0], [1], [0, 0, 1, 1], [], []>} : vector<1x32xf32>, vector<32x128xf32>, vector<1x128xf32> -> vector<1x128xf32>
    %689 = arith.addf %687, %688 : vector<1x128xf32>
    %690 = vector.extract_strided_slice %635 {offsets = [0, 6, 0], sizes = [1, 1, 128], strides = [1, 1, 1]} : vector<1x8x128xf32> to vector<1x1x128xf32>
    %691 = vector.shape_cast %690 : vector<1x1x128xf32> to vector<1x128xf32>
    %cst_229 = arith.constant dense<0.000000e+00> : vector<1x128xf32>
    %692 = tpu.matmul %679, %637, %cst_229 {dimension_numbers = #tpu.dot_dimension_numbers<[1], [0], [0], [1], [0, 0, 1, 1], [], []>} : vector<1x32xf32>, vector<32x128xf32>, vector<1x128xf32> -> vector<1x128xf32>
    %693 = arith.addf %691, %692 : vector<1x128xf32>
    %694 = arith.negf %689 : vector<1x128xf32>
    %695 = math.exp %694 : vector<1x128xf32>
    %cst_230 = arith.constant 1.000000e+00 : f32
    %696 = vector.broadcast %cst_230 : f32 to vector<1x128xf32>
    %697 = arith.addf %696, %695 : vector<1x128xf32>
    %698 = arith.divf %696, %697 : vector<1x128xf32>
    %699 = math.tanh %689 : vector<1x128xf32>
    %700 = arith.negf %693 : vector<1x128xf32>
    %701 = math.exp %700 : vector<1x128xf32>
    %cst_231 = arith.constant 1.000000e+00 : f32
    %702 = vector.broadcast %cst_231 : f32 to vector<1x128xf32>
    %703 = arith.addf %702, %701 : vector<1x128xf32>
    %704 = arith.divf %702, %703 : vector<1x128xf32>
    %705 = math.tanh %693 : vector<1x128xf32>
    %706 = vector.extract_strided_slice %698 {offsets = [0, 32], sizes = [1, 32], strides = [1, 1]} : vector<1x128xf32> to vector<1x32xf32>
    %707 = arith.mulf %706, %667 : vector<1x32xf32>
    %708 = vector.extract_strided_slice %698 {offsets = [0, 0], sizes = [1, 32], strides = [1, 1]} : vector<1x128xf32> to vector<1x32xf32>
    %709 = vector.extract_strided_slice %699 {offsets = [0, 64], sizes = [1, 32], strides = [1, 1]} : vector<1x128xf32> to vector<1x32xf32>
    %710 = arith.mulf %708, %709 : vector<1x32xf32>
    %711 = arith.addf %707, %710 : vector<1x32xf32>
    %712 = vector.extract_strided_slice %704 {offsets = [0, 32], sizes = [1, 32], strides = [1, 1]} : vector<1x128xf32> to vector<1x32xf32>
    %713 = arith.mulf %712, %673 : vector<1x32xf32>
    %714 = vector.extract_strided_slice %704 {offsets = [0, 0], sizes = [1, 32], strides = [1, 1]} : vector<1x128xf32> to vector<1x32xf32>
    %715 = vector.extract_strided_slice %705 {offsets = [0, 64], sizes = [1, 32], strides = [1, 1]} : vector<1x128xf32> to vector<1x32xf32>
    %716 = arith.mulf %714, %715 : vector<1x32xf32>
    %717 = arith.addf %713, %716 : vector<1x32xf32>
    %718 = vector.extract_strided_slice %698 {offsets = [0, 96], sizes = [1, 32], strides = [1, 1]} : vector<1x128xf32> to vector<1x32xf32>
    %719 = math.tanh %711 : vector<1x32xf32>
    %720 = arith.mulf %718, %719 : vector<1x32xf32>
    %721 = vector.extract_strided_slice %704 {offsets = [0, 96], sizes = [1, 32], strides = [1, 1]} : vector<1x128xf32> to vector<1x32xf32>
    %722 = math.tanh %717 : vector<1x32xf32>
    %723 = arith.mulf %721, %722 : vector<1x32xf32>
    %c0_232 = arith.constant 0 : index
    %c1_233 = arith.constant 1 : index
    %c0_234 = arith.constant 0 : index
    %724 = vector.load %arg8[%c0_232, %c1_233, %c0_234] : memref<1x8x32xf32, #tpu.memory_space<vmem>>, vector<1x1x32xf32>
    %725 = vector.shape_cast %724 : vector<1x1x32xf32> to vector<1x32xf32>
    %726 = vector.shape_cast %720 : vector<1x32xf32> to vector<1x1x32xf32>
    tpu.vector_store %arg8[%c0_232, %c1_233, %c0_234], %726 {strides = array<i32>} : memref<1x8x32xf32, #tpu.memory_space<vmem>>, vector<1x1x32xf32>,
    %c0_235 = arith.constant 0 : index
    %c6_236 = arith.constant 6 : index
    %c0_237 = arith.constant 0 : index
    %727 = vector.load %arg9[%c0_235, %c6_236, %c0_237] : memref<1x8x32xf32, #tpu.memory_space<vmem>>, vector<1x1x32xf32>
    %728 = vector.shape_cast %727 : vector<1x1x32xf32> to vector<1x32xf32>
    %729 = vector.shape_cast %723 : vector<1x32xf32> to vector<1x1x32xf32>
    tpu.vector_store %arg9[%c0_235, %c6_236, %c0_237], %729 {strides = array<i32>} : memref<1x8x32xf32, #tpu.memory_space<vmem>>, vector<1x1x32xf32>,
    %730 = vector.extract_strided_slice %626 {offsets = [0, 2, 0], sizes = [1, 1, 128], strides = [1, 1, 1]} : vector<1x8x128xf32> to vector<1x1x128xf32>
    %731 = vector.shape_cast %730 : vector<1x1x128xf32> to vector<1x128xf32>
    %cst_238 = arith.constant dense<0.000000e+00> : vector<1x128xf32>
    %732 = tpu.matmul %720, %636, %cst_238 {dimension_numbers = #tpu.dot_dimension_numbers<[1], [0], [0], [1], [0, 0, 1, 1], [], []>} : vector<1x32xf32>, vector<32x128xf32>, vector<1x128xf32> -> vector<1x128xf32>
    %733 = arith.addf %731, %732 : vector<1x128xf32>
    %734 = vector.extract_strided_slice %635 {offsets = [0, 5, 0], sizes = [1, 1, 128], strides = [1, 1, 1]} : vector<1x8x128xf32> to vector<1x1x128xf32>
    %735 = vector.shape_cast %734 : vector<1x1x128xf32> to vector<1x128xf32>
    %cst_239 = arith.constant dense<0.000000e+00> : vector<1x128xf32>
    %736 = tpu.matmul %723, %637, %cst_239 {dimension_numbers = #tpu.dot_dimension_numbers<[1], [0], [0], [1], [0, 0, 1, 1], [], []>} : vector<1x32xf32>, vector<32x128xf32>, vector<1x128xf32> -> vector<1x128xf32>
    %737 = arith.addf %735, %736 : vector<1x128xf32>
    %738 = arith.negf %733 : vector<1x128xf32>
    %739 = math.exp %738 : vector<1x128xf32>
    %cst_240 = arith.constant 1.000000e+00 : f32
    %740 = vector.broadcast %cst_240 : f32 to vector<1x128xf32>
    %741 = arith.addf %740, %739 : vector<1x128xf32>
    %742 = arith.divf %740, %741 : vector<1x128xf32>
    %743 = math.tanh %733 : vector<1x128xf32>
    %744 = arith.negf %737 : vector<1x128xf32>
    %745 = math.exp %744 : vector<1x128xf32>
    %cst_241 = arith.constant 1.000000e+00 : f32
    %746 = vector.broadcast %cst_241 : f32 to vector<1x128xf32>
    %747 = arith.addf %746, %745 : vector<1x128xf32>
    %748 = arith.divf %746, %747 : vector<1x128xf32>
    %749 = math.tanh %737 : vector<1x128xf32>
    %750 = vector.extract_strided_slice %742 {offsets = [0, 32], sizes = [1, 32], strides = [1, 1]} : vector<1x128xf32> to vector<1x32xf32>
    %751 = arith.mulf %750, %711 : vector<1x32xf32>
    %752 = vector.extract_strided_slice %742 {offsets = [0, 0], sizes = [1, 32], strides = [1, 1]} : vector<1x128xf32> to vector<1x32xf32>
    %753 = vector.extract_strided_slice %743 {offsets = [0, 64], sizes = [1, 32], strides = [1, 1]} : vector<1x128xf32> to vector<1x32xf32>
    %754 = arith.mulf %752, %753 : vector<1x32xf32>
    %755 = arith.addf %751, %754 : vector<1x32xf32>
    %756 = vector.extract_strided_slice %748 {offsets = [0, 32], sizes = [1, 32], strides = [1, 1]} : vector<1x128xf32> to vector<1x32xf32>
    %757 = arith.mulf %756, %717 : vector<1x32xf32>
    %758 = vector.extract_strided_slice %748 {offsets = [0, 0], sizes = [1, 32], strides = [1, 1]} : vector<1x128xf32> to vector<1x32xf32>
    %759 = vector.extract_strided_slice %749 {offsets = [0, 64], sizes = [1, 32], strides = [1, 1]} : vector<1x128xf32> to vector<1x32xf32>
    %760 = arith.mulf %758, %759 : vector<1x32xf32>
    %761 = arith.addf %757, %760 : vector<1x32xf32>
    %762 = vector.extract_strided_slice %742 {offsets = [0, 96], sizes = [1, 32], strides = [1, 1]} : vector<1x128xf32> to vector<1x32xf32>
    %763 = math.tanh %755 : vector<1x32xf32>
    %764 = arith.mulf %762, %763 : vector<1x32xf32>
    %765 = vector.extract_strided_slice %748 {offsets = [0, 96], sizes = [1, 32], strides = [1, 1]} : vector<1x128xf32> to vector<1x32xf32>
    %766 = math.tanh %761 : vector<1x32xf32>
    %767 = arith.mulf %765, %766 : vector<1x32xf32>
    %c0_242 = arith.constant 0 : index
    %c2_243 = arith.constant 2 : index
    %c0_244 = arith.constant 0 : index
    %768 = vector.load %arg8[%c0_242, %c2_243, %c0_244] : memref<1x8x32xf32, #tpu.memory_space<vmem>>, vector<1x1x32xf32>
    %769 = vector.shape_cast %768 : vector<1x1x32xf32> to vector<1x32xf32>
    %770 = vector.shape_cast %764 : vector<1x32xf32> to vector<1x1x32xf32>
    tpu.vector_store %arg8[%c0_242, %c2_243, %c0_244], %770 {strides = array<i32>} : memref<1x8x32xf32, #tpu.memory_space<vmem>>, vector<1x1x32xf32>,
    %c0_245 = arith.constant 0 : index
    %c5_246 = arith.constant 5 : index
    %c0_247 = arith.constant 0 : index
    %771 = vector.load %arg9[%c0_245, %c5_246, %c0_247] : memref<1x8x32xf32, #tpu.memory_space<vmem>>, vector<1x1x32xf32>
    %772 = vector.shape_cast %771 : vector<1x1x32xf32> to vector<1x32xf32>
    %773 = vector.shape_cast %767 : vector<1x32xf32> to vector<1x1x32xf32>
    tpu.vector_store %arg9[%c0_245, %c5_246, %c0_247], %773 {strides = array<i32>} : memref<1x8x32xf32, #tpu.memory_space<vmem>>, vector<1x1x32xf32>,
    %774 = vector.extract_strided_slice %626 {offsets = [0, 3, 0], sizes = [1, 1, 128], strides = [1, 1, 1]} : vector<1x8x128xf32> to vector<1x1x128xf32>
    %775 = vector.shape_cast %774 : vector<1x1x128xf32> to vector<1x128xf32>
    %cst_248 = arith.constant dense<0.000000e+00> : vector<1x128xf32>
    %776 = tpu.matmul %764, %636, %cst_248 {dimension_numbers = #tpu.dot_dimension_numbers<[1], [0], [0], [1], [0, 0, 1, 1], [], []>} : vector<1x32xf32>, vector<32x128xf32>, vector<1x128xf32> -> vector<1x128xf32>
    %777 = arith.addf %775, %776 : vector<1x128xf32>
    %778 = vector.extract_strided_slice %635 {offsets = [0, 4, 0], sizes = [1, 1, 128], strides = [1, 1, 1]} : vector<1x8x128xf32> to vector<1x1x128xf32>
    %779 = vector.shape_cast %778 : vector<1x1x128xf32> to vector<1x128xf32>
    %cst_249 = arith.constant dense<0.000000e+00> : vector<1x128xf32>
    %780 = tpu.matmul %767, %637, %cst_249 {dimension_numbers = #tpu.dot_dimension_numbers<[1], [0], [0], [1], [0, 0, 1, 1], [], []>} : vector<1x32xf32>, vector<32x128xf32>, vector<1x128xf32> -> vector<1x128xf32>
    %781 = arith.addf %779, %780 : vector<1x128xf32>
    %782 = arith.negf %777 : vector<1x128xf32>
    %783 = math.exp %782 : vector<1x128xf32>
    %cst_250 = arith.constant 1.000000e+00 : f32
    %784 = vector.broadcast %cst_250 : f32 to vector<1x128xf32>
    %785 = arith.addf %784, %783 : vector<1x128xf32>
    %786 = arith.divf %784, %785 : vector<1x128xf32>
    %787 = math.tanh %777 : vector<1x128xf32>
    %788 = arith.negf %781 : vector<1x128xf32>
    %789 = math.exp %788 : vector<1x128xf32>
    %cst_251 = arith.constant 1.000000e+00 : f32
    %790 = vector.broadcast %cst_251 : f32 to vector<1x128xf32>
    %791 = arith.addf %790, %789 : vector<1x128xf32>
    %792 = arith.divf %790, %791 : vector<1x128xf32>
    %793 = math.tanh %781 : vector<1x128xf32>
    %794 = vector.extract_strided_slice %786 {offsets = [0, 32], sizes = [1, 32], strides = [1, 1]} : vector<1x128xf32> to vector<1x32xf32>
    %795 = arith.mulf %794, %755 : vector<1x32xf32>
    %796 = vector.extract_strided_slice %786 {offsets = [0, 0], sizes = [1, 32], strides = [1, 1]} : vector<1x128xf32> to vector<1x32xf32>
    %797 = vector.extract_strided_slice %787 {offsets = [0, 64], sizes = [1, 32], strides = [1, 1]} : vector<1x128xf32> to vector<1x32xf32>
    %798 = arith.mulf %796, %797 : vector<1x32xf32>
    %799 = arith.addf %795, %798 : vector<1x32xf32>
    %800 = vector.extract_strided_slice %792 {offsets = [0, 32], sizes = [1, 32], strides = [1, 1]} : vector<1x128xf32> to vector<1x32xf32>
    %801 = arith.mulf %800, %761 : vector<1x32xf32>
    %802 = vector.extract_strided_slice %792 {offsets = [0, 0], sizes = [1, 32], strides = [1, 1]} : vector<1x128xf32> to vector<1x32xf32>
    %803 = vector.extract_strided_slice %793 {offsets = [0, 64], sizes = [1, 32], strides = [1, 1]} : vector<1x128xf32> to vector<1x32xf32>
    %804 = arith.mulf %802, %803 : vector<1x32xf32>
    %805 = arith.addf %801, %804 : vector<1x32xf32>
    %806 = vector.extract_strided_slice %786 {offsets = [0, 96], sizes = [1, 32], strides = [1, 1]} : vector<1x128xf32> to vector<1x32xf32>
    %807 = math.tanh %799 : vector<1x32xf32>
    %808 = arith.mulf %806, %807 : vector<1x32xf32>
    %809 = vector.extract_strided_slice %792 {offsets = [0, 96], sizes = [1, 32], strides = [1, 1]} : vector<1x128xf32> to vector<1x32xf32>
    %810 = math.tanh %805 : vector<1x32xf32>
    %811 = arith.mulf %809, %810 : vector<1x32xf32>
    %c0_252 = arith.constant 0 : index
    %c3_253 = arith.constant 3 : index
    %c0_254 = arith.constant 0 : index
    %812 = vector.load %arg8[%c0_252, %c3_253, %c0_254] : memref<1x8x32xf32, #tpu.memory_space<vmem>>, vector<1x1x32xf32>
    %813 = vector.shape_cast %812 : vector<1x1x32xf32> to vector<1x32xf32>
    %814 = vector.shape_cast %808 : vector<1x32xf32> to vector<1x1x32xf32>
    tpu.vector_store %arg8[%c0_252, %c3_253, %c0_254], %814 {strides = array<i32>} : memref<1x8x32xf32, #tpu.memory_space<vmem>>, vector<1x1x32xf32>,
    %c0_255 = arith.constant 0 : index
    %c4_256 = arith.constant 4 : index
    %c0_257 = arith.constant 0 : index
    %815 = vector.load %arg9[%c0_255, %c4_256, %c0_257] : memref<1x8x32xf32, #tpu.memory_space<vmem>>, vector<1x1x32xf32>
    %816 = vector.shape_cast %815 : vector<1x1x32xf32> to vector<1x32xf32>
    %817 = vector.shape_cast %811 : vector<1x32xf32> to vector<1x1x32xf32>
    tpu.vector_store %arg9[%c0_255, %c4_256, %c0_257], %817 {strides = array<i32>} : memref<1x8x32xf32, #tpu.memory_space<vmem>>, vector<1x1x32xf32>,
    %818 = vector.extract_strided_slice %626 {offsets = [0, 4, 0], sizes = [1, 1, 128], strides = [1, 1, 1]} : vector<1x8x128xf32> to vector<1x1x128xf32>
    %819 = vector.shape_cast %818 : vector<1x1x128xf32> to vector<1x128xf32>
    %cst_258 = arith.constant dense<0.000000e+00> : vector<1x128xf32>
    %820 = tpu.matmul %808, %636, %cst_258 {dimension_numbers = #tpu.dot_dimension_numbers<[1], [0], [0], [1], [0, 0, 1, 1], [], []>} : vector<1x32xf32>, vector<32x128xf32>, vector<1x128xf32> -> vector<1x128xf32>
    %821 = arith.addf %819, %820 : vector<1x128xf32>
    %822 = vector.extract_strided_slice %635 {offsets = [0, 3, 0], sizes = [1, 1, 128], strides = [1, 1, 1]} : vector<1x8x128xf32> to vector<1x1x128xf32>
    %823 = vector.shape_cast %822 : vector<1x1x128xf32> to vector<1x128xf32>
    %cst_259 = arith.constant dense<0.000000e+00> : vector<1x128xf32>
    %824 = tpu.matmul %811, %637, %cst_259 {dimension_numbers = #tpu.dot_dimension_numbers<[1], [0], [0], [1], [0, 0, 1, 1], [], []>} : vector<1x32xf32>, vector<32x128xf32>, vector<1x128xf32> -> vector<1x128xf32>
    %825 = arith.addf %823, %824 : vector<1x128xf32>
    %826 = arith.negf %821 : vector<1x128xf32>
    %827 = math.exp %826 : vector<1x128xf32>
    %cst_260 = arith.constant 1.000000e+00 : f32
    %828 = vector.broadcast %cst_260 : f32 to vector<1x128xf32>
    %829 = arith.addf %828, %827 : vector<1x128xf32>
    %830 = arith.divf %828, %829 : vector<1x128xf32>
    %831 = math.tanh %821 : vector<1x128xf32>
    %832 = arith.negf %825 : vector<1x128xf32>
    %833 = math.exp %832 : vector<1x128xf32>
    %cst_261 = arith.constant 1.000000e+00 : f32
    %834 = vector.broadcast %cst_261 : f32 to vector<1x128xf32>
    %835 = arith.addf %834, %833 : vector<1x128xf32>
    %836 = arith.divf %834, %835 : vector<1x128xf32>
    %837 = math.tanh %825 : vector<1x128xf32>
    %838 = vector.extract_strided_slice %830 {offsets = [0, 32], sizes = [1, 32], strides = [1, 1]} : vector<1x128xf32> to vector<1x32xf32>
    %839 = arith.mulf %838, %799 : vector<1x32xf32>
    %840 = vector.extract_strided_slice %830 {offsets = [0, 0], sizes = [1, 32], strides = [1, 1]} : vector<1x128xf32> to vector<1x32xf32>
    %841 = vector.extract_strided_slice %831 {offsets = [0, 64], sizes = [1, 32], strides = [1, 1]} : vector<1x128xf32> to vector<1x32xf32>
    %842 = arith.mulf %840, %841 : vector<1x32xf32>
    %843 = arith.addf %839, %842 : vector<1x32xf32>
    %844 = vector.extract_strided_slice %836 {offsets = [0, 32], sizes = [1, 32], strides = [1, 1]} : vector<1x128xf32> to vector<1x32xf32>
    %845 = arith.mulf %844, %805 : vector<1x32xf32>
    %846 = vector.extract_strided_slice %836 {offsets = [0, 0], sizes = [1, 32], strides = [1, 1]} : vector<1x128xf32> to vector<1x32xf32>
    %847 = vector.extract_strided_slice %837 {offsets = [0, 64], sizes = [1, 32], strides = [1, 1]} : vector<1x128xf32> to vector<1x32xf32>
    %848 = arith.mulf %846, %847 : vector<1x32xf32>
    %849 = arith.addf %845, %848 : vector<1x32xf32>
    %850 = vector.extract_strided_slice %830 {offsets = [0, 96], sizes = [1, 32], strides = [1, 1]} : vector<1x128xf32> to vector<1x32xf32>
    %851 = math.tanh %843 : vector<1x32xf32>
    %852 = arith.mulf %850, %851 : vector<1x32xf32>
    %853 = vector.extract_strided_slice %836 {offsets = [0, 96], sizes = [1, 32], strides = [1, 1]} : vector<1x128xf32> to vector<1x32xf32>
    %854 = math.tanh %849 : vector<1x32xf32>
    %855 = arith.mulf %853, %854 : vector<1x32xf32>
    %c0_262 = arith.constant 0 : index
    %c4_263 = arith.constant 4 : index
    %c0_264 = arith.constant 0 : index
    %856 = vector.load %arg8[%c0_262, %c4_263, %c0_264] : memref<1x8x32xf32, #tpu.memory_space<vmem>>, vector<1x1x32xf32>
    %857 = vector.shape_cast %856 : vector<1x1x32xf32> to vector<1x32xf32>
    %858 = vector.shape_cast %852 : vector<1x32xf32> to vector<1x1x32xf32>
    tpu.vector_store %arg8[%c0_262, %c4_263, %c0_264], %858 {strides = array<i32>} : memref<1x8x32xf32, #tpu.memory_space<vmem>>, vector<1x1x32xf32>,
    %c0_265 = arith.constant 0 : index
    %c3_266 = arith.constant 3 : index
    %c0_267 = arith.constant 0 : index
    %859 = vector.load %arg9[%c0_265, %c3_266, %c0_267] : memref<1x8x32xf32, #tpu.memory_space<vmem>>, vector<1x1x32xf32>
    %860 = vector.shape_cast %859 : vector<1x1x32xf32> to vector<1x32xf32>
    %861 = vector.shape_cast %855 : vector<1x32xf32> to vector<1x1x32xf32>
    tpu.vector_store %arg9[%c0_265, %c3_266, %c0_267], %861 {strides = array<i32>} : memref<1x8x32xf32, #tpu.memory_space<vmem>>, vector<1x1x32xf32>,
    %862 = vector.extract_strided_slice %626 {offsets = [0, 5, 0], sizes = [1, 1, 128], strides = [1, 1, 1]} : vector<1x8x128xf32> to vector<1x1x128xf32>
    %863 = vector.shape_cast %862 : vector<1x1x128xf32> to vector<1x128xf32>
    %cst_268 = arith.constant dense<0.000000e+00> : vector<1x128xf32>
    %864 = tpu.matmul %852, %636, %cst_268 {dimension_numbers = #tpu.dot_dimension_numbers<[1], [0], [0], [1], [0, 0, 1, 1], [], []>} : vector<1x32xf32>, vector<32x128xf32>, vector<1x128xf32> -> vector<1x128xf32>
    %865 = arith.addf %863, %864 : vector<1x128xf32>
    %866 = vector.extract_strided_slice %635 {offsets = [0, 2, 0], sizes = [1, 1, 128], strides = [1, 1, 1]} : vector<1x8x128xf32> to vector<1x1x128xf32>
    %867 = vector.shape_cast %866 : vector<1x1x128xf32> to vector<1x128xf32>
    %cst_269 = arith.constant dense<0.000000e+00> : vector<1x128xf32>
    %868 = tpu.matmul %855, %637, %cst_269 {dimension_numbers = #tpu.dot_dimension_numbers<[1], [0], [0], [1], [0, 0, 1, 1], [], []>} : vector<1x32xf32>, vector<32x128xf32>, vector<1x128xf32> -> vector<1x128xf32>
    %869 = arith.addf %867, %868 : vector<1x128xf32>
    %870 = arith.negf %865 : vector<1x128xf32>
    %871 = math.exp %870 : vector<1x128xf32>
    %cst_270 = arith.constant 1.000000e+00 : f32
    %872 = vector.broadcast %cst_270 : f32 to vector<1x128xf32>
    %873 = arith.addf %872, %871 : vector<1x128xf32>
    %874 = arith.divf %872, %873 : vector<1x128xf32>
    %875 = math.tanh %865 : vector<1x128xf32>
    %876 = arith.negf %869 : vector<1x128xf32>
    %877 = math.exp %876 : vector<1x128xf32>
    %cst_271 = arith.constant 1.000000e+00 : f32
    %878 = vector.broadcast %cst_271 : f32 to vector<1x128xf32>
    %879 = arith.addf %878, %877 : vector<1x128xf32>
    %880 = arith.divf %878, %879 : vector<1x128xf32>
    %881 = math.tanh %869 : vector<1x128xf32>
    %882 = vector.extract_strided_slice %874 {offsets = [0, 32], sizes = [1, 32], strides = [1, 1]} : vector<1x128xf32> to vector<1x32xf32>
    %883 = arith.mulf %882, %843 : vector<1x32xf32>
    %884 = vector.extract_strided_slice %874 {offsets = [0, 0], sizes = [1, 32], strides = [1, 1]} : vector<1x128xf32> to vector<1x32xf32>
    %885 = vector.extract_strided_slice %875 {offsets = [0, 64], sizes = [1, 32], strides = [1, 1]} : vector<1x128xf32> to vector<1x32xf32>
    %886 = arith.mulf %884, %885 : vector<1x32xf32>
    %887 = arith.addf %883, %886 : vector<1x32xf32>
    %888 = vector.extract_strided_slice %880 {offsets = [0, 32], sizes = [1, 32], strides = [1, 1]} : vector<1x128xf32> to vector<1x32xf32>
    %889 = arith.mulf %888, %849 : vector<1x32xf32>
    %890 = vector.extract_strided_slice %880 {offsets = [0, 0], sizes = [1, 32], strides = [1, 1]} : vector<1x128xf32> to vector<1x32xf32>
    %891 = vector.extract_strided_slice %881 {offsets = [0, 64], sizes = [1, 32], strides = [1, 1]} : vector<1x128xf32> to vector<1x32xf32>
    %892 = arith.mulf %890, %891 : vector<1x32xf32>
    %893 = arith.addf %889, %892 : vector<1x32xf32>
    %894 = vector.extract_strided_slice %874 {offsets = [0, 96], sizes = [1, 32], strides = [1, 1]} : vector<1x128xf32> to vector<1x32xf32>
    %895 = math.tanh %887 : vector<1x32xf32>
    %896 = arith.mulf %894, %895 : vector<1x32xf32>
    %897 = vector.extract_strided_slice %880 {offsets = [0, 96], sizes = [1, 32], strides = [1, 1]} : vector<1x128xf32> to vector<1x32xf32>
    %898 = math.tanh %893 : vector<1x32xf32>
    %899 = arith.mulf %897, %898 : vector<1x32xf32>
    %c0_272 = arith.constant 0 : index
    %c5_273 = arith.constant 5 : index
    %c0_274 = arith.constant 0 : index
    %900 = vector.load %arg8[%c0_272, %c5_273, %c0_274] : memref<1x8x32xf32, #tpu.memory_space<vmem>>, vector<1x1x32xf32>
    %901 = vector.shape_cast %900 : vector<1x1x32xf32> to vector<1x32xf32>
    %902 = vector.shape_cast %896 : vector<1x32xf32> to vector<1x1x32xf32>
    tpu.vector_store %arg8[%c0_272, %c5_273, %c0_274], %902 {strides = array<i32>} : memref<1x8x32xf32, #tpu.memory_space<vmem>>, vector<1x1x32xf32>,
    %c0_275 = arith.constant 0 : index
    %c2_276 = arith.constant 2 : index
    %c0_277 = arith.constant 0 : index
    %903 = vector.load %arg9[%c0_275, %c2_276, %c0_277] : memref<1x8x32xf32, #tpu.memory_space<vmem>>, vector<1x1x32xf32>
    %904 = vector.shape_cast %903 : vector<1x1x32xf32> to vector<1x32xf32>
    %905 = vector.shape_cast %899 : vector<1x32xf32> to vector<1x1x32xf32>
    tpu.vector_store %arg9[%c0_275, %c2_276, %c0_277], %905 {strides = array<i32>} : memref<1x8x32xf32, #tpu.memory_space<vmem>>, vector<1x1x32xf32>,
    %906 = vector.extract_strided_slice %626 {offsets = [0, 6, 0], sizes = [1, 1, 128], strides = [1, 1, 1]} : vector<1x8x128xf32> to vector<1x1x128xf32>
    %907 = vector.shape_cast %906 : vector<1x1x128xf32> to vector<1x128xf32>
    %cst_278 = arith.constant dense<0.000000e+00> : vector<1x128xf32>
    %908 = tpu.matmul %896, %636, %cst_278 {dimension_numbers = #tpu.dot_dimension_numbers<[1], [0], [0], [1], [0, 0, 1, 1], [], []>} : vector<1x32xf32>, vector<32x128xf32>, vector<1x128xf32> -> vector<1x128xf32>
    %909 = arith.addf %907, %908 : vector<1x128xf32>
    %910 = vector.extract_strided_slice %635 {offsets = [0, 1, 0], sizes = [1, 1, 128], strides = [1, 1, 1]} : vector<1x8x128xf32> to vector<1x1x128xf32>
    %911 = vector.shape_cast %910 : vector<1x1x128xf32> to vector<1x128xf32>
    %cst_279 = arith.constant dense<0.000000e+00> : vector<1x128xf32>
    %912 = tpu.matmul %899, %637, %cst_279 {dimension_numbers = #tpu.dot_dimension_numbers<[1], [0], [0], [1], [0, 0, 1, 1], [], []>} : vector<1x32xf32>, vector<32x128xf32>, vector<1x128xf32> -> vector<1x128xf32>
    %913 = arith.addf %911, %912 : vector<1x128xf32>
    %914 = arith.negf %909 : vector<1x128xf32>
    %915 = math.exp %914 : vector<1x128xf32>
    %cst_280 = arith.constant 1.000000e+00 : f32
    %916 = vector.broadcast %cst_280 : f32 to vector<1x128xf32>
    %917 = arith.addf %916, %915 : vector<1x128xf32>
    %918 = arith.divf %916, %917 : vector<1x128xf32>
    %919 = math.tanh %909 : vector<1x128xf32>
    %920 = arith.negf %913 : vector<1x128xf32>
    %921 = math.exp %920 : vector<1x128xf32>
    %cst_281 = arith.constant 1.000000e+00 : f32
    %922 = vector.broadcast %cst_281 : f32 to vector<1x128xf32>
    %923 = arith.addf %922, %921 : vector<1x128xf32>
    %924 = arith.divf %922, %923 : vector<1x128xf32>
    %925 = math.tanh %913 : vector<1x128xf32>
    %926 = vector.extract_strided_slice %918 {offsets = [0, 32], sizes = [1, 32], strides = [1, 1]} : vector<1x128xf32> to vector<1x32xf32>
    %927 = arith.mulf %926, %887 : vector<1x32xf32>
    %928 = vector.extract_strided_slice %918 {offsets = [0, 0], sizes = [1, 32], strides = [1, 1]} : vector<1x128xf32> to vector<1x32xf32>
    %929 = vector.extract_strided_slice %919 {offsets = [0, 64], sizes = [1, 32], strides = [1, 1]} : vector<1x128xf32> to vector<1x32xf32>
    %930 = arith.mulf %928, %929 : vector<1x32xf32>
    %931 = arith.addf %927, %930 : vector<1x32xf32>
    %932 = vector.extract_strided_slice %924 {offsets = [0, 32], sizes = [1, 32], strides = [1, 1]} : vector<1x128xf32> to vector<1x32xf32>
    %933 = arith.mulf %932, %893 : vector<1x32xf32>
    %934 = vector.extract_strided_slice %924 {offsets = [0, 0], sizes = [1, 32], strides = [1, 1]} : vector<1x128xf32> to vector<1x32xf32>
    %935 = vector.extract_strided_slice %925 {offsets = [0, 64], sizes = [1, 32], strides = [1, 1]} : vector<1x128xf32> to vector<1x32xf32>
    %936 = arith.mulf %934, %935 : vector<1x32xf32>
    %937 = arith.addf %933, %936 : vector<1x32xf32>
    %938 = vector.extract_strided_slice %918 {offsets = [0, 96], sizes = [1, 32], strides = [1, 1]} : vector<1x128xf32> to vector<1x32xf32>
    %939 = math.tanh %931 : vector<1x32xf32>
    %940 = arith.mulf %938, %939 : vector<1x32xf32>
    %941 = vector.extract_strided_slice %924 {offsets = [0, 96], sizes = [1, 32], strides = [1, 1]} : vector<1x128xf32> to vector<1x32xf32>
    %942 = math.tanh %937 : vector<1x32xf32>
    %943 = arith.mulf %941, %942 : vector<1x32xf32>
    %c0_282 = arith.constant 0 : index
    %c6_283 = arith.constant 6 : index
    %c0_284 = arith.constant 0 : index
    %944 = vector.load %arg8[%c0_282, %c6_283, %c0_284] : memref<1x8x32xf32, #tpu.memory_space<vmem>>, vector<1x1x32xf32>
    %945 = vector.shape_cast %944 : vector<1x1x32xf32> to vector<1x32xf32>
    %946 = vector.shape_cast %940 : vector<1x32xf32> to vector<1x1x32xf32>
    tpu.vector_store %arg8[%c0_282, %c6_283, %c0_284], %946 {strides = array<i32>} : memref<1x8x32xf32, #tpu.memory_space<vmem>>, vector<1x1x32xf32>,
    %c0_285 = arith.constant 0 : index
    %c1_286 = arith.constant 1 : index
    %c0_287 = arith.constant 0 : index
    %947 = vector.load %arg9[%c0_285, %c1_286, %c0_287] : memref<1x8x32xf32, #tpu.memory_space<vmem>>, vector<1x1x32xf32>
    %948 = vector.shape_cast %947 : vector<1x1x32xf32> to vector<1x32xf32>
    %949 = vector.shape_cast %943 : vector<1x32xf32> to vector<1x1x32xf32>
    tpu.vector_store %arg9[%c0_285, %c1_286, %c0_287], %949 {strides = array<i32>} : memref<1x8x32xf32, #tpu.memory_space<vmem>>, vector<1x1x32xf32>,
    %950 = vector.extract_strided_slice %626 {offsets = [0, 7, 0], sizes = [1, 1, 128], strides = [1, 1, 1]} : vector<1x8x128xf32> to vector<1x1x128xf32>
    %951 = vector.shape_cast %950 : vector<1x1x128xf32> to vector<1x128xf32>
    %cst_288 = arith.constant dense<0.000000e+00> : vector<1x128xf32>
    %952 = tpu.matmul %940, %636, %cst_288 {dimension_numbers = #tpu.dot_dimension_numbers<[1], [0], [0], [1], [0, 0, 1, 1], [], []>} : vector<1x32xf32>, vector<32x128xf32>, vector<1x128xf32> -> vector<1x128xf32>
    %953 = arith.addf %951, %952 : vector<1x128xf32>
    %954 = vector.extract_strided_slice %635 {offsets = [0, 0, 0], sizes = [1, 1, 128], strides = [1, 1, 1]} : vector<1x8x128xf32> to vector<1x1x128xf32>
    %955 = vector.shape_cast %954 : vector<1x1x128xf32> to vector<1x128xf32>
    %cst_289 = arith.constant dense<0.000000e+00> : vector<1x128xf32>
    %956 = tpu.matmul %943, %637, %cst_289 {dimension_numbers = #tpu.dot_dimension_numbers<[1], [0], [0], [1], [0, 0, 1, 1], [], []>} : vector<1x32xf32>, vector<32x128xf32>, vector<1x128xf32> -> vector<1x128xf32>
    %957 = arith.addf %955, %956 : vector<1x128xf32>
    %958 = arith.negf %953 : vector<1x128xf32>
    %959 = math.exp %958 : vector<1x128xf32>
    %cst_290 = arith.constant 1.000000e+00 : f32
    %960 = vector.broadcast %cst_290 : f32 to vector<1x128xf32>
    %961 = arith.addf %960, %959 : vector<1x128xf32>
    %962 = arith.divf %960, %961 : vector<1x128xf32>
    %963 = math.tanh %953 : vector<1x128xf32>
    %964 = arith.negf %957 : vector<1x128xf32>
    %965 = math.exp %964 : vector<1x128xf32>
    %cst_291 = arith.constant 1.000000e+00 : f32
    %966 = vector.broadcast %cst_291 : f32 to vector<1x128xf32>
    %967 = arith.addf %966, %965 : vector<1x128xf32>
    %968 = arith.divf %966, %967 : vector<1x128xf32>
    %969 = math.tanh %957 : vector<1x128xf32>
    %970 = vector.extract_strided_slice %962 {offsets = [0, 32], sizes = [1, 32], strides = [1, 1]} : vector<1x128xf32> to vector<1x32xf32>
    %971 = arith.mulf %970, %931 : vector<1x32xf32>
    %972 = vector.extract_strided_slice %962 {offsets = [0, 0], sizes = [1, 32], strides = [1, 1]} : vector<1x128xf32> to vector<1x32xf32>
    %973 = vector.extract_strided_slice %963 {offsets = [0, 64], sizes = [1, 32], strides = [1, 1]} : vector<1x128xf32> to vector<1x32xf32>
    %974 = arith.mulf %972, %973 : vector<1x32xf32>
    %975 = arith.addf %971, %974 : vector<1x32xf32>
    %976 = vector.extract_strided_slice %968 {offsets = [0, 32], sizes = [1, 32], strides = [1, 1]} : vector<1x128xf32> to vector<1x32xf32>
    %977 = arith.mulf %976, %937 : vector<1x32xf32>
    %978 = vector.extract_strided_slice %968 {offsets = [0, 0], sizes = [1, 32], strides = [1, 1]} : vector<1x128xf32> to vector<1x32xf32>
    %979 = vector.extract_strided_slice %969 {offsets = [0, 64], sizes = [1, 32], strides = [1, 1]} : vector<1x128xf32> to vector<1x32xf32>
    %980 = arith.mulf %978, %979 : vector<1x32xf32>
    %981 = arith.addf %977, %980 : vector<1x32xf32>
    %982 = vector.extract_strided_slice %962 {offsets = [0, 96], sizes = [1, 32], strides = [1, 1]} : vector<1x128xf32> to vector<1x32xf32>
    %983 = math.tanh %975 : vector<1x32xf32>
    %984 = arith.mulf %982, %983 : vector<1x32xf32>
    %985 = vector.extract_strided_slice %968 {offsets = [0, 96], sizes = [1, 32], strides = [1, 1]} : vector<1x128xf32> to vector<1x32xf32>
    %986 = math.tanh %981 : vector<1x32xf32>
    %987 = arith.mulf %985, %986 : vector<1x32xf32>
    %c0_292 = arith.constant 0 : index
    %c7_293 = arith.constant 7 : index
    %c0_294 = arith.constant 0 : index
    %988 = vector.load %arg8[%c0_292, %c7_293, %c0_294] : memref<1x8x32xf32, #tpu.memory_space<vmem>>, vector<1x1x32xf32>
    %989 = vector.shape_cast %988 : vector<1x1x32xf32> to vector<1x32xf32>
    %990 = vector.shape_cast %984 : vector<1x32xf32> to vector<1x1x32xf32>
    tpu.vector_store %arg8[%c0_292, %c7_293, %c0_294], %990 {strides = array<i32>} : memref<1x8x32xf32, #tpu.memory_space<vmem>>, vector<1x1x32xf32>,
    %c0_295 = arith.constant 0 : index
    %c0_296 = arith.constant 0 : index
    %c0_297 = arith.constant 0 : index
    %991 = vector.load %arg9[%c0_295, %c0_296, %c0_297] : memref<1x8x32xf32, #tpu.memory_space<vmem>>, vector<1x1x32xf32>
    %992 = vector.shape_cast %991 : vector<1x1x32xf32> to vector<1x32xf32>
    %993 = vector.shape_cast %987 : vector<1x32xf32> to vector<1x1x32xf32>
    tpu.vector_store %arg9[%c0_295, %c0_296, %c0_297], %993 {strides = array<i32>} : memref<1x8x32xf32, #tpu.memory_space<vmem>>, vector<1x1x32xf32>,
    %c336 = arith.constant 336 : index
    %c0_298 = arith.constant 0 : index
    %994 = vector.load %arg4[%c336, %c0_298] : memref<400x128xf32, #tpu.memory_space<vmem>>, vector<32x128xf32>
    %c368 = arith.constant 368 : index
    %c0_299 = arith.constant 0 : index
    %995 = vector.load %arg4[%c368, %c0_299] : memref<400x128xf32, #tpu.memory_space<vmem>>, vector<32x128xf32>
    %c28 = arith.constant 28 : index
    %c0_300 = arith.constant 0 : index
    %996 = vector.load %arg3[%c28, %c0_300] : memref<29x128xf32, #tpu.memory_space<vmem>>, vector<1x128xf32>
    %c0_301 = arith.constant 0 : index
    %c0_302 = arith.constant 0 : index
    %c0_303 = arith.constant 0 : index
    %997 = vector.load %arg8[%c0_301, %c0_302, %c0_303] : memref<1x8x32xf32, #tpu.memory_space<vmem>>, vector<1x8x32xf32>
    %998 = vector.shape_cast %997 : vector<1x8x32xf32> to vector<8x32xf32>
    %c0_304 = arith.constant 0 : index
    %c0_305 = arith.constant 0 : index
    %c0_306 = arith.constant 0 : index
    %999 = vector.load %arg9[%c0_304, %c0_305, %c0_306] : memref<1x8x32xf32, #tpu.memory_space<vmem>>, vector<1x8x32xf32>
    %1000 = vector.shape_cast %999 : vector<1x8x32xf32> to vector<8x32xf32>
    %cst_307 = arith.constant dense<0.000000e+00> : vector<8x128xf32>
    %1001 = tpu.matmul %998, %994, %cst_307 {dimension_numbers = #tpu.dot_dimension_numbers<[1], [0], [0], [1], [0, 0, 1, 1], [], []>} : vector<8x32xf32>, vector<32x128xf32>, vector<8x128xf32> -> vector<8x128xf32>
    %cst_308 = arith.constant dense<0.000000e+00> : vector<8x128xf32>
    %1002 = tpu.matmul %1000, %995, %cst_308 {dimension_numbers = #tpu.dot_dimension_numbers<[1], [0], [0], [1], [0, 0, 1, 1], [], []>} : vector<8x32xf32>, vector<32x128xf32>, vector<8x128xf32> -> vector<8x128xf32>
    %1003 = arith.addf %1001, %1002 : vector<8x128xf32>
    %1004 = vector.broadcast %996 : vector<1x128xf32> to vector<8x128xf32>
    %1005 = arith.addf %1003, %1004 : vector<8x128xf32>
    %c0_309 = arith.constant 0 : index
    %c0_310 = arith.constant 0 : index
    %1006 = vector.load %arg5[%c0_309, %c0_310] : memref<8x128xf32, #tpu.memory_space<vmem>>, vector<8x128xf32>
    tpu.vector_store %arg5[%c0_309, %c0_310], %1005 {strides = array<i32>} : memref<8x128xf32, #tpu.memory_space<vmem>>, vector<8x128xf32>,
    return
  }
  func.func @transform_0(%arg0: i32) -> (i32, i32, i32) {
    %c0_i32 = arith.constant 0 : i32
    %c0_i32_0 = arith.constant 0 : i32
    %c0_i32_1 = arith.constant 0 : i32
    return %arg0, %c0_i32, %c0_i32_0 : i32, i32, i32
  }
  func.func @transform_1(%arg0: i32) -> (i32, i32) {
    %c0_i32 = arith.constant 0 : i32
    %c0_i32_0 = arith.constant 0 : i32
    %c0_i32_1 = arith.constant 0 : i32
    return %c0_i32, %c0_i32_0 : i32, i32
  }
  func.func @transform_2(%arg0: i32) -> (i32, i32) {
    %c0_i32 = arith.constant 0 : i32
    %c0_i32_0 = arith.constant 0 : i32
    %c0_i32_1 = arith.constant 0 : i32
    return %c0_i32, %c0_i32_0 : i32, i32
  }
  func.func @transform_3(%arg0: i32) -> (i32, i32) {
    %c0_i32 = arith.constant 0 : i32
    %c0_i32_0 = arith.constant 0 : i32
    %c0_i32_1 = arith.constant 0 : i32
    return %c0_i32, %c0_i32_0 : i32, i32
  }
  func.func @transform_4(%arg0: i32) -> (i32, i32) {
    %c0_i32 = arith.constant 0 : i32
    %c0_i32_0 = arith.constant 0 : i32
    return %arg0, %c0_i32 : i32, i32
  }
}

</mosaic_0001>

<llo_original>
// kernel: _lambda_.1
$region0: #{_lambda_.1}
  #allocation0 [shape = 'u32[]', space=smem, size = 0x4, offset = 0x4, fixed_abs, tag = 'smem constant byte address 0x4 - core index']
  #allocation1 [shape = 'u32[72,128]{1,0:T(1,128)}', space=vmem, size = 0x9000, scoped, tag = 'internal scratch']
  #allocation2 [shape = 'f32[1,8,32]{2,1,0:T(8,128)}', space=vmem, size = 0x1000, scoped, tag = 'scratch operand']
  #allocation3 [shape = 'f32[1,8,32]{2,1,0:T(8,128)}', space=vmem, size = 0x1000, scoped, tag = 'scratch operand']
  #allocation4 [shape = 'f32[1,8,32]{2,1,0:T(8,128)}', space=vmem, size = 0x1000, scoped, tag = 'scratch operand']
  #allocation5 [shape = 'f32[1,8,32]{2,1,0:T(8,128)}', space=vmem, size = 0x1000, scoped, tag = 'scratch operand']
  %s0 = inlined_call_operand.vmem [shape: f32[16,16,4], index: 0, kind: input, shape index: {}]
  %s1 = inlined_call_operand.vmem [shape: f32[342,128], index: 1, kind: input, shape index: {}]
  %s2 = inlined_call_operand.vmem [shape: f32[29,128], index: 2, kind: input, shape index: {}]
  %s3 = inlined_call_operand.vmem [shape: f32[400,128], index: 3, kind: input, shape index: {}]
  %s4 = inlined_call_operand.vmem [shape: f32[16,128], index: 4, kind: output, shape index: {}]
  %s5 = sld [smem:[#allocation0]]
  $region49: #{_lambda_.1} parent=0
    _
  %s7 = ssub.s32 1, %s5
  %s8 = scalar_select 0, %s7, %s5
  loop: start=0, step=1, limit=4
  $region2: #{_lambda_.1} parent=0 // loop_pre_header
    _
  $region3: #{_lambda_.1} parent=0 // loop_header
    %s10 = sphi 0, %s14
    %p11 = scmp.ge.s32.totalorder %s10, 4
    %s20 = sphi 0, %s22
    %s23 = sphi 0, %s20
    %s24 = sphi 0, %s23
    %s40 = sphi 0, %s24
    %s44 = sphi 0, %s44
    %s46 = sphi 0, %s44
    %s47 = sphi 0, %s46
    %s61 = sphi 0, %s47
    %s65 = sphi 0, %s65
    %s67 = sphi 0, %s65
    %s68 = sphi 0, %s67
    %s82 = sphi 0, %s68
    %s86 = sphi 0, %s86
    %s88 = sphi 0, %s86
    %s89 = sphi 0, %s88
    %s103 = sphi 0, %s89
    %s109 = sphi 0, %s111
    %s112 = sphi 0, %s109
    %s113 = sphi 0, %s112
    %s129 = sphi 0, %s113
  $region4: #{_lambda_.1} parent=0 // loop_header_branch
    %13 = sbr.rel (%p11) target = $region8
  $region5: #{_lambda_.1} parent=0 // loop_body
    %s15 = ssub.s32 %s10, 1
    %s16 = ssub.s32 %s10, 2
    %s17 = sadd.s32 %s10, 1
    %s18 = ssub.s32 %s10, %s17
    %p19 = scmp.eq.s32.totalorder %s18, 0
    %s21 = sadd.s32 %s20, 1
    %s22 = scalar_select %p19, %s20, %s21
    %p25 = pneg %p19
    %p26 = scmp.eq.s32.totalorder %s10, 1
    %p27 = por %p25, %p26
    %p28 = scmp.ne.s32.totalorder %s20, %s23
    %p29 = scmp.eq.s32.totalorder %s10, 0
    %p30 = por %p28, %p29
    %p31 = scmp.ne.s32.totalorder %s20, %s23
    %p32 = scmp.eq.s32.totalorder %s15, 1
    %p33 = por %p31, %p32
    %p34 = scmp.ne.s32.totalorder %s23, %s24
    %p35 = scmp.eq.s32.totalorder %s15, 0
    %p36 = por %p34, %p35
    %p37 = scmp.ne.s32.totalorder %s23, %s24
    %p38 = scmp.eq.s32.totalorder %s16, 1
    %p39 = por %p37, %p38
    %p41 = scmp.ne.s32.totalorder %s24, %s40
    %p42 = scmp.eq.s32.totalorder %s16, 0
    %p43 = por %p41, %p42
    %s45 = sadd.s32 %s44, 1
    %p48 = scmp.eq.s32.totalorder %s10, 1
    %p49 = scmp.ne.s32.totalorder %s44, %s46
    %p50 = scmp.eq.s32.totalorder %s10, 0
    %p51 = por %p49, %p50
    %p52 = scmp.ne.s32.totalorder %s44, %s46
    %p53 = scmp.eq.s32.totalorder %s15, 1
    %p54 = por %p52, %p53
    %p55 = scmp.ne.s32.totalorder %s46, %s47
    %p56 = scmp.eq.s32.totalorder %s15, 0
    %p57 = por %p55, %p56
    %p58 = scmp.ne.s32.totalorder %s46, %s47
    %p59 = scmp.eq.s32.totalorder %s16, 1
    %p60 = por %p58, %p59
    %p62 = scmp.ne.s32.totalorder %s47, %s61
    %p63 = scmp.eq.s32.totalorder %s16, 0
    %p64 = por %p62, %p63
    %s66 = sadd.s32 %s65, 1
    %p69 = scmp.eq.s32.totalorder %s10, 1
    %p70 = scmp.ne.s32.totalorder %s65, %s67
    %p71 = scmp.eq.s32.totalorder %s10, 0
    %p72 = por %p70, %p71
    %p73 = scmp.ne.s32.totalorder %s65, %s67
    %p74 = scmp.eq.s32.totalorder %s15, 1
    %p75 = por %p73, %p74
    %p76 = scmp.ne.s32.totalorder %s67, %s68
    %p77 = scmp.eq.s32.totalorder %s15, 0
    %p78 = por %p76, %p77
    %p79 = scmp.ne.s32.totalorder %s67, %s68
    %p80 = scmp.eq.s32.totalorder %s16, 1
    %p81 = por %p79, %p80
    %p83 = scmp.ne.s32.totalorder %s68, %s82
    %p84 = scmp.eq.s32.totalorder %s16, 0
    %p85 = por %p83, %p84
    %s87 = sadd.s32 %s86, 1
    %p90 = scmp.eq.s32.totalorder %s10, 1
    %p91 = scmp.ne.s32.totalorder %s86, %s88
    %p92 = scmp.eq.s32.totalorder %s10, 0
    %p93 = por %p91, %p92
    %p94 = scmp.ne.s32.totalorder %s86, %s88
    %p95 = scmp.eq.s32.totalorder %s15, 1
    %p96 = por %p94, %p95
    %p97 = scmp.ne.s32.totalorder %s88, %s89
    %p98 = scmp.eq.s32.totalorder %s15, 0
    %p99 = por %p97, %p98
    %p100 = scmp.ne.s32.totalorder %s88, %s89
    %p101 = scmp.eq.s32.totalorder %s16, 1
    %p102 = por %p100, %p101
    %p104 = scmp.ne.s32.totalorder %s89, %s103
    %p105 = scmp.eq.s32.totalorder %s16, 0
    %p106 = por %p104, %p105
    %s107 = ssub.s32 %s10, %s17
    %p108 = scmp.eq.s32.totalorder %s107, 0
    %s110 = sadd.s32 %s109, 1
    %s111 = scalar_select %p108, %s109, %s110
    %p114 = pneg %p108
    %p115 = scmp.eq.s32.totalorder %s10, 1
    %p116 = por %p114, %p115
    %p117 = scmp.ne.s32.totalorder %s109, %s112
    %p118 = scmp.eq.s32.totalorder %s10, 0
    %p119 = por %p117, %p118
    %p120 = scmp.ne.s32.totalorder %s109, %s112
    %p121 = scmp.eq.s32.totalorder %s15, 1
    %p122 = por %p120, %p121
    %p123 = scmp.ne.s32.totalorder %s112, %s113
    %p124 = scmp.eq.s32.totalorder %s15, 0
    %p125 = por %p123, %p124
    %p126 = scmp.ne.s32.totalorder %s112, %s113
    %p127 = scmp.eq.s32.totalorder %s16, 1
    %p128 = por %p126, %p127
    %p130 = scmp.ne.s32.totalorder %s113, %s129
    %p131 = scmp.eq.s32.totalorder %s16, 0
    %p132 = por %p130, %p131
    %p133 = scmp.le.s32.totalorder 1, %s10
    %p134 = scmp.lt.s32.totalorder %s10, 3
    %p135 = pnand %p133, %p134
    %p136 = pneg %p135
    // Predicated region
    $region9: #{_lambda_.1} parent=5 // pred_check
      _
    $region10: #{_lambda_.1} parent=5 // pred_check_branch
      %138 = sbr.rel (%p135) target = $region12
    $region11: #{_lambda_.1} parent=5 // pred_region
      %s139 = ssub.s32 %s10, 1
      // Predicated region
      $region13: #{_lambda_.1} parent=11 // pred_check
        %p140 = pneg %p57
      $region14: #{_lambda_.1} parent=11 // pred_check_branch
        %142 = sbr.rel (%p140) target = $region16
      $region15: #{_lambda_.1} parent=11 // pred_region
        _
      $region16: #{_lambda_.1} parent=11 // pred_fallthru
        _
      // Predicated region
      $region17: #{_lambda_.1} parent=11 // pred_check
        %p143 = pneg %p78
      $region18: #{_lambda_.1} parent=11 // pred_check_branch
        %145 = sbr.rel (%p143) target = $region20
      $region19: #{_lambda_.1} parent=11 // pred_region
        _
      $region20: #{_lambda_.1} parent=11 // pred_fallthru
        _
      // Predicated region
      $region21: #{_lambda_.1} parent=11 // pred_check
        %p146 = pneg %p99
      $region22: #{_lambda_.1} parent=11 // pred_check_branch
        %148 = sbr.rel (%p146) target = $region24
      $region23: #{_lambda_.1} parent=11 // pred_region
        _
      $region24: #{_lambda_.1} parent=11 // pred_fallthru
        _
    $region12: #{_lambda_.1} parent=5 // pred_fallthru
      _
    %p149 = scmp.lt.s32.totalorder %s10, 2
    // Predicated region
    $region25: #{_lambda_.1} parent=5 // pred_check
      %p150 = pneg %p149
    $region26: #{_lambda_.1} parent=5 // pred_check_branch
      %152 = sbr.rel (%p150) target = $region28
    $region27: #{_lambda_.1} parent=5 // pred_region
      // Predicated region
      $region29: #{_lambda_.1} parent=27 // pred_check
        %p153 = pneg %p30
      $region30: #{_lambda_.1} parent=27 // pred_check_branch
        %155 = sbr.rel (%p153) target = $region32
      $region31: #{_lambda_.1} parent=27 // pred_region
        %s156 = smul.u32 8, %s10
        %p157 = scmp.lt.s32.totalorder %s156, 15
        %s158 = scalar_select %p157, %s156, 15
        %s159 = smul.addr %s158, 2
        %s160 = smul.addr %s159, 8
        %s161 = scalar_lea.vmem %s0, %s160
        %s162 = smul.u32 8, %s10
      $region32: #{_lambda_.1} parent=27 // pred_fallthru
        _
    $region28: #{_lambda_.1} parent=5 // pred_fallthru
      _
    %p163 = scmp.le.s32.totalorder 1, %s10
    %p164 = scmp.lt.s32.totalorder %s10, 3
    %p165 = pnand %p163, %p164
    %p166 = pneg %p165
    // Predicated region
    $region33: #{_lambda_.1} parent=5 // pred_check
      _
    $region34: #{_lambda_.1} parent=5 // pred_check_branch
      %168 = sbr.rel (%p165) target = $region36
    $region35: #{_lambda_.1} parent=5 // pred_region
      %s169 = ssub.s32 %s10, 1
      %s170 = smul.u32 8, %s15
      %p171 = scmp.lt.s32.totalorder %s170, 15
      %s172 = scalar_select %p171, %s170, 15
      %s173 = smul.addr %s172, 2
      %s174 = smul.addr %s173, 8
      %s175 = scalar_lea.vmem %s0, %s174
      %p176 = pneg %p36
      %p177 = pneg %p33
      %p178 = pneg %p57
      %p179 = pneg %p54
      %p180 = pneg %p78
      %p181 = pneg %p75
      %p182 = pneg %p99
      %p183 = pneg %p96
      %p184 = pneg %p125
      %p185 = pneg %p122
      %p186 = scmp.lt.s32.totalorder %s15, 1
      %s187 = scalar_select %p186, %s15, 1
      %s188 = smul.addr %s187, 8
      %s189 = scalar_lea.vmem %s4, %s188
      %s190 = smul.u32 8, %s15
      %p191 = scmp.lt.s32.totalorder %s190, 15
      %s192 = scalar_select %p191, %s190, 15
      %s193 = smul.addr %s192, 2
      %s194 = smul.addr %s193, 8
      %s195 = scalar_lea.vmem %s0, %s194
      %s196 = smul.u32 8, %s15
      %p197 = scmp.lt.s32.totalorder %s15, 1
      %s198 = scalar_select %p197, %s15, 1
      %s199 = smul.addr %s198, 8
      %s200 = scalar_lea.vmem %s4, %s199
      %v201 = vld [vmem:[%s195] sm:$0xff]
      %v202 = vld [vmem:[%s195 + $0x8] sm:$0xff]
      %v203 = vld [vmem:[%s195 + $0x10] sm:$0xff]
      %v204 = vld [vmem:[%s195 + $0x18] sm:$0xff]
      %v205 = vld [vmem:[%s195 + $0x20] sm:$0xff]
      %v206 = vld [vmem:[%s195 + $0x28] sm:$0xff]
      %v207 = vld [vmem:[%s195 + $0x30] sm:$0xff]
      %v208 = vld [vmem:[%s195 + $0x38] sm:$0xff]
      %v209 = vld [vmem:[%s195 + $0x40] sm:$0xff]
      %v210 = vld [vmem:[%s195 + $0x48] sm:$0xff]
      %v211 = vld [vmem:[%s195 + $0x50] sm:$0xff]
      %v212 = vld [vmem:[%s195 + $0x58] sm:$0xff]
      %v213 = vld [vmem:[%s195 + $0x60] sm:$0xff]
      %v214 = vld [vmem:[%s195 + $0x68] sm:$0xff]
      %v215 = vld [vmem:[%s195 + $0x70] sm:$0xff]
      %v216 = vld [vmem:[%s195 + $0x78] sm:$0xff]
      %v217 = vld [vmem:[%s1] sm:$0xf]
      %v218 = vld [vmem:[%s1 + $0x4] sm:$0xf]
      %v219 = vld [vmem:[%s1 + $0x8] sm:$0xf]
      %v220 = vld [vmem:[%s2] sm:$0x1]
      %v221 = vld [vmem:[%s2 + $0x1] sm:$0x1]
      %v222 = vld [vmem:[%s2 + $0x2] sm:$0x1]
      %vm239 = vcmask 1040384
      %v240 = vrot.slane %v201, 7
      %v241 = vrot.slane %v202, 7
      %v242 = vsel %vm239, %v240, %v241
      %v243 = vrot.slane %v203, 7
      %v244 = vrot.slane %v204, 7
      %v245 = vsel %vm239, %v243, %v244
      %v246 = vrot.slane %v205, 7
      %v247 = vrot.slane %v206, 7
      %v248 = vsel %vm239, %v246, %v247
      %v249 = vrot.slane %v207, 7
      %v250 = vrot.slane %v208, 7
      %v251 = vsel %vm239, %v249, %v250
      %v252 = vrot.slane %v209, 7
      %v253 = vrot.slane %v210, 7
      %v254 = vsel %vm239, %v252, %v253
      %v255 = vrot.slane %v211, 7
      %v256 = vrot.slane %v212, 7
      %v257 = vsel %vm239, %v255, %v256
      %v258 = vrot.slane %v213, 7
      %v259 = vrot.slane %v214, 7
      %v260 = vsel %vm239, %v258, %v259
      %v261 = vrot.slane %v215, 7
      %v262 = vrot.slane %v216, 7
      %v263 = vsel %vm239, %v261, %v262
      %v272 = vsel %vm239, 0.0, %v240
      %v273 = vsel %vm239, 0.0, %v243
      %v274 = vsel %vm239, 0.0, %v246
      %v275 = vsel %vm239, 0.0, %v249
      %v276 = vsel %vm239, 0.0, %v252
      %v277 = vsel %vm239, 0.0, %v255
      %v278 = vsel %vm239, 0.0, %v258
      %v279 = vsel %vm239, 0.0, %v261
      %vm280 = vcmask 1046528
      %v281 = vrot.slane %v201, 1
      %v282 = vrot.slane %v202, 1
      %v283 = vsel %vm280, %v281, %v282
      %v284 = vrot.slane %v203, 1
      %v285 = vrot.slane %v204, 1
      %v286 = vsel %vm280, %v284, %v285
      %v287 = vrot.slane %v205, 1
      %v288 = vrot.slane %v206, 1
      %v289 = vsel %vm280, %v287, %v288
      %v290 = vrot.slane %v207, 1
      %v291 = vrot.slane %v208, 1
      %v292 = vsel %vm280, %v290, %v291
      %v293 = vrot.slane %v209, 1
      %v294 = vrot.slane %v210, 1
      %v295 = vsel %vm280, %v293, %v294
      %v296 = vrot.slane %v211, 1
      %v297 = vrot.slane %v212, 1
      %v298 = vsel %vm280, %v296, %v297
      %v299 = vrot.slane %v213, 1
      %v300 = vrot.slane %v214, 1
      %v301 = vsel %vm280, %v299, %v300
      %v302 = vrot.slane %v215, 1
      %v303 = vrot.slane %v216, 1
      %v304 = vsel %vm280, %v302, %v303
      %v313 = vsel %vm280, %v282, 0.0
      %v314 = vsel %vm280, %v285, 0.0
      %v315 = vsel %vm280, %v288, 0.0
      %v316 = vsel %vm280, %v291, 0.0
      %v317 = vsel %vm280, %v294, 0.0
      %v318 = vsel %vm280, %v297, 0.0
      %v319 = vsel %vm280, %v300, 0.0
      %v320 = vsel %vm280, %v303, 0.0
      %vm321 = vcmask 31744
      %v322 = vsel %vm321, %v201, 0
      %v324 = vsel %vm321, %v202, 0
      %v326 = vsel %vm321, %v203, 0
      %v328 = vsel %vm321, %v204, 0
      %v330 = vsel %vm321, %v205, 0
      %v332 = vsel %vm321, %v206, 0
      %v334 = vsel %vm321, %v207, 0
      %v336 = vsel %vm321, %v208, 0
      %v338 = vsel %vm321, %v209, 0
      %v340 = vsel %vm321, %v210, 0
      %v342 = vsel %vm321, %v211, 0
      %v344 = vsel %vm321, %v212, 0
      %v346 = vsel %vm321, %v213, 0
      %v348 = vsel %vm321, %v214, 0
      %v350 = vsel %vm321, %v215, 0
      %v352 = vsel %vm321, %v216, 0
      %vm354 = vcmask 1043456
      %v356 = vsel %vm354, %v218, 0
      %358 = vmatpush.msra.mxu0 0.0
      %359 = vmatpush.msra.mxu0 0.0
      %360 = vmatpush.msra.mxu0 0.0
      %361 = vmatpush.msra.mxu0 0.0
      %362 = vmatpush.msra.mxu0 0.0
      %363 = vmatpush.msra.mxu0 0.0
      %364 = vmatpush.msra.mxu0 0.0
      %365 = vmatpush.msra.mxu0 0.0
      %366 = vmatpush.msra.mxu0 0.0
      %367 = vmatpush.msra.mxu0 0.0
      %368 = vmatpush.msra.mxu0 0.0
      %369 = vmatpush.msra.mxu0 0.0
      %370 = vmatpush.msra.mxu0 0.0
      %371 = vmatpush.msra.mxu0 0.0
      %372 = vmatpush.msra.mxu0 0.0
      %373 = vmatpush.msra.mxu0 %v356
      %374 = vmatmul.f32.gmra.mxu0 %v322
      %v375 = vpop.f32.mrf.mxu0
      %v376 = vadd.f32 0.0, %v375
      %377 = vmatmul.f32.gmra.mxu0 %v324
      %v378 = vpop.f32.mrf.mxu0
      %v379 = vadd.f32 0.0, %v378
      %380 = vmatmul.f32.gmra.mxu0 %v326
      %v381 = vpop.f32.mrf.mxu0
      %v382 = vadd.f32 0.0, %v381
      %383 = vmatmul.f32.gmra.mxu0 %v328
      %v384 = vpop.f32.mrf.mxu0
      %v385 = vadd.f32 0.0, %v384
      %386 = vmatmul.f32.gmra.mxu0 %v330
      %v387 = vpop.f32.mrf.mxu0
      %v388 = vadd.f32 0.0, %v387
      %389 = vmatmul.f32.gmra.mxu0 %v332
      %v390 = vpop.f32.mrf.mxu0
      %v391 = vadd.f32 0.0, %v390
      %392 = vmatmul.f32.gmra.mxu0 %v334
      %v393 = vpop.f32.mrf.mxu0
      %v394 = vadd.f32 0.0, %v393
      %395 = vmatmul.f32.gmra.mxu0 %v336
      %v396 = vpop.f32.mrf.mxu0
      %v397 = vadd.f32 0.0, %v396
      %398 = vmatmul.f32.gmra.mxu0 %v338
      %v399 = vpop.f32.mrf.mxu0
      %v400 = vadd.f32 0.0, %v399
      %401 = vmatmul.f32.gmra.mxu0 %v340
      %v402 = vpop.f32.mrf.mxu0
      %v403 = vadd.f32 0.0, %v402
      %404 = vmatmul.f32.gmra.mxu0 %v342
      %v405 = vpop.f32.mrf.mxu0
      %v406 = vadd.f32 0.0, %v405
      %407 = vmatmul.f32.gmra.mxu0 %v344
      %v408 = vpop.f32.mrf.mxu0
      %v409 = vadd.f32 0.0, %v408
      %410 = vmatmul.f32.gmra.mxu0 %v346
      %v411 = vpop.f32.mrf.mxu0
      %v412 = vadd.f32 0.0, %v411
      %413 = vmatmul.f32.gmra.mxu0 %v348
      %v414 = vpop.f32.mrf.mxu0
      %v415 = vadd.f32 0.0, %v414
      %416 = vmatmul.f32.gmra.mxu0 %v350
      %v417 = vpop.f32.mrf.mxu0
      %v418 = vadd.f32 0.0, %v417
      %419 = vmatmul.f32.gmra.mxu0 %v352
      %v420 = vpop.f32.mrf.mxu0
      %v421 = vadd.f32 0.0, %v420
      %422 = vdwg.mxu0
      %v424 = vsel %vm321, %v272, 0
      %v426 = vsel %vm321, %v242, 0
      %v429 = vsel %vm321, %v273, 0
      %v431 = vsel %vm321, %v245, 0
      %v434 = vsel %vm321, %v274, 0
      %v436 = vsel %vm321, %v248, 0
      %v439 = vsel %vm321, %v275, 0
      %v441 = vsel %vm321, %v251, 0
      %v444 = vsel %vm321, %v276, 0
      %v446 = vsel %vm321, %v254, 0
      %v449 = vsel %vm321, %v277, 0
      %v451 = vsel %vm321, %v257, 0
      %v454 = vsel %vm321, %v278, 0
      %v456 = vsel %vm321, %v260, 0
      %v459 = vsel %vm321, %v279, 0
      %v461 = vsel %vm321, %v263, 0
      %v464 = vsel %vm354, %v217, 0
      %466 = vmatpush.msra.mxu0 0.0
      %467 = vmatpush.msra.mxu0 0.0
      %468 = vmatpush.msra.mxu0 0.0
      %469 = vmatpush.msra.mxu0 0.0
      %470 = vmatpush.msra.mxu0 0.0
      %471 = vmatpush.msra.mxu0 0.0
      %472 = vmatpush.msra.mxu0 0.0
      %473 = vmatpush.msra.mxu0 0.0
      %474 = vmatpush.msra.mxu0 0.0
      %475 = vmatpush.msra.mxu0 0.0
      %476 = vmatpush.msra.mxu0 0.0
      %477 = vmatpush.msra.mxu0 0.0
      %478 = vmatpush.msra.mxu0 0.0
      %479 = vmatpush.msra.mxu0 0.0
      %480 = vmatpush.msra.mxu0 0.0
      %481 = vmatpush.msra.mxu0 %v464
      %482 = vmatmul.f32.gmra.mxu0 %v424
      %v483 = vpop.f32.mrf.mxu0
      %v484 = vadd.f32 %v376, %v483
      %485 = vmatmul.f32.gmra.mxu0 %v426
      %v486 = vpop.f32.mrf.mxu0
      %v487 = vadd.f32 %v379, %v486
      %488 = vmatmul.f32.gmra.mxu0 %v429
      %v489 = vpop.f32.mrf.mxu0
      %v490 = vadd.f32 %v382, %v489
      %491 = vmatmul.f32.gmra.mxu0 %v431
      %v492 = vpop.f32.mrf.mxu0
      %v493 = vadd.f32 %v385, %v492
      %494 = vmatmul.f32.gmra.mxu0 %v434
      %v495 = vpop.f32.mrf.mxu0
      %v496 = vadd.f32 %v388, %v495
      %497 = vmatmul.f32.gmra.mxu0 %v436
      %v498 = vpop.f32.mrf.mxu0
      %v499 = vadd.f32 %v391, %v498
      %500 = vmatmul.f32.gmra.mxu0 %v439
      %v501 = vpop.f32.mrf.mxu0
      %v502 = vadd.f32 %v394, %v501
      %503 = vmatmul.f32.gmra.mxu0 %v441
      %v504 = vpop.f32.mrf.mxu0
      %v505 = vadd.f32 %v397, %v504
      %506 = vmatmul.f32.gmra.mxu0 %v444
      %v507 = vpop.f32.mrf.mxu0
      %v508 = vadd.f32 %v400, %v507
      %509 = vmatmul.f32.gmra.mxu0 %v446
      %v510 = vpop.f32.mrf.mxu0
      %v511 = vadd.f32 %v403, %v510
      %512 = vmatmul.f32.gmra.mxu0 %v449
      %v513 = vpop.f32.mrf.mxu0
      %v514 = vadd.f32 %v406, %v513
      %515 = vmatmul.f32.gmra.mxu0 %v451
      %v516 = vpop.f32.mrf.mxu0
      %v517 = vadd.f32 %v409, %v516
      %518 = vmatmul.f32.gmra.mxu0 %v454
      %v519 = vpop.f32.mrf.mxu0
      %v520 = vadd.f32 %v412, %v519
      %521 = vmatmul.f32.gmra.mxu0 %v456
      %v522 = vpop.f32.mrf.mxu0
      %v523 = vadd.f32 %v415, %v522
      %524 = vmatmul.f32.gmra.mxu0 %v459
      %v525 = vpop.f32.mrf.mxu0
      %v526 = vadd.f32 %v418, %v525
      %527 = vmatmul.f32.gmra.mxu0 %v461
      %v528 = vpop.f32.mrf.mxu0
      %v529 = vadd.f32 %v421, %v528
      %530 = vdwg.mxu0
      %v531 = vsel %vm321, %v283, 0
      %v534 = vsel %vm321, %v313, 0
      %v536 = vsel %vm321, %v286, 0
      %v539 = vsel %vm321, %v314, 0
      %v541 = vsel %vm321, %v289, 0
      %v544 = vsel %vm321, %v315, 0
      %v546 = vsel %vm321, %v292, 0
      %v549 = vsel %vm321, %v316, 0
      %v551 = vsel %vm321, %v295, 0
      %v554 = vsel %vm321, %v317, 0
      %v556 = vsel %vm321, %v298, 0
      %v559 = vsel %vm321, %v318, 0
      %v561 = vsel %vm321, %v301, 0
      %v564 = vsel %vm321, %v319, 0
      %v566 = vsel %vm321, %v304, 0
      %v569 = vsel %vm321, %v320, 0
      %v572 = vsel %vm354, %v219, 0
      %574 = vmatpush.msra.mxu0 0.0
      %575 = vmatpush.msra.mxu0 0.0
      %576 = vmatpush.msra.mxu0 0.0
      %577 = vmatpush.msra.mxu0 0.0
      %578 = vmatpush.msra.mxu0 0.0
      %579 = vmatpush.msra.mxu0 0.0
      %580 = vmatpush.msra.mxu0 0.0
      %581 = vmatpush.msra.mxu0 0.0
      %582 = vmatpush.msra.mxu0 0.0
      %583 = vmatpush.msra.mxu0 0.0
      %584 = vmatpush.msra.mxu0 0.0
      %585 = vmatpush.msra.mxu0 0.0
      %586 = vmatpush.msra.mxu0 0.0
      %587 = vmatpush.msra.mxu0 0.0
      %588 = vmatpush.msra.mxu0 0.0
      %589 = vmatpush.msra.mxu0 %v572
      %590 = vmatmul.f32.gmra.mxu0 %v531
      %v591 = vpop.f32.mrf.mxu0
      %v592 = vadd.f32 0.0, %v591
      %593 = vmatmul.f32.gmra.mxu0 %v534
      %v594 = vpop.f32.mrf.mxu0
      %v595 = vadd.f32 0.0, %v594
      %596 = vmatmul.f32.gmra.mxu0 %v536
      %v597 = vpop.f32.mrf.mxu0
      %v598 = vadd.f32 0.0, %v597
      %599 = vmatmul.f32.gmra.mxu0 %v539
      %v600 = vpop.f32.mrf.mxu0
      %v601 = vadd.f32 0.0, %v600
      %602 = vmatmul.f32.gmra.mxu0 %v541
      %v603 = vpop.f32.mrf.mxu0
      %v604 = vadd.f32 0.0, %v603
      %605 = vmatmul.f32.gmra.mxu0 %v544
      %v606 = vpop.f32.mrf.mxu0
      %v607 = vadd.f32 0.0, %v606
      %608 = vmatmul.f32.gmra.mxu0 %v546
      %v609 = vpop.f32.mrf.mxu0
      %v610 = vadd.f32 0.0, %v609
      %611 = vmatmul.f32.gmra.mxu0 %v549
      %v612 = vpop.f32.mrf.mxu0
      %v613 = vadd.f32 0.0, %v612
      %614 = vmatmul.f32.gmra.mxu0 %v551
      %v615 = vpop.f32.mrf.mxu0
      %v616 = vadd.f32 0.0, %v615
      %617 = vmatmul.f32.gmra.mxu0 %v554
      %v618 = vpop.f32.mrf.mxu0
      %v619 = vadd.f32 0.0, %v618
      %620 = vmatmul.f32.gmra.mxu0 %v556
      %v621 = vpop.f32.mrf.mxu0
      %v622 = vadd.f32 0.0, %v621
      %623 = vmatmul.f32.gmra.mxu0 %v559
      %v624 = vpop.f32.mrf.mxu0
      %v625 = vadd.f32 0.0, %v624
      %626 = vmatmul.f32.gmra.mxu0 %v561
      %v627 = vpop.f32.mrf.mxu0
      %v628 = vadd.f32 0.0, %v627
      %629 = vmatmul.f32.gmra.mxu0 %v564
      %v630 = vpop.f32.mrf.mxu0
      %v631 = vadd.f32 0.0, %v630
      %632 = vmatmul.f32.gmra.mxu0 %v566
      %v633 = vpop.f32.mrf.mxu0
      %v634 = vadd.f32 0.0, %v633
      %635 = vmatmul.f32.gmra.mxu0 %v569
      %v636 = vpop.f32.mrf.mxu0
      %v637 = vadd.f32 0.0, %v636
      %638 = vdwg.mxu0
      %v639 = vadd.f32 %v484, %v592
      %v640 = vadd.f32 %v487, %v595
      %v641 = vadd.f32 %v490, %v598
      %v642 = vadd.f32 %v493, %v601
      %v643 = vadd.f32 %v496, %v604
      %v644 = vadd.f32 %v499, %v607
      %v645 = vadd.f32 %v502, %v610
      %v646 = vadd.f32 %v505, %v613
      %v647 = vadd.f32 %v508, %v616
      %v648 = vadd.f32 %v511, %v619
      %v649 = vadd.f32 %v514, %v622
      %v650 = vadd.f32 %v517, %v625
      %v651 = vadd.f32 %v520, %v628
      %v652 = vadd.f32 %v523, %v631
      %v653 = vadd.f32 %v526, %v634
      %v654 = vadd.f32 %v529, %v637
      %v655 = vperm.slane %v220, 0
      %v656 = vadd.f32 %v639, %v655
      %v657 = vadd.f32 %v640, %v655
      %v658 = vadd.f32 %v641, %v655
      %v659 = vadd.f32 %v642, %v655
      %v660 = vadd.f32 %v643, %v655
      %v661 = vadd.f32 %v644, %v655
      %v662 = vadd.f32 %v645, %v655
      %v663 = vadd.f32 %v646, %v655
      %v664 = vadd.f32 %v647, %v655
      %v665 = vadd.f32 %v648, %v655
      %v666 = vadd.f32 %v649, %v655
      %v667 = vadd.f32 %v650, %v655
      %v668 = vadd.f32 %v651, %v655
      %v669 = vadd.f32 %v652, %v655
      %v670 = vadd.f32 %v653, %v655
      %v671 = vadd.f32 %v654, %v655
      %v672 = vmul.f32 %v656, 0.01
      %v673 = vmul.f32 %v657, 0.01
      %v674 = vmul.f32 %v658, 0.01
      %v675 = vmul.f32 %v659, 0.01
      %v676 = vmul.f32 %v660, 0.01
      %v677 = vmul.f32 %v661, 0.01
      %v678 = vmul.f32 %v662, 0.01
      %v679 = vmul.f32 %v663, 0.01
      %v680 = vmul.f32 %v664, 0.01
      %v681 = vmul.f32 %v665, 0.01
      %v682 = vmul.f32 %v666, 0.01
      %v683 = vmul.f32 %v667, 0.01
      %v684 = vmul.f32 %v668, 0.01
      %v685 = vmul.f32 %v669, 0.01
      %v686 = vmul.f32 %v670, 0.01
      %v687 = vmul.f32 %v671, 0.01
      %v688 = vmax.f32 %v656, %v672
      %v689 = vmax.f32 %v657, %v673
      %v690 = vmax.f32 %v658, %v674
      %v691 = vmax.f32 %v659, %v675
      %v692 = vmax.f32 %v660, %v676
      %v693 = vmax.f32 %v661, %v677
      %v694 = vmax.f32 %v662, %v678
      %v695 = vmax.f32 %v663, %v679
      %v696 = vmax.f32 %v664, %v680
      %v697 = vmax.f32 %v665, %v681
      %v698 = vmax.f32 %v666, %v682
      %v699 = vmax.f32 %v667, %v683
      %v700 = vmax.f32 %v668, %v684
      %v701 = vmax.f32 %v669, %v685
      %v702 = vmax.f32 %v670, %v686
      %v703 = vmax.f32 %v671, %v687
      %v704 = vperm.slane %v221, 0
      %v705 = vmul.f32 %v688, %v704
      %v706 = vmul.f32 %v689, %v704
      %v707 = vmul.f32 %v690, %v704
      %v708 = vmul.f32 %v691, %v704
      %v709 = vmul.f32 %v692, %v704
      %v710 = vmul.f32 %v693, %v704
      %v711 = vmul.f32 %v694, %v704
      %v712 = vmul.f32 %v695, %v704
      %v713 = vmul.f32 %v696, %v704
      %v714 = vmul.f32 %v697, %v704
      %v715 = vmul.f32 %v698, %v704
      %v716 = vmul.f32 %v699, %v704
      %v717 = vmul.f32 %v700, %v704
      %v718 = vmul.f32 %v701, %v704
      %v719 = vmul.f32 %v702, %v704
      %v720 = vmul.f32 %v703, %v704
      %v721 = vperm.slane %v222, 0
      %v722 = vadd.f32 %v705, %v721
      %v723 = vadd.f32 %v706, %v721
      %v724 = vadd.f32 %v707, %v721
      %v725 = vadd.f32 %v708, %v721
      %v726 = vadd.f32 %v709, %v721
      %v727 = vadd.f32 %v710, %v721
      %v728 = vadd.f32 %v711, %v721
      %v729 = vadd.f32 %v712, %v721
      %v730 = vadd.f32 %v713, %v721
      %v731 = vadd.f32 %v714, %v721
      %v732 = vadd.f32 %v715, %v721
      %v733 = vadd.f32 %v716, %v721
      %v734 = vadd.f32 %v717, %v721
      %v735 = vadd.f32 %v718, %v721
      %v736 = vadd.f32 %v719, %v721
      %v737 = vadd.f32 %v720, %v721
      %v738 = vld [vmem:[%s1 + $0xc] sm:$0x1f]
      %v739 = vld [vmem:[%s1 + $0x11] sm:$0x1f]
      %v740 = vld [vmem:[%s1 + $0x16] sm:$0x1f]
      %v741 = vld [vmem:[%s2 + $0x3] sm:$0x1]
      %v742 = vld [vmem:[%s2 + $0x4] sm:$0x1]
      %v743 = vld [vmem:[%s2 + $0x5] sm:$0x1]
      %v760 = vrot.slane %v722, 7
      %v761 = vrot.slane %v723, 7
      %v762 = vsel %vm239, %v760, %v761
      %v763 = vrot.slane %v724, 7
      %v764 = vrot.slane %v725, 7
      %v765 = vsel %vm239, %v763, %v764
      %v766 = vrot.slane %v726, 7
      %v767 = vrot.slane %v727, 7
      %v768 = vsel %vm239, %v766, %v767
      %v769 = vrot.slane %v728, 7
      %v770 = vrot.slane %v729, 7
      %v771 = vsel %vm239, %v769, %v770
      %v772 = vrot.slane %v730, 7
      %v773 = vrot.slane %v731, 7
      %v774 = vsel %vm239, %v772, %v773
      %v775 = vrot.slane %v732, 7
      %v776 = vrot.slane %v733, 7
      %v777 = vsel %vm239, %v775, %v776
      %v778 = vrot.slane %v734, 7
      %v779 = vrot.slane %v735, 7
      %v780 = vsel %vm239, %v778, %v779
      %v781 = vrot.slane %v736, 7
      %v782 = vrot.slane %v737, 7
      %v783 = vsel %vm239, %v781, %v782
      %v792 = vsel %vm239, 0.0, %v760
      %v793 = vsel %vm239, 0.0, %v763
      %v794 = vsel %vm239, 0.0, %v766
      %v795 = vsel %vm239, 0.0, %v769
      %v796 = vsel %vm239, 0.0, %v772
      %v797 = vsel %vm239, 0.0, %v775
      %v798 = vsel %vm239, 0.0, %v778
      %v799 = vsel %vm239, 0.0, %v781
      %v800 = vrot.slane %v722, 1
      %v801 = vrot.slane %v723, 1
      %v802 = vsel %vm280, %v800, %v801
      %v803 = vrot.slane %v724, 1
      %v804 = vrot.slane %v725, 1
      %v805 = vsel %vm280, %v803, %v804
      %v806 = vrot.slane %v726, 1
      %v807 = vrot.slane %v727, 1
      %v808 = vsel %vm280, %v806, %v807
      %v809 = vrot.slane %v728, 1
      %v810 = vrot.slane %v729, 1
      %v811 = vsel %vm280, %v809, %v810
      %v812 = vrot.slane %v730, 1
      %v813 = vrot.slane %v731, 1
      %v814 = vsel %vm280, %v812, %v813
      %v815 = vrot.slane %v732, 1
      %v816 = vrot.slane %v733, 1
      %v817 = vsel %vm280, %v815, %v816
      %v818 = vrot.slane %v734, 1
      %v819 = vrot.slane %v735, 1
      %v820 = vsel %vm280, %v818, %v819
      %v821 = vrot.slane %v736, 1
      %v822 = vrot.slane %v737, 1
      %v823 = vsel %vm280, %v821, %v822
      %v832 = vsel %vm280, %v801, 0.0
      %v833 = vsel %vm280, %v804, 0.0
      %v834 = vsel %vm280, %v807, 0.0
      %v835 = vsel %vm280, %v810, 0.0
      %v836 = vsel %vm280, %v813, 0.0
      %v837 = vsel %vm280, %v816, 0.0
      %v838 = vsel %vm280, %v819, 0.0
      %v839 = vsel %vm280, %v822, 0.0
      %vm840 = vcmask 39936
      %v841 = vsel %vm840, %v722, 0
      %v843 = vsel %vm840, %v723, 0
      %v845 = vsel %vm840, %v724, 0
      %v847 = vsel %vm840, %v725, 0
      %v849 = vsel %vm840, %v726, 0
      %v851 = vsel %vm840, %v727, 0
      %v853 = vsel %vm840, %v728, 0
      %v855 = vsel %vm840, %v729, 0
      %v857 = vsel %vm840, %v730, 0
      %v859 = vsel %vm840, %v731, 0
      %v861 = vsel %vm840, %v732, 0
      %v863 = vsel %vm840, %v733, 0
      %v865 = vsel %vm840, %v734, 0
      %v867 = vsel %vm840, %v735, 0
      %v869 = vsel %vm840, %v736, 0
      %v871 = vsel %vm840, %v737, 0
      %vm873 = vcmask 1044480
      %v875 = vsel %vm873, %v739, 0
      %877 = vmatpush.msra.mxu0 0.0
      %878 = vmatpush.msra.mxu0 0.0
      %879 = vmatpush.msra.mxu0 0.0
      %880 = vmatpush.msra.mxu0 0.0
      %881 = vmatpush.msra.mxu0 0.0
      %882 = vmatpush.msra.mxu0 0.0
      %883 = vmatpush.msra.mxu0 0.0
      %884 = vmatpush.msra.mxu0 0.0
      %885 = vmatpush.msra.mxu0 0.0
      %886 = vmatpush.msra.mxu0 0.0
      %887 = vmatpush.msra.mxu0 0.0
      %888 = vmatpush.msra.mxu0 0.0
      %889 = vmatpush.msra.mxu0 0.0
      %890 = vmatpush.msra.mxu0 0.0
      %891 = vmatpush.msra.mxu0 0.0
      %892 = vmatpush.msra.mxu0 %v875
      %893 = vmatmul.f32.gmra.mxu0 %v841
      %v894 = vpop.f32.mrf.mxu0
      %v895 = vadd.f32 0.0, %v894
      %896 = vmatmul.f32.gmra.mxu0 %v843
      %v897 = vpop.f32.mrf.mxu0
      %v898 = vadd.f32 0.0, %v897
      %899 = vmatmul.f32.gmra.mxu0 %v845
      %v900 = vpop.f32.mrf.mxu0
      %v901 = vadd.f32 0.0, %v900
      %902 = vmatmul.f32.gmra.mxu0 %v847
      %v903 = vpop.f32.mrf.mxu0
      %v904 = vadd.f32 0.0, %v903
      %905 = vmatmul.f32.gmra.mxu0 %v849
      %v906 = vpop.f32.mrf.mxu0
      %v907 = vadd.f32 0.0, %v906
      %908 = vmatmul.f32.gmra.mxu0 %v851
      %v909 = vpop.f32.mrf.mxu0
      %v910 = vadd.f32 0.0, %v909
      %911 = vmatmul.f32.gmra.mxu0 %v853
      %v912 = vpop.f32.mrf.mxu0
      %v913 = vadd.f32 0.0, %v912
      %914 = vmatmul.f32.gmra.mxu0 %v855
      %v915 = vpop.f32.mrf.mxu0
      %v916 = vadd.f32 0.0, %v915
      %917 = vmatmul.f32.gmra.mxu0 %v857
      %v918 = vpop.f32.mrf.mxu0
      %v919 = vadd.f32 0.0, %v918
      %920 = vmatmul.f32.gmra.mxu0 %v859
      %v921 = vpop.f32.mrf.mxu0
      %v922 = vadd.f32 0.0, %v921
      %923 = vmatmul.f32.gmra.mxu0 %v861
      %v924 = vpop.f32.mrf.mxu0
      %v925 = vadd.f32 0.0, %v924
      %926 = vmatmul.f32.gmra.mxu0 %v863
      %v927 = vpop.f32.mrf.mxu0
      %v928 = vadd.f32 0.0, %v927
      %929 = vmatmul.f32.gmra.mxu0 %v865
      %v930 = vpop.f32.mrf.mxu0
      %v931 = vadd.f32 0.0, %v930
      %932 = vmatmul.f32.gmra.mxu0 %v867
      %v933 = vpop.f32.mrf.mxu0
      %v934 = vadd.f32 0.0, %v933
      %935 = vmatmul.f32.gmra.mxu0 %v869
      %v936 = vpop.f32.mrf.mxu0
      %v937 = vadd.f32 0.0, %v936
      %938 = vmatmul.f32.gmra.mxu0 %v871
      %v939 = vpop.f32.mrf.mxu0
      %v940 = vadd.f32 0.0, %v939
      %941 = vdwg.mxu0
      %v943 = vsel %vm840, %v792, 0
      %v945 = vsel %vm840, %v762, 0
      %v948 = vsel %vm840, %v793, 0
      %v950 = vsel %vm840, %v765, 0
      %v953 = vsel %vm840, %v794, 0
      %v955 = vsel %vm840, %v768, 0
      %v958 = vsel %vm840, %v795, 0
      %v960 = vsel %vm840, %v771, 0
      %v963 = vsel %vm840, %v796, 0
      %v965 = vsel %vm840, %v774, 0
      %v968 = vsel %vm840, %v797, 0
      %v970 = vsel %vm840, %v777, 0
      %v973 = vsel %vm840, %v798, 0
      %v975 = vsel %vm840, %v780, 0
      %v978 = vsel %vm840, %v799, 0
      %v980 = vsel %vm840, %v783, 0
      %v983 = vsel %vm873, %v738, 0
      %985 = vmatpush.msra.mxu0 0.0
      %986 = vmatpush.msra.mxu0 0.0
      %987 = vmatpush.msra.mxu0 0.0
      %988 = vmatpush.msra.mxu0 0.0
      %989 = vmatpush.msra.mxu0 0.0
      %990 = vmatpush.msra.mxu0 0.0
      %991 = vmatpush.msra.mxu0 0.0
      %992 = vmatpush.msra.mxu0 0.0
      %993 = vmatpush.msra.mxu0 0.0
      %994 = vmatpush.msra.mxu0 0.0
      %995 = vmatpush.msra.mxu0 0.0
      %996 = vmatpush.msra.mxu0 0.0
      %997 = vmatpush.msra.mxu0 0.0
      %998 = vmatpush.msra.mxu0 0.0
      %999 = vmatpush.msra.mxu0 0.0
      %1000 = vmatpush.msra.mxu0 %v983
      %1001 = vmatmul.f32.gmra.mxu0 %v943
      %v1002 = vpop.f32.mrf.mxu0
      %v1003 = vadd.f32 %v895, %v1002
      %1004 = vmatmul.f32.gmra.mxu0 %v945
      %v1005 = vpop.f32.mrf.mxu0
      %v1006 = vadd.f32 %v898, %v1005
      %1007 = vmatmul.f32.gmra.mxu0 %v948
      %v1008 = vpop.f32.mrf.mxu0
      %v1009 = vadd.f32 %v901, %v1008
      %1010 = vmatmul.f32.gmra.mxu0 %v950
      %v1011 = vpop.f32.mrf.mxu0
      %v1012 = vadd.f32 %v904, %v1011
      %1013 = vmatmul.f32.gmra.mxu0 %v953
      %v1014 = vpop.f32.mrf.mxu0
      %v1015 = vadd.f32 %v907, %v1014
      %1016 = vmatmul.f32.gmra.mxu0 %v955
      %v1017 = vpop.f32.mrf.mxu0
      %v1018 = vadd.f32 %v910, %v1017
      %1019 = vmatmul.f32.gmra.mxu0 %v958
      %v1020 = vpop.f32.mrf.mxu0
      %v1021 = vadd.f32 %v913, %v1020
      %1022 = vmatmul.f32.gmra.mxu0 %v960
      %v1023 = vpop.f32.mrf.mxu0
      %v1024 = vadd.f32 %v916, %v1023
      %1025 = vmatmul.f32.gmra.mxu0 %v963
      %v1026 = vpop.f32.mrf.mxu0
      %v1027 = vadd.f32 %v919, %v1026
      %1028 = vmatmul.f32.gmra.mxu0 %v965
      %v1029 = vpop.f32.mrf.mxu0
      %v1030 = vadd.f32 %v922, %v1029
      %1031 = vmatmul.f32.gmra.mxu0 %v968
      %v1032 = vpop.f32.mrf.mxu0
      %v1033 = vadd.f32 %v925, %v1032
      %1034 = vmatmul.f32.gmra.mxu0 %v970
      %v1035 = vpop.f32.mrf.mxu0
      %v1036 = vadd.f32 %v928, %v1035
      %1037 = vmatmul.f32.gmra.mxu0 %v973
      %v1038 = vpop.f32.mrf.mxu0
      %v1039 = vadd.f32 %v931, %v1038
      %1040 = vmatmul.f32.gmra.mxu0 %v975
      %v1041 = vpop.f32.mrf.mxu0
      %v1042 = vadd.f32 %v934, %v1041
      %1043 = vmatmul.f32.gmra.mxu0 %v978
      %v1044 = vpop.f32.mrf.mxu0
      %v1045 = vadd.f32 %v937, %v1044
      %1046 = vmatmul.f32.gmra.mxu0 %v980
      %v1047 = vpop.f32.mrf.mxu0
      %v1048 = vadd.f32 %v940, %v1047
      %1049 = vdwg.mxu0
      %v1050 = vsel %vm840, %v802, 0
      %v1053 = vsel %vm840, %v832, 0
      %v1055 = vsel %vm840, %v805, 0
      %v1058 = vsel %vm840, %v833, 0
      %v1060 = vsel %vm840, %v808, 0
      %v1063 = vsel %vm840, %v834, 0
      %v1065 = vsel %vm840, %v811, 0
      %v1068 = vsel %vm840, %v835, 0
      %v1070 = vsel %vm840, %v814, 0
      %v1073 = vsel %vm840, %v836, 0
      %v1075 = vsel %vm840, %v817, 0
      %v1078 = vsel %vm840, %v837, 0
      %v1080 = vsel %vm840, %v820, 0
      %v1083 = vsel %vm840, %v838, 0
      %v1085 = vsel %vm840, %v823, 0
      %v1088 = vsel %vm840, %v839, 0
      %v1091 = vsel %vm873, %v740, 0
      %1093 = vmatpush.msra.mxu0 0.0
      %1094 = vmatpush.msra.mxu0 0.0
      %1095 = vmatpush.msra.mxu0 0.0
      %1096 = vmatpush.msra.mxu0 0.0
      %1097 = vmatpush.msra.mxu0 0.0
      %1098 = vmatpush.msra.mxu0 0.0
      %1099 = vmatpush.msra.mxu0 0.0
      %1100 = vmatpush.msra.mxu0 0.0
      %1101 = vmatpush.msra.mxu0 0.0
      %1102 = vmatpush.msra.mxu0 0.0
      %1103 = vmatpush.msra.mxu0 0.0
      %1104 = vmatpush.msra.mxu0 0.0
      %1105 = vmatpush.msra.mxu0 0.0
      %1106 = vmatpush.msra.mxu0 0.0
      %1107 = vmatpush.msra.mxu0 0.0
      %1108 = vmatpush.msra.mxu0 %v1091
      %1109 = vmatmul.f32.gmra.mxu0 %v1050
      %v1110 = vpop.f32.mrf.mxu0
      %v1111 = vadd.f32 0.0, %v1110
      %1112 = vmatmul.f32.gmra.mxu0 %v1053
      %v1113 = vpop.f32.mrf.mxu0
      %v1114 = vadd.f32 0.0, %v1113
      %1115 = vmatmul.f32.gmra.mxu0 %v1055
      %v1116 = vpop.f32.mrf.mxu0
      %v1117 = vadd.f32 0.0, %v1116
      %1118 = vmatmul.f32.gmra.mxu0 %v1058
      %v1119 = vpop.f32.mrf.mxu0
      %v1120 = vadd.f32 0.0, %v1119
      %1121 = vmatmul.f32.gmra.mxu0 %v1060
      %v1122 = vpop.f32.mrf.mxu0
      %v1123 = vadd.f32 0.0, %v1122
      %1124 = vmatmul.f32.gmra.mxu0 %v1063
      %v1125 = vpop.f32.mrf.mxu0
      %v1126 = vadd.f32 0.0, %v1125
      %1127 = vmatmul.f32.gmra.mxu0 %v1065
      %v1128 = vpop.f32.mrf.mxu0
      %v1129 = vadd.f32 0.0, %v1128
      %1130 = vmatmul.f32.gmra.mxu0 %v1068
      %v1131 = vpop.f32.mrf.mxu0
      %v1132 = vadd.f32 0.0, %v1131
      %1133 = vmatmul.f32.gmra.mxu0 %v1070
      %v1134 = vpop.f32.mrf.mxu0
      %v1135 = vadd.f32 0.0, %v1134
      %1136 = vmatmul.f32.gmra.mxu0 %v1073
      %v1137 = vpop.f32.mrf.mxu0
      %v1138 = vadd.f32 0.0, %v1137
      %1139 = vmatmul.f32.gmra.mxu0 %v1075
      %v1140 = vpop.f32.mrf.mxu0
      %v1141 = vadd.f32 0.0, %v1140
      %1142 = vmatmul.f32.gmra.mxu0 %v1078
      %v1143 = vpop.f32.mrf.mxu0
      %v1144 = vadd.f32 0.0, %v1143
      %1145 = vmatmul.f32.gmra.mxu0 %v1080
      %v1146 = vpop.f32.mrf.mxu0
      %v1147 = vadd.f32 0.0, %v1146
      %1148 = vmatmul.f32.gmra.mxu0 %v1083
      %v1149 = vpop.f32.mrf.mxu0
      %v1150 = vadd.f32 0.0, %v1149
      %1151 = vmatmul.f32.gmra.mxu0 %v1085
      %v1152 = vpop.f32.mrf.mxu0
      %v1153 = vadd.f32 0.0, %v1152
      %1154 = vmatmul.f32.gmra.mxu0 %v1088
      %v1155 = vpop.f32.mrf.mxu0
      %v1156 = vadd.f32 0.0, %v1155
      %1157 = vdwg.mxu0
      %v1158 = vadd.f32 %v1003, %v1111
      %v1159 = vadd.f32 %v1006, %v1114
      %v1160 = vadd.f32 %v1009, %v1117
      %v1161 = vadd.f32 %v1012, %v1120
      %v1162 = vadd.f32 %v1015, %v1123
      %v1163 = vadd.f32 %v1018, %v1126
      %v1164 = vadd.f32 %v1021, %v1129
      %v1165 = vadd.f32 %v1024, %v1132
      %v1166 = vadd.f32 %v1027, %v1135
      %v1167 = vadd.f32 %v1030, %v1138
      %v1168 = vadd.f32 %v1033, %v1141
      %v1169 = vadd.f32 %v1036, %v1144
      %v1170 = vadd.f32 %v1039, %v1147
      %v1171 = vadd.f32 %v1042, %v1150
      %v1172 = vadd.f32 %v1045, %v1153
      %v1173 = vadd.f32 %v1048, %v1156
      %v1174 = vperm.slane %v741, 0
      %v1175 = vadd.f32 %v1158, %v1174
      %v1176 = vadd.f32 %v1159, %v1174
      %v1177 = vadd.f32 %v1160, %v1174
      %v1178 = vadd.f32 %v1161, %v1174
      %v1179 = vadd.f32 %v1162, %v1174
      %v1180 = vadd.f32 %v1163, %v1174
      %v1181 = vadd.f32 %v1164, %v1174
      %v1182 = vadd.f32 %v1165, %v1174
      %v1183 = vadd.f32 %v1166, %v1174
      %v1184 = vadd.f32 %v1167, %v1174
      %v1185 = vadd.f32 %v1168, %v1174
      %v1186 = vadd.f32 %v1169, %v1174
      %v1187 = vadd.f32 %v1170, %v1174
      %v1188 = vadd.f32 %v1171, %v1174
      %v1189 = vadd.f32 %v1172, %v1174
      %v1190 = vadd.f32 %v1173, %v1174
      %v1191 = vmul.f32 %v1175, 0.01
      %v1192 = vmul.f32 %v1176, 0.01
      %v1193 = vmul.f32 %v1177, 0.01
      %v1194 = vmul.f32 %v1178, 0.01
      %v1195 = vmul.f32 %v1179, 0.01
      %v1196 = vmul.f32 %v1180, 0.01
      %v1197 = vmul.f32 %v1181, 0.01
      %v1198 = vmul.f32 %v1182, 0.01
      %v1199 = vmul.f32 %v1183, 0.01
      %v1200 = vmul.f32 %v1184, 0.01
      %v1201 = vmul.f32 %v1185, 0.01
      %v1202 = vmul.f32 %v1186, 0.01
      %v1203 = vmul.f32 %v1187, 0.01
      %v1204 = vmul.f32 %v1188, 0.01
      %v1205 = vmul.f32 %v1189, 0.01
      %v1206 = vmul.f32 %v1190, 0.01
      %v1207 = vmax.f32 %v1175, %v1191
      %v1208 = vmax.f32 %v1176, %v1192
      %v1209 = vmax.f32 %v1177, %v1193
      %v1210 = vmax.f32 %v1178, %v1194
      %v1211 = vmax.f32 %v1179, %v1195
      %v1212 = vmax.f32 %v1180, %v1196
      %v1213 = vmax.f32 %v1181, %v1197
      %v1214 = vmax.f32 %v1182, %v1198
      %v1215 = vmax.f32 %v1183, %v1199
      %v1216 = vmax.f32 %v1184, %v1200
      %v1217 = vmax.f32 %v1185, %v1201
      %v1218 = vmax.f32 %v1186, %v1202
      %v1219 = vmax.f32 %v1187, %v1203
      %v1220 = vmax.f32 %v1188, %v1204
      %v1221 = vmax.f32 %v1189, %v1205
      %v1222 = vmax.f32 %v1190, %v1206
      %v1223 = vperm.slane %v742, 0
      %v1224 = vmul.f32 %v1207, %v1223
      %v1225 = vmul.f32 %v1208, %v1223
      %v1226 = vmul.f32 %v1209, %v1223
      %v1227 = vmul.f32 %v1210, %v1223
      %v1228 = vmul.f32 %v1211, %v1223
      %v1229 = vmul.f32 %v1212, %v1223
      %v1230 = vmul.f32 %v1213, %v1223
      %v1231 = vmul.f32 %v1214, %v1223
      %v1232 = vmul.f32 %v1215, %v1223
      %v1233 = vmul.f32 %v1216, %v1223
      %v1234 = vmul.f32 %v1217, %v1223
      %v1235 = vmul.f32 %v1218, %v1223
      %v1236 = vmul.f32 %v1219, %v1223
      %v1237 = vmul.f32 %v1220, %v1223
      %v1238 = vmul.f32 %v1221, %v1223
      %v1239 = vmul.f32 %v1222, %v1223
      %v1240 = vperm.slane %v743, 0
      %v1241 = vadd.f32 %v1224, %v1240
      %v1242 = vadd.f32 %v1225, %v1240
      %v1243 = vadd.f32 %v1226, %v1240
      %v1244 = vadd.f32 %v1227, %v1240
      %v1245 = vadd.f32 %v1228, %v1240
      %v1246 = vadd.f32 %v1229, %v1240
      %v1247 = vadd.f32 %v1230, %v1240
      %v1248 = vadd.f32 %v1231, %v1240
      %v1249 = vadd.f32 %v1232, %v1240
      %v1250 = vadd.f32 %v1233, %v1240
      %v1251 = vadd.f32 %v1234, %v1240
      %v1252 = vadd.f32 %v1235, %v1240
      %v1253 = vadd.f32 %v1236, %v1240
      %v1254 = vadd.f32 %v1237, %v1240
      %v1255 = vadd.f32 %v1238, %v1240
      %v1256 = vadd.f32 %v1239, %v1240
      %v1273 = vrot.slane %v1241, 2
      %v1274 = vrot.slane %v1241, 4
      %v1275 = vrot.slane %v1241, 6
      %v1276 = vrot.slane %v1242, 2
      %v1277 = vrot.slane %v1242, 4
      %v1278 = vrot.slane %v1242, 6
      %v1279 = vrot.slane %v1243, 2
      %v1280 = vrot.slane %v1243, 4
      %v1281 = vrot.slane %v1243, 6
      %v1282 = vrot.slane %v1244, 2
      %v1283 = vrot.slane %v1244, 4
      %v1284 = vrot.slane %v1244, 6
      %v1285 = vrot.slane %v1245, 2
      %v1286 = vrot.slane %v1245, 4
      %v1287 = vrot.slane %v1245, 6
      %v1288 = vrot.slane %v1246, 2
      %v1289 = vrot.slane %v1246, 4
      %v1290 = vrot.slane %v1246, 6
      %v1291 = vrot.slane %v1247, 2
      %v1292 = vrot.slane %v1247, 4
      %v1293 = vrot.slane %v1247, 6
      %v1294 = vrot.slane %v1248, 2
      %v1295 = vrot.slane %v1248, 4
      %v1296 = vrot.slane %v1248, 6
      %v1297 = vrot.slane %v1249, 2
      %v1298 = vrot.slane %v1249, 4
      %v1299 = vrot.slane %v1249, 6
      %v1300 = vrot.slane %v1250, 2
      %v1301 = vrot.slane %v1250, 4
      %v1302 = vrot.slane %v1250, 6
      %v1303 = vrot.slane %v1251, 2
      %v1304 = vrot.slane %v1251, 4
      %v1305 = vrot.slane %v1251, 6
      %v1306 = vrot.slane %v1252, 2
      %v1307 = vrot.slane %v1252, 4
      %v1308 = vrot.slane %v1252, 6
      %v1309 = vrot.slane %v1253, 2
      %v1310 = vrot.slane %v1253, 4
      %v1311 = vrot.slane %v1253, 6
      %v1312 = vrot.slane %v1254, 2
      %v1313 = vrot.slane %v1254, 4
      %v1314 = vrot.slane %v1254, 6
      %v1315 = vrot.slane %v1255, 2
      %v1316 = vrot.slane %v1255, 4
      %v1317 = vrot.slane %v1255, 6
      %v1318 = vrot.slane %v1256, 2
      %v1319 = vrot.slane %v1256, 4
      %v1320 = vrot.slane %v1256, 6
      %vm1369 = vcmask 33792
      %v1370 = vsel %vm1369, %v1241, -inf
      %v1371 = vrot.slane %v1370, 4
      %v1372 = vmax.f32 %v1370, %v1371
      %v1373 = vrot.slane %v1372, 2
      %v1374 = vmax.f32 %v1372, %v1373
      %v1375 = vrot.slane %v1374, 1
      %v1376 = vmax.f32 %v1374, %v1375
      %v1377 = vsel %vm1369, %v1273, -inf
      %v1378 = vrot.slane %v1377, 4
      %v1379 = vmax.f32 %v1377, %v1378
      %v1380 = vrot.slane %v1379, 2
      %v1381 = vmax.f32 %v1379, %v1380
      %v1382 = vrot.slane %v1381, 1
      %v1383 = vmax.f32 %v1381, %v1382
      %v1384 = vsel %vm1369, %v1274, -inf
      %v1385 = vrot.slane %v1384, 4
      %v1386 = vmax.f32 %v1384, %v1385
      %v1387 = vrot.slane %v1386, 2
      %v1388 = vmax.f32 %v1386, %v1387
      %v1389 = vrot.slane %v1388, 1
      %v1390 = vmax.f32 %v1388, %v1389
      %v1391 = vsel %vm1369, %v1275, -inf
      %v1392 = vrot.slane %v1391, 4
      %v1393 = vmax.f32 %v1391, %v1392
      %v1394 = vrot.slane %v1393, 2
      %v1395 = vmax.f32 %v1393, %v1394
      %v1396 = vrot.slane %v1395, 1
      %v1397 = vmax.f32 %v1395, %v1396
      %v1398 = vsel %vm1369, %v1242, -inf
      %v1399 = vrot.slane %v1398, 4
      %v1400 = vmax.f32 %v1398, %v1399
      %v1401 = vrot.slane %v1400, 2
      %v1402 = vmax.f32 %v1400, %v1401
      %v1403 = vrot.slane %v1402, 1
      %v1404 = vmax.f32 %v1402, %v1403
      %v1405 = vsel %vm1369, %v1276, -inf
      %v1406 = vrot.slane %v1405, 4
      %v1407 = vmax.f32 %v1405, %v1406
      %v1408 = vrot.slane %v1407, 2
      %v1409 = vmax.f32 %v1407, %v1408
      %v1410 = vrot.slane %v1409, 1
      %v1411 = vmax.f32 %v1409, %v1410
      %v1412 = vsel %vm1369, %v1277, -inf
      %v1413 = vrot.slane %v1412, 4
      %v1414 = vmax.f32 %v1412, %v1413
      %v1415 = vrot.slane %v1414, 2
      %v1416 = vmax.f32 %v1414, %v1415
      %v1417 = vrot.slane %v1416, 1
      %v1418 = vmax.f32 %v1416, %v1417
      %v1419 = vsel %vm1369, %v1278, -inf
      %v1420 = vrot.slane %v1419, 4
      %v1421 = vmax.f32 %v1419, %v1420
      %v1422 = vrot.slane %v1421, 2
      %v1423 = vmax.f32 %v1421, %v1422
      %v1424 = vrot.slane %v1423, 1
      %v1425 = vmax.f32 %v1423, %v1424
      %v1426 = vsel %vm1369, %v1243, -inf
      %v1427 = vrot.slane %v1426, 4
      %v1428 = vmax.f32 %v1426, %v1427
      %v1429 = vrot.slane %v1428, 2
      %v1430 = vmax.f32 %v1428, %v1429
      %v1431 = vrot.slane %v1430, 1
      %v1432 = vmax.f32 %v1430, %v1431
      %v1433 = vsel %vm1369, %v1279, -inf
      %v1434 = vrot.slane %v1433, 4
      %v1435 = vmax.f32 %v1433, %v1434
      %v1436 = vrot.slane %v1435, 2
      %v1437 = vmax.f32 %v1435, %v1436
      %v1438 = vrot.slane %v1437, 1
      %v1439 = vmax.f32 %v1437, %v1438
      %v1440 = vsel %vm1369, %v1280, -inf
      %v1441 = vrot.slane %v1440, 4
      %v1442 = vmax.f32 %v1440, %v1441
      %v1443 = vrot.slane %v1442, 2
      %v1444 = vmax.f32 %v1442, %v1443
      %v1445 = vrot.slane %v1444, 1
      %v1446 = vmax.f32 %v1444, %v1445
      %v1447 = vsel %vm1369, %v1281, -inf
      %v1448 = vrot.slane %v1447, 4
      %v1449 = vmax.f32 %v1447, %v1448
      %v1450 = vrot.slane %v1449, 2
      %v1451 = vmax.f32 %v1449, %v1450
      %v1452 = vrot.slane %v1451, 1
      %v1453 = vmax.f32 %v1451, %v1452
      %v1454 = vsel %vm1369, %v1244, -inf
      %v1455 = vrot.slane %v1454, 4
      %v1456 = vmax.f32 %v1454, %v1455
      %v1457 = vrot.slane %v1456, 2
      %v1458 = vmax.f32 %v1456, %v1457
      %v1459 = vrot.slane %v1458, 1
      %v1460 = vmax.f32 %v1458, %v1459
      %v1461 = vsel %vm1369, %v1282, -inf
      %v1462 = vrot.slane %v1461, 4
      %v1463 = vmax.f32 %v1461, %v1462
      %v1464 = vrot.slane %v1463, 2
      %v1465 = vmax.f32 %v1463, %v1464
      %v1466 = vrot.slane %v1465, 1
      %v1467 = vmax.f32 %v1465, %v1466
      %v1468 = vsel %vm1369, %v1283, -inf
      %v1469 = vrot.slane %v1468, 4
      %v1470 = vmax.f32 %v1468, %v1469
      %v1471 = vrot.slane %v1470, 2
      %v1472 = vmax.f32 %v1470, %v1471
      %v1473 = vrot.slane %v1472, 1
      %v1474 = vmax.f32 %v1472, %v1473
      %v1475 = vsel %vm1369, %v1284, -inf
      %v1476 = vrot.slane %v1475, 4
      %v1477 = vmax.f32 %v1475, %v1476
      %v1478 = vrot.slane %v1477, 2
      %v1479 = vmax.f32 %v1477, %v1478
      %v1480 = vrot.slane %v1479, 1
      %v1481 = vmax.f32 %v1479, %v1480
      %v1482 = vsel %vm1369, %v1245, -inf
      %v1483 = vrot.slane %v1482, 4
      %v1484 = vmax.f32 %v1482, %v1483
      %v1485 = vrot.slane %v1484, 2
      %v1486 = vmax.f32 %v1484, %v1485
      %v1487 = vrot.slane %v1486, 1
      %v1488 = vmax.f32 %v1486, %v1487
      %v1489 = vsel %vm1369, %v1285, -inf
      %v1490 = vrot.slane %v1489, 4
      %v1491 = vmax.f32 %v1489, %v1490
      %v1492 = vrot.slane %v1491, 2
      %v1493 = vmax.f32 %v1491, %v1492
      %v1494 = vrot.slane %v1493, 1
      %v1495 = vmax.f32 %v1493, %v1494
      %v1496 = vsel %vm1369, %v1286, -inf
      %v1497 = vrot.slane %v1496, 4
      %v1498 = vmax.f32 %v1496, %v1497
      %v1499 = vrot.slane %v1498, 2
      %v1500 = vmax.f32 %v1498, %v1499
      %v1501 = vrot.slane %v1500, 1
      %v1502 = vmax.f32 %v1500, %v1501
      %v1503 = vsel %vm1369, %v1287, -inf
      %v1504 = vrot.slane %v1503, 4
      %v1505 = vmax.f32 %v1503, %v1504
      %v1506 = vrot.slane %v1505, 2
      %v1507 = vmax.f32 %v1505, %v1506
      %v1508 = vrot.slane %v1507, 1
      %v1509 = vmax.f32 %v1507, %v1508
      %v1510 = vsel %vm1369, %v1246, -inf
      %v1511 = vrot.slane %v1510, 4
      %v1512 = vmax.f32 %v1510, %v1511
      %v1513 = vrot.slane %v1512, 2
      %v1514 = vmax.f32 %v1512, %v1513
      %v1515 = vrot.slane %v1514, 1
      %v1516 = vmax.f32 %v1514, %v1515
      %v1517 = vsel %vm1369, %v1288, -inf
      %v1518 = vrot.slane %v1517, 4
      %v1519 = vmax.f32 %v1517, %v1518
      %v1520 = vrot.slane %v1519, 2
      %v1521 = vmax.f32 %v1519, %v1520
      %v1522 = vrot.slane %v1521, 1
      %v1523 = vmax.f32 %v1521, %v1522
      %v1524 = vsel %vm1369, %v1289, -inf
      %v1525 = vrot.slane %v1524, 4
      %v1526 = vmax.f32 %v1524, %v1525
      %v1527 = vrot.slane %v1526, 2
      %v1528 = vmax.f32 %v1526, %v1527
      %v1529 = vrot.slane %v1528, 1
      %v1530 = vmax.f32 %v1528, %v1529
      %v1531 = vsel %vm1369, %v1290, -inf
      %v1532 = vrot.slane %v1531, 4
      %v1533 = vmax.f32 %v1531, %v1532
      %v1534 = vrot.slane %v1533, 2
      %v1535 = vmax.f32 %v1533, %v1534
      %v1536 = vrot.slane %v1535, 1
      %v1537 = vmax.f32 %v1535, %v1536
      %v1538 = vsel %vm1369, %v1247, -inf
      %v1539 = vrot.slane %v1538, 4
      %v1540 = vmax.f32 %v1538, %v1539
      %v1541 = vrot.slane %v1540, 2
      %v1542 = vmax.f32 %v1540, %v1541
      %v1543 = vrot.slane %v1542, 1
      %v1544 = vmax.f32 %v1542, %v1543
      %v1545 = vsel %vm1369, %v1291, -inf
      %v1546 = vrot.slane %v1545, 4
      %v1547 = vmax.f32 %v1545, %v1546
      %v1548 = vrot.slane %v1547, 2
      %v1549 = vmax.f32 %v1547, %v1548
      %v1550 = vrot.slane %v1549, 1
      %v1551 = vmax.f32 %v1549, %v1550
      %v1552 = vsel %vm1369, %v1292, -inf
      %v1553 = vrot.slane %v1552, 4
      %v1554 = vmax.f32 %v1552, %v1553
      %v1555 = vrot.slane %v1554, 2
      %v1556 = vmax.f32 %v1554, %v1555
      %v1557 = vrot.slane %v1556, 1
      %v1558 = vmax.f32 %v1556, %v1557
      %v1559 = vsel %vm1369, %v1293, -inf
      %v1560 = vrot.slane %v1559, 4
      %v1561 = vmax.f32 %v1559, %v1560
      %v1562 = vrot.slane %v1561, 2
      %v1563 = vmax.f32 %v1561, %v1562
      %v1564 = vrot.slane %v1563, 1
      %v1565 = vmax.f32 %v1563, %v1564
      %v1566 = vsel %vm1369, %v1248, -inf
      %v1567 = vrot.slane %v1566, 4
      %v1568 = vmax.f32 %v1566, %v1567
      %v1569 = vrot.slane %v1568, 2
      %v1570 = vmax.f32 %v1568, %v1569
      %v1571 = vrot.slane %v1570, 1
      %v1572 = vmax.f32 %v1570, %v1571
      %v1573 = vsel %vm1369, %v1294, -inf
      %v1574 = vrot.slane %v1573, 4
      %v1575 = vmax.f32 %v1573, %v1574
      %v1576 = vrot.slane %v1575, 2
      %v1577 = vmax.f32 %v1575, %v1576
      %v1578 = vrot.slane %v1577, 1
      %v1579 = vmax.f32 %v1577, %v1578
      %v1580 = vsel %vm1369, %v1295, -inf
      %v1581 = vrot.slane %v1580, 4
      %v1582 = vmax.f32 %v1580, %v1581
      %v1583 = vrot.slane %v1582, 2
      %v1584 = vmax.f32 %v1582, %v1583
      %v1585 = vrot.slane %v1584, 1
      %v1586 = vmax.f32 %v1584, %v1585
      %v1587 = vsel %vm1369, %v1296, -inf
      %v1588 = vrot.slane %v1587, 4
      %v1589 = vmax.f32 %v1587, %v1588
      %v1590 = vrot.slane %v1589, 2
      %v1591 = vmax.f32 %v1589, %v1590
      %v1592 = vrot.slane %v1591, 1
      %v1593 = vmax.f32 %v1591, %v1592
      %v1594 = vsel %vm1369, %v1249, -inf
      %v1595 = vrot.slane %v1594, 4
      %v1596 = vmax.f32 %v1594, %v1595
      %v1597 = vrot.slane %v1596, 2
      %v1598 = vmax.f32 %v1596, %v1597
      %v1599 = vrot.slane %v1598, 1
      %v1600 = vmax.f32 %v1598, %v1599
      %v1601 = vsel %vm1369, %v1297, -inf
      %v1602 = vrot.slane %v1601, 4
      %v1603 = vmax.f32 %v1601, %v1602
      %v1604 = vrot.slane %v1603, 2
      %v1605 = vmax.f32 %v1603, %v1604
      %v1606 = vrot.slane %v1605, 1
      %v1607 = vmax.f32 %v1605, %v1606
      %v1608 = vsel %vm1369, %v1298, -inf
      %v1609 = vrot.slane %v1608, 4
      %v1610 = vmax.f32 %v1608, %v1609
      %v1611 = vrot.slane %v1610, 2
      %v1612 = vmax.f32 %v1610, %v1611
      %v1613 = vrot.slane %v1612, 1
      %v1614 = vmax.f32 %v1612, %v1613
      %v1615 = vsel %vm1369, %v1299, -inf
      %v1616 = vrot.slane %v1615, 4
      %v1617 = vmax.f32 %v1615, %v1616
      %v1618 = vrot.slane %v1617, 2
      %v1619 = vmax.f32 %v1617, %v1618
      %v1620 = vrot.slane %v1619, 1
      %v1621 = vmax.f32 %v1619, %v1620
      %v1622 = vsel %vm1369, %v1250, -inf
      %v1623 = vrot.slane %v1622, 4
      %v1624 = vmax.f32 %v1622, %v1623
      %v1625 = vrot.slane %v1624, 2
      %v1626 = vmax.f32 %v1624, %v1625
      %v1627 = vrot.slane %v1626, 1
      %v1628 = vmax.f32 %v1626, %v1627
      %v1629 = vsel %vm1369, %v1300, -inf
      %v1630 = vrot.slane %v1629, 4
      %v1631 = vmax.f32 %v1629, %v1630
      %v1632 = vrot.slane %v1631, 2
      %v1633 = vmax.f32 %v1631, %v1632
      %v1634 = vrot.slane %v1633, 1
      %v1635 = vmax.f32 %v1633, %v1634
      %v1636 = vsel %vm1369, %v1301, -inf
      %v1637 = vrot.slane %v1636, 4
      %v1638 = vmax.f32 %v1636, %v1637
      %v1639 = vrot.slane %v1638, 2
      %v1640 = vmax.f32 %v1638, %v1639
      %v1641 = vrot.slane %v1640, 1
      %v1642 = vmax.f32 %v1640, %v1641
      %v1643 = vsel %vm1369, %v1302, -inf
      %v1644 = vrot.slane %v1643, 4
      %v1645 = vmax.f32 %v1643, %v1644
      %v1646 = vrot.slane %v1645, 2
      %v1647 = vmax.f32 %v1645, %v1646
      %v1648 = vrot.slane %v1647, 1
      %v1649 = vmax.f32 %v1647, %v1648
      %v1650 = vsel %vm1369, %v1251, -inf
      %v1651 = vrot.slane %v1650, 4
      %v1652 = vmax.f32 %v1650, %v1651
      %v1653 = vrot.slane %v1652, 2
      %v1654 = vmax.f32 %v1652, %v1653
      %v1655 = vrot.slane %v1654, 1
      %v1656 = vmax.f32 %v1654, %v1655
      %v1657 = vsel %vm1369, %v1303, -inf
      %v1658 = vrot.slane %v1657, 4
      %v1659 = vmax.f32 %v1657, %v1658
      %v1660 = vrot.slane %v1659, 2
      %v1661 = vmax.f32 %v1659, %v1660
      %v1662 = vrot.slane %v1661, 1
      %v1663 = vmax.f32 %v1661, %v1662
      %v1664 = vsel %vm1369, %v1304, -inf
      %v1665 = vrot.slane %v1664, 4
      %v1666 = vmax.f32 %v1664, %v1665
      %v1667 = vrot.slane %v1666, 2
      %v1668 = vmax.f32 %v1666, %v1667
      %v1669 = vrot.slane %v1668, 1
      %v1670 = vmax.f32 %v1668, %v1669
      %v1671 = vsel %vm1369, %v1305, -inf
      %v1672 = vrot.slane %v1671, 4
      %v1673 = vmax.f32 %v1671, %v1672
      %v1674 = vrot.slane %v1673, 2
      %v1675 = vmax.f32 %v1673, %v1674
      %v1676 = vrot.slane %v1675, 1
      %v1677 = vmax.f32 %v1675, %v1676
      %v1678 = vsel %vm1369, %v1252, -inf
      %v1679 = vrot.slane %v1678, 4
      %v1680 = vmax.f32 %v1678, %v1679
      %v1681 = vrot.slane %v1680, 2
      %v1682 = vmax.f32 %v1680, %v1681
      %v1683 = vrot.slane %v1682, 1
      %v1684 = vmax.f32 %v1682, %v1683
      %v1685 = vsel %vm1369, %v1306, -inf
      %v1686 = vrot.slane %v1685, 4
      %v1687 = vmax.f32 %v1685, %v1686
      %v1688 = vrot.slane %v1687, 2
      %v1689 = vmax.f32 %v1687, %v1688
      %v1690 = vrot.slane %v1689, 1
      %v1691 = vmax.f32 %v1689, %v1690
      %v1692 = vsel %vm1369, %v1307, -inf
      %v1693 = vrot.slane %v1692, 4
      %v1694 = vmax.f32 %v1692, %v1693
      %v1695 = vrot.slane %v1694, 2
      %v1696 = vmax.f32 %v1694, %v1695
      %v1697 = vrot.slane %v1696, 1
      %v1698 = vmax.f32 %v1696, %v1697
      %v1699 = vsel %vm1369, %v1308, -inf
      %v1700 = vrot.slane %v1699, 4
      %v1701 = vmax.f32 %v1699, %v1700
      %v1702 = vrot.slane %v1701, 2
      %v1703 = vmax.f32 %v1701, %v1702
      %v1704 = vrot.slane %v1703, 1
      %v1705 = vmax.f32 %v1703, %v1704
      %v1706 = vsel %vm1369, %v1253, -inf
      %v1707 = vrot.slane %v1706, 4
      %v1708 = vmax.f32 %v1706, %v1707
      %v1709 = vrot.slane %v1708, 2
      %v1710 = vmax.f32 %v1708, %v1709
      %v1711 = vrot.slane %v1710, 1
      %v1712 = vmax.f32 %v1710, %v1711
      %v1713 = vsel %vm1369, %v1309, -inf
      %v1714 = vrot.slane %v1713, 4
      %v1715 = vmax.f32 %v1713, %v1714
      %v1716 = vrot.slane %v1715, 2
      %v1717 = vmax.f32 %v1715, %v1716
      %v1718 = vrot.slane %v1717, 1
      %v1719 = vmax.f32 %v1717, %v1718
      %v1720 = vsel %vm1369, %v1310, -inf
      %v1721 = vrot.slane %v1720, 4
      %v1722 = vmax.f32 %v1720, %v1721
      %v1723 = vrot.slane %v1722, 2
      %v1724 = vmax.f32 %v1722, %v1723
      %v1725 = vrot.slane %v1724, 1
      %v1726 = vmax.f32 %v1724, %v1725
      %v1727 = vsel %vm1369, %v1311, -inf
      %v1728 = vrot.slane %v1727, 4
      %v1729 = vmax.f32 %v1727, %v1728
      %v1730 = vrot.slane %v1729, 2
      %v1731 = vmax.f32 %v1729, %v1730
      %v1732 = vrot.slane %v1731, 1
      %v1733 = vmax.f32 %v1731, %v1732
      %v1734 = vsel %vm1369, %v1254, -inf
      %v1735 = vrot.slane %v1734, 4
      %v1736 = vmax.f32 %v1734, %v1735
      %v1737 = vrot.slane %v1736, 2
      %v1738 = vmax.f32 %v1736, %v1737
      %v1739 = vrot.slane %v1738, 1
      %v1740 = vmax.f32 %v1738, %v1739
      %v1741 = vsel %vm1369, %v1312, -inf
      %v1742 = vrot.slane %v1741, 4
      %v1743 = vmax.f32 %v1741, %v1742
      %v1744 = vrot.slane %v1743, 2
      %v1745 = vmax.f32 %v1743, %v1744
      %v1746 = vrot.slane %v1745, 1
      %v1747 = vmax.f32 %v1745, %v1746
      %v1748 = vsel %vm1369, %v1313, -inf
      %v1749 = vrot.slane %v1748, 4
      %v1750 = vmax.f32 %v1748, %v1749
      %v1751 = vrot.slane %v1750, 2
      %v1752 = vmax.f32 %v1750, %v1751
      %v1753 = vrot.slane %v1752, 1
      %v1754 = vmax.f32 %v1752, %v1753
      %v1755 = vsel %vm1369, %v1314, -inf
      %v1756 = vrot.slane %v1755, 4
      %v1757 = vmax.f32 %v1755, %v1756
      %v1758 = vrot.slane %v1757, 2
      %v1759 = vmax.f32 %v1757, %v1758
      %v1760 = vrot.slane %v1759, 1
      %v1761 = vmax.f32 %v1759, %v1760
      %v1762 = vsel %vm1369, %v1255, -inf
      %v1763 = vrot.slane %v1762, 4
      %v1764 = vmax.f32 %v1762, %v1763
      %v1765 = vrot.slane %v1764, 2
      %v1766 = vmax.f32 %v1764, %v1765
      %v1767 = vrot.slane %v1766, 1
      %v1768 = vmax.f32 %v1766, %v1767
      %v1769 = vsel %vm1369, %v1315, -inf
      %v1770 = vrot.slane %v1769, 4
      %v1771 = vmax.f32 %v1769, %v1770
      %v1772 = vrot.slane %v1771, 2
      %v1773 = vmax.f32 %v1771, %v1772
      %v1774 = vrot.slane %v1773, 1
      %v1775 = vmax.f32 %v1773, %v1774
      %v1776 = vsel %vm1369, %v1316, -inf
      %v1777 = vrot.slane %v1776, 4
      %v1778 = vmax.f32 %v1776, %v1777
      %v1779 = vrot.slane %v1778, 2
      %v1780 = vmax.f32 %v1778, %v1779
      %v1781 = vrot.slane %v1780, 1
      %v1782 = vmax.f32 %v1780, %v1781
      %v1783 = vsel %vm1369, %v1317, -inf
      %v1784 = vrot.slane %v1783, 4
      %v1785 = vmax.f32 %v1783, %v1784
      %v1786 = vrot.slane %v1785, 2
      %v1787 = vmax.f32 %v1785, %v1786
      %v1788 = vrot.slane %v1787, 1
      %v1789 = vmax.f32 %v1787, %v1788
      %v1790 = vsel %vm1369, %v1256, -inf
      %v1791 = vrot.slane %v1790, 4
      %v1792 = vmax.f32 %v1790, %v1791
      %v1793 = vrot.slane %v1792, 2
      %v1794 = vmax.f32 %v1792, %v1793
      %v1795 = vrot.slane %v1794, 1
      %v1796 = vmax.f32 %v1794, %v1795
      %v1797 = vsel %vm1369, %v1318, -inf
      %v1798 = vrot.slane %v1797, 4
      %v1799 = vmax.f32 %v1797, %v1798
      %v1800 = vrot.slane %v1799, 2
      %v1801 = vmax.f32 %v1799, %v1800
      %v1802 = vrot.slane %v1801, 1
      %v1803 = vmax.f32 %v1801, %v1802
      %v1804 = vsel %vm1369, %v1319, -inf
      %v1805 = vrot.slane %v1804, 4
      %v1806 = vmax.f32 %v1804, %v1805
      %v1807 = vrot.slane %v1806, 2
      %v1808 = vmax.f32 %v1806, %v1807
      %v1809 = vrot.slane %v1808, 1
      %v1810 = vmax.f32 %v1808, %v1809
      %v1811 = vsel %vm1369, %v1320, -inf
      %v1812 = vrot.slane %v1811, 4
      %v1813 = vmax.f32 %v1811, %v1812
      %v1814 = vrot.slane %v1813, 2
      %v1815 = vmax.f32 %v1813, %v1814
      %v1816 = vrot.slane %v1815, 1
      %v1817 = vmax.f32 %v1815, %v1816
      %v1818 = vld [vmem:[%s1 + $0x1b] sm:$0x1f]
      %v1819 = vld [vmem:[%s1 + $0x20] sm:$0x1f]
      %v1820 = vld [vmem:[%s1 + $0x25] sm:$0x1f]
      %v1821 = vld [vmem:[%s2 + $0x6] sm:$0x1]
      %v1822 = vld [vmem:[%s2 + $0x7] sm:$0x1]
      %v1823 = vld [vmem:[%s2 + $0x8] sm:$0x1]
      %vm1880 = vcmask 1042434
      %v1881 = vsel %vm1880, %v1383, %v1376
      %vm1882 = vcmask 1043459
      %v1883 = vsel %vm1882, %v1390, %v1881
      %vm1884 = vcmask 1044484
      %v1885 = vsel %vm1884, %v1397, %v1883
      %vm1886 = vcmask 1045509
      %v1887 = vsel %vm1886, %v1404, %v1885
      %vm1888 = vcmask 1046534
      %v1889 = vsel %vm1888, %v1411, %v1887
      %vm1890 = vcmask 1047559
      %v1891 = vsel %vm1890, %v1418, %v1889
      %v1892 = vsel %vm1880, %v1439, %v1432
      %v1893 = vsel %vm1882, %v1446, %v1892
      %v1894 = vsel %vm1884, %v1453, %v1893
      %v1895 = vsel %vm1886, %v1460, %v1894
      %v1896 = vsel %vm1888, %v1467, %v1895
      %v1897 = vsel %vm1890, %v1474, %v1896
      %v1898 = vsel %vm1880, %v1495, %v1488
      %v1899 = vsel %vm1882, %v1502, %v1898
      %v1900 = vsel %vm1884, %v1509, %v1899
      %v1901 = vsel %vm1886, %v1516, %v1900
      %v1902 = vsel %vm1888, %v1523, %v1901
      %v1903 = vsel %vm1890, %v1530, %v1902
      %v1904 = vsel %vm1880, %v1551, %v1544
      %v1905 = vsel %vm1882, %v1558, %v1904
      %v1906 = vsel %vm1884, %v1565, %v1905
      %v1907 = vsel %vm1886, %v1572, %v1906
      %v1908 = vsel %vm1888, %v1579, %v1907
      %v1909 = vsel %vm1890, %v1586, %v1908
      %v1910 = vsel %vm1880, %v1607, %v1600
      %v1911 = vsel %vm1882, %v1614, %v1910
      %v1912 = vsel %vm1884, %v1621, %v1911
      %v1913 = vsel %vm1886, %v1628, %v1912
      %v1914 = vsel %vm1888, %v1635, %v1913
      %v1915 = vsel %vm1890, %v1642, %v1914
      %v1916 = vsel %vm1880, %v1663, %v1656
      %v1917 = vsel %vm1882, %v1670, %v1916
      %v1918 = vsel %vm1884, %v1677, %v1917
      %v1919 = vsel %vm1886, %v1684, %v1918
      %v1920 = vsel %vm1888, %v1691, %v1919
      %v1921 = vsel %vm1890, %v1698, %v1920
      %v1922 = vsel %vm1880, %v1719, %v1712
      %v1923 = vsel %vm1882, %v1726, %v1922
      %v1924 = vsel %vm1884, %v1733, %v1923
      %v1925 = vsel %vm1886, %v1740, %v1924
      %v1926 = vsel %vm1888, %v1747, %v1925
      %v1927 = vsel %vm1890, %v1754, %v1926
      %v1928 = vsel %vm1880, %v1775, %v1768
      %v1929 = vsel %vm1882, %v1782, %v1928
      %v1930 = vsel %vm1884, %v1789, %v1929
      %v1931 = vsel %vm1886, %v1796, %v1930
      %v1932 = vsel %vm1888, %v1803, %v1931
      %v1933 = vsel %vm1890, %v1810, %v1932
      %v1942 = vsel %vm239, 0.0, %v1891
      %v1943 = vsel %vm239, 0.0, %v1897
      %v1944 = vsel %vm239, 0.0, %v1903
      %v1945 = vsel %vm239, 0.0, %v1909
      %v1946 = vsel %vm239, 0.0, %v1915
      %v1947 = vsel %vm239, 0.0, %v1921
      %v1948 = vsel %vm239, 0.0, %v1927
      %v1949 = vsel %vm239, 0.0, %v1933
      %vm1958 = vcmask 1041409
      %v1959 = vsel %vm1958, %v1390, %v1383
      %v1960 = vsel %vm1880, %v1397, %v1959
      %v1961 = vsel %vm1882, %v1404, %v1960
      %v1962 = vsel %vm1884, %v1411, %v1961
      %v1963 = vsel %vm1886, %v1418, %v1962
      %v1964 = vsel %vm1888, %v1425, %v1963
      %v1965 = vsel %vm1958, %v1446, %v1439
      %v1966 = vsel %vm1880, %v1453, %v1965
      %v1967 = vsel %vm1882, %v1460, %v1966
      %v1968 = vsel %vm1884, %v1467, %v1967
      %v1969 = vsel %vm1886, %v1474, %v1968
      %v1970 = vsel %vm1888, %v1481, %v1969
      %v1971 = vsel %vm1958, %v1502, %v1495
      %v1972 = vsel %vm1880, %v1509, %v1971
      %v1973 = vsel %vm1882, %v1516, %v1972
      %v1974 = vsel %vm1884, %v1523, %v1973
      %v1975 = vsel %vm1886, %v1530, %v1974
      %v1976 = vsel %vm1888, %v1537, %v1975
      %v1977 = vsel %vm1958, %v1558, %v1551
      %v1978 = vsel %vm1880, %v1565, %v1977
      %v1979 = vsel %vm1882, %v1572, %v1978
      %v1980 = vsel %vm1884, %v1579, %v1979
      %v1981 = vsel %vm1886, %v1586, %v1980
      %v1982 = vsel %vm1888, %v1593, %v1981
      %v1983 = vsel %vm1958, %v1614, %v1607
      %v1984 = vsel %vm1880, %v1621, %v1983
      %v1985 = vsel %vm1882, %v1628, %v1984
      %v1986 = vsel %vm1884, %v1635, %v1985
      %v1987 = vsel %vm1886, %v1642, %v1986
      %v1988 = vsel %vm1888, %v1649, %v1987
      %v1989 = vsel %vm1958, %v1670, %v1663
      %v1990 = vsel %vm1880, %v1677, %v1989
      %v1991 = vsel %vm1882, %v1684, %v1990
      %v1992 = vsel %vm1884, %v1691, %v1991
      %v1993 = vsel %vm1886, %v1698, %v1992
      %v1994 = vsel %vm1888, %v1705, %v1993
      %v1995 = vsel %vm1958, %v1726, %v1719
      %v1996 = vsel %vm1880, %v1733, %v1995
      %v1997 = vsel %vm1882, %v1740, %v1996
      %v1998 = vsel %vm1884, %v1747, %v1997
      %v1999 = vsel %vm1886, %v1754, %v1998
      %v2000 = vsel %vm1888, %v1761, %v1999
      %v2001 = vsel %vm1958, %v1782, %v1775
      %v2002 = vsel %vm1880, %v1789, %v2001
      %v2003 = vsel %vm1882, %v1796, %v2002
      %v2004 = vsel %vm1884, %v1803, %v2003
      %v2005 = vsel %vm1886, %v1810, %v2004
      %v2006 = vsel %vm1888, %v1817, %v2005
      %v2015 = vsel %vm280, %v1964, 0.0
      %v2016 = vsel %vm280, %v1970, 0.0
      %v2017 = vsel %vm280, %v1976, 0.0
      %v2018 = vsel %vm280, %v1982, 0.0
      %v2019 = vsel %vm280, %v1988, 0.0
      %v2020 = vsel %vm280, %v1994, 0.0
      %v2021 = vsel %vm280, %v2000, 0.0
      %v2022 = vsel %vm280, %v2006, 0.0
      %v2023 = vsel %vm1958, %v1383, %v1376
      %v2024 = vsel %vm1880, %v1390, %v2023
      %v2025 = vsel %vm1882, %v1397, %v2024
      %v2026 = vsel %vm1884, %v1404, %v2025
      %v2027 = vsel %vm1886, %v1411, %v2026
      %v2028 = vsel %vm1888, %v1418, %v2027
      %v2029 = vsel %vm1890, %v1425, %v2028
      %v2030 = vsel %vm1958, %v1439, %v1432
      %v2031 = vsel %vm1880, %v1446, %v2030
      %v2032 = vsel %vm1882, %v1453, %v2031
      %v2033 = vsel %vm1884, %v1460, %v2032
      %v2034 = vsel %vm1886, %v1467, %v2033
      %v2035 = vsel %vm1888, %v1474, %v2034
      %v2036 = vsel %vm1890, %v1481, %v2035
      %v2037 = vsel %vm1958, %v1495, %v1488
      %v2038 = vsel %vm1880, %v1502, %v2037
      %v2039 = vsel %vm1882, %v1509, %v2038
      %v2040 = vsel %vm1884, %v1516, %v2039
      %v2041 = vsel %vm1886, %v1523, %v2040
      %v2042 = vsel %vm1888, %v1530, %v2041
      %v2043 = vsel %vm1890, %v1537, %v2042
      %v2044 = vsel %vm1958, %v1551, %v1544
      %v2045 = vsel %vm1880, %v1558, %v2044
      %v2046 = vsel %vm1882, %v1565, %v2045
      %v2047 = vsel %vm1884, %v1572, %v2046
      %v2048 = vsel %vm1886, %v1579, %v2047
      %v2049 = vsel %vm1888, %v1586, %v2048
      %v2050 = vsel %vm1890, %v1593, %v2049
      %v2051 = vsel %vm1958, %v1607, %v1600
      %v2052 = vsel %vm1880, %v1614, %v2051
      %v2053 = vsel %vm1882, %v1621, %v2052
      %v2054 = vsel %vm1884, %v1628, %v2053
      %v2055 = vsel %vm1886, %v1635, %v2054
      %v2056 = vsel %vm1888, %v1642, %v2055
      %v2057 = vsel %vm1890, %v1649, %v2056
      %v2058 = vsel %vm1958, %v1663, %v1656
      %v2059 = vsel %vm1880, %v1670, %v2058
      %v2060 = vsel %vm1882, %v1677, %v2059
      %v2061 = vsel %vm1884, %v1684, %v2060
      %v2062 = vsel %vm1886, %v1691, %v2061
      %v2063 = vsel %vm1888, %v1698, %v2062
      %v2064 = vsel %vm1890, %v1705, %v2063
      %v2065 = vsel %vm1958, %v1719, %v1712
      %v2066 = vsel %vm1880, %v1726, %v2065
      %v2067 = vsel %vm1882, %v1733, %v2066
      %v2068 = vsel %vm1884, %v1740, %v2067
      %v2069 = vsel %vm1886, %v1747, %v2068
      %v2070 = vsel %vm1888, %v1754, %v2069
      %v2071 = vsel %vm1890, %v1761, %v2070
      %v2072 = vsel %vm1958, %v1775, %v1768
      %v2073 = vsel %vm1880, %v1782, %v2072
      %v2074 = vsel %vm1882, %v1789, %v2073
      %v2075 = vsel %vm1884, %v1796, %v2074
      %v2076 = vsel %vm1886, %v1803, %v2075
      %v2077 = vsel %vm1888, %v1810, %v2076
      %v2078 = vsel %vm1890, %v1817, %v2077
      %v2079 = vsel %vm840, %v2029, 0
      %v2081 = vsel %vm840, %v2036, 0
      %v2083 = vsel %vm840, %v2043, 0
      %v2085 = vsel %vm840, %v2050, 0
      %v2087 = vsel %vm840, %v2057, 0
      %v2089 = vsel %vm840, %v2064, 0
      %v2091 = vsel %vm840, %v2071, 0
      %v2093 = vsel %vm840, %v2078, 0
      %v2096 = vsel %vm873, %v1819, 0
      %2098 = vmatpush.msra.mxu0 0.0
      %2099 = vmatpush.msra.mxu0 0.0
      %2100 = vmatpush.msra.mxu0 0.0
      %2101 = vmatpush.msra.mxu0 0.0
      %2102 = vmatpush.msra.mxu0 0.0
      %2103 = vmatpush.msra.mxu0 0.0
      %2104 = vmatpush.msra.mxu0 0.0
      %2105 = vmatpush.msra.mxu0 0.0
      %2106 = vmatpush.msra.mxu0 0.0
      %2107 = vmatpush.msra.mxu0 0.0
      %2108 = vmatpush.msra.mxu0 0.0
      %2109 = vmatpush.msra.mxu0 0.0
      %2110 = vmatpush.msra.mxu0 0.0
      %2111 = vmatpush.msra.mxu0 0.0
      %2112 = vmatpush.msra.mxu0 0.0
      %2113 = vmatpush.msra.mxu0 %v2096
      %2114 = vmatmul.f32.gmra.mxu0 %v2079
      %v2115 = vpop.f32.mrf.mxu0
      %v2116 = vadd.f32 0.0, %v2115
      %2117 = vmatmul.f32.gmra.mxu0 %v2081
      %v2118 = vpop.f32.mrf.mxu0
      %v2119 = vadd.f32 0.0, %v2118
      %2120 = vmatmul.f32.gmra.mxu0 %v2083
      %v2121 = vpop.f32.mrf.mxu0
      %v2122 = vadd.f32 0.0, %v2121
      %2123 = vmatmul.f32.gmra.mxu0 %v2085
      %v2124 = vpop.f32.mrf.mxu0
      %v2125 = vadd.f32 0.0, %v2124
      %2126 = vmatmul.f32.gmra.mxu0 %v2087
      %v2127 = vpop.f32.mrf.mxu0
      %v2128 = vadd.f32 0.0, %v2127
      %2129 = vmatmul.f32.gmra.mxu0 %v2089
      %v2130 = vpop.f32.mrf.mxu0
      %v2131 = vadd.f32 0.0, %v2130
      %2132 = vmatmul.f32.gmra.mxu0 %v2091
      %v2133 = vpop.f32.mrf.mxu0
      %v2134 = vadd.f32 0.0, %v2133
      %2135 = vmatmul.f32.gmra.mxu0 %v2093
      %v2136 = vpop.f32.mrf.mxu0
      %v2137 = vadd.f32 0.0, %v2136
      %2138 = vdwg.mxu0
      %v2140 = vsel %vm840, %v1942, 0
      %v2143 = vsel %vm840, %v1943, 0
      %v2146 = vsel %vm840, %v1944, 0
      %v2149 = vsel %vm840, %v1945, 0
      %v2152 = vsel %vm840, %v1946, 0
      %v2155 = vsel %vm840, %v1947, 0
      %v2158 = vsel %vm840, %v1948, 0
      %v2161 = vsel %vm840, %v1949, 0
      %v2164 = vsel %vm873, %v1818, 0
      %2166 = vmatpush.msra.mxu0 0.0
      %2167 = vmatpush.msra.mxu0 0.0
      %2168 = vmatpush.msra.mxu0 0.0
      %2169 = vmatpush.msra.mxu0 0.0
      %2170 = vmatpush.msra.mxu0 0.0
      %2171 = vmatpush.msra.mxu0 0.0
      %2172 = vmatpush.msra.mxu0 0.0
      %2173 = vmatpush.msra.mxu0 0.0
      %2174 = vmatpush.msra.mxu0 0.0
      %2175 = vmatpush.msra.mxu0 0.0
      %2176 = vmatpush.msra.mxu0 0.0
      %2177 = vmatpush.msra.mxu0 0.0
      %2178 = vmatpush.msra.mxu0 0.0
      %2179 = vmatpush.msra.mxu0 0.0
      %2180 = vmatpush.msra.mxu0 0.0
      %2181 = vmatpush.msra.mxu0 %v2164
      %2182 = vmatmul.f32.gmra.mxu0 %v2140
      %v2183 = vpop.f32.mrf.mxu0
      %v2184 = vadd.f32 %v2116, %v2183
      %2185 = vmatmul.f32.gmra.mxu0 %v2143
      %v2186 = vpop.f32.mrf.mxu0
      %v2187 = vadd.f32 %v2119, %v2186
      %2188 = vmatmul.f32.gmra.mxu0 %v2146
      %v2189 = vpop.f32.mrf.mxu0
      %v2190 = vadd.f32 %v2122, %v2189
      %2191 = vmatmul.f32.gmra.mxu0 %v2149
      %v2192 = vpop.f32.mrf.mxu0
      %v2193 = vadd.f32 %v2125, %v2192
      %2194 = vmatmul.f32.gmra.mxu0 %v2152
      %v2195 = vpop.f32.mrf.mxu0
      %v2196 = vadd.f32 %v2128, %v2195
      %2197 = vmatmul.f32.gmra.mxu0 %v2155
      %v2198 = vpop.f32.mrf.mxu0
      %v2199 = vadd.f32 %v2131, %v2198
      %2200 = vmatmul.f32.gmra.mxu0 %v2158
      %v2201 = vpop.f32.mrf.mxu0
      %v2202 = vadd.f32 %v2134, %v2201
      %2203 = vmatmul.f32.gmra.mxu0 %v2161
      %v2204 = vpop.f32.mrf.mxu0
      %v2205 = vadd.f32 %v2137, %v2204
      %2206 = vdwg.mxu0
      %v2208 = vsel %vm840, %v2015, 0
      %v2211 = vsel %vm840, %v2016, 0
      %v2214 = vsel %vm840, %v2017, 0
      %v2217 = vsel %vm840, %v2018, 0
      %v2220 = vsel %vm840, %v2019, 0
      %v2223 = vsel %vm840, %v2020, 0
      %v2226 = vsel %vm840, %v2021, 0
      %v2229 = vsel %vm840, %v2022, 0
      %v2232 = vsel %vm873, %v1820, 0
      %2234 = vmatpush.msra.mxu0 0.0
      %2235 = vmatpush.msra.mxu0 0.0
      %2236 = vmatpush.msra.mxu0 0.0
      %2237 = vmatpush.msra.mxu0 0.0
      %2238 = vmatpush.msra.mxu0 0.0
      %2239 = vmatpush.msra.mxu0 0.0
      %2240 = vmatpush.msra.mxu0 0.0
      %2241 = vmatpush.msra.mxu0 0.0
      %2242 = vmatpush.msra.mxu0 0.0
      %2243 = vmatpush.msra.mxu0 0.0
      %2244 = vmatpush.msra.mxu0 0.0
      %2245 = vmatpush.msra.mxu0 0.0
      %2246 = vmatpush.msra.mxu0 0.0
      %2247 = vmatpush.msra.mxu0 0.0
      %2248 = vmatpush.msra.mxu0 0.0
      %2249 = vmatpush.msra.mxu0 %v2232
      %2250 = vmatmul.f32.gmra.mxu0 %v2208
      %v2251 = vpop.f32.mrf.mxu0
      %v2252 = vadd.f32 0.0, %v2251
      %2253 = vmatmul.f32.gmra.mxu0 %v2211
      %v2254 = vpop.f32.mrf.mxu0
      %v2255 = vadd.f32 0.0, %v2254
      %2256 = vmatmul.f32.gmra.mxu0 %v2214
      %v2257 = vpop.f32.mrf.mxu0
      %v2258 = vadd.f32 0.0, %v2257
      %2259 = vmatmul.f32.gmra.mxu0 %v2217
      %v2260 = vpop.f32.mrf.mxu0
      %v2261 = vadd.f32 0.0, %v2260
      %2262 = vmatmul.f32.gmra.mxu0 %v2220
      %v2263 = vpop.f32.mrf.mxu0
      %v2264 = vadd.f32 0.0, %v2263
      %2265 = vmatmul.f32.gmra.mxu0 %v2223
      %v2266 = vpop.f32.mrf.mxu0
      %v2267 = vadd.f32 0.0, %v2266
      %2268 = vmatmul.f32.gmra.mxu0 %v2226
      %v2269 = vpop.f32.mrf.mxu0
      %v2270 = vadd.f32 0.0, %v2269
      %2271 = vmatmul.f32.gmra.mxu0 %v2229
      %v2272 = vpop.f32.mrf.mxu0
      %v2273 = vadd.f32 0.0, %v2272
      %2274 = vdwg.mxu0
      %v2275 = vadd.f32 %v2184, %v2252
      %v2276 = vadd.f32 %v2187, %v2255
      %v2277 = vadd.f32 %v2190, %v2258
      %v2278 = vadd.f32 %v2193, %v2261
      %v2279 = vadd.f32 %v2196, %v2264
      %v2280 = vadd.f32 %v2199, %v2267
      %v2281 = vadd.f32 %v2202, %v2270
      %v2282 = vadd.f32 %v2205, %v2273
      %v2283 = vperm.slane %v1821, 0
      %v2284 = vadd.f32 %v2275, %v2283
      %v2285 = vadd.f32 %v2276, %v2283
      %v2286 = vadd.f32 %v2277, %v2283
      %v2287 = vadd.f32 %v2278, %v2283
      %v2288 = vadd.f32 %v2279, %v2283
      %v2289 = vadd.f32 %v2280, %v2283
      %v2290 = vadd.f32 %v2281, %v2283
      %v2291 = vadd.f32 %v2282, %v2283
      %v2292 = vmul.f32 %v2284, 0.01
      %v2293 = vmul.f32 %v2285, 0.01
      %v2294 = vmul.f32 %v2286, 0.01
      %v2295 = vmul.f32 %v2287, 0.01
      %v2296 = vmul.f32 %v2288, 0.01
      %v2297 = vmul.f32 %v2289, 0.01
      %v2298 = vmul.f32 %v2290, 0.01
      %v2299 = vmul.f32 %v2291, 0.01
      %v2300 = vmax.f32 %v2284, %v2292
      %v2301 = vmax.f32 %v2285, %v2293
      %v2302 = vmax.f32 %v2286, %v2294
      %v2303 = vmax.f32 %v2287, %v2295
      %v2304 = vmax.f32 %v2288, %v2296
      %v2305 = vmax.f32 %v2289, %v2297
      %v2306 = vmax.f32 %v2290, %v2298
      %v2307 = vmax.f32 %v2291, %v2299
      %v2308 = vperm.slane %v1822, 0
      %v2309 = vmul.f32 %v2300, %v2308
      %v2310 = vmul.f32 %v2301, %v2308
      %v2311 = vmul.f32 %v2302, %v2308
      %v2312 = vmul.f32 %v2303, %v2308
      %v2313 = vmul.f32 %v2304, %v2308
      %v2314 = vmul.f32 %v2305, %v2308
      %v2315 = vmul.f32 %v2306, %v2308
      %v2316 = vmul.f32 %v2307, %v2308
      %v2317 = vperm.slane %v1823, 0
      %v2318 = vadd.f32 %v2309, %v2317
      %v2319 = vadd.f32 %v2310, %v2317
      %v2320 = vadd.f32 %v2311, %v2317
      %v2321 = vadd.f32 %v2312, %v2317
      %v2322 = vadd.f32 %v2313, %v2317
      %v2323 = vadd.f32 %v2314, %v2317
      %v2324 = vadd.f32 %v2315, %v2317
      %v2325 = vadd.f32 %v2316, %v2317
      %v2326 = vld [vmem:[%s1 + $0x2a] sm:$0xff]
      %v2327 = vld [vmem:[%s1 + $0x32] sm:$0x3]
      %v2328 = vld [vmem:[%s1 + $0x34] sm:$0xff]
      %v2329 = vld [vmem:[%s1 + $0x3c] sm:$0x3]
      %v2330 = vld [vmem:[%s1 + $0x3e] sm:$0xff]
      %v2331 = vld [vmem:[%s1 + $0x46] sm:$0x3]
      %v2332 = vld [vmem:[%s2 + $0x9] sm:$0x1]
      %v2333 = vld [vmem:[%s2 + $0xa] sm:$0x1]
      %v2334 = vld [vmem:[%s2 + $0xb] sm:$0x1]
      %v2343 = vrot.slane %v2318, 7
      %v2344 = vrot.slane %v2319, 7
      %v2345 = vrot.slane %v2320, 7
      %v2346 = vrot.slane %v2321, 7
      %v2347 = vrot.slane %v2322, 7
      %v2348 = vrot.slane %v2323, 7
      %v2349 = vrot.slane %v2324, 7
      %v2350 = vrot.slane %v2325, 7
      %v2359 = vsel %vm239, 0.0, %v2343
      %v2360 = vsel %vm239, 0.0, %v2344
      %v2361 = vsel %vm239, 0.0, %v2345
      %v2362 = vsel %vm239, 0.0, %v2346
      %v2363 = vsel %vm239, 0.0, %v2347
      %v2364 = vsel %vm239, 0.0, %v2348
      %v2365 = vsel %vm239, 0.0, %v2349
      %v2366 = vsel %vm239, 0.0, %v2350
      %v2367 = vrot.slane %v2318, 1
      %v2368 = vrot.slane %v2319, 1
      %v2369 = vrot.slane %v2320, 1
      %v2370 = vrot.slane %v2321, 1
      %v2371 = vrot.slane %v2322, 1
      %v2372 = vrot.slane %v2323, 1
      %v2373 = vrot.slane %v2324, 1
      %v2374 = vrot.slane %v2325, 1
      %v2383 = vsel %vm280, %v2367, 0.0
      %v2384 = vsel %vm280, %v2368, 0.0
      %v2385 = vsel %vm280, %v2369, 0.0
      %v2386 = vsel %vm280, %v2370, 0.0
      %v2387 = vsel %vm280, %v2371, 0.0
      %v2388 = vsel %vm280, %v2372, 0.0
      %v2389 = vsel %vm280, %v2373, 0.0
      %v2390 = vsel %vm280, %v2374, 0.0
      %vm2391 = vcmask 80896
      %v2392 = vsel %vm2391, %v2318, 0
      %v2394 = vsel %vm2391, %v2319, 0
      %v2396 = vsel %vm2391, %v2320, 0
      %v2398 = vsel %vm2391, %v2321, 0
      %v2400 = vsel %vm2391, %v2322, 0
      %v2402 = vsel %vm2391, %v2323, 0
      %v2404 = vsel %vm2391, %v2324, 0
      %v2406 = vsel %vm2391, %v2325, 0
      %vm2408 = vcmask 1041408
      %v2410 = vsel %vm2408, %v2329, 0
      %2412 = vmatpush.msra.mxu0 0.0
      %2413 = vmatpush.msra.mxu0 0.0
      %2414 = vmatpush.msra.mxu0 0.0
      %2415 = vmatpush.msra.mxu0 0.0
      %2416 = vmatpush.msra.mxu0 0.0
      %2417 = vmatpush.msra.mxu0 0.0
      %2418 = vmatpush.msra.mxu0 0.0
      %2419 = vmatpush.msra.mxu0 0.0
      %2420 = vmatpush.msra.mxu0 0.0
      %2421 = vmatpush.msra.mxu0 0.0
      %2422 = vmatpush.msra.mxu0 0.0
      %2423 = vmatpush.msra.mxu0 0.0
      %2424 = vmatpush.msra.mxu0 0.0
      %2425 = vmatpush.msra.mxu0 0.0
      %2426 = vmatpush.msra.mxu0 %v2410
      %2427 = vmatpush.msra.mxu0 %v2328
      %2428 = vmatmul.f32.gmra.mxu0 %v2392
      %v2429 = vpop.f32.mrf.mxu0
      %v2430 = vadd.f32 0.0, %v2429
      %2431 = vmatmul.f32.gmra.mxu0 %v2394
      %v2432 = vpop.f32.mrf.mxu0
      %v2433 = vadd.f32 0.0, %v2432
      %2434 = vmatmul.f32.gmra.mxu0 %v2396
      %v2435 = vpop.f32.mrf.mxu0
      %v2436 = vadd.f32 0.0, %v2435
      %2437 = vmatmul.f32.gmra.mxu0 %v2398
      %v2438 = vpop.f32.mrf.mxu0
      %v2439 = vadd.f32 0.0, %v2438
      %2440 = vmatmul.f32.gmra.mxu0 %v2400
      %v2441 = vpop.f32.mrf.mxu0
      %v2442 = vadd.f32 0.0, %v2441
      %2443 = vmatmul.f32.gmra.mxu0 %v2402
      %v2444 = vpop.f32.mrf.mxu0
      %v2445 = vadd.f32 0.0, %v2444
      %2446 = vmatmul.f32.gmra.mxu0 %v2404
      %v2447 = vpop.f32.mrf.mxu0
      %v2448 = vadd.f32 0.0, %v2447
      %2449 = vmatmul.f32.gmra.mxu0 %v2406
      %v2450 = vpop.f32.mrf.mxu0
      %v2451 = vadd.f32 0.0, %v2450
      %2452 = vdwg.mxu0
      %v2454 = vsel %vm2391, %v2359, 0
      %v2457 = vsel %vm2391, %v2360, 0
      %v2460 = vsel %vm2391, %v2361, 0
      %v2463 = vsel %vm2391, %v2362, 0
      %v2466 = vsel %vm2391, %v2363, 0
      %v2469 = vsel %vm2391, %v2364, 0
      %v2472 = vsel %vm2391, %v2365, 0
      %v2475 = vsel %vm2391, %v2366, 0
      %v2478 = vsel %vm2408, %v2327, 0
      %2480 = vmatpush.msra.mxu0 0.0
      %2481 = vmatpush.msra.mxu0 0.0
      %2482 = vmatpush.msra.mxu0 0.0
      %2483 = vmatpush.msra.mxu0 0.0
      %2484 = vmatpush.msra.mxu0 0.0
      %2485 = vmatpush.msra.mxu0 0.0
      %2486 = vmatpush.msra.mxu0 0.0
      %2487 = vmatpush.msra.mxu0 0.0
      %2488 = vmatpush.msra.mxu0 0.0
      %2489 = vmatpush.msra.mxu0 0.0
      %2490 = vmatpush.msra.mxu0 0.0
      %2491 = vmatpush.msra.mxu0 0.0
      %2492 = vmatpush.msra.mxu0 0.0
      %2493 = vmatpush.msra.mxu0 0.0
      %2494 = vmatpush.msra.mxu0 %v2478
      %2495 = vmatpush.msra.mxu0 %v2326
      %2496 = vmatmul.f32.gmra.mxu0 %v2454
      %v2497 = vpop.f32.mrf.mxu0
      %v2498 = vadd.f32 %v2430, %v2497
      %2499 = vmatmul.f32.gmra.mxu0 %v2457
      %v2500 = vpop.f32.mrf.mxu0
      %v2501 = vadd.f32 %v2433, %v2500
      %2502 = vmatmul.f32.gmra.mxu0 %v2460
      %v2503 = vpop.f32.mrf.mxu0
      %v2504 = vadd.f32 %v2436, %v2503
      %2505 = vmatmul.f32.gmra.mxu0 %v2463
      %v2506 = vpop.f32.mrf.mxu0
      %v2507 = vadd.f32 %v2439, %v2506
      %2508 = vmatmul.f32.gmra.mxu0 %v2466
      %v2509 = vpop.f32.mrf.mxu0
      %v2510 = vadd.f32 %v2442, %v2509
      %2511 = vmatmul.f32.gmra.mxu0 %v2469
      %v2512 = vpop.f32.mrf.mxu0
      %v2513 = vadd.f32 %v2445, %v2512
      %2514 = vmatmul.f32.gmra.mxu0 %v2472
      %v2515 = vpop.f32.mrf.mxu0
      %v2516 = vadd.f32 %v2448, %v2515
      %2517 = vmatmul.f32.gmra.mxu0 %v2475
      %v2518 = vpop.f32.mrf.mxu0
      %v2519 = vadd.f32 %v2451, %v2518
      %2520 = vdwg.mxu0
      %v2522 = vsel %vm2391, %v2383, 0
      %v2525 = vsel %vm2391, %v2384, 0
      %v2528 = vsel %vm2391, %v2385, 0
      %v2531 = vsel %vm2391, %v2386, 0
      %v2534 = vsel %vm2391, %v2387, 0
      %v2537 = vsel %vm2391, %v2388, 0
      %v2540 = vsel %vm2391, %v2389, 0
      %v2543 = vsel %vm2391, %v2390, 0
      %v2546 = vsel %vm2408, %v2331, 0
      %2548 = vmatpush.msra.mxu0 0.0
      %2549 = vmatpush.msra.mxu0 0.0
      %2550 = vmatpush.msra.mxu0 0.0
      %2551 = vmatpush.msra.mxu0 0.0
      %2552 = vmatpush.msra.mxu0 0.0
      %2553 = vmatpush.msra.mxu0 0.0
      %2554 = vmatpush.msra.mxu0 0.0
      %2555 = vmatpush.msra.mxu0 0.0
      %2556 = vmatpush.msra.mxu0 0.0
      %2557 = vmatpush.msra.mxu0 0.0
      %2558 = vmatpush.msra.mxu0 0.0
      %2559 = vmatpush.msra.mxu0 0.0
      %2560 = vmatpush.msra.mxu0 0.0
      %2561 = vmatpush.msra.mxu0 0.0
      %2562 = vmatpush.msra.mxu0 %v2546
      %2563 = vmatpush.msra.mxu0 %v2330
      %2564 = vmatmul.f32.gmra.mxu0 %v2522
      %v2565 = vpop.f32.mrf.mxu0
      %v2566 = vadd.f32 0.0, %v2565
      %2567 = vmatmul.f32.gmra.mxu0 %v2525
      %v2568 = vpop.f32.mrf.mxu0
      %v2569 = vadd.f32 0.0, %v2568
      %2570 = vmatmul.f32.gmra.mxu0 %v2528
      %v2571 = vpop.f32.mrf.mxu0
      %v2572 = vadd.f32 0.0, %v2571
      %2573 = vmatmul.f32.gmra.mxu0 %v2531
      %v2574 = vpop.f32.mrf.mxu0
      %v2575 = vadd.f32 0.0, %v2574
      %2576 = vmatmul.f32.gmra.mxu0 %v2534
      %v2577 = vpop.f32.mrf.mxu0
      %v2578 = vadd.f32 0.0, %v2577
      %2579 = vmatmul.f32.gmra.mxu0 %v2537
      %v2580 = vpop.f32.mrf.mxu0
      %v2581 = vadd.f32 0.0, %v2580
      %2582 = vmatmul.f32.gmra.mxu0 %v2540
      %v2583 = vpop.f32.mrf.mxu0
      %v2584 = vadd.f32 0.0, %v2583
      %2585 = vmatmul.f32.gmra.mxu0 %v2543
      %v2586 = vpop.f32.mrf.mxu0
      %v2587 = vadd.f32 0.0, %v2586
      %2588 = vdwg.mxu0
      %v2589 = vadd.f32 %v2498, %v2566
      %v2590 = vadd.f32 %v2501, %v2569
      %v2591 = vadd.f32 %v2504, %v2572
      %v2592 = vadd.f32 %v2507, %v2575
      %v2593 = vadd.f32 %v2510, %v2578
      %v2594 = vadd.f32 %v2513, %v2581
      %v2595 = vadd.f32 %v2516, %v2584
      %v2596 = vadd.f32 %v2519, %v2587
      %v2597 = vperm.slane %v2332, 0
      %v2598 = vadd.f32 %v2589, %v2597
      %v2599 = vadd.f32 %v2590, %v2597
      %v2600 = vadd.f32 %v2591, %v2597
      %v2601 = vadd.f32 %v2592, %v2597
      %v2602 = vadd.f32 %v2593, %v2597
      %v2603 = vadd.f32 %v2594, %v2597
      %v2604 = vadd.f32 %v2595, %v2597
      %v2605 = vadd.f32 %v2596, %v2597
      %v2606 = vmul.f32 %v2598, 0.01
      %v2607 = vmul.f32 %v2599, 0.01
      %v2608 = vmul.f32 %v2600, 0.01
      %v2609 = vmul.f32 %v2601, 0.01
      %v2610 = vmul.f32 %v2602, 0.01
      %v2611 = vmul.f32 %v2603, 0.01
      %v2612 = vmul.f32 %v2604, 0.01
      %v2613 = vmul.f32 %v2605, 0.01
      %v2614 = vmax.f32 %v2598, %v2606
      %v2615 = vmax.f32 %v2599, %v2607
      %v2616 = vmax.f32 %v2600, %v2608
      %v2617 = vmax.f32 %v2601, %v2609
      %v2618 = vmax.f32 %v2602, %v2610
      %v2619 = vmax.f32 %v2603, %v2611
      %v2620 = vmax.f32 %v2604, %v2612
      %v2621 = vmax.f32 %v2605, %v2613
      %v2622 = vperm.slane %v2333, 0
      %v2623 = vmul.f32 %v2614, %v2622
      %v2624 = vmul.f32 %v2615, %v2622
      %v2625 = vmul.f32 %v2616, %v2622
      %v2626 = vmul.f32 %v2617, %v2622
      %v2627 = vmul.f32 %v2618, %v2622
      %v2628 = vmul.f32 %v2619, %v2622
      %v2629 = vmul.f32 %v2620, %v2622
      %v2630 = vmul.f32 %v2621, %v2622
      %v2631 = vperm.slane %v2334, 0
      %v2632 = vadd.f32 %v2623, %v2631
      %v2633 = vadd.f32 %v2624, %v2631
      %v2634 = vadd.f32 %v2625, %v2631
      %v2635 = vadd.f32 %v2626, %v2631
      %v2636 = vadd.f32 %v2627, %v2631
      %v2637 = vadd.f32 %v2628, %v2631
      %v2638 = vadd.f32 %v2629, %v2631
      %v2639 = vadd.f32 %v2630, %v2631
      %v2648 = vrot.slane %v2632, 2
      %v2649 = vrot.slane %v2632, 4
      %v2650 = vrot.slane %v2632, 6
      %v2651 = vrot.slane %v2633, 2
      %v2652 = vrot.slane %v2633, 4
      %v2653 = vrot.slane %v2633, 6
      %v2654 = vrot.slane %v2634, 2
      %v2655 = vrot.slane %v2634, 4
      %v2656 = vrot.slane %v2634, 6
      %v2657 = vrot.slane %v2635, 2
      %v2658 = vrot.slane %v2635, 4
      %v2659 = vrot.slane %v2635, 6
      %v2660 = vrot.slane %v2636, 2
      %v2661 = vrot.slane %v2636, 4
      %v2662 = vrot.slane %v2636, 6
      %v2663 = vrot.slane %v2637, 2
      %v2664 = vrot.slane %v2637, 4
      %v2665 = vrot.slane %v2637, 6
      %v2666 = vrot.slane %v2638, 2
      %v2667 = vrot.slane %v2638, 4
      %v2668 = vrot.slane %v2638, 6
      %v2669 = vrot.slane %v2639, 2
      %v2670 = vrot.slane %v2639, 4
      %v2671 = vrot.slane %v2639, 6
      %vm2696 = vcmask 74752
      %v2697 = vsel %vm2696, %v2632, -inf
      %v2698 = vrot.slane %v2697, 4
      %v2699 = vmax.f32 %v2697, %v2698
      %v2700 = vrot.slane %v2699, 2
      %v2701 = vmax.f32 %v2699, %v2700
      %v2702 = vrot.slane %v2701, 1
      %v2703 = vmax.f32 %v2701, %v2702
      %v2704 = vsel %vm2696, %v2648, -inf
      %v2705 = vrot.slane %v2704, 4
      %v2706 = vmax.f32 %v2704, %v2705
      %v2707 = vrot.slane %v2706, 2
      %v2708 = vmax.f32 %v2706, %v2707
      %v2709 = vrot.slane %v2708, 1
      %v2710 = vmax.f32 %v2708, %v2709
      %v2711 = vsel %vm2696, %v2649, -inf
      %v2712 = vrot.slane %v2711, 4
      %v2713 = vmax.f32 %v2711, %v2712
      %v2714 = vrot.slane %v2713, 2
      %v2715 = vmax.f32 %v2713, %v2714
      %v2716 = vrot.slane %v2715, 1
      %v2717 = vmax.f32 %v2715, %v2716
      %v2718 = vsel %vm2696, %v2650, -inf
      %v2719 = vrot.slane %v2718, 4
      %v2720 = vmax.f32 %v2718, %v2719
      %v2721 = vrot.slane %v2720, 2
      %v2722 = vmax.f32 %v2720, %v2721
      %v2723 = vrot.slane %v2722, 1
      %v2724 = vmax.f32 %v2722, %v2723
      %v2725 = vsel %vm2696, %v2633, -inf
      %v2726 = vrot.slane %v2725, 4
      %v2727 = vmax.f32 %v2725, %v2726
      %v2728 = vrot.slane %v2727, 2
      %v2729 = vmax.f32 %v2727, %v2728
      %v2730 = vrot.slane %v2729, 1
      %v2731 = vmax.f32 %v2729, %v2730
      %v2732 = vsel %vm2696, %v2651, -inf
      %v2733 = vrot.slane %v2732, 4
      %v2734 = vmax.f32 %v2732, %v2733
      %v2735 = vrot.slane %v2734, 2
      %v2736 = vmax.f32 %v2734, %v2735
      %v2737 = vrot.slane %v2736, 1
      %v2738 = vmax.f32 %v2736, %v2737
      %v2739 = vsel %vm2696, %v2652, -inf
      %v2740 = vrot.slane %v2739, 4
      %v2741 = vmax.f32 %v2739, %v2740
      %v2742 = vrot.slane %v2741, 2
      %v2743 = vmax.f32 %v2741, %v2742
      %v2744 = vrot.slane %v2743, 1
      %v2745 = vmax.f32 %v2743, %v2744
      %v2746 = vsel %vm2696, %v2653, -inf
      %v2747 = vrot.slane %v2746, 4
      %v2748 = vmax.f32 %v2746, %v2747
      %v2749 = vrot.slane %v2748, 2
      %v2750 = vmax.f32 %v2748, %v2749
      %v2751 = vrot.slane %v2750, 1
      %v2752 = vmax.f32 %v2750, %v2751
      %v2753 = vsel %vm2696, %v2634, -inf
      %v2754 = vrot.slane %v2753, 4
      %v2755 = vmax.f32 %v2753, %v2754
      %v2756 = vrot.slane %v2755, 2
      %v2757 = vmax.f32 %v2755, %v2756
      %v2758 = vrot.slane %v2757, 1
      %v2759 = vmax.f32 %v2757, %v2758
      %v2760 = vsel %vm2696, %v2654, -inf
      %v2761 = vrot.slane %v2760, 4
      %v2762 = vmax.f32 %v2760, %v2761
      %v2763 = vrot.slane %v2762, 2
      %v2764 = vmax.f32 %v2762, %v2763
      %v2765 = vrot.slane %v2764, 1
      %v2766 = vmax.f32 %v2764, %v2765
      %v2767 = vsel %vm2696, %v2655, -inf
      %v2768 = vrot.slane %v2767, 4
      %v2769 = vmax.f32 %v2767, %v2768
      %v2770 = vrot.slane %v2769, 2
      %v2771 = vmax.f32 %v2769, %v2770
      %v2772 = vrot.slane %v2771, 1
      %v2773 = vmax.f32 %v2771, %v2772
      %v2774 = vsel %vm2696, %v2656, -inf
      %v2775 = vrot.slane %v2774, 4
      %v2776 = vmax.f32 %v2774, %v2775
      %v2777 = vrot.slane %v2776, 2
      %v2778 = vmax.f32 %v2776, %v2777
      %v2779 = vrot.slane %v2778, 1
      %v2780 = vmax.f32 %v2778, %v2779
      %v2781 = vsel %vm2696, %v2635, -inf
      %v2782 = vrot.slane %v2781, 4
      %v2783 = vmax.f32 %v2781, %v2782
      %v2784 = vrot.slane %v2783, 2
      %v2785 = vmax.f32 %v2783, %v2784
      %v2786 = vrot.slane %v2785, 1
      %v2787 = vmax.f32 %v2785, %v2786
      %v2788 = vsel %vm2696, %v2657, -inf
      %v2789 = vrot.slane %v2788, 4
      %v2790 = vmax.f32 %v2788, %v2789
      %v2791 = vrot.slane %v2790, 2
      %v2792 = vmax.f32 %v2790, %v2791
      %v2793 = vrot.slane %v2792, 1
      %v2794 = vmax.f32 %v2792, %v2793
      %v2795 = vsel %vm2696, %v2658, -inf
      %v2796 = vrot.slane %v2795, 4
      %v2797 = vmax.f32 %v2795, %v2796
      %v2798 = vrot.slane %v2797, 2
      %v2799 = vmax.f32 %v2797, %v2798
      %v2800 = vrot.slane %v2799, 1
      %v2801 = vmax.f32 %v2799, %v2800
      %v2802 = vsel %vm2696, %v2659, -inf
      %v2803 = vrot.slane %v2802, 4
      %v2804 = vmax.f32 %v2802, %v2803
      %v2805 = vrot.slane %v2804, 2
      %v2806 = vmax.f32 %v2804, %v2805
      %v2807 = vrot.slane %v2806, 1
      %v2808 = vmax.f32 %v2806, %v2807
      %v2809 = vsel %vm2696, %v2636, -inf
      %v2810 = vrot.slane %v2809, 4
      %v2811 = vmax.f32 %v2809, %v2810
      %v2812 = vrot.slane %v2811, 2
      %v2813 = vmax.f32 %v2811, %v2812
      %v2814 = vrot.slane %v2813, 1
      %v2815 = vmax.f32 %v2813, %v2814
      %v2816 = vsel %vm2696, %v2660, -inf
      %v2817 = vrot.slane %v2816, 4
      %v2818 = vmax.f32 %v2816, %v2817
      %v2819 = vrot.slane %v2818, 2
      %v2820 = vmax.f32 %v2818, %v2819
      %v2821 = vrot.slane %v2820, 1
      %v2822 = vmax.f32 %v2820, %v2821
      %v2823 = vsel %vm2696, %v2661, -inf
      %v2824 = vrot.slane %v2823, 4
      %v2825 = vmax.f32 %v2823, %v2824
      %v2826 = vrot.slane %v2825, 2
      %v2827 = vmax.f32 %v2825, %v2826
      %v2828 = vrot.slane %v2827, 1
      %v2829 = vmax.f32 %v2827, %v2828
      %v2830 = vsel %vm2696, %v2662, -inf
      %v2831 = vrot.slane %v2830, 4
      %v2832 = vmax.f32 %v2830, %v2831
      %v2833 = vrot.slane %v2832, 2
      %v2834 = vmax.f32 %v2832, %v2833
      %v2835 = vrot.slane %v2834, 1
      %v2836 = vmax.f32 %v2834, %v2835
      %v2837 = vsel %vm2696, %v2637, -inf
      %v2838 = vrot.slane %v2837, 4
      %v2839 = vmax.f32 %v2837, %v2838
      %v2840 = vrot.slane %v2839, 2
      %v2841 = vmax.f32 %v2839, %v2840
      %v2842 = vrot.slane %v2841, 1
      %v2843 = vmax.f32 %v2841, %v2842
      %v2844 = vsel %vm2696, %v2663, -inf
      %v2845 = vrot.slane %v2844, 4
      %v2846 = vmax.f32 %v2844, %v2845
      %v2847 = vrot.slane %v2846, 2
      %v2848 = vmax.f32 %v2846, %v2847
      %v2849 = vrot.slane %v2848, 1
      %v2850 = vmax.f32 %v2848, %v2849
      %v2851 = vsel %vm2696, %v2664, -inf
      %v2852 = vrot.slane %v2851, 4
      %v2853 = vmax.f32 %v2851, %v2852
      %v2854 = vrot.slane %v2853, 2
      %v2855 = vmax.f32 %v2853, %v2854
      %v2856 = vrot.slane %v2855, 1
      %v2857 = vmax.f32 %v2855, %v2856
      %v2858 = vsel %vm2696, %v2665, -inf
      %v2859 = vrot.slane %v2858, 4
      %v2860 = vmax.f32 %v2858, %v2859
      %v2861 = vrot.slane %v2860, 2
      %v2862 = vmax.f32 %v2860, %v2861
      %v2863 = vrot.slane %v2862, 1
      %v2864 = vmax.f32 %v2862, %v2863
      %v2865 = vsel %vm2696, %v2638, -inf
      %v2866 = vrot.slane %v2865, 4
      %v2867 = vmax.f32 %v2865, %v2866
      %v2868 = vrot.slane %v2867, 2
      %v2869 = vmax.f32 %v2867, %v2868
      %v2870 = vrot.slane %v2869, 1
      %v2871 = vmax.f32 %v2869, %v2870
      %v2872 = vsel %vm2696, %v2666, -inf
      %v2873 = vrot.slane %v2872, 4
      %v2874 = vmax.f32 %v2872, %v2873
      %v2875 = vrot.slane %v2874, 2
      %v2876 = vmax.f32 %v2874, %v2875
      %v2877 = vrot.slane %v2876, 1
      %v2878 = vmax.f32 %v2876, %v2877
      %v2879 = vsel %vm2696, %v2667, -inf
      %v2880 = vrot.slane %v2879, 4
      %v2881 = vmax.f32 %v2879, %v2880
      %v2882 = vrot.slane %v2881, 2
      %v2883 = vmax.f32 %v2881, %v2882
      %v2884 = vrot.slane %v2883, 1
      %v2885 = vmax.f32 %v2883, %v2884
      %v2886 = vsel %vm2696, %v2668, -inf
      %v2887 = vrot.slane %v2886, 4
      %v2888 = vmax.f32 %v2886, %v2887
      %v2889 = vrot.slane %v2888, 2
      %v2890 = vmax.f32 %v2888, %v2889
      %v2891 = vrot.slane %v2890, 1
      %v2892 = vmax.f32 %v2890, %v2891
      %v2893 = vsel %vm2696, %v2639, -inf
      %v2894 = vrot.slane %v2893, 4
      %v2895 = vmax.f32 %v2893, %v2894
      %v2896 = vrot.slane %v2895, 2
      %v2897 = vmax.f32 %v2895, %v2896
      %v2898 = vrot.slane %v2897, 1
      %v2899 = vmax.f32 %v2897, %v2898
      %v2900 = vsel %vm2696, %v2669, -inf
      %v2901 = vrot.slane %v2900, 4
      %v2902 = vmax.f32 %v2900, %v2901
      %v2903 = vrot.slane %v2902, 2
      %v2904 = vmax.f32 %v2902, %v2903
      %v2905 = vrot.slane %v2904, 1
      %v2906 = vmax.f32 %v2904, %v2905
      %v2907 = vsel %vm2696, %v2670, -inf
      %v2908 = vrot.slane %v2907, 4
      %v2909 = vmax.f32 %v2907, %v2908
      %v2910 = vrot.slane %v2909, 2
      %v2911 = vmax.f32 %v2909, %v2910
      %v2912 = vrot.slane %v2911, 1
      %v2913 = vmax.f32 %v2911, %v2912
      %v2914 = vsel %vm2696, %v2671, -inf
      %v2915 = vrot.slane %v2914, 4
      %v2916 = vmax.f32 %v2914, %v2915
      %v2917 = vrot.slane %v2916, 2
      %v2918 = vmax.f32 %v2916, %v2917
      %v2919 = vrot.slane %v2918, 1
      %v2920 = vmax.f32 %v2918, %v2919
      %v2921 = vld [vmem:[%s1 + $0x48] sm:$0xff]
      %v2922 = vld [vmem:[%s1 + $0x50] sm:$0x3]
      %v2923 = vld [vmem:[%s1 + $0x52] sm:$0xff]
      %v2924 = vld [vmem:[%s1 + $0x5a] sm:$0x3]
      %v2925 = vld [vmem:[%s1 + $0x5c] sm:$0xff]
      %v2926 = vld [vmem:[%s1 + $0x64] sm:$0x3]
      %v2927 = vld [vmem:[%s2 + $0xc] sm:$0x1]
      %v2928 = vld [vmem:[%s2 + $0xd] sm:$0x1]
      %v2929 = vld [vmem:[%s2 + $0xe] sm:$0x1]
      %v2954 = vsel %vm1880, %v2710, %v2703
      %v2955 = vsel %vm1882, %v2717, %v2954
      %v2956 = vsel %vm1880, %v2738, %v2731
      %v2957 = vsel %vm1882, %v2745, %v2956
      %v2958 = vsel %vm1880, %v2766, %v2759
      %v2959 = vsel %vm1882, %v2773, %v2958
      %v2960 = vsel %vm1880, %v2794, %v2787
      %v2961 = vsel %vm1882, %v2801, %v2960
      %v2962 = vsel %vm1880, %v2822, %v2815
      %v2963 = vsel %vm1882, %v2829, %v2962
      %v2964 = vsel %vm1880, %v2850, %v2843
      %v2965 = vsel %vm1882, %v2857, %v2964
      %v2966 = vsel %vm1880, %v2878, %v2871
      %v2967 = vsel %vm1882, %v2885, %v2966
      %v2968 = vsel %vm1880, %v2906, %v2899
      %v2969 = vsel %vm1882, %v2913, %v2968
      %v2978 = vsel %vm239, 0.0, %v2955
      %v2979 = vsel %vm239, 0.0, %v2957
      %v2980 = vsel %vm239, 0.0, %v2959
      %v2981 = vsel %vm239, 0.0, %v2961
      %v2982 = vsel %vm239, 0.0, %v2963
      %v2983 = vsel %vm239, 0.0, %v2965
      %v2984 = vsel %vm239, 0.0, %v2967
      %v2985 = vsel %vm239, 0.0, %v2969
      %v2994 = vsel %vm1958, %v2717, %v2710
      %v2995 = vsel %vm1880, %v2724, %v2994
      %v2996 = vsel %vm1958, %v2745, %v2738
      %v2997 = vsel %vm1880, %v2752, %v2996
      %v2998 = vsel %vm1958, %v2773, %v2766
      %v2999 = vsel %vm1880, %v2780, %v2998
      %v3000 = vsel %vm1958, %v2801, %v2794
      %v3001 = vsel %vm1880, %v2808, %v3000
      %v3002 = vsel %vm1958, %v2829, %v2822
      %v3003 = vsel %vm1880, %v2836, %v3002
      %v3004 = vsel %vm1958, %v2857, %v2850
      %v3005 = vsel %vm1880, %v2864, %v3004
      %v3006 = vsel %vm1958, %v2885, %v2878
      %v3007 = vsel %vm1880, %v2892, %v3006
      %v3008 = vsel %vm1958, %v2913, %v2906
      %v3009 = vsel %vm1880, %v2920, %v3008
      %vm3018 = vcmask 1042432
      %v3019 = vsel %vm3018, %v2995, 0.0
      %v3020 = vsel %vm3018, %v2997, 0.0
      %v3021 = vsel %vm3018, %v2999, 0.0
      %v3022 = vsel %vm3018, %v3001, 0.0
      %v3023 = vsel %vm3018, %v3003, 0.0
      %v3024 = vsel %vm3018, %v3005, 0.0
      %v3025 = vsel %vm3018, %v3007, 0.0
      %v3026 = vsel %vm3018, %v3009, 0.0
      %v3027 = vsel %vm1958, %v2710, %v2703
      %v3028 = vsel %vm1880, %v2717, %v3027
      %v3029 = vsel %vm1882, %v2724, %v3028
      %v3030 = vsel %vm1884, %v2731, %v3029
      %v3031 = vsel %vm1886, %v2738, %v3030
      %v3032 = vsel %vm1888, %v2745, %v3031
      %v3033 = vsel %vm1890, %v2752, %v3032
      %v3034 = vsel %vm1958, %v2766, %v2759
      %v3035 = vsel %vm1880, %v2773, %v3034
      %v3036 = vsel %vm1882, %v2780, %v3035
      %v3037 = vsel %vm1884, %v2787, %v3036
      %v3038 = vsel %vm1886, %v2794, %v3037
      %v3039 = vsel %vm1888, %v2801, %v3038
      %v3040 = vsel %vm1890, %v2808, %v3039
      %v3041 = vsel %vm1958, %v2822, %v2815
      %v3042 = vsel %vm1880, %v2829, %v3041
      %v3043 = vsel %vm1882, %v2836, %v3042
      %v3044 = vsel %vm1884, %v2843, %v3043
      %v3045 = vsel %vm1886, %v2850, %v3044
      %v3046 = vsel %vm1888, %v2857, %v3045
      %v3047 = vsel %vm1890, %v2864, %v3046
      %v3048 = vsel %vm1958, %v2878, %v2871
      %v3049 = vsel %vm1880, %v2885, %v3048
      %v3050 = vsel %vm1882, %v2892, %v3049
      %v3051 = vsel %vm1884, %v2899, %v3050
      %v3052 = vsel %vm1886, %v2906, %v3051
      %v3053 = vsel %vm1888, %v2913, %v3052
      %v3054 = vsel %vm1890, %v2920, %v3053
      %v3055 = vsel %vm2391, %v3033, 0
      %v3057 = vsel %vm2391, %v3040, 0
      %v3059 = vsel %vm2391, %v3047, 0
      %v3061 = vsel %vm2391, %v3054, 0
      %v3064 = vsel %vm2408, %v2924, 0
      %3066 = vmatpush.msra.mxu0 0.0
      %3067 = vmatpush.msra.mxu0 0.0
      %3068 = vmatpush.msra.mxu0 0.0
      %3069 = vmatpush.msra.mxu0 0.0
      %3070 = vmatpush.msra.mxu0 0.0
      %3071 = vmatpush.msra.mxu0 0.0
      %3072 = vmatpush.msra.mxu0 0.0
      %3073 = vmatpush.msra.mxu0 0.0
      %3074 = vmatpush.msra.mxu0 0.0
      %3075 = vmatpush.msra.mxu0 0.0
      %3076 = vmatpush.msra.mxu0 0.0
      %3077 = vmatpush.msra.mxu0 0.0
      %3078 = vmatpush.msra.mxu0 0.0
      %3079 = vmatpush.msra.mxu0 0.0
      %3080 = vmatpush.msra.mxu0 %v3064
      %3081 = vmatpush.msra.mxu0 %v2923
      %3082 = vmatmul.f32.gmra.mxu0 %v3055
      %v3083 = vpop.f32.mrf.mxu0
      %v3084 = vadd.f32 0.0, %v3083
      %3085 = vmatmul.f32.gmra.mxu0 %v3057
      %v3086 = vpop.f32.mrf.mxu0
      %v3087 = vadd.f32 0.0, %v3086
      %3088 = vmatmul.f32.gmra.mxu0 %v3059
      %v3089 = vpop.f32.mrf.mxu0
      %v3090 = vadd.f32 0.0, %v3089
      %3091 = vmatmul.f32.gmra.mxu0 %v3061
      %v3092 = vpop.f32.mrf.mxu0
      %v3093 = vadd.f32 0.0, %v3092
      %3094 = vdwg.mxu0
      %3103 = vst [vmem:[#allocation1] ss:$2 sm:$0xff] %v2978
      %s3104 = scalar_lea.vmem [#allocation1], 1
      %3105 = vst [vmem:[%s3104] ss:$2 sm:$0xff] %v2979
      %s3106 = scalar_lea.vmem [#allocation1], 16
      %3107 = vst [vmem:[%s3106] ss:$2 sm:$0xff] %v2980
      %s3108 = scalar_lea.vmem [#allocation1], 17
      %3109 = vst [vmem:[%s3108] ss:$2 sm:$0xff] %v2981
      %s3110 = scalar_lea.vmem [#allocation1], 32
      %3111 = vst [vmem:[%s3110] ss:$2 sm:$0xff] %v2982
      %s3112 = scalar_lea.vmem [#allocation1], 33
      %3113 = vst [vmem:[%s3112] ss:$2 sm:$0xff] %v2983
      %s3114 = scalar_lea.vmem [#allocation1], 48
      %3115 = vst [vmem:[%s3114] ss:$2 sm:$0xff] %v2984
      %s3116 = scalar_lea.vmem [#allocation1], 49
      %3117 = vst [vmem:[%s3116] ss:$2 sm:$0xff] %v2985
      %v3118 = vld.sshfl [vmem:[#allocation1] sm:$0xff pattern:$0x75316420]
      %v3119 = vld.sshfl [vmem:[#allocation1 + $0x10] sm:$0xff pattern:$0x75316420]
      %v3120 = vld.sshfl [vmem:[#allocation1 + $0x20] sm:$0xff pattern:$0x75316420]
      %v3121 = vld.sshfl [vmem:[#allocation1 + $0x30] sm:$0xff pattern:$0x75316420]
      %v3122 = vsel %vm2391, %v3118, 0
      %v3124 = vsel %vm2391, %v3119, 0
      %v3126 = vsel %vm2391, %v3120, 0
      %v3128 = vsel %vm2391, %v3121, 0
      %v3131 = vsel %vm2408, %v2922, 0
      %3133 = vmatpush.msra.mxu0 0.0
      %3134 = vmatpush.msra.mxu0 0.0
      %3135 = vmatpush.msra.mxu0 0.0
      %3136 = vmatpush.msra.mxu0 0.0
      %3137 = vmatpush.msra.mxu0 0.0
      %3138 = vmatpush.msra.mxu0 0.0
      %3139 = vmatpush.msra.mxu0 0.0
      %3140 = vmatpush.msra.mxu0 0.0
      %3141 = vmatpush.msra.mxu0 0.0
      %3142 = vmatpush.msra.mxu0 0.0
      %3143 = vmatpush.msra.mxu0 0.0
      %3144 = vmatpush.msra.mxu0 0.0
      %3145 = vmatpush.msra.mxu0 0.0
      %3146 = vmatpush.msra.mxu0 0.0
      %3147 = vmatpush.msra.mxu0 %v3131
      %3148 = vmatpush.msra.mxu0 %v2921
      %3149 = vmatmul.f32.gmra.mxu0 %v3122
      %v3150 = vpop.f32.mrf.mxu0
      %v3151 = vadd.f32 %v3084, %v3150
      %3152 = vmatmul.f32.gmra.mxu0 %v3124
      %v3153 = vpop.f32.mrf.mxu0
      %v3154 = vadd.f32 %v3087, %v3153
      %3155 = vmatmul.f32.gmra.mxu0 %v3126
      %v3156 = vpop.f32.mrf.mxu0
      %v3157 = vadd.f32 %v3090, %v3156
      %3158 = vmatmul.f32.gmra.mxu0 %v3128
      %v3159 = vpop.f32.mrf.mxu0
      %v3160 = vadd.f32 %v3093, %v3159
      %3161 = vdwg.mxu0
      %3170 = vst [vmem:[#allocation1] ss:$2 sm:$0xff] %v3019
      %s3171 = scalar_lea.vmem [#allocation1], 1
      %3172 = vst [vmem:[%s3171] ss:$2 sm:$0xff] %v3020
      %s3173 = scalar_lea.vmem [#allocation1], 16
      %3174 = vst [vmem:[%s3173] ss:$2 sm:$0xff] %v3021
      %s3175 = scalar_lea.vmem [#allocation1], 17
      %3176 = vst [vmem:[%s3175] ss:$2 sm:$0xff] %v3022
      %s3177 = scalar_lea.vmem [#allocation1], 32
      %3178 = vst [vmem:[%s3177] ss:$2 sm:$0xff] %v3023
      %s3179 = scalar_lea.vmem [#allocation1], 33
      %3180 = vst [vmem:[%s3179] ss:$2 sm:$0xff] %v3024
      %s3181 = scalar_lea.vmem [#allocation1], 48
      %3182 = vst [vmem:[%s3181] ss:$2 sm:$0xff] %v3025
      %s3183 = scalar_lea.vmem [#allocation1], 49
      %3184 = vst [vmem:[%s3183] ss:$2 sm:$0xff] %v3026
      %v3185 = vld.sshfl [vmem:[#allocation1] sm:$0xff pattern:$0x75316420]
      %v3186 = vld.sshfl [vmem:[#allocation1 + $0x10] sm:$0xff pattern:$0x75316420]
      %v3187 = vld.sshfl [vmem:[#allocation1 + $0x20] sm:$0xff pattern:$0x75316420]
      %v3188 = vld.sshfl [vmem:[#allocation1 + $0x30] sm:$0xff pattern:$0x75316420]
      %v3189 = vsel %vm2391, %v3185, 0
      %v3191 = vsel %vm2391, %v3186, 0
      %v3193 = vsel %vm2391, %v3187, 0
      %v3195 = vsel %vm2391, %v3188, 0
      %v3198 = vsel %vm2408, %v2926, 0
      %3200 = vmatpush.msra.mxu0 0.0
      %3201 = vmatpush.msra.mxu0 0.0
      %3202 = vmatpush.msra.mxu0 0.0
      %3203 = vmatpush.msra.mxu0 0.0
      %3204 = vmatpush.msra.mxu0 0.0
      %3205 = vmatpush.msra.mxu0 0.0
      %3206 = vmatpush.msra.mxu0 0.0
      %3207 = vmatpush.msra.mxu0 0.0
      %3208 = vmatpush.msra.mxu0 0.0
      %3209 = vmatpush.msra.mxu0 0.0
      %3210 = vmatpush.msra.mxu0 0.0
      %3211 = vmatpush.msra.mxu0 0.0
      %3212 = vmatpush.msra.mxu0 0.0
      %3213 = vmatpush.msra.mxu0 0.0
      %3214 = vmatpush.msra.mxu0 %v3198
      %3215 = vmatpush.msra.mxu0 %v2925
      %3216 = vmatmul.f32.gmra.mxu0 %v3189
      %v3217 = vpop.f32.mrf.mxu0
      %v3218 = vadd.f32 0.0, %v3217
      %3219 = vmatmul.f32.gmra.mxu0 %v3191
      %v3220 = vpop.f32.mrf.mxu0
      %v3221 = vadd.f32 0.0, %v3220
      %3222 = vmatmul.f32.gmra.mxu0 %v3193
      %v3223 = vpop.f32.mrf.mxu0
      %v3224 = vadd.f32 0.0, %v3223
      %3225 = vmatmul.f32.gmra.mxu0 %v3195
      %v3226 = vpop.f32.mrf.mxu0
      %v3227 = vadd.f32 0.0, %v3226
      %3228 = vdwg.mxu0
      %v3229 = vadd.f32 %v3151, %v3218
      %v3230 = vadd.f32 %v3154, %v3221
      %v3231 = vadd.f32 %v3157, %v3224
      %v3232 = vadd.f32 %v3160, %v3227
      %v3233 = vperm.slane %v2927, 0
      %v3234 = vadd.f32 %v3229, %v3233
      %v3235 = vadd.f32 %v3230, %v3233
      %v3236 = vadd.f32 %v3231, %v3233
      %v3237 = vadd.f32 %v3232, %v3233
      %v3238 = vmul.f32 %v3234, 0.01
      %v3239 = vmul.f32 %v3235, 0.01
      %v3240 = vmul.f32 %v3236, 0.01
      %v3241 = vmul.f32 %v3237, 0.01
      %v3242 = vmax.f32 %v3234, %v3238
      %v3243 = vmax.f32 %v3235, %v3239
      %v3244 = vmax.f32 %v3236, %v3240
      %v3245 = vmax.f32 %v3237, %v3241
      %v3246 = vperm.slane %v2928, 0
      %v3247 = vmul.f32 %v3242, %v3246
      %v3248 = vmul.f32 %v3243, %v3246
      %v3249 = vmul.f32 %v3244, %v3246
      %v3250 = vmul.f32 %v3245, %v3246
      %v3251 = vperm.slane %v2929, 0
      %v3252 = vadd.f32 %v3247, %v3251
      %v3253 = vadd.f32 %v3248, %v3251
      %v3254 = vadd.f32 %v3249, %v3251
      %v3255 = vadd.f32 %v3250, %v3251
      %v3260 = vrot.slane %v3252, 4
      %v3261 = vrot.slane %v3253, 4
      %v3262 = vrot.slane %v3254, 4
      %v3263 = vrot.slane %v3255, 4
      %v3264 = vld [vmem:[%s1 + $0x66] sm:$0xff]
      %v3265 = vld [vmem:[%s1 + $0x6e] sm:$0xff]
      %v3266 = vld [vmem:[%s1 + $0x76] sm:$0xf]
      %v3267 = vld [vmem:[%s1 + $0x7a] sm:$0xff]
      %v3268 = vld [vmem:[%s1 + $0x82] sm:$0xff]
      %v3269 = vld [vmem:[%s1 + $0x8a] sm:$0xf]
      %v3270 = vld [vmem:[%s1 + $0x8e] sm:$0xff]
      %v3271 = vld [vmem:[%s1 + $0x96] sm:$0xff]
      %v3272 = vld [vmem:[%s1 + $0x9e] sm:$0xf]
      %v3273 = vld [vmem:[%s2 + $0xf] sm:$0x1]
      %v3274 = vld [vmem:[%s2 + $0x10] sm:$0x1]
      %v3275 = vld [vmem:[%s2 + $0x11] sm:$0x1]
      %3276 = vst [vmem:[#allocation1] ss:$2 sm:$0xff] %v3252
      %v3277 = vld.sshfl [vmem:[#allocation1] sm:$0xff pattern:$0x75316420]
      %s3278 = scalar_lea.vmem [#allocation1], 16
      %3279 = vst [vmem:[%s3278] ss:$2 sm:$0xff] %v3260
      %v3280 = vld.sshfl [vmem:[#allocation1 + $0x10] sm:$0xff pattern:$0x75316420]
      %s3281 = scalar_lea.vmem [#allocation1], 32
      %3282 = vst [vmem:[%s3281] ss:$2 sm:$0xff] %v3253
      %v3283 = vld.sshfl [vmem:[#allocation1 + $0x20] sm:$0xff pattern:$0x75316420]
      %s3284 = scalar_lea.vmem [#allocation1], 48
      %3285 = vst [vmem:[%s3284] ss:$2 sm:$0xff] %v3261
      %v3286 = vld.sshfl [vmem:[#allocation1 + $0x30] sm:$0xff pattern:$0x75316420]
      %3287 = vst [vmem:[#allocation1] ss:$2 sm:$0xff] %v3254
      %v3288 = vld.sshfl [vmem:[#allocation1] sm:$0xff pattern:$0x75316420]
      %3289 = vst [vmem:[%s3278] ss:$2 sm:$0xff] %v3262
      %v3290 = vld.sshfl [vmem:[#allocation1 + $0x10] sm:$0xff pattern:$0x75316420]
      %3291 = vst [vmem:[%s3281] ss:$2 sm:$0xff] %v3255
      %v3292 = vld.sshfl [vmem:[#allocation1 + $0x20] sm:$0xff pattern:$0x75316420]
      %3293 = vst [vmem:[%s3284] ss:$2 sm:$0xff] %v3263
      %v3294 = vld.sshfl [vmem:[#allocation1 + $0x30] sm:$0xff pattern:$0x75316420]
      %v3295 = vrot.slane %v3277, 7
      %v3296 = vrot.slane %v3280, 7
      %v3297 = vrot.slane %v3283, 7
      %v3298 = vrot.slane %v3286, 7
      %v3299 = vrot.slane %v3288, 7
      %v3300 = vrot.slane %v3290, 7
      %v3301 = vrot.slane %v3292, 7
      %v3302 = vrot.slane %v3294, 7
      %v3311 = vsel %vm239, 0.0, %v3295
      %v3312 = vsel %vm239, 0.0, %v3296
      %v3313 = vsel %vm239, 0.0, %v3297
      %v3314 = vsel %vm239, 0.0, %v3298
      %v3315 = vsel %vm239, 0.0, %v3299
      %v3316 = vsel %vm239, 0.0, %v3300
      %v3317 = vsel %vm239, 0.0, %v3301
      %v3318 = vsel %vm239, 0.0, %v3302
      %3319 = vst [vmem:[#allocation1] ss:$2 sm:$0xff] %v3252
      %v3320 = vld.sshfl [vmem:[#allocation1] sm:$0xff pattern:$0x75316420]
      %s3321 = scalar_lea.vmem [#allocation1], 16
      %3322 = vst [vmem:[%s3321] ss:$2 sm:$0xff] %v3260
      %v3323 = vld.sshfl [vmem:[#allocation1 + $0x10] sm:$0xff pattern:$0x75316420]
      %s3324 = scalar_lea.vmem [#allocation1], 32
      %3325 = vst [vmem:[%s3324] ss:$2 sm:$0xff] %v3253
      %v3326 = vld.sshfl [vmem:[#allocation1 + $0x20] sm:$0xff pattern:$0x75316420]
      %s3327 = scalar_lea.vmem [#allocation1], 48
      %3328 = vst [vmem:[%s3327] ss:$2 sm:$0xff] %v3261
      %v3329 = vld.sshfl [vmem:[#allocation1 + $0x30] sm:$0xff pattern:$0x75316420]
      %3330 = vst [vmem:[#allocation1] ss:$2 sm:$0xff] %v3254
      %v3331 = vld.sshfl [vmem:[#allocation1] sm:$0xff pattern:$0x75316420]
      %3332 = vst [vmem:[%s3321] ss:$2 sm:$0xff] %v3262
      %v3333 = vld.sshfl [vmem:[#allocation1 + $0x10] sm:$0xff pattern:$0x75316420]
      %3334 = vst [vmem:[%s3324] ss:$2 sm:$0xff] %v3255
      %v3335 = vld.sshfl [vmem:[#allocation1 + $0x20] sm:$0xff pattern:$0x75316420]
      %3336 = vst [vmem:[%s3327] ss:$2 sm:$0xff] %v3263
      %v3337 = vld.sshfl [vmem:[#allocation1 + $0x30] sm:$0xff pattern:$0x75316420]
      %v3338 = vrot.slane %v3320, 1
      %v3339 = vrot.slane %v3323, 1
      %v3340 = vrot.slane %v3326, 1
      %v3341 = vrot.slane %v3329, 1
      %v3342 = vrot.slane %v3331, 1
      %v3343 = vrot.slane %v3333, 1
      %v3344 = vrot.slane %v3335, 1
      %v3345 = vrot.slane %v3337, 1
      %v3354 = vsel %vm3018, %v3338, 0.0
      %v3355 = vsel %vm3018, %v3339, 0.0
      %v3356 = vsel %vm3018, %v3340, 0.0
      %v3357 = vsel %vm3018, %v3341, 0.0
      %v3358 = vsel %vm3018, %v3342, 0.0
      %v3359 = vsel %vm3018, %v3343, 0.0
      %v3360 = vsel %vm3018, %v3344, 0.0
      %v3361 = vsel %vm3018, %v3345, 0.0
      %vm3362 = vcmask 162816
      %v3363 = vsel %vm3362, %v3252, 0
      %v3365 = vsel %vm3362, %v3253, 0
      %v3367 = vsel %vm3362, %v3254, 0
      %v3369 = vsel %vm3362, %v3255, 0
      %v3372 = vsel %vm354, %v3269, 0
      %3374 = vmatpush.msra.mxu0 0.0
      %3375 = vmatpush.msra.mxu0 0.0
      %3376 = vmatpush.msra.mxu0 0.0
      %3377 = vmatpush.msra.mxu0 0.0
      %3378 = vmatpush.msra.mxu0 0.0
      %3379 = vmatpush.msra.mxu0 0.0
      %3380 = vmatpush.msra.mxu0 0.0
      %3381 = vmatpush.msra.mxu0 0.0
      %3382 = vmatpush.msra.mxu0 0.0
      %3383 = vmatpush.msra.mxu0 0.0
      %3384 = vmatpush.msra.mxu0 0.0
      %3385 = vmatpush.msra.mxu0 0.0
      %3386 = vmatpush.msra.mxu0 0.0
      %3387 = vmatpush.msra.mxu0 %v3372
      %3388 = vmatpush.msra.mxu0 %v3268
      %3389 = vmatpush.msra.mxu0 %v3267
      %3390 = vmatmul.f32.gmra.mxu0 %v3363
      %v3391 = vpop.f32.mrf.mxu0
      %v3392 = vadd.f32 0.0, %v3391
      %3393 = vmatmul.f32.gmra.mxu0 %v3365
      %v3394 = vpop.f32.mrf.mxu0
      %v3395 = vadd.f32 0.0, %v3394
      %3396 = vmatmul.f32.gmra.mxu0 %v3367
      %v3397 = vpop.f32.mrf.mxu0
      %v3398 = vadd.f32 0.0, %v3397
      %3399 = vmatmul.f32.gmra.mxu0 %v3369
      %v3400 = vpop.f32.mrf.mxu0
      %v3401 = vadd.f32 0.0, %v3400
      %3402 = vdwg.mxu0
      %3411 = vst [vmem:[#allocation1] ss:$2 sm:$0xff] %v3311
      %s3412 = scalar_lea.vmem [#allocation1], 1
      %3413 = vst [vmem:[%s3412] ss:$2 sm:$0xff] %v3312
      %s3414 = scalar_lea.vmem [#allocation1], 16
      %3415 = vst [vmem:[%s3414] ss:$2 sm:$0xff] %v3313
      %s3416 = scalar_lea.vmem [#allocation1], 17
      %3417 = vst [vmem:[%s3416] ss:$2 sm:$0xff] %v3314
      %s3418 = scalar_lea.vmem [#allocation1], 32
      %3419 = vst [vmem:[%s3418] ss:$2 sm:$0xff] %v3315
      %s3420 = scalar_lea.vmem [#allocation1], 33
      %3421 = vst [vmem:[%s3420] ss:$2 sm:$0xff] %v3316
      %s3422 = scalar_lea.vmem [#allocation1], 48
      %3423 = vst [vmem:[%s3422] ss:$2 sm:$0xff] %v3317
      %s3424 = scalar_lea.vmem [#allocation1], 49
      %3425 = vst [vmem:[%s3424] ss:$2 sm:$0xff] %v3318
      %v3426 = vld.sshfl [vmem:[#allocation1] sm:$0xff pattern:$0x75316420]
      %v3427 = vld.sshfl [vmem:[#allocation1 + $0x10] sm:$0xff pattern:$0x75316420]
      %v3428 = vld.sshfl [vmem:[#allocation1 + $0x20] sm:$0xff pattern:$0x75316420]
      %v3429 = vld.sshfl [vmem:[#allocation1 + $0x30] sm:$0xff pattern:$0x75316420]
      %v3430 = vsel %vm3362, %v3426, 0
      %v3432 = vsel %vm3362, %v3427, 0
      %v3434 = vsel %vm3362, %v3428, 0
      %v3436 = vsel %vm3362, %v3429, 0
      %v3439 = vsel %vm354, %v3266, 0
      %3441 = vmatpush.msra.mxu0 0.0
      %3442 = vmatpush.msra.mxu0 0.0
      %3443 = vmatpush.msra.mxu0 0.0
      %3444 = vmatpush.msra.mxu0 0.0
      %3445 = vmatpush.msra.mxu0 0.0
      %3446 = vmatpush.msra.mxu0 0.0
      %3447 = vmatpush.msra.mxu0 0.0
      %3448 = vmatpush.msra.mxu0 0.0
      %3449 = vmatpush.msra.mxu0 0.0
      %3450 = vmatpush.msra.mxu0 0.0
      %3451 = vmatpush.msra.mxu0 0.0
      %3452 = vmatpush.msra.mxu0 0.0
      %3453 = vmatpush.msra.mxu0 0.0
      %3454 = vmatpush.msra.mxu0 %v3439
      %3455 = vmatpush.msra.mxu0 %v3265
      %3456 = vmatpush.msra.mxu0 %v3264
      %3457 = vmatmul.f32.gmra.mxu0 %v3430
      %v3458 = vpop.f32.mrf.mxu0
      %v3459 = vadd.f32 %v3392, %v3458
      %3460 = vmatmul.f32.gmra.mxu0 %v3432
      %v3461 = vpop.f32.mrf.mxu0
      %v3462 = vadd.f32 %v3395, %v3461
      %3463 = vmatmul.f32.gmra.mxu0 %v3434
      %v3464 = vpop.f32.mrf.mxu0
      %v3465 = vadd.f32 %v3398, %v3464
      %3466 = vmatmul.f32.gmra.mxu0 %v3436
      %v3467 = vpop.f32.mrf.mxu0
      %v3468 = vadd.f32 %v3401, %v3467
      %3469 = vdwg.mxu0
      %3478 = vst [vmem:[#allocation1] ss:$2 sm:$0xff] %v3354
      %s3479 = scalar_lea.vmem [#allocation1], 1
      %3480 = vst [vmem:[%s3479] ss:$2 sm:$0xff] %v3355
      %s3481 = scalar_lea.vmem [#allocation1], 16
      %3482 = vst [vmem:[%s3481] ss:$2 sm:$0xff] %v3356
      %s3483 = scalar_lea.vmem [#allocation1], 17
      %3484 = vst [vmem:[%s3483] ss:$2 sm:$0xff] %v3357
      %s3485 = scalar_lea.vmem [#allocation1], 32
      %3486 = vst [vmem:[%s3485] ss:$2 sm:$0xff] %v3358
      %s3487 = scalar_lea.vmem [#allocation1], 33
      %3488 = vst [vmem:[%s3487] ss:$2 sm:$0xff] %v3359
      %s3489 = scalar_lea.vmem [#allocation1], 48
      %3490 = vst [vmem:[%s3489] ss:$2 sm:$0xff] %v3360
      %s3491 = scalar_lea.vmem [#allocation1], 49
      %3492 = vst [vmem:[%s3491] ss:$2 sm:$0xff] %v3361
      %v3493 = vld.sshfl [vmem:[#allocation1] sm:$0xff pattern:$0x75316420]
      %v3494 = vld.sshfl [vmem:[#allocation1 + $0x10] sm:$0xff pattern:$0x75316420]
      %v3495 = vld.sshfl [vmem:[#allocation1 + $0x20] sm:$0xff pattern:$0x75316420]
      %v3496 = vld.sshfl [vmem:[#allocation1 + $0x30] sm:$0xff pattern:$0x75316420]
      %v3497 = vsel %vm3362, %v3493, 0
      %v3499 = vsel %vm3362, %v3494, 0
      %v3501 = vsel %vm3362, %v3495, 0
      %v3503 = vsel %vm3362, %v3496, 0
      %v3506 = vsel %vm354, %v3272, 0
      %3508 = vmatpush.msra.mxu0 0.0
      %3509 = vmatpush.msra.mxu0 0.0
      %3510 = vmatpush.msra.mxu0 0.0
      %3511 = vmatpush.msra.mxu0 0.0
      %3512 = vmatpush.msra.mxu0 0.0
      %3513 = vmatpush.msra.mxu0 0.0
      %3514 = vmatpush.msra.mxu0 0.0
      %3515 = vmatpush.msra.mxu0 0.0
      %3516 = vmatpush.msra.mxu0 0.0
      %3517 = vmatpush.msra.mxu0 0.0
      %3518 = vmatpush.msra.mxu0 0.0
      %3519 = vmatpush.msra.mxu0 0.0
      %3520 = vmatpush.msra.mxu0 0.0
      %3521 = vmatpush.msra.mxu0 %v3506
      %3522 = vmatpush.msra.mxu0 %v3271
      %3523 = vmatpush.msra.mxu0 %v3270
      %3524 = vmatmul.f32.gmra.mxu0 %v3497
      %v3525 = vpop.f32.mrf.mxu0
      %v3526 = vadd.f32 0.0, %v3525
      %3527 = vmatmul.f32.gmra.mxu0 %v3499
      %v3528 = vpop.f32.mrf.mxu0
      %v3529 = vadd.f32 0.0, %v3528
      %3530 = vmatmul.f32.gmra.mxu0 %v3501
      %v3531 = vpop.f32.mrf.mxu0
      %v3532 = vadd.f32 0.0, %v3531
      %3533 = vmatmul.f32.gmra.mxu0 %v3503
      %v3534 = vpop.f32.mrf.mxu0
      %v3535 = vadd.f32 0.0, %v3534
      %3536 = vdwg.mxu0
      %v3537 = vadd.f32 %v3459, %v3526
      %v3538 = vadd.f32 %v3462, %v3529
      %v3539 = vadd.f32 %v3465, %v3532
      %v3540 = vadd.f32 %v3468, %v3535
      %v3541 = vperm.slane %v3273, 0
      %v3542 = vadd.f32 %v3537, %v3541
      %v3543 = vadd.f32 %v3538, %v3541
      %v3544 = vadd.f32 %v3539, %v3541
      %v3545 = vadd.f32 %v3540, %v3541
      %v3546 = vmul.f32 %v3542, 0.01
      %v3547 = vmul.f32 %v3543, 0.01
      %v3548 = vmul.f32 %v3544, 0.01
      %v3549 = vmul.f32 %v3545, 0.01
      %v3550 = vmax.f32 %v3542, %v3546
      %v3551 = vmax.f32 %v3543, %v3547
      %v3552 = vmax.f32 %v3544, %v3548
      %v3553 = vmax.f32 %v3545, %v3549
      %v3554 = vperm.slane %v3274, 0
      %v3555 = vmul.f32 %v3550, %v3554
      %v3556 = vmul.f32 %v3551, %v3554
      %v3557 = vmul.f32 %v3552, %v3554
      %v3558 = vmul.f32 %v3553, %v3554
      %v3559 = vperm.slane %v3275, 0
      %v3560 = vadd.f32 %v3555, %v3559
      %v3561 = vadd.f32 %v3556, %v3559
      %v3562 = vadd.f32 %v3557, %v3559
      %v3563 = vadd.f32 %v3558, %v3559
      %v3568 = vrot.slane %v3560, 2
      %v3569 = vrot.slane %v3560, 4
      %v3570 = vrot.slane %v3560, 6
      %v3571 = vrot.slane %v3561, 2
      %v3572 = vrot.slane %v3561, 4
      %v3573 = vrot.slane %v3561, 6
      %v3574 = vrot.slane %v3562, 2
      %v3575 = vrot.slane %v3562, 4
      %v3576 = vrot.slane %v3562, 6
      %v3577 = vrot.slane %v3563, 2
      %v3578 = vrot.slane %v3563, 4
      %v3579 = vrot.slane %v3563, 6
      %vm3592 = vcmask 156672
      %v3593 = vsel %vm3592, %v3560, -inf
      %v3594 = vrot.slane %v3593, 4
      %v3595 = vmax.f32 %v3593, %v3594
      %v3596 = vrot.slane %v3595, 2
      %v3597 = vmax.f32 %v3595, %v3596
      %v3598 = vrot.slane %v3597, 1
      %v3599 = vmax.f32 %v3597, %v3598
      %v3600 = vsel %vm3592, %v3568, -inf
      %v3601 = vrot.slane %v3600, 4
      %v3602 = vmax.f32 %v3600, %v3601
      %v3603 = vrot.slane %v3602, 2
      %v3604 = vmax.f32 %v3602, %v3603
      %v3605 = vrot.slane %v3604, 1
      %v3606 = vmax.f32 %v3604, %v3605
      %v3607 = vsel %vm3592, %v3569, -inf
      %v3608 = vrot.slane %v3607, 4
      %v3609 = vmax.f32 %v3607, %v3608
      %v3610 = vrot.slane %v3609, 2
      %v3611 = vmax.f32 %v3609, %v3610
      %v3612 = vrot.slane %v3611, 1
      %v3613 = vmax.f32 %v3611, %v3612
      %v3614 = vsel %vm3592, %v3570, -inf
      %v3615 = vrot.slane %v3614, 4
      %v3616 = vmax.f32 %v3614, %v3615
      %v3617 = vrot.slane %v3616, 2
      %v3618 = vmax.f32 %v3616, %v3617
      %v3619 = vrot.slane %v3618, 1
      %v3620 = vmax.f32 %v3618, %v3619
      %v3621 = vsel %vm3592, %v3561, -inf
      %v3622 = vrot.slane %v3621, 4
      %v3623 = vmax.f32 %v3621, %v3622
      %v3624 = vrot.slane %v3623, 2
      %v3625 = vmax.f32 %v3623, %v3624
      %v3626 = vrot.slane %v3625, 1
      %v3627 = vmax.f32 %v3625, %v3626
      %v3628 = vsel %vm3592, %v3571, -inf
      %v3629 = vrot.slane %v3628, 4
      %v3630 = vmax.f32 %v3628, %v3629
      %v3631 = vrot.slane %v3630, 2
      %v3632 = vmax.f32 %v3630, %v3631
      %v3633 = vrot.slane %v3632, 1
      %v3634 = vmax.f32 %v3632, %v3633
      %v3635 = vsel %vm3592, %v3572, -inf
      %v3636 = vrot.slane %v3635, 4
      %v3637 = vmax.f32 %v3635, %v3636
      %v3638 = vrot.slane %v3637, 2
      %v3639 = vmax.f32 %v3637, %v3638
      %v3640 = vrot.slane %v3639, 1
      %v3641 = vmax.f32 %v3639, %v3640
      %v3642 = vsel %vm3592, %v3573, -inf
      %v3643 = vrot.slane %v3642, 4
      %v3644 = vmax.f32 %v3642, %v3643
      %v3645 = vrot.slane %v3644, 2
      %v3646 = vmax.f32 %v3644, %v3645
      %v3647 = vrot.slane %v3646, 1
      %v3648 = vmax.f32 %v3646, %v3647
      %v3649 = vsel %vm3592, %v3562, -inf
      %v3650 = vrot.slane %v3649, 4
      %v3651 = vmax.f32 %v3649, %v3650
      %v3652 = vrot.slane %v3651, 2
      %v3653 = vmax.f32 %v3651, %v3652
      %v3654 = vrot.slane %v3653, 1
      %v3655 = vmax.f32 %v3653, %v3654
      %v3656 = vsel %vm3592, %v3574, -inf
      %v3657 = vrot.slane %v3656, 4
      %v3658 = vmax.f32 %v3656, %v3657
      %v3659 = vrot.slane %v3658, 2
      %v3660 = vmax.f32 %v3658, %v3659
      %v3661 = vrot.slane %v3660, 1
      %v3662 = vmax.f32 %v3660, %v3661
      %v3663 = vsel %vm3592, %v3575, -inf
      %v3664 = vrot.slane %v3663, 4
      %v3665 = vmax.f32 %v3663, %v3664
      %v3666 = vrot.slane %v3665, 2
      %v3667 = vmax.f32 %v3665, %v3666
      %v3668 = vrot.slane %v3667, 1
      %v3669 = vmax.f32 %v3667, %v3668
      %v3670 = vsel %vm3592, %v3576, -inf
      %v3671 = vrot.slane %v3670, 4
      %v3672 = vmax.f32 %v3670, %v3671
      %v3673 = vrot.slane %v3672, 2
      %v3674 = vmax.f32 %v3672, %v3673
      %v3675 = vrot.slane %v3674, 1
      %v3676 = vmax.f32 %v3674, %v3675
      %v3677 = vsel %vm3592, %v3563, -inf
      %v3678 = vrot.slane %v3677, 4
      %v3679 = vmax.f32 %v3677, %v3678
      %v3680 = vrot.slane %v3679, 2
      %v3681 = vmax.f32 %v3679, %v3680
      %v3682 = vrot.slane %v3681, 1
      %v3683 = vmax.f32 %v3681, %v3682
      %v3684 = vsel %vm3592, %v3577, -inf
      %v3685 = vrot.slane %v3684, 4
      %v3686 = vmax.f32 %v3684, %v3685
      %v3687 = vrot.slane %v3686, 2
      %v3688 = vmax.f32 %v3686, %v3687
      %v3689 = vrot.slane %v3688, 1
      %v3690 = vmax.f32 %v3688, %v3689
      %v3691 = vsel %vm3592, %v3578, -inf
      %v3692 = vrot.slane %v3691, 4
      %v3693 = vmax.f32 %v3691, %v3692
      %v3694 = vrot.slane %v3693, 2
      %v3695 = vmax.f32 %v3693, %v3694
      %v3696 = vrot.slane %v3695, 1
      %v3697 = vmax.f32 %v3695, %v3696
      %v3698 = vsel %vm3592, %v3579, -inf
      %v3699 = vrot.slane %v3698, 4
      %v3700 = vmax.f32 %v3698, %v3699
      %v3701 = vrot.slane %v3700, 2
      %v3702 = vmax.f32 %v3700, %v3701
      %v3703 = vrot.slane %v3702, 1
      %v3704 = vmax.f32 %v3702, %v3703
      %v3705 = vld [vmem:[%s1 + $0xa2] sm:$0xff]
      %v3706 = vld [vmem:[%s1 + $0xaa] sm:$0xff]
      %v3707 = vld [vmem:[%s1 + $0xb2] sm:$0xf]
      %v3708 = vld [vmem:[%s1 + $0xb6] sm:$0xff]
      %v3709 = vld [vmem:[%s1 + $0xbe] sm:$0xff]
      %v3710 = vld [vmem:[%s1 + $0xc6] sm:$0xf]
      %v3711 = vld [vmem:[%s1 + $0xca] sm:$0xff]
      %v3712 = vld [vmem:[%s1 + $0xd2] sm:$0xff]
      %v3713 = vld [vmem:[%s1 + $0xda] sm:$0xf]
      %v3714 = vld [vmem:[%s2 + $0x12] sm:$0x1]
      %v3715 = vld [vmem:[%s2 + $0x13] sm:$0x1]
      %v3716 = vld [vmem:[%s2 + $0x14] sm:$0x1]
      %v3717 = vsel %vm239, 0.0, %v3599
      %v3718 = vsel %vm239, 0.0, %v3613
      %v3719 = vsel %vm239, 0.0, %v3627
      %v3720 = vsel %vm239, 0.0, %v3641
      %v3721 = vsel %vm239, 0.0, %v3655
      %v3722 = vsel %vm239, 0.0, %v3669
      %v3723 = vsel %vm239, 0.0, %v3683
      %v3724 = vsel %vm239, 0.0, %v3697
      %v3725 = vsel %vm239, %v3606, 0.0
      %v3726 = vsel %vm239, %v3620, 0.0
      %v3727 = vsel %vm239, %v3634, 0.0
      %v3728 = vsel %vm239, %v3648, 0.0
      %v3729 = vsel %vm239, %v3662, 0.0
      %v3730 = vsel %vm239, %v3676, 0.0
      %v3731 = vsel %vm239, %v3690, 0.0
      %v3732 = vsel %vm239, %v3704, 0.0
      %v3749 = vsel %vm1958, %v3606, %v3599
      %v3750 = vsel %vm1880, %v3613, %v3749
      %v3751 = vsel %vm1882, %v3620, %v3750
      %v3752 = vsel %vm1884, %v3627, %v3751
      %v3753 = vsel %vm1886, %v3634, %v3752
      %v3754 = vsel %vm1888, %v3641, %v3753
      %v3755 = vsel %vm1890, %v3648, %v3754
      %v3756 = vsel %vm1958, %v3662, %v3655
      %v3757 = vsel %vm1880, %v3669, %v3756
      %v3758 = vsel %vm1882, %v3676, %v3757
      %v3759 = vsel %vm1884, %v3683, %v3758
      %v3760 = vsel %vm1886, %v3690, %v3759
      %v3761 = vsel %vm1888, %v3697, %v3760
      %v3762 = vsel %vm1890, %v3704, %v3761
      %v3763 = vsel %vm3362, %v3755, 0
      %v3765 = vsel %vm3362, %v3762, 0
      %v3768 = vsel %vm354, %v3710, 0
      %3770 = vmatpush.msra.mxu0 0.0
      %3771 = vmatpush.msra.mxu0 0.0
      %3772 = vmatpush.msra.mxu0 0.0
      %3773 = vmatpush.msra.mxu0 0.0
      %3774 = vmatpush.msra.mxu0 0.0
      %3775 = vmatpush.msra.mxu0 0.0
      %3776 = vmatpush.msra.mxu0 0.0
      %3777 = vmatpush.msra.mxu0 0.0
      %3778 = vmatpush.msra.mxu0 0.0
      %3779 = vmatpush.msra.mxu0 0.0
      %3780 = vmatpush.msra.mxu0 0.0
      %3781 = vmatpush.msra.mxu0 0.0
      %3782 = vmatpush.msra.mxu0 0.0
      %3783 = vmatpush.msra.mxu0 %v3768
      %3784 = vmatpush.msra.mxu0 %v3709
      %3785 = vmatpush.msra.mxu0 %v3708
      %3786 = vmatmul.f32.gmra.mxu0 %v3763
      %v3787 = vpop.f32.mrf.mxu0
      %v3788 = vadd.f32 0.0, %v3787
      %3789 = vmatmul.f32.gmra.mxu0 %v3765
      %v3790 = vpop.f32.mrf.mxu0
      %v3791 = vadd.f32 0.0, %v3790
      %3792 = vdwg.mxu0
      %3801 = vst [vmem:[#allocation1] ss:$4 sm:$0xff] %v3717
      %s3802 = scalar_lea.vmem [#allocation1], 1
      %3803 = vst [vmem:[%s3802] ss:$4 sm:$0xff] %v3718
      %s3804 = scalar_lea.vmem [#allocation1], 2
      %3805 = vst [vmem:[%s3804] ss:$4 sm:$0xff] %v3719
      %s3806 = scalar_lea.vmem [#allocation1], 3
      %3807 = vst [vmem:[%s3806] ss:$4 sm:$0xff] %v3720
      %s3808 = scalar_lea.vmem [#allocation1], 32
      %3809 = vst [vmem:[%s3808] ss:$4 sm:$0xff] %v3721
      %s3810 = scalar_lea.vmem [#allocation1], 33
      %3811 = vst [vmem:[%s3810] ss:$4 sm:$0xff] %v3722
      %s3812 = scalar_lea.vmem [#allocation1], 34
      %3813 = vst [vmem:[%s3812] ss:$4 sm:$0xff] %v3723
      %s3814 = scalar_lea.vmem [#allocation1], 35
      %3815 = vst [vmem:[%s3814] ss:$4 sm:$0xff] %v3724
      %v3816 = vld.sshfl [vmem:[#allocation1] sm:$0xff pattern:$0x73625140]
      %v3817 = vld.sshfl [vmem:[#allocation1 + $0x20] sm:$0xff pattern:$0x73625140]
      %v3818 = vsel %vm3362, %v3816, 0
      %v3820 = vsel %vm3362, %v3817, 0
      %v3823 = vsel %vm354, %v3707, 0
      %3825 = vmatpush.msra.mxu0 0.0
      %3826 = vmatpush.msra.mxu0 0.0
      %3827 = vmatpush.msra.mxu0 0.0
      %3828 = vmatpush.msra.mxu0 0.0
      %3829 = vmatpush.msra.mxu0 0.0
      %3830 = vmatpush.msra.mxu0 0.0
      %3831 = vmatpush.msra.mxu0 0.0
      %3832 = vmatpush.msra.mxu0 0.0
      %3833 = vmatpush.msra.mxu0 0.0
      %3834 = vmatpush.msra.mxu0 0.0
      %3835 = vmatpush.msra.mxu0 0.0
      %3836 = vmatpush.msra.mxu0 0.0
      %3837 = vmatpush.msra.mxu0 0.0
      %3838 = vmatpush.msra.mxu0 %v3823
      %3839 = vmatpush.msra.mxu0 %v3706
      %3840 = vmatpush.msra.mxu0 %v3705
      %3841 = vmatmul.f32.gmra.mxu0 %v3818
      %v3842 = vpop.f32.mrf.mxu0
      %v3843 = vadd.f32 %v3788, %v3842
      %3844 = vmatmul.f32.gmra.mxu0 %v3820
      %v3845 = vpop.f32.mrf.mxu0
      %v3846 = vadd.f32 %v3791, %v3845
      %3847 = vdwg.mxu0
      %3856 = vst [vmem:[#allocation1] ss:$4 sm:$0xff] %v3725
      %s3857 = scalar_lea.vmem [#allocation1], 1
      %3858 = vst [vmem:[%s3857] ss:$4 sm:$0xff] %v3726
      %s3859 = scalar_lea.vmem [#allocation1], 2
      %3860 = vst [vmem:[%s3859] ss:$4 sm:$0xff] %v3727
      %s3861 = scalar_lea.vmem [#allocation1], 3
      %3862 = vst [vmem:[%s3861] ss:$4 sm:$0xff] %v3728
      %s3863 = scalar_lea.vmem [#allocation1], 32
      %3864 = vst [vmem:[%s3863] ss:$4 sm:$0xff] %v3729
      %s3865 = scalar_lea.vmem [#allocation1], 33
      %3866 = vst [vmem:[%s3865] ss:$4 sm:$0xff] %v3730
      %s3867 = scalar_lea.vmem [#allocation1], 34
      %3868 = vst [vmem:[%s3867] ss:$4 sm:$0xff] %v3731
      %s3869 = scalar_lea.vmem [#allocation1], 35
      %3870 = vst [vmem:[%s3869] ss:$4 sm:$0xff] %v3732
      %v3871 = vld.sshfl [vmem:[#allocation1] sm:$0xff pattern:$0x73625140]
      %v3872 = vld.sshfl [vmem:[#allocation1 + $0x20] sm:$0xff pattern:$0x73625140]
      %v3873 = vsel %vm3362, %v3871, 0
      %v3875 = vsel %vm3362, %v3872, 0
      %v3878 = vsel %vm354, %v3713, 0
      %3880 = vmatpush.msra.mxu0 0.0
      %3881 = vmatpush.msra.mxu0 0.0
      %3882 = vmatpush.msra.mxu0 0.0
      %3883 = vmatpush.msra.mxu0 0.0
      %3884 = vmatpush.msra.mxu0 0.0
      %3885 = vmatpush.msra.mxu0 0.0
      %3886 = vmatpush.msra.mxu0 0.0
      %3887 = vmatpush.msra.mxu0 0.0
      %3888 = vmatpush.msra.mxu0 0.0
      %3889 = vmatpush.msra.mxu0 0.0
      %3890 = vmatpush.msra.mxu0 0.0
      %3891 = vmatpush.msra.mxu0 0.0
      %3892 = vmatpush.msra.mxu0 0.0
      %3893 = vmatpush.msra.mxu0 %v3878
      %3894 = vmatpush.msra.mxu0 %v3712
      %3895 = vmatpush.msra.mxu0 %v3711
      %3896 = vmatmul.f32.gmra.mxu0 %v3873
      %v3897 = vpop.f32.mrf.mxu0
      %v3898 = vadd.f32 0.0, %v3897
      %3899 = vmatmul.f32.gmra.mxu0 %v3875
      %v3900 = vpop.f32.mrf.mxu0
      %v3901 = vadd.f32 0.0, %v3900
      %3902 = vdwg.mxu0
      %v3903 = vadd.f32 %v3843, %v3898
      %v3904 = vadd.f32 %v3846, %v3901
      %v3905 = vperm.slane %v3714, 0
      %v3906 = vadd.f32 %v3903, %v3905
      %v3907 = vadd.f32 %v3904, %v3905
      %v3908 = vmul.f32 %v3906, 0.01
      %v3909 = vmul.f32 %v3907, 0.01
      %v3910 = vmax.f32 %v3906, %v3908
      %v3911 = vmax.f32 %v3907, %v3909
      %v3912 = vperm.slane %v3715, 0
      %v3913 = vmul.f32 %v3910, %v3912
      %v3914 = vmul.f32 %v3911, %v3912
      %v3915 = vperm.slane %v3716, 0
      %v3916 = vadd.f32 %v3913, %v3915
      %v3917 = vadd.f32 %v3914, %v3915
      %v3920 = vrot.slane %v3916, 2
      %v3921 = vrot.slane %v3916, 4
      %v3922 = vrot.slane %v3916, 6
      %v3923 = vrot.slane %v3917, 2
      %v3924 = vrot.slane %v3917, 4
      %v3925 = vrot.slane %v3917, 6
      %v3926 = vld [vmem:[%s1 + $0xde] sm:$0xff]
      %v3927 = vld [vmem:[%s1 + $0xe6] sm:$0xff]
      %v3928 = vld [vmem:[%s1 + $0xee] sm:$0xff]
      %v3929 = vld [vmem:[%s1 + $0xf6] sm:$0xff]
      %v3930 = vld [vmem:[%s1 + $0xfe] sm:$0xff]
      %v3931 = vld [vmem:[%s1 + $0x106] sm:$0xff]
      %v3932 = vld [vmem:[%s1 + $0x10e] sm:$0xff]
      %v3933 = vld [vmem:[%s1 + $0x116] sm:$0xff]
      %v3934 = vld [vmem:[%s1 + $0x11e] sm:$0xff]
      %v3935 = vld [vmem:[%s1 + $0x126] sm:$0xff]
      %v3936 = vld [vmem:[%s1 + $0x12e] sm:$0xff]
      %v3937 = vld [vmem:[%s1 + $0x136] sm:$0xff]
      %v3938 = vld [vmem:[%s1 + $0x13e] sm:$0xff]
      %v3939 = vld [vmem:[%s1 + $0x146] sm:$0xff]
      %v3940 = vld [vmem:[%s1 + $0x14e] sm:$0xff]
      %v3941 = vld [vmem:[%s2 + $0x15] sm:$0x1]
      %v3942 = vld [vmem:[%s2 + $0x16] sm:$0x1]
      %v3943 = vld [vmem:[%s2 + $0x17] sm:$0x1]
      %v3944 = vperm.slane %v3916, 0
      %v3945 = vperm.slane %v3920, 0
      %v3946 = vperm.slane %v3921, 0
      %v3947 = vperm.slane %v3922, 0
      %v3948 = vperm.slane %v3917, 0
      %v3949 = vperm.slane %v3923, 0
      %v3950 = vperm.slane %v3924, 0
      %v3951 = vperm.slane %v3925, 0
      %v3960 = vsel %vm239, 0.0, %v3944
      %v3961 = vsel %vm239, 0.0, %v3945
      %v3962 = vsel %vm239, 0.0, %v3946
      %v3963 = vsel %vm239, 0.0, %v3947
      %v3964 = vsel %vm239, 0.0, %v3948
      %v3965 = vsel %vm239, 0.0, %v3949
      %v3966 = vsel %vm239, 0.0, %v3950
      %v3967 = vsel %vm239, 0.0, %v3951
      %v3968 = vperm.slane %v3916, 1
      %v3969 = vperm.slane %v3920, 1
      %v3970 = vperm.slane %v3921, 1
      %v3971 = vperm.slane %v3922, 1
      %v3972 = vperm.slane %v3917, 1
      %v3973 = vperm.slane %v3923, 1
      %v3974 = vperm.slane %v3924, 1
      %v3975 = vperm.slane %v3925, 1
      %v3984 = vsel %vm239, %v3968, 0.0
      %v3985 = vsel %vm239, %v3969, 0.0
      %v3986 = vsel %vm239, %v3970, 0.0
      %v3987 = vsel %vm239, %v3971, 0.0
      %v3988 = vsel %vm239, %v3972, 0.0
      %v3989 = vsel %vm239, %v3973, 0.0
      %v3990 = vsel %vm239, %v3974, 0.0
      %v3991 = vsel %vm239, %v3975, 0.0
      %vm3992 = vcmask 326656
      %v3993 = vsel %vm3992, %v3916, 0
      %v3995 = vsel %vm3992, %v3917, 0
      %3997 = vmatpush.msra.mxu0 0.0
      %3998 = vmatpush.msra.mxu0 0.0
      %3999 = vmatpush.msra.mxu0 0.0
      %4000 = vmatpush.msra.mxu0 0.0
      %4001 = vmatpush.msra.mxu0 0.0
      %4002 = vmatpush.msra.mxu0 0.0
      %4003 = vmatpush.msra.mxu0 0.0
      %4004 = vmatpush.msra.mxu0 0.0
      %4005 = vmatpush.msra.mxu0 0.0
      %4006 = vmatpush.msra.mxu0 0.0
      %4007 = vmatpush.msra.mxu0 0.0
      %4008 = vmatpush.msra.mxu0 %v3935
      %4009 = vmatpush.msra.mxu0 %v3934
      %4010 = vmatpush.msra.mxu0 %v3933
      %4011 = vmatpush.msra.mxu0 %v3932
      %4012 = vmatpush.msra.mxu0 %v3931
      %4013 = vmatmul.f32.gmra.mxu0 %v3993
      %v4014 = vpop.f32.mrf.mxu0
      %v4015 = vadd.f32 0.0, %v4014
      %4016 = vmatmul.f32.gmra.mxu0 %v3995
      %v4017 = vpop.f32.mrf.mxu0
      %v4018 = vadd.f32 0.0, %v4017
      %4019 = vdwg.mxu0
      %4028 = vst [vmem:[#allocation1] ss:$4 sm:$0xff] %v3960
      %s4029 = scalar_lea.vmem [#allocation1], 1
      %4030 = vst [vmem:[%s4029] ss:$4 sm:$0xff] %v3961
      %s4031 = scalar_lea.vmem [#allocation1], 2
      %4032 = vst [vmem:[%s4031] ss:$4 sm:$0xff] %v3962
      %s4033 = scalar_lea.vmem [#allocation1], 3
      %4034 = vst [vmem:[%s4033] ss:$4 sm:$0xff] %v3963
      %s4035 = scalar_lea.vmem [#allocation1], 32
      %4036 = vst [vmem:[%s4035] ss:$4 sm:$0xff] %v3964
      %s4037 = scalar_lea.vmem [#allocation1], 33
      %4038 = vst [vmem:[%s4037] ss:$4 sm:$0xff] %v3965
      %s4039 = scalar_lea.vmem [#allocation1], 34
      %4040 = vst [vmem:[%s4039] ss:$4 sm:$0xff] %v3966
      %s4041 = scalar_lea.vmem [#allocation1], 35
      %4042 = vst [vmem:[%s4041] ss:$4 sm:$0xff] %v3967
      %v4043 = vld.sshfl [vmem:[#allocation1] sm:$0xff pattern:$0x73625140]
      %v4044 = vld.sshfl [vmem:[#allocation1 + $0x20] sm:$0xff pattern:$0x73625140]
      %v4045 = vsel %vm3992, %v4043, 0
      %v4047 = vsel %vm3992, %v4044, 0
      %4049 = vmatpush.msra.mxu0 0.0
      %4050 = vmatpush.msra.mxu0 0.0
      %4051 = vmatpush.msra.mxu0 0.0
      %4052 = vmatpush.msra.mxu0 0.0
      %4053 = vmatpush.msra.mxu0 0.0
      %4054 = vmatpush.msra.mxu0 0.0
      %4055 = vmatpush.msra.mxu0 0.0
      %4056 = vmatpush.msra.mxu0 0.0
      %4057 = vmatpush.msra.mxu0 0.0
      %4058 = vmatpush.msra.mxu0 0.0
      %4059 = vmatpush.msra.mxu0 0.0
      %4060 = vmatpush.msra.mxu0 %v3930
      %4061 = vmatpush.msra.mxu0 %v3929
      %4062 = vmatpush.msra.mxu0 %v3928
      %4063 = vmatpush.msra.mxu0 %v3927
      %4064 = vmatpush.msra.mxu0 %v3926
      %4065 = vmatmul.f32.gmra.mxu0 %v4045
      %v4066 = vpop.f32.mrf.mxu0
      %v4067 = vadd.f32 %v4015, %v4066
      %4068 = vmatmul.f32.gmra.mxu0 %v4047
      %v4069 = vpop.f32.mrf.mxu0
      %v4070 = vadd.f32 %v4018, %v4069
      %4071 = vdwg.mxu0
      %4080 = vst [vmem:[#allocation1] ss:$4 sm:$0xff] %v3984
      %s4081 = scalar_lea.vmem [#allocation1], 1
      %4082 = vst [vmem:[%s4081] ss:$4 sm:$0xff] %v3985
      %s4083 = scalar_lea.vmem [#allocation1], 2
      %4084 = vst [vmem:[%s4083] ss:$4 sm:$0xff] %v3986
      %s4085 = scalar_lea.vmem [#allocation1], 3
      %4086 = vst [vmem:[%s4085] ss:$4 sm:$0xff] %v3987
      %s4087 = scalar_lea.vmem [#allocation1], 32
      %4088 = vst [vmem:[%s4087] ss:$4 sm:$0xff] %v3988
      %s4089 = scalar_lea.vmem [#allocation1], 33
      %4090 = vst [vmem:[%s4089] ss:$4 sm:$0xff] %v3989
      %s4091 = scalar_lea.vmem [#allocation1], 34
      %4092 = vst [vmem:[%s4091] ss:$4 sm:$0xff] %v3990
      %s4093 = scalar_lea.vmem [#allocation1], 35
      %4094 = vst [vmem:[%s4093] ss:$4 sm:$0xff] %v3991
      %v4095 = vld.sshfl [vmem:[#allocation1] sm:$0xff pattern:$0x73625140]
      %v4096 = vld.sshfl [vmem:[#allocation1 + $0x20] sm:$0xff pattern:$0x73625140]
      %v4097 = vsel %vm3992, %v4095, 0
      %v4099 = vsel %vm3992, %v4096, 0
      %4101 = vmatpush.msra.mxu0 0.0
      %4102 = vmatpush.msra.mxu0 0.0
      %4103 = vmatpush.msra.mxu0 0.0
      %4104 = vmatpush.msra.mxu0 0.0
      %4105 = vmatpush.msra.mxu0 0.0
      %4106 = vmatpush.msra.mxu0 0.0
      %4107 = vmatpush.msra.mxu0 0.0
      %4108 = vmatpush.msra.mxu0 0.0
      %4109 = vmatpush.msra.mxu0 0.0
      %4110 = vmatpush.msra.mxu0 0.0
      %4111 = vmatpush.msra.mxu0 0.0
      %4112 = vmatpush.msra.mxu0 %v3940
      %4113 = vmatpush.msra.mxu0 %v3939
      %4114 = vmatpush.msra.mxu0 %v3938
      %4115 = vmatpush.msra.mxu0 %v3937
      %4116 = vmatpush.msra.mxu0 %v3936
      %4117 = vmatmul.f32.gmra.mxu0 %v4097
      %v4118 = vpop.f32.mrf.mxu0
      %v4119 = vadd.f32 0.0, %v4118
      %4120 = vmatmul.f32.gmra.mxu0 %v4099
      %v4121 = vpop.f32.mrf.mxu0
      %v4122 = vadd.f32 0.0, %v4121
      %4123 = vdwg.mxu0
      %v4124 = vadd.f32 %v4067, %v4119
      %v4125 = vadd.f32 %v4070, %v4122
      %v4126 = vperm.slane %v3941, 0
      %v4127 = vadd.f32 %v4124, %v4126
      %v4128 = vadd.f32 %v4125, %v4126
      %v4129 = vmul.f32 %v4127, 0.01
      %v4130 = vmul.f32 %v4128, 0.01
      %v4131 = vmax.f32 %v4127, %v4129
      %v4132 = vmax.f32 %v4128, %v4130
      %v4133 = vperm.slane %v3942, 0
      %v4134 = vmul.f32 %v4131, %v4133
      %v4135 = vmul.f32 %v4132, %v4133
      %v4136 = vperm.slane %v3943, 0
      %v4137 = vadd.f32 %v4134, %v4136
      %v4138 = vadd.f32 %v4135, %v4136
      %v4141 = vrot.slane %v4137, 2
      %v4142 = vrot.slane %v4137, 4
      %v4143 = vrot.slane %v4137, 6
      %v4144 = vrot.slane %v4138, 2
      %v4145 = vrot.slane %v4138, 4
      %v4146 = vrot.slane %v4138, 6
      %vm4153 = vcmask 320512
      %v4154 = vsel %vm4153, %v4137, -inf
      %v4155 = vrot.slane %v4154, 4
      %v4156 = vmax.f32 %v4154, %v4155
      %v4157 = vrot.slane %v4156, 2
      %v4158 = vmax.f32 %v4156, %v4157
      %v4159 = vrot.slane %v4158, 1
      %v4160 = vmax.f32 %v4158, %v4159
      %v4161 = vsel %vm4153, %v4141, -inf
      %v4162 = vrot.slane %v4161, 4
      %v4163 = vmax.f32 %v4161, %v4162
      %v4164 = vrot.slane %v4163, 2
      %v4165 = vmax.f32 %v4163, %v4164
      %v4166 = vrot.slane %v4165, 1
      %v4167 = vmax.f32 %v4165, %v4166
      %v4168 = vsel %vm4153, %v4142, -inf
      %v4169 = vrot.slane %v4168, 4
      %v4170 = vmax.f32 %v4168, %v4169
      %v4171 = vrot.slane %v4170, 2
      %v4172 = vmax.f32 %v4170, %v4171
      %v4173 = vrot.slane %v4172, 1
      %v4174 = vmax.f32 %v4172, %v4173
      %v4175 = vsel %vm4153, %v4143, -inf
      %v4176 = vrot.slane %v4175, 4
      %v4177 = vmax.f32 %v4175, %v4176
      %v4178 = vrot.slane %v4177, 2
      %v4179 = vmax.f32 %v4177, %v4178
      %v4180 = vrot.slane %v4179, 1
      %v4181 = vmax.f32 %v4179, %v4180
      %v4182 = vsel %vm4153, %v4138, -inf
      %v4183 = vrot.slane %v4182, 4
      %v4184 = vmax.f32 %v4182, %v4183
      %v4185 = vrot.slane %v4184, 2
      %v4186 = vmax.f32 %v4184, %v4185
      %v4187 = vrot.slane %v4186, 1
      %v4188 = vmax.f32 %v4186, %v4187
      %v4189 = vsel %vm4153, %v4144, -inf
      %v4190 = vrot.slane %v4189, 4
      %v4191 = vmax.f32 %v4189, %v4190
      %v4192 = vrot.slane %v4191, 2
      %v4193 = vmax.f32 %v4191, %v4192
      %v4194 = vrot.slane %v4193, 1
      %v4195 = vmax.f32 %v4193, %v4194
      %v4196 = vsel %vm4153, %v4145, -inf
      %v4197 = vrot.slane %v4196, 4
      %v4198 = vmax.f32 %v4196, %v4197
      %v4199 = vrot.slane %v4198, 2
      %v4200 = vmax.f32 %v4198, %v4199
      %v4201 = vrot.slane %v4200, 1
      %v4202 = vmax.f32 %v4200, %v4201
      %v4203 = vsel %vm4153, %v4146, -inf
      %v4204 = vrot.slane %v4203, 4
      %v4205 = vmax.f32 %v4203, %v4204
      %v4206 = vrot.slane %v4205, 2
      %v4207 = vmax.f32 %v4205, %v4206
      %v4208 = vrot.slane %v4207, 1
      %v4209 = vmax.f32 %v4207, %v4208
      %v4210 = vadd.f32 %v4160, 0.0
      %v4211 = vadd.f32 %v4167, 0.0
      %v4212 = vadd.f32 %v4174, 0.0
      %v4213 = vadd.f32 %v4181, 0.0
      %v4214 = vadd.f32 %v4188, 0.0
      %v4215 = vadd.f32 %v4195, 0.0
      %v4216 = vadd.f32 %v4202, 0.0
      %v4217 = vadd.f32 %v4209, 0.0
      %v4218 = vld [vmem:[%s3] sm:$0xff]
      %v4219 = vld [vmem:[%s3 + $0x8] sm:$0xff]
      %v4220 = vld [vmem:[%s3 + $0x10] sm:$0xff]
      %v4221 = vld [vmem:[%s3 + $0x18] sm:$0xff]
      %v4222 = vld [vmem:[%s3 + $0x20] sm:$0xff]
      %v4223 = vld [vmem:[%s3 + $0x28] sm:$0xff]
      %v4224 = vld [vmem:[%s3 + $0x30] sm:$0xff]
      %v4225 = vld [vmem:[%s3 + $0x38] sm:$0xff]
      %v4226 = vld [vmem:[%s3 + $0x40] sm:$0xff]
      %v4227 = vld [vmem:[%s3 + $0x48] sm:$0xff]
      %v4228 = vld [vmem:[%s2 + $0x18] sm:$0x1]
      %v4229 = vld [vmem:[%s2 + $0x19] sm:$0x1]
      %v4230 = vperm.slane %v4228, 0
      %v4239 = vsel %vm1958, %v4211, %v4210
      %v4240 = vsel %vm1880, %v4212, %v4239
      %v4241 = vsel %vm1882, %v4213, %v4240
      %v4242 = vsel %vm1884, %v4214, %v4241
      %v4243 = vsel %vm1886, %v4215, %v4242
      %v4244 = vsel %vm1888, %v4216, %v4243
      %v4245 = vsel %vm1890, %v4217, %v4244
      %v4246 = vsel %vm3992, %v4245, 0
      %4248 = vmatpush.msra.mxu0 0.0
      %4249 = vmatpush.msra.mxu0 0.0
      %4250 = vmatpush.msra.mxu0 0.0
      %4251 = vmatpush.msra.mxu0 0.0
      %4252 = vmatpush.msra.mxu0 0.0
      %4253 = vmatpush.msra.mxu0 0.0
      %4254 = vmatpush.msra.mxu0 0.0
      %4255 = vmatpush.msra.mxu0 0.0
      %4256 = vmatpush.msra.mxu0 0.0
      %4257 = vmatpush.msra.mxu0 0.0
      %4258 = vmatpush.msra.mxu0 0.0
      %4259 = vmatpush.msra.mxu0 %v4222
      %4260 = vmatpush.msra.mxu0 %v4221
      %4261 = vmatpush.msra.mxu0 %v4220
      %4262 = vmatpush.msra.mxu0 %v4219
      %4263 = vmatpush.msra.mxu0 %v4218
      %4264 = vmatmul.f32.gmra.mxu0 %v4246
      %v4265 = vpop.f32.mrf.mxu0
      %v4266 = vadd.f32 %v4230, %v4265
      %4267 = vdwg.mxu0
      %v4268 = vperm.slane %v4229, 0
      %4269 = vmatpush.msra.mxu0 0.0
      %4270 = vmatpush.msra.mxu0 0.0
      %4271 = vmatpush.msra.mxu0 0.0
      %4272 = vmatpush.msra.mxu0 0.0
      %4273 = vmatpush.msra.mxu0 0.0
      %4274 = vmatpush.msra.mxu0 0.0
      %4275 = vmatpush.msra.mxu0 0.0
      %4276 = vmatpush.msra.mxu0 0.0
      %4277 = vmatpush.msra.mxu0 0.0
      %4278 = vmatpush.msra.mxu0 0.0
      %4279 = vmatpush.msra.mxu0 0.0
      %4280 = vmatpush.msra.mxu0 %v4227
      %4281 = vmatpush.msra.mxu0 %v4226
      %4282 = vmatpush.msra.mxu0 %v4225
      %4283 = vmatpush.msra.mxu0 %v4224
      %4284 = vmatpush.msra.mxu0 %v4223
      %4285 = vmatmul.f32.gmra.mxu0 %v4246
      %v4286 = vpop.f32.mrf.mxu0
      %v4287 = vadd.f32 %v4268, %v4286
      %4288 = vdwg.mxu0
      %v4289 = vld [vmem:[%s3 + $0xd0] sm:$0xff]
      %v4290 = vld [vmem:[%s3 + $0xd8] sm:$0xff]
      %v4291 = vld [vmem:[%s3 + $0xe0] sm:$0xff]
      %v4292 = vld [vmem:[%s3 + $0xe8] sm:$0xff]
      %v4293 = vld [vmem:[%s3 + $0xf0] sm:$0xff]
      %v4294 = vld [vmem:[%s3 + $0xf8] sm:$0xff]
      %v4295 = vld [vmem:[%s3 + $0x100] sm:$0xff]
      %v4296 = vld [vmem:[%s3 + $0x108] sm:$0xff]
      %vm4297 = vcmask 261120
      %v4299 = vsel %vm4297, 0.0, 0
      %4301 = vmatpush.msra.mxu0 0.0
      %4302 = vmatpush.msra.mxu0 0.0
      %4303 = vmatpush.msra.mxu0 0.0
      %4304 = vmatpush.msra.mxu0 0.0
      %4305 = vmatpush.msra.mxu0 0.0
      %4306 = vmatpush.msra.mxu0 0.0
      %4307 = vmatpush.msra.mxu0 0.0
      %4308 = vmatpush.msra.mxu0 0.0
      %4309 = vmatpush.msra.mxu0 0.0
      %4310 = vmatpush.msra.mxu0 0.0
      %4311 = vmatpush.msra.mxu0 0.0
      %4312 = vmatpush.msra.mxu0 0.0
      %4313 = vmatpush.msra.mxu0 %v4292
      %4314 = vmatpush.msra.mxu0 %v4291
      %4315 = vmatpush.msra.mxu0 %v4290
      %4316 = vmatpush.msra.mxu0 %v4289
      %4317 = vmatmul.f32.gmra.mxu0 %v4299
      %v4318 = vpop.f32.mrf.mxu0
      %v4319 = vadd.f32 0.0, %v4318
      %4320 = vdwg.mxu0
      %v4321 = vadd.f32 %v4266, %v4319
      %4322 = vmatpush.msra.mxu0 0.0
      %4323 = vmatpush.msra.mxu0 0.0
      %4324 = vmatpush.msra.mxu0 0.0
      %4325 = vmatpush.msra.mxu0 0.0
      %4326 = vmatpush.msra.mxu0 0.0
      %4327 = vmatpush.msra.mxu0 0.0
      %4328 = vmatpush.msra.mxu0 0.0
      %4329 = vmatpush.msra.mxu0 0.0
      %4330 = vmatpush.msra.mxu0 0.0
      %4331 = vmatpush.msra.mxu0 0.0
      %4332 = vmatpush.msra.mxu0 0.0
      %4333 = vmatpush.msra.mxu0 0.0
      %4334 = vmatpush.msra.mxu0 %v4296
      %4335 = vmatpush.msra.mxu0 %v4295
      %4336 = vmatpush.msra.mxu0 %v4294
      %4337 = vmatpush.msra.mxu0 %v4293
      %4338 = vmatmul.f32.gmra.mxu0 %v4299
      %v4339 = vpop.f32.mrf.mxu0
      %v4340 = vadd.f32 0.0, %v4339
      %4341 = vdwg.mxu0
      %v4343 = vrot.slane %v4340, 1
      %v4345 = vadd.f32 %v4287, %v4343
      %v4346 = vxor.u32 %v4321, 2147483648
      %v4347 = vmul.f32 %v4346, 1.442695
      %v4348 = vpow.pop %v4347
      %v4349 = vadd.f32 %v4348, 1.0
      %v4350 = vrcp.pop %v4349
      %v4351 = vmul.f32 %v4349, %v4350
      %v4352 = vsub.f32 1.0, %v4351
      %v4353 = vmul.f32 %v4350, %v4352
      %v4354 = vadd.f32 %v4350, %v4353
      %vm4355 = vweird.f32 %v4349
      %vm4356 = vweird.f32 %v4350
      %vm4357 = vmor %vm4355, %vm4356
      %v4358 = vsel %vm4357, %v4350, %v4354
      %v4359 = vand.u32 2147483647, %v4349
      %vm4360 = vcmp.eq.f32.partialorder %v4359, 8.507059e+37
      %v4361 = vand.u32 %v4349, 2147483648
      %v4362 = vor.u32 1.1754944e-38, %v4361
      %v4363 = vsel %vm4360, %v4362, %v4358
      %v4364 = vmul.f32 1.0, %v4363
      %v4365 = vtanh.pop %v4321
      %v4366 = vxor.u32 %v4345, 2147483648
      %v4367 = vmul.f32 %v4366, 1.442695
      %v4368 = vpow.pop %v4367
      %v4369 = vadd.f32 %v4368, 1.0
      %v4370 = vrcp.pop %v4369
      %v4371 = vmul.f32 %v4369, %v4370
      %v4372 = vsub.f32 1.0, %v4371
      %v4373 = vmul.f32 %v4370, %v4372
      %v4374 = vadd.f32 %v4370, %v4373
      %vm4375 = vweird.f32 %v4369
      %vm4376 = vweird.f32 %v4370
      %vm4377 = vmor %vm4375, %vm4376
      %v4378 = vsel %vm4377, %v4370, %v4374
      %v4379 = vand.u32 2147483647, %v4369
      %vm4380 = vcmp.eq.f32.partialorder %v4379, 8.507059e+37
      %v4381 = vand.u32 %v4369, 2147483648
      %v4382 = vor.u32 1.1754944e-38, %v4381
      %v4383 = vsel %vm4380, %v4382, %v4378
      %v4384 = vmul.f32 1.0, %v4383
      %v4385 = vtanh.pop %v4345
      %v4386 = vmul.f32 %v4364, 0.0
      %4388 = vrot.lane.b32.xlu0 %v4365, 64
      %v4389 = vpop.permute.xlu0 %4388
      %v4391 = vmul.f32 %v4364, %v4389
      %4393 = vrot.lane.b32.xlu0 %v4391, 32
      %v4394 = vpop.permute.xlu0 %4393
      %v4396 = vadd.f32 %v4386, %v4394
      %v4397 = vmul.f32 %v4384, 0.0
      %4399 = vrot.lane.b32.xlu0 %v4385, 64
      %v4400 = vpop.permute.xlu0 %4399
      %v4402 = vmul.f32 %v4384, %v4400
      %4404 = vrot.lane.b32.xlu0 %v4402, 32
      %v4405 = vpop.permute.xlu0 %4404
      %v4407 = vadd.f32 %v4397, %v4405
      %v4408 = vtanh.pop %v4396
      %4410 = vrot.lane.b32.xlu0 %v4408, 64
      %v4411 = vpop.permute.xlu0 %4410
      %v4413 = vmul.f32 %v4364, %v4411
      %v4414 = vtanh.pop %v4407
      %4416 = vrot.lane.b32.xlu0 %v4414, 64
      %v4417 = vpop.permute.xlu0 %4416
      %v4419 = vmul.f32 %v4384, %v4417
      %4421 = vrot.lane.b32.xlu0 %v4413, 32
      %v4422 = vpop.permute.xlu0 %4421
      %vm4424 = vcmask 253952
      %4425 = vst.msk [vmem:[#allocation2] sm:$0x1] %vm4424, %v4422
      %4427 = vrot.lane.b32.xlu0 %v4419, 32
      %v4428 = vpop.permute.xlu0 %4427
      %vm4430 = vcmask 261127
      %4431 = vst.msk [vmem:[#allocation3] sm:$0x80] %vm4430, %v4428
      %v4432 = vsel %vm4297, %v4422, 0
      %4434 = vmatpush.msra.mxu0 0.0
      %4435 = vmatpush.msra.mxu0 0.0
      %4436 = vmatpush.msra.mxu0 0.0
      %4437 = vmatpush.msra.mxu0 0.0
      %4438 = vmatpush.msra.mxu0 0.0
      %4439 = vmatpush.msra.mxu0 0.0
      %4440 = vmatpush.msra.mxu0 0.0
      %4441 = vmatpush.msra.mxu0 0.0
      %4442 = vmatpush.msra.mxu0 0.0
      %4443 = vmatpush.msra.mxu0 0.0
      %4444 = vmatpush.msra.mxu0 0.0
      %4445 = vmatpush.msra.mxu0 0.0
      %4446 = vmatpush.msra.mxu0 %v4292
      %4447 = vmatpush.msra.mxu0 %v4291
      %4448 = vmatpush.msra.mxu0 %v4290
      %4449 = vmatpush.msra.mxu0 %v4289
      %4450 = vmatmul.f32.gmra.mxu0 %v4432
      %v4451 = vpop.f32.mrf.mxu0
      %v4452 = vadd.f32 0.0, %v4451
      %4453 = vdwg.mxu0
      %v4455 = vrot.slane %v4452, 7
      %v4457 = vadd.f32 %v4266, %v4455
      %v4458 = vrot.slane %v4419, 7
      %4459 = vrot.lane.b32.xlu0 %v4458, 32
      %v4460 = vpop.permute.xlu0 %4459
      %v4461 = vsel %vm4297, %v4460, 0
      %4463 = vmatpush.msra.mxu0 0.0
      %4464 = vmatpush.msra.mxu0 0.0
      %4465 = vmatpush.msra.mxu0 0.0
      %4466 = vmatpush.msra.mxu0 0.0
      %4467 = vmatpush.msra.mxu0 0.0
      %4468 = vmatpush.msra.mxu0 0.0
      %4469 = vmatpush.msra.mxu0 0.0
      %4470 = vmatpush.msra.mxu0 0.0
      %4471 = vmatpush.msra.mxu0 0.0
      %4472 = vmatpush.msra.mxu0 0.0
      %4473 = vmatpush.msra.mxu0 0.0
      %4474 = vmatpush.msra.mxu0 0.0
      %4475 = vmatpush.msra.mxu0 %v4296
      %4476 = vmatpush.msra.mxu0 %v4295
      %4477 = vmatpush.msra.mxu0 %v4294
      %4478 = vmatpush.msra.mxu0 %v4293
      %4479 = vmatmul.f32.gmra.mxu0 %v4461
      %v4480 = vpop.f32.mrf.mxu0
      %v4481 = vadd.f32 0.0, %v4480
      %4482 = vdwg.mxu0
      %v4484 = vrot.slane %v4481, 2
      %v4486 = vadd.f32 %v4287, %v4484
      %v4487 = vxor.u32 %v4457, 2147483648
      %v4488 = vmul.f32 %v4487, 1.442695
      %v4489 = vpow.pop %v4488
      %v4490 = vadd.f32 %v4489, 1.0
      %v4491 = vrcp.pop %v4490
      %v4492 = vmul.f32 %v4490, %v4491
      %v4493 = vsub.f32 1.0, %v4492
      %v4494 = vmul.f32 %v4491, %v4493
      %v4495 = vadd.f32 %v4491, %v4494
      %vm4496 = vweird.f32 %v4490
      %vm4497 = vweird.f32 %v4491
      %vm4498 = vmor %vm4496, %vm4497
      %v4499 = vsel %vm4498, %v4491, %v4495
      %v4500 = vand.u32 2147483647, %v4490
      %vm4501 = vcmp.eq.f32.partialorder %v4500, 8.507059e+37
      %v4502 = vand.u32 %v4490, 2147483648
      %v4503 = vor.u32 1.1754944e-38, %v4502
      %v4504 = vsel %vm4501, %v4503, %v4499
      %v4505 = vmul.f32 1.0, %v4504
      %v4506 = vtanh.pop %v4457
      %v4507 = vxor.u32 %v4486, 2147483648
      %v4508 = vmul.f32 %v4507, 1.442695
      %v4509 = vpow.pop %v4508
      %v4510 = vadd.f32 %v4509, 1.0
      %v4511 = vrcp.pop %v4510
      %v4512 = vmul.f32 %v4510, %v4511
      %v4513 = vsub.f32 1.0, %v4512
      %v4514 = vmul.f32 %v4511, %v4513
      %v4515 = vadd.f32 %v4511, %v4514
      %vm4516 = vweird.f32 %v4510
      %vm4517 = vweird.f32 %v4511
      %vm4518 = vmor %vm4516, %vm4517
      %v4519 = vsel %vm4518, %v4511, %v4515
      %v4520 = vand.u32 2147483647, %v4510
      %vm4521 = vcmp.eq.f32.partialorder %v4520, 8.507059e+37
      %v4522 = vand.u32 %v4510, 2147483648
      %v4523 = vor.u32 1.1754944e-38, %v4522
      %v4524 = vsel %vm4521, %v4523, %v4519
      %v4525 = vmul.f32 1.0, %v4524
      %v4526 = vtanh.pop %v4486
      %v4528 = vrot.slane %v4396, 7
      %v4530 = vmul.f32 %v4505, %v4528
      %4532 = vrot.lane.b32.xlu0 %v4506, 64
      %v4533 = vpop.permute.xlu0 %4532
      %v4535 = vmul.f32 %v4505, %v4533
      %4537 = vrot.lane.b32.xlu0 %v4535, 32
      %v4538 = vpop.permute.xlu0 %4537
      %v4540 = vadd.f32 %v4530, %v4538
      %v4542 = vrot.slane %v4407, 1
      %v4544 = vmul.f32 %v4525, %v4542
      %4546 = vrot.lane.b32.xlu0 %v4526, 64
      %v4547 = vpop.permute.xlu0 %4546
      %v4549 = vmul.f32 %v4525, %v4547
      %4551 = vrot.lane.b32.xlu0 %v4549, 32
      %v4552 = vpop.permute.xlu0 %4551
      %v4554 = vadd.f32 %v4544, %v4552
      %v4555 = vtanh.pop %v4540
      %4557 = vrot.lane.b32.xlu0 %v4555, 64
      %v4558 = vpop.permute.xlu0 %4557
      %v4560 = vmul.f32 %v4505, %v4558
      %v4561 = vtanh.pop %v4554
      %4563 = vrot.lane.b32.xlu0 %v4561, 64
      %v4564 = vpop.permute.xlu0 %4563
      %v4566 = vmul.f32 %v4525, %v4564
      %4568 = vrot.lane.b32.xlu0 %v4560, 32
      %v4569 = vpop.permute.xlu0 %4568
      %vm4571 = vcmask 254977
      %4572 = vst.msk [vmem:[#allocation2] sm:$0x2] %vm4571, %v4569
      %4574 = vrot.lane.b32.xlu0 %v4566, 32
      %v4575 = vpop.permute.xlu0 %4574
      %vm4577 = vcmask 260102
      %4578 = vst.msk [vmem:[#allocation3] sm:$0x40] %vm4577, %v4575
      %v4579 = vrot.slane %v4560, 1
      %4580 = vrot.lane.b32.xlu0 %v4579, 32
      %v4581 = vpop.permute.xlu0 %4580
      %v4582 = vsel %vm4297, %v4581, 0
      %4584 = vmatpush.msra.mxu0 0.0
      %4585 = vmatpush.msra.mxu0 0.0
      %4586 = vmatpush.msra.mxu0 0.0
      %4587 = vmatpush.msra.mxu0 0.0
      %4588 = vmatpush.msra.mxu0 0.0
      %4589 = vmatpush.msra.mxu0 0.0
      %4590 = vmatpush.msra.mxu0 0.0
      %4591 = vmatpush.msra.mxu0 0.0
      %4592 = vmatpush.msra.mxu0 0.0
      %4593 = vmatpush.msra.mxu0 0.0
      %4594 = vmatpush.msra.mxu0 0.0
      %4595 = vmatpush.msra.mxu0 0.0
      %4596 = vmatpush.msra.mxu0 %v4292
      %4597 = vmatpush.msra.mxu0 %v4291
      %4598 = vmatpush.msra.mxu0 %v4290
      %4599 = vmatpush.msra.mxu0 %v4289
      %4600 = vmatmul.f32.gmra.mxu0 %v4582
      %v4601 = vpop.f32.mrf.mxu0
      %v4602 = vadd.f32 0.0, %v4601
      %4603 = vdwg.mxu0
      %v4605 = vrot.slane %v4602, 6
      %v4607 = vadd.f32 %v4266, %v4605
      %v4608 = vrot.slane %v4566, 6
      %4609 = vrot.lane.b32.xlu0 %v4608, 32
      %v4610 = vpop.permute.xlu0 %4609
      %v4611 = vsel %vm4297, %v4610, 0
      %4613 = vmatpush.msra.mxu0 0.0
      %4614 = vmatpush.msra.mxu0 0.0
      %4615 = vmatpush.msra.mxu0 0.0
      %4616 = vmatpush.msra.mxu0 0.0
      %4617 = vmatpush.msra.mxu0 0.0
      %4618 = vmatpush.msra.mxu0 0.0
      %4619 = vmatpush.msra.mxu0 0.0
      %4620 = vmatpush.msra.mxu0 0.0
      %4621 = vmatpush.msra.mxu0 0.0
      %4622 = vmatpush.msra.mxu0 0.0
      %4623 = vmatpush.msra.mxu0 0.0
      %4624 = vmatpush.msra.mxu0 0.0
      %4625 = vmatpush.msra.mxu0 %v4296
      %4626 = vmatpush.msra.mxu0 %v4295
      %4627 = vmatpush.msra.mxu0 %v4294
      %4628 = vmatpush.msra.mxu0 %v4293
      %4629 = vmatmul.f32.gmra.mxu0 %v4611
      %v4630 = vpop.f32.mrf.mxu0
      %v4631 = vadd.f32 0.0, %v4630
      %4632 = vdwg.mxu0
      %v4634 = vrot.slane %v4631, 3
      %v4636 = vadd.f32 %v4287, %v4634
      %v4637 = vxor.u32 %v4607, 2147483648
      %v4638 = vmul.f32 %v4637, 1.442695
      %v4639 = vpow.pop %v4638
      %v4640 = vadd.f32 %v4639, 1.0
      %v4641 = vrcp.pop %v4640
      %v4642 = vmul.f32 %v4640, %v4641
      %v4643 = vsub.f32 1.0, %v4642
      %v4644 = vmul.f32 %v4641, %v4643
      %v4645 = vadd.f32 %v4641, %v4644
      %vm4646 = vweird.f32 %v4640
      %vm4647 = vweird.f32 %v4641
      %vm4648 = vmor %vm4646, %vm4647
      %v4649 = vsel %vm4648, %v4641, %v4645
      %v4650 = vand.u32 2147483647, %v4640
      %vm4651 = vcmp.eq.f32.partialorder %v4650, 8.507059e+37
      %v4652 = vand.u32 %v4640, 2147483648
      %v4653 = vor.u32 1.1754944e-38, %v4652
      %v4654 = vsel %vm4651, %v4653, %v4649
      %v4655 = vmul.f32 1.0, %v4654
      %v4656 = vtanh.pop %v4607
      %v4657 = vxor.u32 %v4636, 2147483648
      %v4658 = vmul.f32 %v4657, 1.442695
      %v4659 = vpow.pop %v4658
      %v4660 = vadd.f32 %v4659, 1.0
      %v4661 = vrcp.pop %v4660
      %v4662 = vmul.f32 %v4660, %v4661
      %v4663 = vsub.f32 1.0, %v4662
      %v4664 = vmul.f32 %v4661, %v4663
      %v4665 = vadd.f32 %v4661, %v4664
      %vm4666 = vweird.f32 %v4660
      %vm4667 = vweird.f32 %v4661
      %vm4668 = vmor %vm4666, %vm4667
      %v4669 = vsel %vm4668, %v4661, %v4665
      %v4670 = vand.u32 2147483647, %v4660
      %vm4671 = vcmp.eq.f32.partialorder %v4670, 8.507059e+37
      %v4672 = vand.u32 %v4660, 2147483648
      %v4673 = vor.u32 1.1754944e-38, %v4672
      %v4674 = vsel %vm4671, %v4673, %v4669
      %v4675 = vmul.f32 1.0, %v4674
      %v4676 = vtanh.pop %v4636
      %v4678 = vrot.slane %v4540, 7
      %v4680 = vmul.f32 %v4655, %v4678
      %4682 = vrot.lane.b32.xlu0 %v4656, 64
      %v4683 = vpop.permute.xlu0 %4682
      %v4685 = vmul.f32 %v4655, %v4683
      %4687 = vrot.lane.b32.xlu0 %v4685, 32
      %v4688 = vpop.permute.xlu0 %4687
      %v4690 = vadd.f32 %v4680, %v4688
      %v4692 = vrot.slane %v4554, 1
      %v4694 = vmul.f32 %v4675, %v4692
      %4696 = vrot.lane.b32.xlu0 %v4676, 64
      %v4697 = vpop.permute.xlu0 %4696
      %v4699 = vmul.f32 %v4675, %v4697
      %4701 = vrot.lane.b32.xlu0 %v4699, 32
      %v4702 = vpop.permute.xlu0 %4701
      %v4704 = vadd.f32 %v4694, %v4702
      %v4705 = vtanh.pop %v4690
      %4707 = vrot.lane.b32.xlu0 %v4705, 64
      %v4708 = vpop.permute.xlu0 %4707
      %v4710 = vmul.f32 %v4655, %v4708
      %v4711 = vtanh.pop %v4704
      %4713 = vrot.lane.b32.xlu0 %v4711, 64
      %v4714 = vpop.permute.xlu0 %4713
      %v4716 = vmul.f32 %v4675, %v4714
      %4718 = vrot.lane.b32.xlu0 %v4710, 32
      %v4719 = vpop.permute.xlu0 %4718
      %vm4721 = vcmask 256002
      %4722 = vst.msk [vmem:[#allocation2] sm:$0x4] %vm4721, %v4719
      %4724 = vrot.lane.b32.xlu0 %v4716, 32
      %v4725 = vpop.permute.xlu0 %4724
      %vm4727 = vcmask 259077
      %4728 = vst.msk [vmem:[#allocation3] sm:$0x20] %vm4727, %v4725
      %v4729 = vrot.slane %v4710, 2
      %4730 = vrot.lane.b32.xlu0 %v4729, 32
      %v4731 = vpop.permute.xlu0 %4730
      %v4732 = vsel %vm4297, %v4731, 0
      %4734 = vmatpush.msra.mxu0 0.0
      %4735 = vmatpush.msra.mxu0 0.0
      %4736 = vmatpush.msra.mxu0 0.0
      %4737 = vmatpush.msra.mxu0 0.0
      %4738 = vmatpush.msra.mxu0 0.0
      %4739 = vmatpush.msra.mxu0 0.0
      %4740 = vmatpush.msra.mxu0 0.0
      %4741 = vmatpush.msra.mxu0 0.0
      %4742 = vmatpush.msra.mxu0 0.0
      %4743 = vmatpush.msra.mxu0 0.0
      %4744 = vmatpush.msra.mxu0 0.0
      %4745 = vmatpush.msra.mxu0 0.0
      %4746 = vmatpush.msra.mxu0 %v4292
      %4747 = vmatpush.msra.mxu0 %v4291
      %4748 = vmatpush.msra.mxu0 %v4290
      %4749 = vmatpush.msra.mxu0 %v4289
      %4750 = vmatmul.f32.gmra.mxu0 %v4732
      %v4751 = vpop.f32.mrf.mxu0
      %v4752 = vadd.f32 0.0, %v4751
      %4753 = vdwg.mxu0
      %v4755 = vrot.slane %v4752, 5
      %v4757 = vadd.f32 %v4266, %v4755
      %v4758 = vrot.slane %v4716, 5
      %4759 = vrot.lane.b32.xlu0 %v4758, 32
      %v4760 = vpop.permute.xlu0 %4759
      %v4761 = vsel %vm4297, %v4760, 0
      %4763 = vmatpush.msra.mxu0 0.0
      %4764 = vmatpush.msra.mxu0 0.0
      %4765 = vmatpush.msra.mxu0 0.0
      %4766 = vmatpush.msra.mxu0 0.0
      %4767 = vmatpush.msra.mxu0 0.0
      %4768 = vmatpush.msra.mxu0 0.0
      %4769 = vmatpush.msra.mxu0 0.0
      %4770 = vmatpush.msra.mxu0 0.0
      %4771 = vmatpush.msra.mxu0 0.0
      %4772 = vmatpush.msra.mxu0 0.0
      %4773 = vmatpush.msra.mxu0 0.0
      %4774 = vmatpush.msra.mxu0 0.0
      %4775 = vmatpush.msra.mxu0 %v4296
      %4776 = vmatpush.msra.mxu0 %v4295
      %4777 = vmatpush.msra.mxu0 %v4294
      %4778 = vmatpush.msra.mxu0 %v4293
      %4779 = vmatmul.f32.gmra.mxu0 %v4761
      %v4780 = vpop.f32.mrf.mxu0
      %v4781 = vadd.f32 0.0, %v4780
      %4782 = vdwg.mxu0
      %v4784 = vrot.slane %v4781, 4
      %v4786 = vadd.f32 %v4287, %v4784
      %v4787 = vxor.u32 %v4757, 2147483648
      %v4788 = vmul.f32 %v4787, 1.442695
      %v4789 = vpow.pop %v4788
      %v4790 = vadd.f32 %v4789, 1.0
      %v4791 = vrcp.pop %v4790
      %v4792 = vmul.f32 %v4790, %v4791
      %v4793 = vsub.f32 1.0, %v4792
      %v4794 = vmul.f32 %v4791, %v4793
      %v4795 = vadd.f32 %v4791, %v4794
      %vm4796 = vweird.f32 %v4790
      %vm4797 = vweird.f32 %v4791
      %vm4798 = vmor %vm4796, %vm4797
      %v4799 = vsel %vm4798, %v4791, %v4795
      %v4800 = vand.u32 2147483647, %v4790
      %vm4801 = vcmp.eq.f32.partialorder %v4800, 8.507059e+37
      %v4802 = vand.u32 %v4790, 2147483648
      %v4803 = vor.u32 1.1754944e-38, %v4802
      %v4804 = vsel %vm4801, %v4803, %v4799
      %v4805 = vmul.f32 1.0, %v4804
      %v4806 = vtanh.pop %v4757
      %v4807 = vxor.u32 %v4786, 2147483648
      %v4808 = vmul.f32 %v4807, 1.442695
      %v4809 = vpow.pop %v4808
      %v4810 = vadd.f32 %v4809, 1.0
      %v4811 = vrcp.pop %v4810
      %v4812 = vmul.f32 %v4810, %v4811
      %v4813 = vsub.f32 1.0, %v4812
      %v4814 = vmul.f32 %v4811, %v4813
      %v4815 = vadd.f32 %v4811, %v4814
      %vm4816 = vweird.f32 %v4810
      %vm4817 = vweird.f32 %v4811
      %vm4818 = vmor %vm4816, %vm4817
      %v4819 = vsel %vm4818, %v4811, %v4815
      %v4820 = vand.u32 2147483647, %v4810
      %vm4821 = vcmp.eq.f32.partialorder %v4820, 8.507059e+37
      %v4822 = vand.u32 %v4810, 2147483648
      %v4823 = vor.u32 1.1754944e-38, %v4822
      %v4824 = vsel %vm4821, %v4823, %v4819
      %v4825 = vmul.f32 1.0, %v4824
      %v4826 = vtanh.pop %v4786
      %v4828 = vrot.slane %v4690, 7
      %v4830 = vmul.f32 %v4805, %v4828
      %4832 = vrot.lane.b32.xlu0 %v4806, 64
      %v4833 = vpop.permute.xlu0 %4832
      %v4835 = vmul.f32 %v4805, %v4833
      %4837 = vrot.lane.b32.xlu0 %v4835, 32
      %v4838 = vpop.permute.xlu0 %4837
      %v4840 = vadd.f32 %v4830, %v4838
      %v4842 = vrot.slane %v4704, 1
      %v4844 = vmul.f32 %v4825, %v4842
      %4846 = vrot.lane.b32.xlu0 %v4826, 64
      %v4847 = vpop.permute.xlu0 %4846
      %v4849 = vmul.f32 %v4825, %v4847
      %4851 = vrot.lane.b32.xlu0 %v4849, 32
      %v4852 = vpop.permute.xlu0 %4851
      %v4854 = vadd.f32 %v4844, %v4852
      %v4855 = vtanh.pop %v4840
      %4857 = vrot.lane.b32.xlu0 %v4855, 64
      %v4858 = vpop.permute.xlu0 %4857
      %v4860 = vmul.f32 %v4805, %v4858
      %v4861 = vtanh.pop %v4854
      %4863 = vrot.lane.b32.xlu0 %v4861, 64
      %v4864 = vpop.permute.xlu0 %4863
      %v4866 = vmul.f32 %v4825, %v4864
      %4868 = vrot.lane.b32.xlu0 %v4860, 32
      %v4869 = vpop.permute.xlu0 %4868
      %vm4871 = vcmask 257027
      %4872 = vst.msk [vmem:[#allocation2] sm:$0x8] %vm4871, %v4869
      %4874 = vrot.lane.b32.xlu0 %v4866, 32
      %v4875 = vpop.permute.xlu0 %4874
      %vm4877 = vcmask 258052
      %4878 = vst.msk [vmem:[#allocation3] sm:$0x10] %vm4877, %v4875
      %v4879 = vrot.slane %v4860, 3
      %4880 = vrot.lane.b32.xlu0 %v4879, 32
      %v4881 = vpop.permute.xlu0 %4880
      %v4882 = vsel %vm4297, %v4881, 0
      %4884 = vmatpush.msra.mxu0 0.0
      %4885 = vmatpush.msra.mxu0 0.0
      %4886 = vmatpush.msra.mxu0 0.0
      %4887 = vmatpush.msra.mxu0 0.0
      %4888 = vmatpush.msra.mxu0 0.0
      %4889 = vmatpush.msra.mxu0 0.0
      %4890 = vmatpush.msra.mxu0 0.0
      %4891 = vmatpush.msra.mxu0 0.0
      %4892 = vmatpush.msra.mxu0 0.0
      %4893 = vmatpush.msra.mxu0 0.0
      %4894 = vmatpush.msra.mxu0 0.0
      %4895 = vmatpush.msra.mxu0 0.0
      %4896 = vmatpush.msra.mxu0 %v4292
      %4897 = vmatpush.msra.mxu0 %v4291
      %4898 = vmatpush.msra.mxu0 %v4290
      %4899 = vmatpush.msra.mxu0 %v4289
      %4900 = vmatmul.f32.gmra.mxu0 %v4882
      %v4901 = vpop.f32.mrf.mxu0
      %v4902 = vadd.f32 0.0, %v4901
      %4903 = vdwg.mxu0
      %v4905 = vrot.slane %v4902, 4
      %v4907 = vadd.f32 %v4266, %v4905
      %v4908 = vrot.slane %v4866, 4
      %4909 = vrot.lane.b32.xlu0 %v4908, 32
      %v4910 = vpop.permute.xlu0 %4909
      %v4911 = vsel %vm4297, %v4910, 0
      %4913 = vmatpush.msra.mxu0 0.0
      %4914 = vmatpush.msra.mxu0 0.0
      %4915 = vmatpush.msra.mxu0 0.0
      %4916 = vmatpush.msra.mxu0 0.0
      %4917 = vmatpush.msra.mxu0 0.0
      %4918 = vmatpush.msra.mxu0 0.0
      %4919 = vmatpush.msra.mxu0 0.0
      %4920 = vmatpush.msra.mxu0 0.0
      %4921 = vmatpush.msra.mxu0 0.0
      %4922 = vmatpush.msra.mxu0 0.0
      %4923 = vmatpush.msra.mxu0 0.0
      %4924 = vmatpush.msra.mxu0 0.0
      %4925 = vmatpush.msra.mxu0 %v4296
      %4926 = vmatpush.msra.mxu0 %v4295
      %4927 = vmatpush.msra.mxu0 %v4294
      %4928 = vmatpush.msra.mxu0 %v4293
      %4929 = vmatmul.f32.gmra.mxu0 %v4911
      %v4930 = vpop.f32.mrf.mxu0
      %v4931 = vadd.f32 0.0, %v4930
      %4932 = vdwg.mxu0
      %v4934 = vrot.slane %v4931, 5
      %v4936 = vadd.f32 %v4287, %v4934
      %v4937 = vxor.u32 %v4907, 2147483648
      %v4938 = vmul.f32 %v4937, 1.442695
      %v4939 = vpow.pop %v4938
      %v4940 = vadd.f32 %v4939, 1.0
      %v4941 = vrcp.pop %v4940
      %v4942 = vmul.f32 %v4940, %v4941
      %v4943 = vsub.f32 1.0, %v4942
      %v4944 = vmul.f32 %v4941, %v4943
      %v4945 = vadd.f32 %v4941, %v4944
      %vm4946 = vweird.f32 %v4940
      %vm4947 = vweird.f32 %v4941
      %vm4948 = vmor %vm4946, %vm4947
      %v4949 = vsel %vm4948, %v4941, %v4945
      %v4950 = vand.u32 2147483647, %v4940
      %vm4951 = vcmp.eq.f32.partialorder %v4950, 8.507059e+37
      %v4952 = vand.u32 %v4940, 2147483648
      %v4953 = vor.u32 1.1754944e-38, %v4952
      %v4954 = vsel %vm4951, %v4953, %v4949
      %v4955 = vmul.f32 1.0, %v4954
      %v4956 = vtanh.pop %v4907
      %v4957 = vxor.u32 %v4936, 2147483648
      %v4958 = vmul.f32 %v4957, 1.442695
      %v4959 = vpow.pop %v4958
      %v4960 = vadd.f32 %v4959, 1.0
      %v4961 = vrcp.pop %v4960
      %v4962 = vmul.f32 %v4960, %v4961
      %v4963 = vsub.f32 1.0, %v4962
      %v4964 = vmul.f32 %v4961, %v4963
      %v4965 = vadd.f32 %v4961, %v4964
      %vm4966 = vweird.f32 %v4960
      %vm4967 = vweird.f32 %v4961
      %vm4968 = vmor %vm4966, %vm4967
      %v4969 = vsel %vm4968, %v4961, %v4965
      %v4970 = vand.u32 2147483647, %v4960
      %vm4971 = vcmp.eq.f32.partialorder %v4970, 8.507059e+37
      %v4972 = vand.u32 %v4960, 2147483648
      %v4973 = vor.u32 1.1754944e-38, %v4972
      %v4974 = vsel %vm4971, %v4973, %v4969
      %v4975 = vmul.f32 1.0, %v4974
      %v4976 = vtanh.pop %v4936
      %v4978 = vrot.slane %v4840, 7
      %v4980 = vmul.f32 %v4955, %v4978
      %4982 = vrot.lane.b32.xlu0 %v4956, 64
      %v4983 = vpop.permute.xlu0 %4982
      %v4985 = vmul.f32 %v4955, %v4983
      %4987 = vrot.lane.b32.xlu0 %v4985, 32
      %v4988 = vpop.permute.xlu0 %4987
      %v4990 = vadd.f32 %v4980, %v4988
      %v4992 = vrot.slane %v4854, 1
      %v4994 = vmul.f32 %v4975, %v4992
      %4996 = vrot.lane.b32.xlu0 %v4976, 64
      %v4997 = vpop.permute.xlu0 %4996
      %v4999 = vmul.f32 %v4975, %v4997
      %5001 = vrot.lane.b32.xlu0 %v4999, 32
      %v5002 = vpop.permute.xlu0 %5001
      %v5004 = vadd.f32 %v4994, %v5002
      %v5005 = vtanh.pop %v4990
      %5007 = vrot.lane.b32.xlu0 %v5005, 64
      %v5008 = vpop.permute.xlu0 %5007
      %v5010 = vmul.f32 %v4955, %v5008
      %v5011 = vtanh.pop %v5004
      %5013 = vrot.lane.b32.xlu0 %v5011, 64
      %v5014 = vpop.permute.xlu0 %5013
      %v5016 = vmul.f32 %v4975, %v5014
      %5018 = vrot.lane.b32.xlu0 %v5010, 32
      %v5019 = vpop.permute.xlu0 %5018
      %5021 = vst.msk [vmem:[#allocation2] sm:$0x10] %vm4877, %v5019
      %5023 = vrot.lane.b32.xlu0 %v5016, 32
      %v5024 = vpop.permute.xlu0 %5023
      %5026 = vst.msk [vmem:[#allocation3] sm:$0x8] %vm4871, %v5024
      %v5027 = vrot.slane %v5010, 4
      %5028 = vrot.lane.b32.xlu0 %v5027, 32
      %v5029 = vpop.permute.xlu0 %5028
      %v5030 = vsel %vm4297, %v5029, 0
      %5032 = vmatpush.msra.mxu0 0.0
      %5033 = vmatpush.msra.mxu0 0.0
      %5034 = vmatpush.msra.mxu0 0.0
      %5035 = vmatpush.msra.mxu0 0.0
      %5036 = vmatpush.msra.mxu0 0.0
      %5037 = vmatpush.msra.mxu0 0.0
      %5038 = vmatpush.msra.mxu0 0.0
      %5039 = vmatpush.msra.mxu0 0.0
      %5040 = vmatpush.msra.mxu0 0.0
      %5041 = vmatpush.msra.mxu0 0.0
      %5042 = vmatpush.msra.mxu0 0.0
      %5043 = vmatpush.msra.mxu0 0.0
      %5044 = vmatpush.msra.mxu0 %v4292
      %5045 = vmatpush.msra.mxu0 %v4291
      %5046 = vmatpush.msra.mxu0 %v4290
      %5047 = vmatpush.msra.mxu0 %v4289
      %5048 = vmatmul.f32.gmra.mxu0 %v5030
      %v5049 = vpop.f32.mrf.mxu0
      %v5050 = vadd.f32 0.0, %v5049
      %5051 = vdwg.mxu0
      %v5053 = vrot.slane %v5050, 3
      %v5055 = vadd.f32 %v4266, %v5053
      %v5056 = vrot.slane %v5016, 3
      %5057 = vrot.lane.b32.xlu0 %v5056, 32
      %v5058 = vpop.permute.xlu0 %5057
      %v5059 = vsel %vm4297, %v5058, 0
      %5061 = vmatpush.msra.mxu0 0.0
      %5062 = vmatpush.msra.mxu0 0.0
      %5063 = vmatpush.msra.mxu0 0.0
      %5064 = vmatpush.msra.mxu0 0.0
      %5065 = vmatpush.msra.mxu0 0.0
      %5066 = vmatpush.msra.mxu0 0.0
      %5067 = vmatpush.msra.mxu0 0.0
      %5068 = vmatpush.msra.mxu0 0.0
      %5069 = vmatpush.msra.mxu0 0.0
      %5070 = vmatpush.msra.mxu0 0.0
      %5071 = vmatpush.msra.mxu0 0.0
      %5072 = vmatpush.msra.mxu0 0.0
      %5073 = vmatpush.msra.mxu0 %v4296
      %5074 = vmatpush.msra.mxu0 %v4295
      %5075 = vmatpush.msra.mxu0 %v4294
      %5076 = vmatpush.msra.mxu0 %v4293
      %5077 = vmatmul.f32.gmra.mxu0 %v5059
      %v5078 = vpop.f32.mrf.mxu0
      %v5079 = vadd.f32 0.0, %v5078
      %5080 = vdwg.mxu0
      %v5082 = vrot.slane %v5079, 6
      %v5084 = vadd.f32 %v4287, %v5082
      %v5085 = vxor.u32 %v5055, 2147483648
      %v5086 = vmul.f32 %v5085, 1.442695
      %v5087 = vpow.pop %v5086
      %v5088 = vadd.f32 %v5087, 1.0
      %v5089 = vrcp.pop %v5088
      %v5090 = vmul.f32 %v5088, %v5089
      %v5091 = vsub.f32 1.0, %v5090
      %v5092 = vmul.f32 %v5089, %v5091
      %v5093 = vadd.f32 %v5089, %v5092
      %vm5094 = vweird.f32 %v5088
      %vm5095 = vweird.f32 %v5089
      %vm5096 = vmor %vm5094, %vm5095
      %v5097 = vsel %vm5096, %v5089, %v5093
      %v5098 = vand.u32 2147483647, %v5088
      %vm5099 = vcmp.eq.f32.partialorder %v5098, 8.507059e+37
      %v5100 = vand.u32 %v5088, 2147483648
      %v5101 = vor.u32 1.1754944e-38, %v5100
      %v5102 = vsel %vm5099, %v5101, %v5097
      %v5103 = vmul.f32 1.0, %v5102
      %v5104 = vtanh.pop %v5055
      %v5105 = vxor.u32 %v5084, 2147483648
      %v5106 = vmul.f32 %v5105, 1.442695
      %v5107 = vpow.pop %v5106
      %v5108 = vadd.f32 %v5107, 1.0
      %v5109 = vrcp.pop %v5108
      %v5110 = vmul.f32 %v5108, %v5109
      %v5111 = vsub.f32 1.0, %v5110
      %v5112 = vmul.f32 %v5109, %v5111
      %v5113 = vadd.f32 %v5109, %v5112
      %vm5114 = vweird.f32 %v5108
      %vm5115 = vweird.f32 %v5109
      %vm5116 = vmor %vm5114, %vm5115
      %v5117 = vsel %vm5116, %v5109, %v5113
      %v5118 = vand.u32 2147483647, %v5108
      %vm5119 = vcmp.eq.f32.partialorder %v5118, 8.507059e+37
      %v5120 = vand.u32 %v5108, 2147483648
      %v5121 = vor.u32 1.1754944e-38, %v5120
      %v5122 = vsel %vm5119, %v5121, %v5117
      %v5123 = vmul.f32 1.0, %v5122
      %v5124 = vtanh.pop %v5084
      %v5126 = vrot.slane %v4990, 7
      %v5128 = vmul.f32 %v5103, %v5126
      %5130 = vrot.lane.b32.xlu0 %v5104, 64
      %v5131 = vpop.permute.xlu0 %5130
      %v5133 = vmul.f32 %v5103, %v5131
      %5135 = vrot.lane.b32.xlu0 %v5133, 32
      %v5136 = vpop.permute.xlu0 %5135
      %v5138 = vadd.f32 %v5128, %v5136
      %v5140 = vrot.slane %v5004, 1
      %v5142 = vmul.f32 %v5123, %v5140
      %5144 = vrot.lane.b32.xlu0 %v5124, 64
      %v5145 = vpop.permute.xlu0 %5144
      %v5147 = vmul.f32 %v5123, %v5145
      %5149 = vrot.lane.b32.xlu0 %v5147, 32
      %v5150 = vpop.permute.xlu0 %5149
      %v5152 = vadd.f32 %v5142, %v5150
      %v5153 = vtanh.pop %v5138
      %5155 = vrot.lane.b32.xlu0 %v5153, 64
      %v5156 = vpop.permute.xlu0 %5155
      %v5158 = vmul.f32 %v5103, %v5156
      %v5159 = vtanh.pop %v5152
      %5161 = vrot.lane.b32.xlu0 %v5159, 64
      %v5162 = vpop.permute.xlu0 %5161
      %v5164 = vmul.f32 %v5123, %v5162
      %5166 = vrot.lane.b32.xlu0 %v5158, 32
      %v5167 = vpop.permute.xlu0 %5166
      %5169 = vst.msk [vmem:[#allocation2] sm:$0x20] %vm4727, %v5167
      %5171 = vrot.lane.b32.xlu0 %v5164, 32
      %v5172 = vpop.permute.xlu0 %5171
      %5174 = vst.msk [vmem:[#allocation3] sm:$0x4] %vm4721, %v5172
      %v5175 = vrot.slane %v5158, 5
      %5176 = vrot.lane.b32.xlu0 %v5175, 32
      %v5177 = vpop.permute.xlu0 %5176
      %v5178 = vsel %vm4297, %v5177, 0
      %5180 = vmatpush.msra.mxu0 0.0
      %5181 = vmatpush.msra.mxu0 0.0
      %5182 = vmatpush.msra.mxu0 0.0
      %5183 = vmatpush.msra.mxu0 0.0
      %5184 = vmatpush.msra.mxu0 0.0
      %5185 = vmatpush.msra.mxu0 0.0
      %5186 = vmatpush.msra.mxu0 0.0
      %5187 = vmatpush.msra.mxu0 0.0
      %5188 = vmatpush.msra.mxu0 0.0
      %5189 = vmatpush.msra.mxu0 0.0
      %5190 = vmatpush.msra.mxu0 0.0
      %5191 = vmatpush.msra.mxu0 0.0
      %5192 = vmatpush.msra.mxu0 %v4292
      %5193 = vmatpush.msra.mxu0 %v4291
      %5194 = vmatpush.msra.mxu0 %v4290
      %5195 = vmatpush.msra.mxu0 %v4289
      %5196 = vmatmul.f32.gmra.mxu0 %v5178
      %v5197 = vpop.f32.mrf.mxu0
      %v5198 = vadd.f32 0.0, %v5197
      %5199 = vdwg.mxu0
      %v5201 = vrot.slane %v5198, 2
      %v5203 = vadd.f32 %v4266, %v5201
      %v5204 = vrot.slane %v5164, 2
      %5205 = vrot.lane.b32.xlu0 %v5204, 32
      %v5206 = vpop.permute.xlu0 %5205
      %v5207 = vsel %vm4297, %v5206, 0
      %5209 = vmatpush.msra.mxu0 0.0
      %5210 = vmatpush.msra.mxu0 0.0
      %5211 = vmatpush.msra.mxu0 0.0
      %5212 = vmatpush.msra.mxu0 0.0
      %5213 = vmatpush.msra.mxu0 0.0
      %5214 = vmatpush.msra.mxu0 0.0
      %5215 = vmatpush.msra.mxu0 0.0
      %5216 = vmatpush.msra.mxu0 0.0
      %5217 = vmatpush.msra.mxu0 0.0
      %5218 = vmatpush.msra.mxu0 0.0
      %5219 = vmatpush.msra.mxu0 0.0
      %5220 = vmatpush.msra.mxu0 0.0
      %5221 = vmatpush.msra.mxu0 %v4296
      %5222 = vmatpush.msra.mxu0 %v4295
      %5223 = vmatpush.msra.mxu0 %v4294
      %5224 = vmatpush.msra.mxu0 %v4293
      %5225 = vmatmul.f32.gmra.mxu0 %v5207
      %v5226 = vpop.f32.mrf.mxu0
      %v5227 = vadd.f32 0.0, %v5226
      %5228 = vdwg.mxu0
      %v5230 = vrot.slane %v5227, 7
      %v5232 = vadd.f32 %v4287, %v5230
      %v5233 = vxor.u32 %v5203, 2147483648
      %v5234 = vmul.f32 %v5233, 1.442695
      %v5235 = vpow.pop %v5234
      %v5236 = vadd.f32 %v5235, 1.0
      %v5237 = vrcp.pop %v5236
      %v5238 = vmul.f32 %v5236, %v5237
      %v5239 = vsub.f32 1.0, %v5238
      %v5240 = vmul.f32 %v5237, %v5239
      %v5241 = vadd.f32 %v5237, %v5240
      %vm5242 = vweird.f32 %v5236
      %vm5243 = vweird.f32 %v5237
      %vm5244 = vmor %vm5242, %vm5243
      %v5245 = vsel %vm5244, %v5237, %v5241
      %v5246 = vand.u32 2147483647, %v5236
      %vm5247 = vcmp.eq.f32.partialorder %v5246, 8.507059e+37
      %v5248 = vand.u32 %v5236, 2147483648
      %v5249 = vor.u32 1.1754944e-38, %v5248
      %v5250 = vsel %vm5247, %v5249, %v5245
      %v5251 = vmul.f32 1.0, %v5250
      %v5252 = vtanh.pop %v5203
      %v5253 = vxor.u32 %v5232, 2147483648
      %v5254 = vmul.f32 %v5253, 1.442695
      %v5255 = vpow.pop %v5254
      %v5256 = vadd.f32 %v5255, 1.0
      %v5257 = vrcp.pop %v5256
      %v5258 = vmul.f32 %v5256, %v5257
      %v5259 = vsub.f32 1.0, %v5258
      %v5260 = vmul.f32 %v5257, %v5259
      %v5261 = vadd.f32 %v5257, %v5260
      %vm5262 = vweird.f32 %v5256
      %vm5263 = vweird.f32 %v5257
      %vm5264 = vmor %vm5262, %vm5263
      %v5265 = vsel %vm5264, %v5257, %v5261
      %v5266 = vand.u32 2147483647, %v5256
      %vm5267 = vcmp.eq.f32.partialorder %v5266, 8.507059e+37
      %v5268 = vand.u32 %v5256, 2147483648
      %v5269 = vor.u32 1.1754944e-38, %v5268
      %v5270 = vsel %vm5267, %v5269, %v5265
      %v5271 = vmul.f32 1.0, %v5270
      %v5272 = vtanh.pop %v5232
      %v5274 = vrot.slane %v5138, 7
      %v5276 = vmul.f32 %v5251, %v5274
      %5278 = vrot.lane.b32.xlu0 %v5252, 64
      %v5279 = vpop.permute.xlu0 %5278
      %v5281 = vmul.f32 %v5251, %v5279
      %5283 = vrot.lane.b32.xlu0 %v5281, 32
      %v5284 = vpop.permute.xlu0 %5283
      %v5286 = vadd.f32 %v5276, %v5284
      %v5288 = vrot.slane %v5152, 1
      %v5290 = vmul.f32 %v5271, %v5288
      %5292 = vrot.lane.b32.xlu0 %v5272, 64
      %v5293 = vpop.permute.xlu0 %5292
      %v5295 = vmul.f32 %v5271, %v5293
      %5297 = vrot.lane.b32.xlu0 %v5295, 32
      %v5298 = vpop.permute.xlu0 %5297
      %v5300 = vadd.f32 %v5290, %v5298
      %v5301 = vtanh.pop %v5286
      %5303 = vrot.lane.b32.xlu0 %v5301, 64
      %v5304 = vpop.permute.xlu0 %5303
      %v5306 = vmul.f32 %v5251, %v5304
      %v5307 = vtanh.pop %v5300
      %5309 = vrot.lane.b32.xlu0 %v5307, 64
      %v5310 = vpop.permute.xlu0 %5309
      %v5312 = vmul.f32 %v5271, %v5310
      %5314 = vrot.lane.b32.xlu0 %v5306, 32
      %v5315 = vpop.permute.xlu0 %5314
      %5317 = vst.msk [vmem:[#allocation2] sm:$0x40] %vm4577, %v5315
      %5319 = vrot.lane.b32.xlu0 %v5312, 32
      %v5320 = vpop.permute.xlu0 %5319
      %5322 = vst.msk [vmem:[#allocation3] sm:$0x2] %vm4571, %v5320
      %v5323 = vrot.slane %v5306, 6
      %5324 = vrot.lane.b32.xlu0 %v5323, 32
      %v5325 = vpop.permute.xlu0 %5324
      %v5326 = vsel %vm4297, %v5325, 0
      %5328 = vmatpush.msra.mxu0 0.0
      %5329 = vmatpush.msra.mxu0 0.0
      %5330 = vmatpush.msra.mxu0 0.0
      %5331 = vmatpush.msra.mxu0 0.0
      %5332 = vmatpush.msra.mxu0 0.0
      %5333 = vmatpush.msra.mxu0 0.0
      %5334 = vmatpush.msra.mxu0 0.0
      %5335 = vmatpush.msra.mxu0 0.0
      %5336 = vmatpush.msra.mxu0 0.0
      %5337 = vmatpush.msra.mxu0 0.0
      %5338 = vmatpush.msra.mxu0 0.0
      %5339 = vmatpush.msra.mxu0 0.0
      %5340 = vmatpush.msra.mxu0 %v4292
      %5341 = vmatpush.msra.mxu0 %v4291
      %5342 = vmatpush.msra.mxu0 %v4290
      %5343 = vmatpush.msra.mxu0 %v4289
      %5344 = vmatmul.f32.gmra.mxu0 %v5326
      %v5345 = vpop.f32.mrf.mxu0
      %v5346 = vadd.f32 0.0, %v5345
      %5347 = vdwg.mxu0
      %v5349 = vrot.slane %v5346, 1
      %v5351 = vadd.f32 %v4266, %v5349
      %v5352 = vrot.slane %v5312, 1
      %5353 = vrot.lane.b32.xlu0 %v5352, 32
      %v5354 = vpop.permute.xlu0 %5353
      %v5355 = vsel %vm4297, %v5354, 0
      %5357 = vmatpush.msra.mxu0 0.0
      %5358 = vmatpush.msra.mxu0 0.0
      %5359 = vmatpush.msra.mxu0 0.0
      %5360 = vmatpush.msra.mxu0 0.0
      %5361 = vmatpush.msra.mxu0 0.0
      %5362 = vmatpush.msra.mxu0 0.0
      %5363 = vmatpush.msra.mxu0 0.0
      %5364 = vmatpush.msra.mxu0 0.0
      %5365 = vmatpush.msra.mxu0 0.0
      %5366 = vmatpush.msra.mxu0 0.0
      %5367 = vmatpush.msra.mxu0 0.0
      %5368 = vmatpush.msra.mxu0 0.0
      %5369 = vmatpush.msra.mxu0 %v4296
      %5370 = vmatpush.msra.mxu0 %v4295
      %5371 = vmatpush.msra.mxu0 %v4294
      %5372 = vmatpush.msra.mxu0 %v4293
      %5373 = vmatmul.f32.gmra.mxu0 %v5355
      %v5374 = vpop.f32.mrf.mxu0
      %v5375 = vadd.f32 0.0, %v5374
      %5376 = vdwg.mxu0
      %v5377 = vadd.f32 %v4287, %v5375
      %v5378 = vxor.u32 %v5351, 2147483648
      %v5379 = vmul.f32 %v5378, 1.442695
      %v5380 = vpow.pop %v5379
      %v5381 = vadd.f32 %v5380, 1.0
      %v5382 = vrcp.pop %v5381
      %v5383 = vmul.f32 %v5381, %v5382
      %v5384 = vsub.f32 1.0, %v5383
      %v5385 = vmul.f32 %v5382, %v5384
      %v5386 = vadd.f32 %v5382, %v5385
      %vm5387 = vweird.f32 %v5381
      %vm5388 = vweird.f32 %v5382
      %vm5389 = vmor %vm5387, %vm5388
      %v5390 = vsel %vm5389, %v5382, %v5386
      %v5391 = vand.u32 2147483647, %v5381
      %vm5392 = vcmp.eq.f32.partialorder %v5391, 8.507059e+37
      %v5393 = vand.u32 %v5381, 2147483648
      %v5394 = vor.u32 1.1754944e-38, %v5393
      %v5395 = vsel %vm5392, %v5394, %v5390
      %v5396 = vmul.f32 1.0, %v5395
      %v5397 = vtanh.pop %v5351
      %v5398 = vxor.u32 %v5377, 2147483648
      %v5399 = vmul.f32 %v5398, 1.442695
      %v5400 = vpow.pop %v5399
      %v5401 = vadd.f32 %v5400, 1.0
      %v5402 = vrcp.pop %v5401
      %v5403 = vmul.f32 %v5401, %v5402
      %v5404 = vsub.f32 1.0, %v5403
      %v5405 = vmul.f32 %v5402, %v5404
      %v5406 = vadd.f32 %v5402, %v5405
      %vm5407 = vweird.f32 %v5401
      %vm5408 = vweird.f32 %v5402
      %vm5409 = vmor %vm5407, %vm5408
      %v5410 = vsel %vm5409, %v5402, %v5406
      %v5411 = vand.u32 2147483647, %v5401
      %vm5412 = vcmp.eq.f32.partialorder %v5411, 8.507059e+37
      %v5413 = vand.u32 %v5401, 2147483648
      %v5414 = vor.u32 1.1754944e-38, %v5413
      %v5415 = vsel %vm5412, %v5414, %v5410
      %v5416 = vmul.f32 1.0, %v5415
      %v5417 = vtanh.pop %v5377
      %v5419 = vrot.slane %v5286, 7
      %v5421 = vmul.f32 %v5396, %v5419
      %5423 = vrot.lane.b32.xlu0 %v5397, 64
      %v5424 = vpop.permute.xlu0 %5423
      %v5426 = vmul.f32 %v5396, %v5424
      %5428 = vrot.lane.b32.xlu0 %v5426, 32
      %v5429 = vpop.permute.xlu0 %5428
      %v5431 = vadd.f32 %v5421, %v5429
      %v5433 = vrot.slane %v5300, 1
      %v5435 = vmul.f32 %v5416, %v5433
      %5437 = vrot.lane.b32.xlu0 %v5417, 64
      %v5438 = vpop.permute.xlu0 %5437
      %v5440 = vmul.f32 %v5416, %v5438
      %5442 = vrot.lane.b32.xlu0 %v5440, 32
      %v5443 = vpop.permute.xlu0 %5442
      %v5445 = vadd.f32 %v5435, %v5443
      %v5446 = vtanh.pop %v5431
      %5448 = vrot.lane.b32.xlu0 %v5446, 64
      %v5449 = vpop.permute.xlu0 %5448
      %v5451 = vmul.f32 %v5396, %v5449
      %v5452 = vtanh.pop %v5445
      %5454 = vrot.lane.b32.xlu0 %v5452, 64
      %v5455 = vpop.permute.xlu0 %5454
      %v5457 = vmul.f32 %v5416, %v5455
      %5459 = vrot.lane.b32.xlu0 %v5451, 32
      %v5460 = vpop.permute.xlu0 %5459
      %5462 = vst.msk [vmem:[#allocation2] sm:$0x80] %vm4430, %v5460
      %5464 = vrot.lane.b32.xlu0 %v5457, 32
      %v5465 = vpop.permute.xlu0 %5464
      %5467 = vst.msk [vmem:[#allocation3] sm:$0x1] %vm4424, %v5465
      %v5468 = vld [vmem:[#allocation2] sm:$0xff]
      %v5469 = vld [vmem:[#allocation3] sm:$0xff]
      %v5470 = vld [vmem:[%s3 + $0x50] sm:$0xff]
      %v5471 = vld [vmem:[%s3 + $0x58] sm:$0xff]
      %v5472 = vld [vmem:[%s3 + $0x60] sm:$0xff]
      %v5473 = vld [vmem:[%s3 + $0x68] sm:$0xff]
      %v5474 = vld [vmem:[%s3 + $0x70] sm:$0xff]
      %v5475 = vld [vmem:[%s3 + $0x78] sm:$0xff]
      %v5476 = vld [vmem:[%s3 + $0x80] sm:$0xff]
      %v5477 = vld [vmem:[%s3 + $0x88] sm:$0xff]
      %v5478 = vld [vmem:[%s2 + $0x1a] sm:$0x1]
      %v5480 = vsel %vm4297, %v5469, 0
      %5482 = vmatpush.msra.mxu0 0.0
      %5483 = vmatpush.msra.mxu0 0.0
      %5484 = vmatpush.msra.mxu0 0.0
      %5485 = vmatpush.msra.mxu0 0.0
      %5486 = vmatpush.msra.mxu0 0.0
      %5487 = vmatpush.msra.mxu0 0.0
      %5488 = vmatpush.msra.mxu0 0.0
      %5489 = vmatpush.msra.mxu0 0.0
      %5490 = vmatpush.msra.mxu0 0.0
      %5491 = vmatpush.msra.mxu0 0.0
      %5492 = vmatpush.msra.mxu0 0.0
      %5493 = vmatpush.msra.mxu0 0.0
      %5494 = vmatpush.msra.mxu0 %v5477
      %5495 = vmatpush.msra.mxu0 %v5476
      %5496 = vmatpush.msra.mxu0 %v5475
      %5497 = vmatpush.msra.mxu0 %v5474
      %5498 = vmatmul.f32.gmra.mxu0 %v5480
      %v5499 = vpop.f32.mrf.mxu0
      %v5500 = vadd.f32 0.0, %v5499
      %5501 = vdwg.mxu0
      %v5503 = vsel %vm4297, %v5468, 0
      %5505 = vmatpush.msra.mxu0 0.0
      %5506 = vmatpush.msra.mxu0 0.0
      %5507 = vmatpush.msra.mxu0 0.0
      %5508 = vmatpush.msra.mxu0 0.0
      %5509 = vmatpush.msra.mxu0 0.0
      %5510 = vmatpush.msra.mxu0 0.0
      %5511 = vmatpush.msra.mxu0 0.0
      %5512 = vmatpush.msra.mxu0 0.0
      %5513 = vmatpush.msra.mxu0 0.0
      %5514 = vmatpush.msra.mxu0 0.0
      %5515 = vmatpush.msra.mxu0 0.0
      %5516 = vmatpush.msra.mxu0 0.0
      %5517 = vmatpush.msra.mxu0 %v5473
      %5518 = vmatpush.msra.mxu0 %v5472
      %5519 = vmatpush.msra.mxu0 %v5471
      %5520 = vmatpush.msra.mxu0 %v5470
      %5521 = vmatmul.f32.gmra.mxu0 %v5503
      %v5522 = vpop.f32.mrf.mxu0
      %v5523 = vadd.f32 %v5500, %v5522
      %5524 = vdwg.mxu0
      %v5525 = vperm.slane %v5478, 0
      %v5526 = vadd.f32 %v5523, %v5525
      %v5527 = vld [vmem:[%s3 + $0x90] sm:$0xff]
      %v5528 = vld [vmem:[%s3 + $0x98] sm:$0xff]
      %v5529 = vld [vmem:[%s3 + $0xa0] sm:$0xff]
      %v5530 = vld [vmem:[%s3 + $0xa8] sm:$0xff]
      %v5531 = vld [vmem:[%s3 + $0xb0] sm:$0xff]
      %v5532 = vld [vmem:[%s3 + $0xb8] sm:$0xff]
      %v5533 = vld [vmem:[%s3 + $0xc0] sm:$0xff]
      %v5534 = vld [vmem:[%s3 + $0xc8] sm:$0xff]
      %v5535 = vld [vmem:[%s2 + $0x1b] sm:$0x1]
      %5536 = vmatpush.msra.mxu0 0.0
      %5537 = vmatpush.msra.mxu0 0.0
      %5538 = vmatpush.msra.mxu0 0.0
      %5539 = vmatpush.msra.mxu0 0.0
      %5540 = vmatpush.msra.mxu0 0.0
      %5541 = vmatpush.msra.mxu0 0.0
      %5542 = vmatpush.msra.mxu0 0.0
      %5543 = vmatpush.msra.mxu0 0.0
      %5544 = vmatpush.msra.mxu0 0.0
      %5545 = vmatpush.msra.mxu0 0.0
      %5546 = vmatpush.msra.mxu0 0.0
      %5547 = vmatpush.msra.mxu0 0.0
      %5548 = vmatpush.msra.mxu0 %v5534
      %5549 = vmatpush.msra.mxu0 %v5533
      %5550 = vmatpush.msra.mxu0 %v5532
      %5551 = vmatpush.msra.mxu0 %v5531
      %5552 = vmatmul.f32.gmra.mxu0 %v5480
      %v5553 = vpop.f32.mrf.mxu0
      %v5554 = vadd.f32 0.0, %v5553
      %5555 = vdwg.mxu0
      %5556 = vmatpush.msra.mxu0 0.0
      %5557 = vmatpush.msra.mxu0 0.0
      %5558 = vmatpush.msra.mxu0 0.0
      %5559 = vmatpush.msra.mxu0 0.0
      %5560 = vmatpush.msra.mxu0 0.0
      %5561 = vmatpush.msra.mxu0 0.0
      %5562 = vmatpush.msra.mxu0 0.0
      %5563 = vmatpush.msra.mxu0 0.0
      %5564 = vmatpush.msra.mxu0 0.0
      %5565 = vmatpush.msra.mxu0 0.0
      %5566 = vmatpush.msra.mxu0 0.0
      %5567 = vmatpush.msra.mxu0 0.0
      %5568 = vmatpush.msra.mxu0 %v5530
      %5569 = vmatpush.msra.mxu0 %v5529
      %5570 = vmatpush.msra.mxu0 %v5528
      %5571 = vmatpush.msra.mxu0 %v5527
      %5572 = vmatmul.f32.gmra.mxu0 %v5503
      %v5573 = vpop.f32.mrf.mxu0
      %v5574 = vadd.f32 %v5554, %v5573
      %5575 = vdwg.mxu0
      %v5576 = vperm.slane %v5535, 0
      %v5577 = vadd.f32 %v5574, %v5576
      %v5578 = vld [vmem:[%s3 + $0x110] sm:$0xff]
      %v5579 = vld [vmem:[%s3 + $0x118] sm:$0xff]
      %v5580 = vld [vmem:[%s3 + $0x120] sm:$0xff]
      %v5581 = vld [vmem:[%s3 + $0x128] sm:$0xff]
      %v5582 = vld [vmem:[%s3 + $0x130] sm:$0xff]
      %v5583 = vld [vmem:[%s3 + $0x138] sm:$0xff]
      %v5584 = vld [vmem:[%s3 + $0x140] sm:$0xff]
      %v5585 = vld [vmem:[%s3 + $0x148] sm:$0xff]
      %5586 = vmatpush.msra.mxu0 0.0
      %5587 = vmatpush.msra.mxu0 0.0
      %5588 = vmatpush.msra.mxu0 0.0
      %5589 = vmatpush.msra.mxu0 0.0
      %5590 = vmatpush.msra.mxu0 0.0
      %5591 = vmatpush.msra.mxu0 0.0
      %5592 = vmatpush.msra.mxu0 0.0
      %5593 = vmatpush.msra.mxu0 0.0
      %5594 = vmatpush.msra.mxu0 0.0
      %5595 = vmatpush.msra.mxu0 0.0
      %5596 = vmatpush.msra.mxu0 0.0
      %5597 = vmatpush.msra.mxu0 0.0
      %5598 = vmatpush.msra.mxu0 %v5581
      %5599 = vmatpush.msra.mxu0 %v5580
      %5600 = vmatpush.msra.mxu0 %v5579
      %5601 = vmatpush.msra.mxu0 %v5578
      %5602 = vmatmul.f32.gmra.mxu0 %v4299
      %v5603 = vpop.f32.mrf.mxu0
      %v5604 = vadd.f32 0.0, %v5603
      %5605 = vdwg.mxu0
      %v5606 = vadd.f32 %v5526, %v5604
      %5607 = vmatpush.msra.mxu0 0.0
      %5608 = vmatpush.msra.mxu0 0.0
      %5609 = vmatpush.msra.mxu0 0.0
      %5610 = vmatpush.msra.mxu0 0.0
      %5611 = vmatpush.msra.mxu0 0.0
      %5612 = vmatpush.msra.mxu0 0.0
      %5613 = vmatpush.msra.mxu0 0.0
      %5614 = vmatpush.msra.mxu0 0.0
      %5615 = vmatpush.msra.mxu0 0.0
      %5616 = vmatpush.msra.mxu0 0.0
      %5617 = vmatpush.msra.mxu0 0.0
      %5618 = vmatpush.msra.mxu0 0.0
      %5619 = vmatpush.msra.mxu0 %v5585
      %5620 = vmatpush.msra.mxu0 %v5584
      %5621 = vmatpush.msra.mxu0 %v5583
      %5622 = vmatpush.msra.mxu0 %v5582
      %5623 = vmatmul.f32.gmra.mxu0 %v4299
      %v5624 = vpop.f32.mrf.mxu0
      %v5625 = vadd.f32 0.0, %v5624
      %5626 = vdwg.mxu0
      %v5628 = vrot.slane %v5625, 1
      %v5630 = vadd.f32 %v5577, %v5628
      %v5631 = vxor.u32 %v5606, 2147483648
      %v5632 = vmul.f32 %v5631, 1.442695
      %v5633 = vpow.pop %v5632
      %v5634 = vadd.f32 %v5633, 1.0
      %v5635 = vrcp.pop %v5634
      %v5636 = vmul.f32 %v5634, %v5635
      %v5637 = vsub.f32 1.0, %v5636
      %v5638 = vmul.f32 %v5635, %v5637
      %v5639 = vadd.f32 %v5635, %v5638
      %vm5640 = vweird.f32 %v5634
      %vm5641 = vweird.f32 %v5635
      %vm5642 = vmor %vm5640, %vm5641
      %v5643 = vsel %vm5642, %v5635, %v5639
      %v5644 = vand.u32 2147483647, %v5634
      %vm5645 = vcmp.eq.f32.partialorder %v5644, 8.507059e+37
      %v5646 = vand.u32 %v5634, 2147483648
      %v5647 = vor.u32 1.1754944e-38, %v5646
      %v5648 = vsel %vm5645, %v5647, %v5643
      %v5649 = vmul.f32 1.0, %v5648
      %v5650 = vtanh.pop %v5606
      %v5651 = vxor.u32 %v5630, 2147483648
      %v5652 = vmul.f32 %v5651, 1.442695
      %v5653 = vpow.pop %v5652
      %v5654 = vadd.f32 %v5653, 1.0
      %v5655 = vrcp.pop %v5654
      %v5656 = vmul.f32 %v5654, %v5655
      %v5657 = vsub.f32 1.0, %v5656
      %v5658 = vmul.f32 %v5655, %v5657
      %v5659 = vadd.f32 %v5655, %v5658
      %vm5660 = vweird.f32 %v5654
      %vm5661 = vweird.f32 %v5655
      %vm5662 = vmor %vm5660, %vm5661
      %v5663 = vsel %vm5662, %v5655, %v5659
      %v5664 = vand.u32 2147483647, %v5654
      %vm5665 = vcmp.eq.f32.partialorder %v5664, 8.507059e+37
      %v5666 = vand.u32 %v5654, 2147483648
      %v5667 = vor.u32 1.1754944e-38, %v5666
      %v5668 = vsel %vm5665, %v5667, %v5663
      %v5669 = vmul.f32 1.0, %v5668
      %v5670 = vtanh.pop %v5630
      %v5671 = vmul.f32 %v5649, 0.0
      %5673 = vrot.lane.b32.xlu0 %v5650, 64
      %v5674 = vpop.permute.xlu0 %5673
      %v5676 = vmul.f32 %v5649, %v5674
      %5678 = vrot.lane.b32.xlu0 %v5676, 32
      %v5679 = vpop.permute.xlu0 %5678
      %v5681 = vadd.f32 %v5671, %v5679
      %v5682 = vmul.f32 %v5669, 0.0
      %5684 = vrot.lane.b32.xlu0 %v5670, 64
      %v5685 = vpop.permute.xlu0 %5684
      %v5687 = vmul.f32 %v5669, %v5685
      %5689 = vrot.lane.b32.xlu0 %v5687, 32
      %v5690 = vpop.permute.xlu0 %5689
      %v5692 = vadd.f32 %v5682, %v5690
      %v5693 = vtanh.pop %v5681
      %5695 = vrot.lane.b32.xlu0 %v5693, 64
      %v5696 = vpop.permute.xlu0 %5695
      %v5698 = vmul.f32 %v5649, %v5696
      %v5699 = vtanh.pop %v5692
      %5701 = vrot.lane.b32.xlu0 %v5699, 64
      %v5702 = vpop.permute.xlu0 %5701
      %v5704 = vmul.f32 %v5669, %v5702
      %5706 = vrot.lane.b32.xlu0 %v5698, 32
      %v5707 = vpop.permute.xlu0 %5706
      %5709 = vst.msk [vmem:[#allocation4] sm:$0x1] %vm4424, %v5707
      %5711 = vrot.lane.b32.xlu0 %v5704, 32
      %v5712 = vpop.permute.xlu0 %5711
      %5714 = vst.msk [vmem:[#allocation5] sm:$0x80] %vm4430, %v5712
      %v5715 = vsel %vm4297, %v5707, 0
      %5717 = vmatpush.msra.mxu0 0.0
      %5718 = vmatpush.msra.mxu0 0.0
      %5719 = vmatpush.msra.mxu0 0.0
      %5720 = vmatpush.msra.mxu0 0.0
      %5721 = vmatpush.msra.mxu0 0.0
      %5722 = vmatpush.msra.mxu0 0.0
      %5723 = vmatpush.msra.mxu0 0.0
      %5724 = vmatpush.msra.mxu0 0.0
      %5725 = vmatpush.msra.mxu0 0.0
      %5726 = vmatpush.msra.mxu0 0.0
      %5727 = vmatpush.msra.mxu0 0.0
      %5728 = vmatpush.msra.mxu0 0.0
      %5729 = vmatpush.msra.mxu0 %v5581
      %5730 = vmatpush.msra.mxu0 %v5580
      %5731 = vmatpush.msra.mxu0 %v5579
      %5732 = vmatpush.msra.mxu0 %v5578
      %5733 = vmatmul.f32.gmra.mxu0 %v5715
      %v5734 = vpop.f32.mrf.mxu0
      %v5735 = vadd.f32 0.0, %v5734
      %5736 = vdwg.mxu0
      %v5738 = vrot.slane %v5735, 7
      %v5740 = vadd.f32 %v5526, %v5738
      %v5741 = vrot.slane %v5704, 7
      %5742 = vrot.lane.b32.xlu0 %v5741, 32
      %v5743 = vpop.permute.xlu0 %5742
      %v5744 = vsel %vm4297, %v5743, 0
      %5746 = vmatpush.msra.mxu0 0.0
      %5747 = vmatpush.msra.mxu0 0.0
      %5748 = vmatpush.msra.mxu0 0.0
      %5749 = vmatpush.msra.mxu0 0.0
      %5750 = vmatpush.msra.mxu0 0.0
      %5751 = vmatpush.msra.mxu0 0.0
      %5752 = vmatpush.msra.mxu0 0.0
      %5753 = vmatpush.msra.mxu0 0.0
      %5754 = vmatpush.msra.mxu0 0.0
      %5755 = vmatpush.msra.mxu0 0.0
      %5756 = vmatpush.msra.mxu0 0.0
      %5757 = vmatpush.msra.mxu0 0.0
      %5758 = vmatpush.msra.mxu0 %v5585
      %5759 = vmatpush.msra.mxu0 %v5584
      %5760 = vmatpush.msra.mxu0 %v5583
      %5761 = vmatpush.msra.mxu0 %v5582
      %5762 = vmatmul.f32.gmra.mxu0 %v5744
      %v5763 = vpop.f32.mrf.mxu0
      %v5764 = vadd.f32 0.0, %v5763
      %5765 = vdwg.mxu0
      %v5767 = vrot.slane %v5764, 2
      %v5769 = vadd.f32 %v5577, %v5767
      %v5770 = vxor.u32 %v5740, 2147483648
      %v5771 = vmul.f32 %v5770, 1.442695
      %v5772 = vpow.pop %v5771
      %v5773 = vadd.f32 %v5772, 1.0
      %v5774 = vrcp.pop %v5773
      %v5775 = vmul.f32 %v5773, %v5774
      %v5776 = vsub.f32 1.0, %v5775
      %v5777 = vmul.f32 %v5774, %v5776
      %v5778 = vadd.f32 %v5774, %v5777
      %vm5779 = vweird.f32 %v5773
      %vm5780 = vweird.f32 %v5774
      %vm5781 = vmor %vm5779, %vm5780
      %v5782 = vsel %vm5781, %v5774, %v5778
      %v5783 = vand.u32 2147483647, %v5773
      %vm5784 = vcmp.eq.f32.partialorder %v5783, 8.507059e+37
      %v5785 = vand.u32 %v5773, 2147483648
      %v5786 = vor.u32 1.1754944e-38, %v5785
      %v5787 = vsel %vm5784, %v5786, %v5782
      %v5788 = vmul.f32 1.0, %v5787
      %v5789 = vtanh.pop %v5740
      %v5790 = vxor.u32 %v5769, 2147483648
      %v5791 = vmul.f32 %v5790, 1.442695
      %v5792 = vpow.pop %v5791
      %v5793 = vadd.f32 %v5792, 1.0
      %v5794 = vrcp.pop %v5793
      %v5795 = vmul.f32 %v5793, %v5794
      %v5796 = vsub.f32 1.0, %v5795
      %v5797 = vmul.f32 %v5794, %v5796
      %v5798 = vadd.f32 %v5794, %v5797
      %vm5799 = vweird.f32 %v5793
      %vm5800 = vweird.f32 %v5794
      %vm5801 = vmor %vm5799, %vm5800
      %v5802 = vsel %vm5801, %v5794, %v5798
      %v5803 = vand.u32 2147483647, %v5793
      %vm5804 = vcmp.eq.f32.partialorder %v5803, 8.507059e+37
      %v5805 = vand.u32 %v5793, 2147483648
      %v5806 = vor.u32 1.1754944e-38, %v5805
      %v5807 = vsel %vm5804, %v5806, %v5802
      %v5808 = vmul.f32 1.0, %v5807
      %v5809 = vtanh.pop %v5769
      %v5811 = vrot.slane %v5681, 7
      %v5813 = vmul.f32 %v5788, %v5811
      %5815 = vrot.lane.b32.xlu0 %v5789, 64
      %v5816 = vpop.permute.xlu0 %5815
      %v5818 = vmul.f32 %v5788, %v5816
      %5820 = vrot.lane.b32.xlu0 %v5818, 32
      %v5821 = vpop.permute.xlu0 %5820
      %v5823 = vadd.f32 %v5813, %v5821
      %v5825 = vrot.slane %v5692, 1
      %v5827 = vmul.f32 %v5808, %v5825
      %5829 = vrot.lane.b32.xlu0 %v5809, 64
      %v5830 = vpop.permute.xlu0 %5829
      %v5832 = vmul.f32 %v5808, %v5830
      %5834 = vrot.lane.b32.xlu0 %v5832, 32
      %v5835 = vpop.permute.xlu0 %5834
      %v5837 = vadd.f32 %v5827, %v5835
      %v5838 = vtanh.pop %v5823
      %5840 = vrot.lane.b32.xlu0 %v5838, 64
      %v5841 = vpop.permute.xlu0 %5840
      %v5843 = vmul.f32 %v5788, %v5841
      %v5844 = vtanh.pop %v5837
      %5846 = vrot.lane.b32.xlu0 %v5844, 64
      %v5847 = vpop.permute.xlu0 %5846
      %v5849 = vmul.f32 %v5808, %v5847
      %5851 = vrot.lane.b32.xlu0 %v5843, 32
      %v5852 = vpop.permute.xlu0 %5851
      %5854 = vst.msk [vmem:[#allocation4] sm:$0x2] %vm4571, %v5852
      %5856 = vrot.lane.b32.xlu0 %v5849, 32
      %v5857 = vpop.permute.xlu0 %5856
      %5859 = vst.msk [vmem:[#allocation5] sm:$0x40] %vm4577, %v5857
      %v5860 = vrot.slane %v5843, 1
      %5861 = vrot.lane.b32.xlu0 %v5860, 32
      %v5862 = vpop.permute.xlu0 %5861
      %v5863 = vsel %vm4297, %v5862, 0
      %5865 = vmatpush.msra.mxu0 0.0
      %5866 = vmatpush.msra.mxu0 0.0
      %5867 = vmatpush.msra.mxu0 0.0
      %5868 = vmatpush.msra.mxu0 0.0
      %5869 = vmatpush.msra.mxu0 0.0
      %5870 = vmatpush.msra.mxu0 0.0
      %5871 = vmatpush.msra.mxu0 0.0
      %5872 = vmatpush.msra.mxu0 0.0
      %5873 = vmatpush.msra.mxu0 0.0
      %5874 = vmatpush.msra.mxu0 0.0
      %5875 = vmatpush.msra.mxu0 0.0
      %5876 = vmatpush.msra.mxu0 0.0
      %5877 = vmatpush.msra.mxu0 %v5581
      %5878 = vmatpush.msra.mxu0 %v5580
      %5879 = vmatpush.msra.mxu0 %v5579
      %5880 = vmatpush.msra.mxu0 %v5578
      %5881 = vmatmul.f32.gmra.mxu0 %v5863
      %v5882 = vpop.f32.mrf.mxu0
      %v5883 = vadd.f32 0.0, %v5882
      %5884 = vdwg.mxu0
      %v5886 = vrot.slane %v5883, 6
      %v5888 = vadd.f32 %v5526, %v5886
      %v5889 = vrot.slane %v5849, 6
      %5890 = vrot.lane.b32.xlu0 %v5889, 32
      %v5891 = vpop.permute.xlu0 %5890
      %v5892 = vsel %vm4297, %v5891, 0
      %5894 = vmatpush.msra.mxu0 0.0
      %5895 = vmatpush.msra.mxu0 0.0
      %5896 = vmatpush.msra.mxu0 0.0
      %5897 = vmatpush.msra.mxu0 0.0
      %5898 = vmatpush.msra.mxu0 0.0
      %5899 = vmatpush.msra.mxu0 0.0
      %5900 = vmatpush.msra.mxu0 0.0
      %5901 = vmatpush.msra.mxu0 0.0
      %5902 = vmatpush.msra.mxu0 0.0
      %5903 = vmatpush.msra.mxu0 0.0
      %5904 = vmatpush.msra.mxu0 0.0
      %5905 = vmatpush.msra.mxu0 0.0
      %5906 = vmatpush.msra.mxu0 %v5585
      %5907 = vmatpush.msra.mxu0 %v5584
      %5908 = vmatpush.msra.mxu0 %v5583
      %5909 = vmatpush.msra.mxu0 %v5582
      %5910 = vmatmul.f32.gmra.mxu0 %v5892
      %v5911 = vpop.f32.mrf.mxu0
      %v5912 = vadd.f32 0.0, %v5911
      %5913 = vdwg.mxu0
      %v5915 = vrot.slane %v5912, 3
      %v5917 = vadd.f32 %v5577, %v5915
      %v5918 = vxor.u32 %v5888, 2147483648
      %v5919 = vmul.f32 %v5918, 1.442695
      %v5920 = vpow.pop %v5919
      %v5921 = vadd.f32 %v5920, 1.0
      %v5922 = vrcp.pop %v5921
      %v5923 = vmul.f32 %v5921, %v5922
      %v5924 = vsub.f32 1.0, %v5923
      %v5925 = vmul.f32 %v5922, %v5924
      %v5926 = vadd.f32 %v5922, %v5925
      %vm5927 = vweird.f32 %v5921
      %vm5928 = vweird.f32 %v5922
      %vm5929 = vmor %vm5927, %vm5928
      %v5930 = vsel %vm5929, %v5922, %v5926
      %v5931 = vand.u32 2147483647, %v5921
      %vm5932 = vcmp.eq.f32.partialorder %v5931, 8.507059e+37
      %v5933 = vand.u32 %v5921, 2147483648
      %v5934 = vor.u32 1.1754944e-38, %v5933
      %v5935 = vsel %vm5932, %v5934, %v5930
      %v5936 = vmul.f32 1.0, %v5935
      %v5937 = vtanh.pop %v5888
      %v5938 = vxor.u32 %v5917, 2147483648
      %v5939 = vmul.f32 %v5938, 1.442695
      %v5940 = vpow.pop %v5939
      %v5941 = vadd.f32 %v5940, 1.0
      %v5942 = vrcp.pop %v5941
      %v5943 = vmul.f32 %v5941, %v5942
      %v5944 = vsub.f32 1.0, %v5943
      %v5945 = vmul.f32 %v5942, %v5944
      %v5946 = vadd.f32 %v5942, %v5945
      %vm5947 = vweird.f32 %v5941
      %vm5948 = vweird.f32 %v5942
      %vm5949 = vmor %vm5947, %vm5948
      %v5950 = vsel %vm5949, %v5942, %v5946
      %v5951 = vand.u32 2147483647, %v5941
      %vm5952 = vcmp.eq.f32.partialorder %v5951, 8.507059e+37
      %v5953 = vand.u32 %v5941, 2147483648
      %v5954 = vor.u32 1.1754944e-38, %v5953
      %v5955 = vsel %vm5952, %v5954, %v5950
      %v5956 = vmul.f32 1.0, %v5955
      %v5957 = vtanh.pop %v5917
      %v5959 = vrot.slane %v5823, 7
      %v5961 = vmul.f32 %v5936, %v5959
      %5963 = vrot.lane.b32.xlu0 %v5937, 64
      %v5964 = vpop.permute.xlu0 %5963
      %v5966 = vmul.f32 %v5936, %v5964
      %5968 = vrot.lane.b32.xlu0 %v5966, 32
      %v5969 = vpop.permute.xlu0 %5968
      %v5971 = vadd.f32 %v5961, %v5969
      %v5973 = vrot.slane %v5837, 1
      %v5975 = vmul.f32 %v5956, %v5973
      %5977 = vrot.lane.b32.xlu0 %v5957, 64
      %v5978 = vpop.permute.xlu0 %5977
      %v5980 = vmul.f32 %v5956, %v5978
      %5982 = vrot.lane.b32.xlu0 %v5980, 32
      %v5983 = vpop.permute.xlu0 %5982
      %v5985 = vadd.f32 %v5975, %v5983
      %v5986 = vtanh.pop %v5971
      %5988 = vrot.lane.b32.xlu0 %v5986, 64
      %v5989 = vpop.permute.xlu0 %5988
      %v5991 = vmul.f32 %v5936, %v5989
      %v5992 = vtanh.pop %v5985
      %5994 = vrot.lane.b32.xlu0 %v5992, 64
      %v5995 = vpop.permute.xlu0 %5994
      %v5997 = vmul.f32 %v5956, %v5995
      %5999 = vrot.lane.b32.xlu0 %v5991, 32
      %v6000 = vpop.permute.xlu0 %5999
      %6002 = vst.msk [vmem:[#allocation4] sm:$0x4] %vm4721, %v6000
      %6004 = vrot.lane.b32.xlu0 %v5997, 32
      %v6005 = vpop.permute.xlu0 %6004
      %6007 = vst.msk [vmem:[#allocation5] sm:$0x20] %vm4727, %v6005
      %v6008 = vrot.slane %v5991, 2
      %6009 = vrot.lane.b32.xlu0 %v6008, 32
      %v6010 = vpop.permute.xlu0 %6009
      %v6011 = vsel %vm4297, %v6010, 0
      %6013 = vmatpush.msra.mxu0 0.0
      %6014 = vmatpush.msra.mxu0 0.0
      %6015 = vmatpush.msra.mxu0 0.0
      %6016 = vmatpush.msra.mxu0 0.0
      %6017 = vmatpush.msra.mxu0 0.0
      %6018 = vmatpush.msra.mxu0 0.0
      %6019 = vmatpush.msra.mxu0 0.0
      %6020 = vmatpush.msra.mxu0 0.0
      %6021 = vmatpush.msra.mxu0 0.0
      %6022 = vmatpush.msra.mxu0 0.0
      %6023 = vmatpush.msra.mxu0 0.0
      %6024 = vmatpush.msra.mxu0 0.0
      %6025 = vmatpush.msra.mxu0 %v5581
      %6026 = vmatpush.msra.mxu0 %v5580
      %6027 = vmatpush.msra.mxu0 %v5579
      %6028 = vmatpush.msra.mxu0 %v5578
      %6029 = vmatmul.f32.gmra.mxu0 %v6011
      %v6030 = vpop.f32.mrf.mxu0
      %v6031 = vadd.f32 0.0, %v6030
      %6032 = vdwg.mxu0
      %v6034 = vrot.slane %v6031, 5
      %v6036 = vadd.f32 %v5526, %v6034
      %v6037 = vrot.slane %v5997, 5
      %6038 = vrot.lane.b32.xlu0 %v6037, 32
      %v6039 = vpop.permute.xlu0 %6038
      %v6040 = vsel %vm4297, %v6039, 0
      %6042 = vmatpush.msra.mxu0 0.0
      %6043 = vmatpush.msra.mxu0 0.0
      %6044 = vmatpush.msra.mxu0 0.0
      %6045 = vmatpush.msra.mxu0 0.0
      %6046 = vmatpush.msra.mxu0 0.0
      %6047 = vmatpush.msra.mxu0 0.0
      %6048 = vmatpush.msra.mxu0 0.0
      %6049 = vmatpush.msra.mxu0 0.0
      %6050 = vmatpush.msra.mxu0 0.0
      %6051 = vmatpush.msra.mxu0 0.0
      %6052 = vmatpush.msra.mxu0 0.0
      %6053 = vmatpush.msra.mxu0 0.0
      %6054 = vmatpush.msra.mxu0 %v5585
      %6055 = vmatpush.msra.mxu0 %v5584
      %6056 = vmatpush.msra.mxu0 %v5583
      %6057 = vmatpush.msra.mxu0 %v5582
      %6058 = vmatmul.f32.gmra.mxu0 %v6040
      %v6059 = vpop.f32.mrf.mxu0
      %v6060 = vadd.f32 0.0, %v6059
      %6061 = vdwg.mxu0
      %v6063 = vrot.slane %v6060, 4
      %v6065 = vadd.f32 %v5577, %v6063
      %v6066 = vxor.u32 %v6036, 2147483648
      %v6067 = vmul.f32 %v6066, 1.442695
      %v6068 = vpow.pop %v6067
      %v6069 = vadd.f32 %v6068, 1.0
      %v6070 = vrcp.pop %v6069
      %v6071 = vmul.f32 %v6069, %v6070
      %v6072 = vsub.f32 1.0, %v6071
      %v6073 = vmul.f32 %v6070, %v6072
      %v6074 = vadd.f32 %v6070, %v6073
      %vm6075 = vweird.f32 %v6069
      %vm6076 = vweird.f32 %v6070
      %vm6077 = vmor %vm6075, %vm6076
      %v6078 = vsel %vm6077, %v6070, %v6074
      %v6079 = vand.u32 2147483647, %v6069
      %vm6080 = vcmp.eq.f32.partialorder %v6079, 8.507059e+37
      %v6081 = vand.u32 %v6069, 2147483648
      %v6082 = vor.u32 1.1754944e-38, %v6081
      %v6083 = vsel %vm6080, %v6082, %v6078
      %v6084 = vmul.f32 1.0, %v6083
      %v6085 = vtanh.pop %v6036
      %v6086 = vxor.u32 %v6065, 2147483648
      %v6087 = vmul.f32 %v6086, 1.442695
      %v6088 = vpow.pop %v6087
      %v6089 = vadd.f32 %v6088, 1.0
      %v6090 = vrcp.pop %v6089
      %v6091 = vmul.f32 %v6089, %v6090
      %v6092 = vsub.f32 1.0, %v6091
      %v6093 = vmul.f32 %v6090, %v6092
      %v6094 = vadd.f32 %v6090, %v6093
      %vm6095 = vweird.f32 %v6089
      %vm6096 = vweird.f32 %v6090
      %vm6097 = vmor %vm6095, %vm6096
      %v6098 = vsel %vm6097, %v6090, %v6094
      %v6099 = vand.u32 2147483647, %v6089
      %vm6100 = vcmp.eq.f32.partialorder %v6099, 8.507059e+37
      %v6101 = vand.u32 %v6089, 2147483648
      %v6102 = vor.u32 1.1754944e-38, %v6101
      %v6103 = vsel %vm6100, %v6102, %v6098
      %v6104 = vmul.f32 1.0, %v6103
      %v6105 = vtanh.pop %v6065
      %v6107 = vrot.slane %v5971, 7
      %v6109 = vmul.f32 %v6084, %v6107
      %6111 = vrot.lane.b32.xlu0 %v6085, 64
      %v6112 = vpop.permute.xlu0 %6111
      %v6114 = vmul.f32 %v6084, %v6112
      %6116 = vrot.lane.b32.xlu0 %v6114, 32
      %v6117 = vpop.permute.xlu0 %6116
      %v6119 = vadd.f32 %v6109, %v6117
      %v6121 = vrot.slane %v5985, 1
      %v6123 = vmul.f32 %v6104, %v6121
      %6125 = vrot.lane.b32.xlu0 %v6105, 64
      %v6126 = vpop.permute.xlu0 %6125
      %v6128 = vmul.f32 %v6104, %v6126
      %6130 = vrot.lane.b32.xlu0 %v6128, 32
      %v6131 = vpop.permute.xlu0 %6130
      %v6133 = vadd.f32 %v6123, %v6131
      %v6134 = vtanh.pop %v6119
      %6136 = vrot.lane.b32.xlu0 %v6134, 64
      %v6137 = vpop.permute.xlu0 %6136
      %v6139 = vmul.f32 %v6084, %v6137
      %v6140 = vtanh.pop %v6133
      %6142 = vrot.lane.b32.xlu0 %v6140, 64
      %v6143 = vpop.permute.xlu0 %6142
      %v6145 = vmul.f32 %v6104, %v6143
      %6147 = vrot.lane.b32.xlu0 %v6139, 32
      %v6148 = vpop.permute.xlu0 %6147
      %6150 = vst.msk [vmem:[#allocation4] sm:$0x8] %vm4871, %v6148
      %6152 = vrot.lane.b32.xlu0 %v6145, 32
      %v6153 = vpop.permute.xlu0 %6152
      %6155 = vst.msk [vmem:[#allocation5] sm:$0x10] %vm4877, %v6153
      %v6156 = vrot.slane %v6139, 3
      %6157 = vrot.lane.b32.xlu0 %v6156, 32
      %v6158 = vpop.permute.xlu0 %6157
      %v6159 = vsel %vm4297, %v6158, 0
      %6161 = vmatpush.msra.mxu0 0.0
      %6162 = vmatpush.msra.mxu0 0.0
      %6163 = vmatpush.msra.mxu0 0.0
      %6164 = vmatpush.msra.mxu0 0.0
      %6165 = vmatpush.msra.mxu0 0.0
      %6166 = vmatpush.msra.mxu0 0.0
      %6167 = vmatpush.msra.mxu0 0.0
      %6168 = vmatpush.msra.mxu0 0.0
      %6169 = vmatpush.msra.mxu0 0.0
      %6170 = vmatpush.msra.mxu0 0.0
      %6171 = vmatpush.msra.mxu0 0.0
      %6172 = vmatpush.msra.mxu0 0.0
      %6173 = vmatpush.msra.mxu0 %v5581
      %6174 = vmatpush.msra.mxu0 %v5580
      %6175 = vmatpush.msra.mxu0 %v5579
      %6176 = vmatpush.msra.mxu0 %v5578
      %6177 = vmatmul.f32.gmra.mxu0 %v6159
      %v6178 = vpop.f32.mrf.mxu0
      %v6179 = vadd.f32 0.0, %v6178
      %6180 = vdwg.mxu0
      %v6182 = vrot.slane %v6179, 4
      %v6184 = vadd.f32 %v5526, %v6182
      %v6185 = vrot.slane %v6145, 4
      %6186 = vrot.lane.b32.xlu0 %v6185, 32
      %v6187 = vpop.permute.xlu0 %6186
      %v6188 = vsel %vm4297, %v6187, 0
      %6190 = vmatpush.msra.mxu0 0.0
      %6191 = vmatpush.msra.mxu0 0.0
      %6192 = vmatpush.msra.mxu0 0.0
      %6193 = vmatpush.msra.mxu0 0.0
      %6194 = vmatpush.msra.mxu0 0.0
      %6195 = vmatpush.msra.mxu0 0.0
      %6196 = vmatpush.msra.mxu0 0.0
      %6197 = vmatpush.msra.mxu0 0.0
      %6198 = vmatpush.msra.mxu0 0.0
      %6199 = vmatpush.msra.mxu0 0.0
      %6200 = vmatpush.msra.mxu0 0.0
      %6201 = vmatpush.msra.mxu0 0.0
      %6202 = vmatpush.msra.mxu0 %v5585
      %6203 = vmatpush.msra.mxu0 %v5584
      %6204 = vmatpush.msra.mxu0 %v5583
      %6205 = vmatpush.msra.mxu0 %v5582
      %6206 = vmatmul.f32.gmra.mxu0 %v6188
      %v6207 = vpop.f32.mrf.mxu0
      %v6208 = vadd.f32 0.0, %v6207
      %6209 = vdwg.mxu0
      %v6211 = vrot.slane %v6208, 5
      %v6213 = vadd.f32 %v5577, %v6211
      %v6214 = vxor.u32 %v6184, 2147483648
      %v6215 = vmul.f32 %v6214, 1.442695
      %v6216 = vpow.pop %v6215
      %v6217 = vadd.f32 %v6216, 1.0
      %v6218 = vrcp.pop %v6217
      %v6219 = vmul.f32 %v6217, %v6218
      %v6220 = vsub.f32 1.0, %v6219
      %v6221 = vmul.f32 %v6218, %v6220
      %v6222 = vadd.f32 %v6218, %v6221
      %vm6223 = vweird.f32 %v6217
      %vm6224 = vweird.f32 %v6218
      %vm6225 = vmor %vm6223, %vm6224
      %v6226 = vsel %vm6225, %v6218, %v6222
      %v6227 = vand.u32 2147483647, %v6217
      %vm6228 = vcmp.eq.f32.partialorder %v6227, 8.507059e+37
      %v6229 = vand.u32 %v6217, 2147483648
      %v6230 = vor.u32 1.1754944e-38, %v6229
      %v6231 = vsel %vm6228, %v6230, %v6226
      %v6232 = vmul.f32 1.0, %v6231
      %v6233 = vtanh.pop %v6184
      %v6234 = vxor.u32 %v6213, 2147483648
      %v6235 = vmul.f32 %v6234, 1.442695
      %v6236 = vpow.pop %v6235
      %v6237 = vadd.f32 %v6236, 1.0
      %v6238 = vrcp.pop %v6237
      %v6239 = vmul.f32 %v6237, %v6238
      %v6240 = vsub.f32 1.0, %v6239
      %v6241 = vmul.f32 %v6238, %v6240
      %v6242 = vadd.f32 %v6238, %v6241
      %vm6243 = vweird.f32 %v6237
      %vm6244 = vweird.f32 %v6238
      %vm6245 = vmor %vm6243, %vm6244
      %v6246 = vsel %vm6245, %v6238, %v6242
      %v6247 = vand.u32 2147483647, %v6237
      %vm6248 = vcmp.eq.f32.partialorder %v6247, 8.507059e+37
      %v6249 = vand.u32 %v6237, 2147483648
      %v6250 = vor.u32 1.1754944e-38, %v6249
      %v6251 = vsel %vm6248, %v6250, %v6246
      %v6252 = vmul.f32 1.0, %v6251
      %v6253 = vtanh.pop %v6213
      %v6255 = vrot.slane %v6119, 7
      %v6257 = vmul.f32 %v6232, %v6255
      %6259 = vrot.lane.b32.xlu0 %v6233, 64
      %v6260 = vpop.permute.xlu0 %6259
      %v6262 = vmul.f32 %v6232, %v6260
      %6264 = vrot.lane.b32.xlu0 %v6262, 32
      %v6265 = vpop.permute.xlu0 %6264
      %v6267 = vadd.f32 %v6257, %v6265
      %v6269 = vrot.slane %v6133, 1
      %v6271 = vmul.f32 %v6252, %v6269
      %6273 = vrot.lane.b32.xlu0 %v6253, 64
      %v6274 = vpop.permute.xlu0 %6273
      %v6276 = vmul.f32 %v6252, %v6274
      %6278 = vrot.lane.b32.xlu0 %v6276, 32
      %v6279 = vpop.permute.xlu0 %6278
      %v6281 = vadd.f32 %v6271, %v6279
      %v6282 = vtanh.pop %v6267
      %6284 = vrot.lane.b32.xlu0 %v6282, 64
      %v6285 = vpop.permute.xlu0 %6284
      %v6287 = vmul.f32 %v6232, %v6285
      %v6288 = vtanh.pop %v6281
      %6290 = vrot.lane.b32.xlu0 %v6288, 64
      %v6291 = vpop.permute.xlu0 %6290
      %v6293 = vmul.f32 %v6252, %v6291
      %6295 = vrot.lane.b32.xlu0 %v6287, 32
      %v6296 = vpop.permute.xlu0 %6295
      %6298 = vst.msk [vmem:[#allocation4] sm:$0x10] %vm4877, %v6296
      %6300 = vrot.lane.b32.xlu0 %v6293, 32
      %v6301 = vpop.permute.xlu0 %6300
      %6303 = vst.msk [vmem:[#allocation5] sm:$0x8] %vm4871, %v6301
      %v6304 = vrot.slane %v6287, 4
      %6305 = vrot.lane.b32.xlu0 %v6304, 32
      %v6306 = vpop.permute.xlu0 %6305
      %v6307 = vsel %vm4297, %v6306, 0
      %6309 = vmatpush.msra.mxu0 0.0
      %6310 = vmatpush.msra.mxu0 0.0
      %6311 = vmatpush.msra.mxu0 0.0
      %6312 = vmatpush.msra.mxu0 0.0
      %6313 = vmatpush.msra.mxu0 0.0
      %6314 = vmatpush.msra.mxu0 0.0
      %6315 = vmatpush.msra.mxu0 0.0
      %6316 = vmatpush.msra.mxu0 0.0
      %6317 = vmatpush.msra.mxu0 0.0
      %6318 = vmatpush.msra.mxu0 0.0
      %6319 = vmatpush.msra.mxu0 0.0
      %6320 = vmatpush.msra.mxu0 0.0
      %6321 = vmatpush.msra.mxu0 %v5581
      %6322 = vmatpush.msra.mxu0 %v5580
      %6323 = vmatpush.msra.mxu0 %v5579
      %6324 = vmatpush.msra.mxu0 %v5578
      %6325 = vmatmul.f32.gmra.mxu0 %v6307
      %v6326 = vpop.f32.mrf.mxu0
      %v6327 = vadd.f32 0.0, %v6326
      %6328 = vdwg.mxu0
      %v6330 = vrot.slane %v6327, 3
      %v6332 = vadd.f32 %v5526, %v6330
      %v6333 = vrot.slane %v6293, 3
      %6334 = vrot.lane.b32.xlu0 %v6333, 32
      %v6335 = vpop.permute.xlu0 %6334
      %v6336 = vsel %vm4297, %v6335, 0
      %6338 = vmatpush.msra.mxu0 0.0
      %6339 = vmatpush.msra.mxu0 0.0
      %6340 = vmatpush.msra.mxu0 0.0
      %6341 = vmatpush.msra.mxu0 0.0
      %6342 = vmatpush.msra.mxu0 0.0
      %6343 = vmatpush.msra.mxu0 0.0
      %6344 = vmatpush.msra.mxu0 0.0
      %6345 = vmatpush.msra.mxu0 0.0
      %6346 = vmatpush.msra.mxu0 0.0
      %6347 = vmatpush.msra.mxu0 0.0
      %6348 = vmatpush.msra.mxu0 0.0
      %6349 = vmatpush.msra.mxu0 0.0
      %6350 = vmatpush.msra.mxu0 %v5585
      %6351 = vmatpush.msra.mxu0 %v5584
      %6352 = vmatpush.msra.mxu0 %v5583
      %6353 = vmatpush.msra.mxu0 %v5582
      %6354 = vmatmul.f32.gmra.mxu0 %v6336
      %v6355 = vpop.f32.mrf.mxu0
      %v6356 = vadd.f32 0.0, %v6355
      %6357 = vdwg.mxu0
      %v6359 = vrot.slane %v6356, 6
      %v6361 = vadd.f32 %v5577, %v6359
      %v6362 = vxor.u32 %v6332, 2147483648
      %v6363 = vmul.f32 %v6362, 1.442695
      %v6364 = vpow.pop %v6363
      %v6365 = vadd.f32 %v6364, 1.0
      %v6366 = vrcp.pop %v6365
      %v6367 = vmul.f32 %v6365, %v6366
      %v6368 = vsub.f32 1.0, %v6367
      %v6369 = vmul.f32 %v6366, %v6368
      %v6370 = vadd.f32 %v6366, %v6369
      %vm6371 = vweird.f32 %v6365
      %vm6372 = vweird.f32 %v6366
      %vm6373 = vmor %vm6371, %vm6372
      %v6374 = vsel %vm6373, %v6366, %v6370
      %v6375 = vand.u32 2147483647, %v6365
      %vm6376 = vcmp.eq.f32.partialorder %v6375, 8.507059e+37
      %v6377 = vand.u32 %v6365, 2147483648
      %v6378 = vor.u32 1.1754944e-38, %v6377
      %v6379 = vsel %vm6376, %v6378, %v6374
      %v6380 = vmul.f32 1.0, %v6379
      %v6381 = vtanh.pop %v6332
      %v6382 = vxor.u32 %v6361, 2147483648
      %v6383 = vmul.f32 %v6382, 1.442695
      %v6384 = vpow.pop %v6383
      %v6385 = vadd.f32 %v6384, 1.0
      %v6386 = vrcp.pop %v6385
      %v6387 = vmul.f32 %v6385, %v6386
      %v6388 = vsub.f32 1.0, %v6387
      %v6389 = vmul.f32 %v6386, %v6388
      %v6390 = vadd.f32 %v6386, %v6389
      %vm6391 = vweird.f32 %v6385
      %vm6392 = vweird.f32 %v6386
      %vm6393 = vmor %vm6391, %vm6392
      %v6394 = vsel %vm6393, %v6386, %v6390
      %v6395 = vand.u32 2147483647, %v6385
      %vm6396 = vcmp.eq.f32.partialorder %v6395, 8.507059e+37
      %v6397 = vand.u32 %v6385, 2147483648
      %v6398 = vor.u32 1.1754944e-38, %v6397
      %v6399 = vsel %vm6396, %v6398, %v6394
      %v6400 = vmul.f32 1.0, %v6399
      %v6401 = vtanh.pop %v6361
      %v6403 = vrot.slane %v6267, 7
      %v6405 = vmul.f32 %v6380, %v6403
      %6407 = vrot.lane.b32.xlu0 %v6381, 64
      %v6408 = vpop.permute.xlu0 %6407
      %v6410 = vmul.f32 %v6380, %v6408
      %6412 = vrot.lane.b32.xlu0 %v6410, 32
      %v6413 = vpop.permute.xlu0 %6412
      %v6415 = vadd.f32 %v6405, %v6413
      %v6417 = vrot.slane %v6281, 1
      %v6419 = vmul.f32 %v6400, %v6417
      %6421 = vrot.lane.b32.xlu0 %v6401, 64
      %v6422 = vpop.permute.xlu0 %6421
      %v6424 = vmul.f32 %v6400, %v6422
      %6426 = vrot.lane.b32.xlu0 %v6424, 32
      %v6427 = vpop.permute.xlu0 %6426
      %v6429 = vadd.f32 %v6419, %v6427
      %v6430 = vtanh.pop %v6415
      %6432 = vrot.lane.b32.xlu0 %v6430, 64
      %v6433 = vpop.permute.xlu0 %6432
      %v6435 = vmul.f32 %v6380, %v6433
      %v6436 = vtanh.pop %v6429
      %6438 = vrot.lane.b32.xlu0 %v6436, 64
      %v6439 = vpop.permute.xlu0 %6438
      %v6441 = vmul.f32 %v6400, %v6439
      %6443 = vrot.lane.b32.xlu0 %v6435, 32
      %v6444 = vpop.permute.xlu0 %6443
      %6446 = vst.msk [vmem:[#allocation4] sm:$0x20] %vm4727, %v6444
      %6448 = vrot.lane.b32.xlu0 %v6441, 32
      %v6449 = vpop.permute.xlu0 %6448
      %6451 = vst.msk [vmem:[#allocation5] sm:$0x4] %vm4721, %v6449
      %v6452 = vrot.slane %v6435, 5
      %6453 = vrot.lane.b32.xlu0 %v6452, 32
      %v6454 = vpop.permute.xlu0 %6453
      %v6455 = vsel %vm4297, %v6454, 0
      %6457 = vmatpush.msra.mxu0 0.0
      %6458 = vmatpush.msra.mxu0 0.0
      %6459 = vmatpush.msra.mxu0 0.0
      %6460 = vmatpush.msra.mxu0 0.0
      %6461 = vmatpush.msra.mxu0 0.0
      %6462 = vmatpush.msra.mxu0 0.0
      %6463 = vmatpush.msra.mxu0 0.0
      %6464 = vmatpush.msra.mxu0 0.0
      %6465 = vmatpush.msra.mxu0 0.0
      %6466 = vmatpush.msra.mxu0 0.0
      %6467 = vmatpush.msra.mxu0 0.0
      %6468 = vmatpush.msra.mxu0 0.0
      %6469 = vmatpush.msra.mxu0 %v5581
      %6470 = vmatpush.msra.mxu0 %v5580
      %6471 = vmatpush.msra.mxu0 %v5579
      %6472 = vmatpush.msra.mxu0 %v5578
      %6473 = vmatmul.f32.gmra.mxu0 %v6455
      %v6474 = vpop.f32.mrf.mxu0
      %v6475 = vadd.f32 0.0, %v6474
      %6476 = vdwg.mxu0
      %v6478 = vrot.slane %v6475, 2
      %v6480 = vadd.f32 %v5526, %v6478
      %v6481 = vrot.slane %v6441, 2
      %6482 = vrot.lane.b32.xlu0 %v6481, 32
      %v6483 = vpop.permute.xlu0 %6482
      %v6484 = vsel %vm4297, %v6483, 0
      %6486 = vmatpush.msra.mxu0 0.0
      %6487 = vmatpush.msra.mxu0 0.0
      %6488 = vmatpush.msra.mxu0 0.0
      %6489 = vmatpush.msra.mxu0 0.0
      %6490 = vmatpush.msra.mxu0 0.0
      %6491 = vmatpush.msra.mxu0 0.0
      %6492 = vmatpush.msra.mxu0 0.0
      %6493 = vmatpush.msra.mxu0 0.0
      %6494 = vmatpush.msra.mxu0 0.0
      %6495 = vmatpush.msra.mxu0 0.0
      %6496 = vmatpush.msra.mxu0 0.0
      %6497 = vmatpush.msra.mxu0 0.0
      %6498 = vmatpush.msra.mxu0 %v5585
      %6499 = vmatpush.msra.mxu0 %v5584
      %6500 = vmatpush.msra.mxu0 %v5583
      %6501 = vmatpush.msra.mxu0 %v5582
      %6502 = vmatmul.f32.gmra.mxu0 %v6484
      %v6503 = vpop.f32.mrf.mxu0
      %v6504 = vadd.f32 0.0, %v6503
      %6505 = vdwg.mxu0
      %v6507 = vrot.slane %v6504, 7
      %v6509 = vadd.f32 %v5577, %v6507
      %v6510 = vxor.u32 %v6480, 2147483648
      %v6511 = vmul.f32 %v6510, 1.442695
      %v6512 = vpow.pop %v6511
      %v6513 = vadd.f32 %v6512, 1.0
      %v6514 = vrcp.pop %v6513
      %v6515 = vmul.f32 %v6513, %v6514
      %v6516 = vsub.f32 1.0, %v6515
      %v6517 = vmul.f32 %v6514, %v6516
      %v6518 = vadd.f32 %v6514, %v6517
      %vm6519 = vweird.f32 %v6513
      %vm6520 = vweird.f32 %v6514
      %vm6521 = vmor %vm6519, %vm6520
      %v6522 = vsel %vm6521, %v6514, %v6518
      %v6523 = vand.u32 2147483647, %v6513
      %vm6524 = vcmp.eq.f32.partialorder %v6523, 8.507059e+37
      %v6525 = vand.u32 %v6513, 2147483648
      %v6526 = vor.u32 1.1754944e-38, %v6525
      %v6527 = vsel %vm6524, %v6526, %v6522
      %v6528 = vmul.f32 1.0, %v6527
      %v6529 = vtanh.pop %v6480
      %v6530 = vxor.u32 %v6509, 2147483648
      %v6531 = vmul.f32 %v6530, 1.442695
      %v6532 = vpow.pop %v6531
      %v6533 = vadd.f32 %v6532, 1.0
      %v6534 = vrcp.pop %v6533
      %v6535 = vmul.f32 %v6533, %v6534
      %v6536 = vsub.f32 1.0, %v6535
      %v6537 = vmul.f32 %v6534, %v6536
      %v6538 = vadd.f32 %v6534, %v6537
      %vm6539 = vweird.f32 %v6533
      %vm6540 = vweird.f32 %v6534
      %vm6541 = vmor %vm6539, %vm6540
      %v6542 = vsel %vm6541, %v6534, %v6538
      %v6543 = vand.u32 2147483647, %v6533
      %vm6544 = vcmp.eq.f32.partialorder %v6543, 8.507059e+37
      %v6545 = vand.u32 %v6533, 2147483648
      %v6546 = vor.u32 1.1754944e-38, %v6545
      %v6547 = vsel %vm6544, %v6546, %v6542
      %v6548 = vmul.f32 1.0, %v6547
      %v6549 = vtanh.pop %v6509
      %v6551 = vrot.slane %v6415, 7
      %v6553 = vmul.f32 %v6528, %v6551
      %6555 = vrot.lane.b32.xlu0 %v6529, 64
      %v6556 = vpop.permute.xlu0 %6555
      %v6558 = vmul.f32 %v6528, %v6556
      %6560 = vrot.lane.b32.xlu0 %v6558, 32
      %v6561 = vpop.permute.xlu0 %6560
      %v6563 = vadd.f32 %v6553, %v6561
      %v6565 = vrot.slane %v6429, 1
      %v6567 = vmul.f32 %v6548, %v6565
      %6569 = vrot.lane.b32.xlu0 %v6549, 64
      %v6570 = vpop.permute.xlu0 %6569
      %v6572 = vmul.f32 %v6548, %v6570
      %6574 = vrot.lane.b32.xlu0 %v6572, 32
      %v6575 = vpop.permute.xlu0 %6574
      %v6577 = vadd.f32 %v6567, %v6575
      %v6578 = vtanh.pop %v6563
      %6580 = vrot.lane.b32.xlu0 %v6578, 64
      %v6581 = vpop.permute.xlu0 %6580
      %v6583 = vmul.f32 %v6528, %v6581
      %v6584 = vtanh.pop %v6577
      %6586 = vrot.lane.b32.xlu0 %v6584, 64
      %v6587 = vpop.permute.xlu0 %6586
      %v6589 = vmul.f32 %v6548, %v6587
      %6591 = vrot.lane.b32.xlu0 %v6583, 32
      %v6592 = vpop.permute.xlu0 %6591
      %6594 = vst.msk [vmem:[#allocation4] sm:$0x40] %vm4577, %v6592
      %6596 = vrot.lane.b32.xlu0 %v6589, 32
      %v6597 = vpop.permute.xlu0 %6596
      %6599 = vst.msk [vmem:[#allocation5] sm:$0x2] %vm4571, %v6597
      %v6600 = vrot.slane %v6583, 6
      %6601 = vrot.lane.b32.xlu0 %v6600, 32
      %v6602 = vpop.permute.xlu0 %6601
      %v6603 = vsel %vm4297, %v6602, 0
      %6605 = vmatpush.msra.mxu0 0.0
      %6606 = vmatpush.msra.mxu0 0.0
      %6607 = vmatpush.msra.mxu0 0.0
      %6608 = vmatpush.msra.mxu0 0.0
      %6609 = vmatpush.msra.mxu0 0.0
      %6610 = vmatpush.msra.mxu0 0.0
      %6611 = vmatpush.msra.mxu0 0.0
      %6612 = vmatpush.msra.mxu0 0.0
      %6613 = vmatpush.msra.mxu0 0.0
      %6614 = vmatpush.msra.mxu0 0.0
      %6615 = vmatpush.msra.mxu0 0.0
      %6616 = vmatpush.msra.mxu0 0.0
      %6617 = vmatpush.msra.mxu0 %v5581
      %6618 = vmatpush.msra.mxu0 %v5580
      %6619 = vmatpush.msra.mxu0 %v5579
      %6620 = vmatpush.msra.mxu0 %v5578
      %6621 = vmatmul.f32.gmra.mxu0 %v6603
      %v6622 = vpop.f32.mrf.mxu0
      %v6623 = vadd.f32 0.0, %v6622
      %6624 = vdwg.mxu0
      %v6626 = vrot.slane %v6623, 1
      %v6628 = vadd.f32 %v5526, %v6626
      %v6629 = vrot.slane %v6589, 1
      %6630 = vrot.lane.b32.xlu0 %v6629, 32
      %v6631 = vpop.permute.xlu0 %6630
      %v6632 = vsel %vm4297, %v6631, 0
      %6634 = vmatpush.msra.mxu0 0.0
      %6635 = vmatpush.msra.mxu0 0.0
      %6636 = vmatpush.msra.mxu0 0.0
      %6637 = vmatpush.msra.mxu0 0.0
      %6638 = vmatpush.msra.mxu0 0.0
      %6639 = vmatpush.msra.mxu0 0.0
      %6640 = vmatpush.msra.mxu0 0.0
      %6641 = vmatpush.msra.mxu0 0.0
      %6642 = vmatpush.msra.mxu0 0.0
      %6643 = vmatpush.msra.mxu0 0.0
      %6644 = vmatpush.msra.mxu0 0.0
      %6645 = vmatpush.msra.mxu0 0.0
      %6646 = vmatpush.msra.mxu0 %v5585
      %6647 = vmatpush.msra.mxu0 %v5584
      %6648 = vmatpush.msra.mxu0 %v5583
      %6649 = vmatpush.msra.mxu0 %v5582
      %6650 = vmatmul.f32.gmra.mxu0 %v6632
      %v6651 = vpop.f32.mrf.mxu0
      %v6652 = vadd.f32 0.0, %v6651
      %6653 = vdwg.mxu0
      %v6654 = vadd.f32 %v5577, %v6652
      %v6655 = vxor.u32 %v6628, 2147483648
      %v6656 = vmul.f32 %v6655, 1.442695
      %v6657 = vpow.pop %v6656
      %v6658 = vadd.f32 %v6657, 1.0
      %v6659 = vrcp.pop %v6658
      %v6660 = vmul.f32 %v6658, %v6659
      %v6661 = vsub.f32 1.0, %v6660
      %v6662 = vmul.f32 %v6659, %v6661
      %v6663 = vadd.f32 %v6659, %v6662
      %vm6664 = vweird.f32 %v6658
      %vm6665 = vweird.f32 %v6659
      %vm6666 = vmor %vm6664, %vm6665
      %v6667 = vsel %vm6666, %v6659, %v6663
      %v6668 = vand.u32 2147483647, %v6658
      %vm6669 = vcmp.eq.f32.partialorder %v6668, 8.507059e+37
      %v6670 = vand.u32 %v6658, 2147483648
      %v6671 = vor.u32 1.1754944e-38, %v6670
      %v6672 = vsel %vm6669, %v6671, %v6667
      %v6673 = vmul.f32 1.0, %v6672
      %v6674 = vtanh.pop %v6628
      %v6675 = vxor.u32 %v6654, 2147483648
      %v6676 = vmul.f32 %v6675, 1.442695
      %v6677 = vpow.pop %v6676
      %v6678 = vadd.f32 %v6677, 1.0
      %v6679 = vrcp.pop %v6678
      %v6680 = vmul.f32 %v6678, %v6679
      %v6681 = vsub.f32 1.0, %v6680
      %v6682 = vmul.f32 %v6679, %v6681
      %v6683 = vadd.f32 %v6679, %v6682
      %vm6684 = vweird.f32 %v6678
      %vm6685 = vweird.f32 %v6679
      %vm6686 = vmor %vm6684, %vm6685
      %v6687 = vsel %vm6686, %v6679, %v6683
      %v6688 = vand.u32 2147483647, %v6678
      %vm6689 = vcmp.eq.f32.partialorder %v6688, 8.507059e+37
      %v6690 = vand.u32 %v6678, 2147483648
      %v6691 = vor.u32 1.1754944e-38, %v6690
      %v6692 = vsel %vm6689, %v6691, %v6687
      %v6693 = vmul.f32 1.0, %v6692
      %v6694 = vtanh.pop %v6654
      %v6696 = vrot.slane %v6563, 7
      %v6698 = vmul.f32 %v6673, %v6696
      %6700 = vrot.lane.b32.xlu0 %v6674, 64
      %v6701 = vpop.permute.xlu0 %6700
      %v6703 = vmul.f32 %v6673, %v6701
      %6705 = vrot.lane.b32.xlu0 %v6703, 32
      %v6706 = vpop.permute.xlu0 %6705
      %v6708 = vadd.f32 %v6698, %v6706
      %v6710 = vrot.slane %v6577, 1
      %v6712 = vmul.f32 %v6693, %v6710
      %6714 = vrot.lane.b32.xlu0 %v6694, 64
      %v6715 = vpop.permute.xlu0 %6714
      %v6717 = vmul.f32 %v6693, %v6715
      %6719 = vrot.lane.b32.xlu0 %v6717, 32
      %v6720 = vpop.permute.xlu0 %6719
      %v6722 = vadd.f32 %v6712, %v6720
      %v6723 = vtanh.pop %v6708
      %6725 = vrot.lane.b32.xlu0 %v6723, 64
      %v6726 = vpop.permute.xlu0 %6725
      %v6728 = vmul.f32 %v6673, %v6726
      %v6729 = vtanh.pop %v6722
      %6731 = vrot.lane.b32.xlu0 %v6729, 64
      %v6732 = vpop.permute.xlu0 %6731
      %v6734 = vmul.f32 %v6693, %v6732
      %6736 = vrot.lane.b32.xlu0 %v6728, 32
      %v6737 = vpop.permute.xlu0 %6736
      %6739 = vst.msk [vmem:[#allocation4] sm:$0x80] %vm4430, %v6737
      %6741 = vrot.lane.b32.xlu0 %v6734, 32
      %v6742 = vpop.permute.xlu0 %6741
      %6744 = vst.msk [vmem:[#allocation5] sm:$0x1] %vm4424, %v6742
      %v6745 = vld [vmem:[%s3 + $0x150] sm:$0xff]
      %v6746 = vld [vmem:[%s3 + $0x158] sm:$0xff]
      %v6747 = vld [vmem:[%s3 + $0x160] sm:$0xff]
      %v6748 = vld [vmem:[%s3 + $0x168] sm:$0xff]
      %v6749 = vld [vmem:[%s3 + $0x170] sm:$0xff]
      %v6750 = vld [vmem:[%s3 + $0x178] sm:$0xff]
      %v6751 = vld [vmem:[%s3 + $0x180] sm:$0xff]
      %v6752 = vld [vmem:[%s3 + $0x188] sm:$0xff]
      %v6753 = vld [vmem:[%s2 + $0x1c] sm:$0x1]
      %v6754 = vld [vmem:[#allocation4] sm:$0xff]
      %v6755 = vld [vmem:[#allocation5] sm:$0xff]
      %v6757 = vsel %vm4297, %v6755, 0
      %6759 = vmatpush.msra.mxu0 0.0
      %6760 = vmatpush.msra.mxu0 0.0
      %6761 = vmatpush.msra.mxu0 0.0
      %6762 = vmatpush.msra.mxu0 0.0
      %6763 = vmatpush.msra.mxu0 0.0
      %6764 = vmatpush.msra.mxu0 0.0
      %6765 = vmatpush.msra.mxu0 0.0
      %6766 = vmatpush.msra.mxu0 0.0
      %6767 = vmatpush.msra.mxu0 0.0
      %6768 = vmatpush.msra.mxu0 0.0
      %6769 = vmatpush.msra.mxu0 0.0
      %6770 = vmatpush.msra.mxu0 0.0
      %6771 = vmatpush.msra.mxu0 %v6752
      %6772 = vmatpush.msra.mxu0 %v6751
      %6773 = vmatpush.msra.mxu0 %v6750
      %6774 = vmatpush.msra.mxu0 %v6749
      %6775 = vmatmul.f32.gmra.mxu0 %v6757
      %v6776 = vpop.f32.mrf.mxu0
      %v6777 = vadd.f32 0.0, %v6776
      %6778 = vdwg.mxu0
      %v6780 = vsel %vm4297, %v6754, 0
      %6782 = vmatpush.msra.mxu0 0.0
      %6783 = vmatpush.msra.mxu0 0.0
      %6784 = vmatpush.msra.mxu0 0.0
      %6785 = vmatpush.msra.mxu0 0.0
      %6786 = vmatpush.msra.mxu0 0.0
      %6787 = vmatpush.msra.mxu0 0.0
      %6788 = vmatpush.msra.mxu0 0.0
      %6789 = vmatpush.msra.mxu0 0.0
      %6790 = vmatpush.msra.mxu0 0.0
      %6791 = vmatpush.msra.mxu0 0.0
      %6792 = vmatpush.msra.mxu0 0.0
      %6793 = vmatpush.msra.mxu0 0.0
      %6794 = vmatpush.msra.mxu0 %v6748
      %6795 = vmatpush.msra.mxu0 %v6747
      %6796 = vmatpush.msra.mxu0 %v6746
      %6797 = vmatpush.msra.mxu0 %v6745
      %6798 = vmatmul.f32.gmra.mxu0 %v6780
      %v6799 = vpop.f32.mrf.mxu0
      %v6800 = vadd.f32 %v6777, %v6799
      %6801 = vdwg.mxu0
      %v6802 = vperm.slane %v6753, 0
      %v6803 = vadd.f32 %v6800, %v6802
      %6804 = vst [vmem:[%s200] sm:$0xff] %v6803
      %p6805 = scmp.lt.s32.totalorder %s15, 1
      %s6806 = scalar_select %p6805, %s15, 1
      %s6807 = smul.addr %s6806, 8
      %s6808 = scalar_lea.vmem %s4, %s6807
      // Predicated region
      $region37: #{_lambda_.1} parent=35 // pred_check
        %p6809 = pneg %p122
      $region38: #{_lambda_.1} parent=35 // pred_check_branch
        %6811 = sbr.rel (%p6809) target = $region40
      $region39: #{_lambda_.1} parent=35 // pred_region
        _
      $region40: #{_lambda_.1} parent=35 // pred_fallthru
        _
    $region36: #{_lambda_.1} parent=5 // pred_fallthru
      _
    %p6812 = scmp.le.s32.totalorder 2, %s10
    // Predicated region
    $region41: #{_lambda_.1} parent=5 // pred_check
      %p6813 = pneg %p6812
    $region42: #{_lambda_.1} parent=5 // pred_check_branch
      %6815 = sbr.rel (%p6813) target = $region44
    $region43: #{_lambda_.1} parent=5 // pred_region
      %s6816 = ssub.s32 %s10, 2
      // Predicated region
      $region45: #{_lambda_.1} parent=43 // pred_check
        %p6817 = pneg %p128
      $region46: #{_lambda_.1} parent=43 // pred_check_branch
        %6819 = sbr.rel (%p6817) target = $region48
      $region47: #{_lambda_.1} parent=43 // pred_region
        %p6820 = scmp.lt.s32.totalorder %s16, 1
        %s6821 = scalar_select %p6820, %s16, 1
        %s6822 = smul.addr %s6821, 8
        %s6823 = scalar_lea.vmem %s4, %s6822
      $region48: #{_lambda_.1} parent=43 // pred_fallthru
        _
    $region44: #{_lambda_.1} parent=5 // pred_fallthru
      _
  $region6: #{_lambda_.1} parent=0 // loop_footer
    %s14 = sadd.s32 1, %s10
  $region7: #{_lambda_.1} parent=0 // loop_footer_branch
    %9 = sbr.rel target = $region3
  $region8: #{_lambda_.1} parent=0 // loop_exit
    _

</llo_original>
